<compile_context>
chip_gen: v7x
topology: tpu7x:2x2x1
jax: 0.10.0
libtpu: 0.0.40
codegen_flags: <defaults>
</compile_context>

<pallas_src>
import functools

import numpy as np
import jax
import jax.numpy as jnp
from jax.experimental import pallas as pl
from jax.experimental.pallas import tpu as pltpu


# ----------------------------------------------------------------------------
# Fused LSTM1 -> GNN -> LSTM2 kernel (whole sequence, one grid step).
# Row layout everywhere: r = b * N + n  (node-major; ego node is n == 0).
# ----------------------------------------------------------------------------
def _fused_kernel(xw1_ref, mask_ref, egom_ref, b2rows_ref,
                  whh1s_ref, wih2s_ref, whh2s_ref, s_ref, st_ref,
                  gw1_ref, gb1_ref, gw2a_ref, gw2b_ref, gb2_ref,
                  h10_ref, c10_ref, h20_ref, c20_ref,
                  o2_ref, h1n_ref, c1n_ref, h2n_ref, c2n_ref,
                  *, unroll):
    T = xw1_ref.shape[0]
    H1 = h10_ref.shape[-1]
    H2 = h20_ref.shape[-1]

    # Hoisted loads (read once, reused every serialized step).
    ego_m = egom_ref[...]                    # [R, 1] 1.0 on ego rows
    oth_m = 1.0 - ego_m
    whh1_e = whh1s_ref[0]                    # [H1, 4H1]
    whh1_o = whh1s_ref[1]
    wih2_e = wih2s_ref[0]                    # [E, 4H2]
    wih2_o = wih2s_ref[1]
    whh2_e = whh2s_ref[0]                    # [H2, 4H2]
    whh2_o = whh2s_ref[1]
    b2rows = b2rows_ref[...]                 # [R, 4H2] per-row LSTM2 bias
    S = s_ref[...]                           # [B, R] graph membership
    St = st_ref[...]                         # [R, B]
    gw1 = gw1_ref[...]
    gb1 = gb1_ref[...]
    gw2a = gw2a_ref[...]
    gw2b = gw2b_ref[...]
    gb2 = gb2_ref[...]

    def lstm_cell(gates, c, h_dim):
        # gate packing: [ i | f | o | g ]
        ifo = jax.nn.sigmoid(gates[:, :3 * h_dim])
        g = jnp.tanh(gates[:, 3 * h_dim:4 * h_dim])
        i = ifo[:, 0:h_dim]
        f = ifo[:, h_dim:2 * h_dim]
        o = ifo[:, 2 * h_dim:3 * h_dim]
        c_new = f * c + i * g
        h_new = o * jnp.tanh(c_new)
        return h_new, c_new

    def step(t, carry):
        h1, c1, h2, c2 = carry

        # ---- LSTM layer 1 (input projection + bias precomputed in xw1)
        g1 = (xw1_ref[t]
              + jnp.dot(h1 * ego_m, whh1_e, preferred_element_type=jnp.float32)
              + jnp.dot(h1 * oth_m, whh1_o, preferred_element_type=jnp.float32))
        h1n, c1n = lstm_cell(g1, c1, H1)

        # ---- GNN on this timestep's o1 (= h1n), masked mean over valid nodes
        m = mask_ref[t]                                           # [R, 1]
        hg = jax.nn.relu(
            jnp.dot(h1n, gw1, preferred_element_type=jnp.float32) + gb1)   # [R, G]
        agg_sum = jnp.dot(S, hg * m, preferred_element_type=jnp.float32)   # [B, G]
        cnt = jnp.maximum(jnp.dot(S, m, preferred_element_type=jnp.float32), 1.0)
        agg_e = jnp.dot(agg_sum / cnt, gw2b,
                        preferred_element_type=jnp.float32)                # [B, E]
        e_t = jax.nn.relu(
            jnp.dot(hg, gw2a, preferred_element_type=jnp.float32)
            + jnp.dot(St, agg_e, preferred_element_type=jnp.float32)
            + gb2) * m                                                     # [R, E]; e[~valid]=0

        # ---- LSTM layer 2 (input projection folded into the loop)
        g2 = (jnp.dot(e_t * ego_m, wih2_e, preferred_element_type=jnp.float32)
              + jnp.dot(e_t * oth_m, wih2_o, preferred_element_type=jnp.float32)
              + b2rows
              + jnp.dot(h2 * ego_m, whh2_e, preferred_element_type=jnp.float32)
              + jnp.dot(h2 * oth_m, whh2_o, preferred_element_type=jnp.float32))
        h2n, c2n = lstm_cell(g2, c2, H2)

        o2_ref[t] = h2n * m                                # o2[~valid_mask] = 0
        return (h1n, c1n, h2n, c2n)

    h1f, c1f, h2f, c2f = jax.lax.fori_loop(
        0, T, step,
        (h10_ref[...], c10_ref[...], h20_ref[...], c20_ref[...]),
        unroll=unroll)

    h1n_ref[...] = h1f
    c1n_ref[...] = c1f
    h2n_ref[...] = h2f
    c2n_ref[...] = c2f


def _full_spec(shape):
    return pl.BlockSpec(shape, lambda i: (0,) * len(shape))


def _fused_forward(xw1, mask, ego_m, b2rows, whh1s, wih2s, whh2s, S, St,
                   gnn_params, h10, c10, h20, c20, *, unroll):
    T, R, _ = xw1.shape
    H1 = whh1s.shape[1]
    H2 = whh2s.shape[1]

    inputs = [xw1, mask, ego_m, b2rows, whh1s, wih2s, whh2s, S, St,
              gnn_params["w1"], gnn_params["b1"], gnn_params["w2a"],
              gnn_params["w2b"], gnn_params["b2"], h10, c10, h20, c20]
    inputs = [a.astype(jnp.float32) for a in inputs]

    out_shape = (jax.ShapeDtypeStruct((T, R, H2), jnp.float32),   # o2 (time-major)
                 jax.ShapeDtypeStruct((R, H1), jnp.float32),      # h1_n
                 jax.ShapeDtypeStruct((R, H1), jnp.float32),      # c1_n
                 jax.ShapeDtypeStruct((R, H2), jnp.float32),      # h2_n
                 jax.ShapeDtypeStruct((R, H2), jnp.float32))      # c2_n

    return pl.pallas_call(
        functools.partial(_fused_kernel, unroll=unroll),
        out_shape=out_shape,
        grid_spec=pltpu.PrefetchScalarGridSpec(
            num_scalar_prefetch=0,
            grid=(1,),
            in_specs=[_full_spec(a.shape) for a in inputs],
            out_specs=[_full_spec(s.shape) for s in out_shape]),
        compiler_params=pltpu.CompilerParams(
            dimension_semantics=("arbitrary",)),
    )(*inputs)


# ----------------------------------------------------------------------------
# Full GNNLSTM2Net forward
# ----------------------------------------------------------------------------
def gnn_lstm2_forward(params, obs_sequence, action_sequence, latent, node_num):
    B, T, _ = obs_sequence.shape
    N = node_num
    R = B * N
    obs = obs_sequence.reshape(B, T, N, -1).astype(jnp.float32)
    act = action_sequence.astype(jnp.float32)

    h1, c1, h2, c2 = latent
    if h1.ndim == 2:
        h1 = jnp.broadcast_to(h1[None], (B,) + h1.shape)
        c1 = jnp.broadcast_to(c1[None], (B,) + c1.shape)
        h2 = jnp.broadcast_to(h2[None], (B,) + h2.shape)
        c2 = jnp.broadcast_to(c2[None], (B,) + c2.shape)

    valid_mask = jnp.sum(jnp.abs(obs), axis=-1) != 0              # [B, T, N]
    mask_f = valid_mask.astype(jnp.float32)
    mask_trn = jnp.transpose(mask_f, (1, 0, 2)).reshape(T, R, 1)  # [T, R, 1]

    p1e, p1o = params["lstm1_ego"], params["lstm1_other"]
    p2e, p2o = params["lstm2_ego"], params["lstm2_other"]

    # LSTM1 input projection hoisted out of the recurrence (time-major,
    # node-major rows), produced with two einsums + one concat only.
    x_ego = jnp.concatenate([obs[:, :, 0, :], act], axis=-1)
    xw1_ego = jnp.einsum("btd,dh->tbh", x_ego, p1e["w_ih"]) + p1e["b"]        # [T,B,4H1]
    xw1_oth = jnp.einsum("btnd,dh->tbnh", obs[:, :, 1:, :], p1o["w_ih"]) + p1o["b"]
    xw1 = jnp.concatenate([xw1_ego[:, :, None, :], xw1_oth], axis=2).reshape(T, R, -1)

    # Per-row stream selection masks and LSTM2 per-row bias.
    ego_m = (jnp.arange(R) % N == 0).astype(jnp.float32)[:, None]             # [R, 1]
    b2rows = ego_m * p2e["b"] + (1.0 - ego_m) * p2o["b"]                      # [R, 4H2]

    # Stream-stacked weights (indexed inside the kernel).
    whh1s = jnp.stack([p1e["w_hh"], p1o["w_hh"]], axis=0)                     # [2, H1, 4H1]
    wih2s = jnp.stack([p2e["w_ih"], p2o["w_ih"]], axis=0)                     # [2, E, 4H2]
    whh2s = jnp.stack([p2e["w_hh"], p2o["w_hh"]], axis=0)                     # [2, H2, 4H2]

    # Graph-membership matrices for the per-graph (= batch element) masked mean.
    S_np = np.kron(np.eye(B, dtype=np.float32), np.ones((1, N), np.float32))
    S = jnp.asarray(S_np)                                                     # [B, R]
    St = jnp.asarray(S_np.T)                                                  # [R, B]

    H1 = p1e["w_hh"].shape[0]
    H2 = p2e["w_hh"].shape[0]
    h10 = h1.astype(jnp.float32).reshape(R, H1)
    c10 = c1.astype(jnp.float32).reshape(R, H1)
    h20 = h2.astype(jnp.float32).reshape(R, H2)
    c20 = c2.astype(jnp.float32).reshape(R, H2)

    unroll = True if T <= 8 else 8          # cap unroll for long sequences
    o2_t, h1f, c1f, h2f, c2f = _fused_forward(
        xw1, mask_trn, ego_m, b2rows, whh1s, wih2s, whh2s, S, St,
        params["gnn"], h10, c10, h20, c20, unroll=unroll)

    o2 = jnp.transpose(o2_t.reshape(T, B, N, H2), (1, 0, 2, 3))   # [B, T, N, H2]
    h1_n = h1f.reshape(B, N, H1)
    c1_n = c1f.reshape(B, N, H1)
    h2_n = h2f.reshape(B, N, H2)
    c2_n = c2f.reshape(B, N, H2)
    # TODO(synk): like the reference, h*_n/c*_n of invalid nodes still update
    # from zeroed inputs (only e and o2 are masked).
    return o2, (h1_n, c1_n, h2_n, c2_n)


# ----------------------------------------------------------------------------
# Deterministic parameter init (gate packing: [i | f | o | g])
# ----------------------------------------------------------------------------
def make_lstm_params(key, d_in, h):
    k1, k2, k3 = jax.random.split(key, 3)
    s = 1.0 / np.sqrt(h)
    return dict(
        w_ih=jax.random.uniform(k1, (d_in, 4 * h), minval=-s, maxval=s,
                                dtype=jnp.float32),
        w_hh=jax.random.uniform(k2, (h, 4 * h), minval=-s, maxval=s,
                                dtype=jnp.float32),
        b=jax.random.uniform(k3, (1, 4 * h), minval=-s, maxval=s,
                             dtype=jnp.float32))


def make_gnn_params(key, f_in, g, e_out):
    k1, k2, k3, k4, k5 = jax.random.split(key, 5)
    s1, s2 = 1.0 / np.sqrt(f_in), 1.0 / np.sqrt(2 * g)
    return dict(
        w1=jax.random.uniform(k1, (f_in, g), minval=-s1, maxval=s1, dtype=jnp.float32),
        b1=jax.random.uniform(k2, (1, g), minval=-s1, maxval=s1, dtype=jnp.float32),
        w2a=jax.random.uniform(k3, (g, e_out), minval=-s2, maxval=s2, dtype=jnp.float32),
        w2b=jax.random.uniform(k4, (g, e_out), minval=-s2, maxval=s2, dtype=jnp.float32),
        b2=jax.random.uniform(k5, (1, e_out), minval=-s2, maxval=s2, dtype=jnp.float32))


if __name__ == "__main__":
    B, T, NODE = 2, 8, 4
    OBS_D, ACT_D = 6, 3
    H1, G, E, H2 = 32, 32, 16, 32

    root = jax.random.PRNGKey(0)
    keys = jax.random.split(root, 12)

    params = dict(
        lstm1_ego=make_lstm_params(keys[0], OBS_D + ACT_D, H1),
        lstm1_other=make_lstm_params(keys[1], OBS_D, H1),
        gnn=make_gnn_params(keys[2], H1, G, E),
        lstm2_ego=make_lstm_params(keys[3], E, H2),
        lstm2_other=make_lstm_params(keys[4], E, H2))

    obs_sequence = jax.random.normal(keys[5], (B, T, NODE * OBS_D), dtype=jnp.float32)
    # zero out the last node for the second half of the sequence -> exercises valid_mask
    obs_sequence = obs_sequence.at[:, T // 2:, (NODE - 1) * OBS_D:].set(0.0)
    action_sequence = jax.random.normal(keys[6], (B, T, ACT_D), dtype=jnp.float32)

    h1 = jax.random.normal(keys[7], (NODE, H1), dtype=jnp.float32) * 0.1
    c1 = jax.random.normal(keys[8], (NODE, H1), dtype=jnp.float32) * 0.1
    h2 = jax.random.normal(keys[9], (NODE, H2), dtype=jnp.float32) * 0.1
    c2 = jax.random.normal(keys[10], (NODE, H2), dtype=jnp.float32) * 0.1

    fwd = jax.jit(functools.partial(gnn_lstm2_forward, node_num=NODE))
    o2, (h1_n, c1_n, h2_n, c2_n) = fwd(params, obs_sequence, action_sequence,
                                       (h1, c1, h2, c2))

    jax.block_until_ready((o2, h1_n, c1_n, h2_n, c2_n))
    assert o2.shape == (B, T, NODE, H2)
    assert h1_n.shape == (B, NODE, H1) and c1_n.shape == (B, NODE, H1)
    assert h2_n.shape == (B, NODE, H2) and c2_n.shape == (B, NODE, H2)
    assert bool(jnp.all(jnp.isfinite(o2)))
    print("KERNEL_OK")
</pallas_src>

<mosaic_0001>
module attributes {stable_mosaic.version = 11 : i64} {
  func.func @_fused_kernel(%arg0: i32, %arg1: memref<8x8x128xf32, #tpu.memory_space<vmem>>, %arg2: memref<8x8x1xf32, #tpu.memory_space<vmem>>, %arg3: memref<8x1xf32, #tpu.memory_space<vmem>>, %arg4: memref<8x128xf32, #tpu.memory_space<vmem>>, %arg5: memref<2x32x128xf32, #tpu.memory_space<vmem>>, %arg6: memref<2x16x128xf32, #tpu.memory_space<vmem>>, %arg7: memref<2x32x128xf32, #tpu.memory_space<vmem>>, %arg8: memref<2x8xf32, #tpu.memory_space<vmem>>, %arg9: memref<8x2xf32, #tpu.memory_space<vmem>>, %arg10: memref<32x32xf32, #tpu.memory_space<vmem>>, %arg11: memref<1x32xf32, #tpu.memory_space<vmem>>, %arg12: memref<32x16xf32, #tpu.memory_space<vmem>>, %arg13: memref<32x16xf32, #tpu.memory_space<vmem>>, %arg14: memref<1x16xf32, #tpu.memory_space<vmem>>, %arg15: memref<8x32xf32, #tpu.memory_space<vmem>>, %arg16: memref<8x32xf32, #tpu.memory_space<vmem>>, %arg17: memref<8x32xf32, #tpu.memory_space<vmem>>, %arg18: memref<8x32xf32, #tpu.memory_space<vmem>>, %arg19: memref<8x8x32xf32, #tpu.memory_space<vmem>>, %arg20: memref<8x32xf32, #tpu.memory_space<vmem>>, %arg21: memref<8x32xf32, #tpu.memory_space<vmem>>, %arg22: memref<8x32xf32, #tpu.memory_space<vmem>>, %arg23: memref<8x32xf32, #tpu.memory_space<vmem>>) attributes {dimension_semantics = [#tpu.dimension_semantics<arbitrary>], iteration_bounds = array<i64: 1>, scalar_prefetch = 0 : i64, scratch_operands = 0 : i64, tpu.core_type = #tpu.core_type<tc>, window_params = [{pipeline_mode = #tpu.pipeline_mode<synchronous>, transform_indices = @transform_0, window_bounds = array<i64: 8, 8, 128>}, {pipeline_mode = #tpu.pipeline_mode<synchronous>, transform_indices = @transform_1, window_bounds = array<i64: 8, 8, 1>}, {pipeline_mode = #tpu.pipeline_mode<synchronous>, transform_indices = @transform_2, window_bounds = array<i64: 8, 1>}, {pipeline_mode = #tpu.pipeline_mode<synchronous>, transform_indices = @transform_3, window_bounds = array<i64: 8, 128>}, {pipeline_mode = #tpu.pipeline_mode<synchronous>, transform_indices = @transform_4, window_bounds = array<i64: 2, 32, 128>}, {pipeline_mode = #tpu.pipeline_mode<synchronous>, transform_indices = @transform_5, window_bounds = array<i64: 2, 16, 128>}, {pipeline_mode = #tpu.pipeline_mode<synchronous>, transform_indices = @transform_6, window_bounds = array<i64: 2, 32, 128>}, {pipeline_mode = #tpu.pipeline_mode<synchronous>, transform_indices = @transform_7, window_bounds = array<i64: 2, 8>}, {pipeline_mode = #tpu.pipeline_mode<synchronous>, transform_indices = @transform_8, window_bounds = array<i64: 8, 2>}, {pipeline_mode = #tpu.pipeline_mode<synchronous>, transform_indices = @transform_9, window_bounds = array<i64: 32, 32>}, {pipeline_mode = #tpu.pipeline_mode<synchronous>, transform_indices = @transform_10, window_bounds = array<i64: 1, 32>}, {pipeline_mode = #tpu.pipeline_mode<synchronous>, transform_indices = @transform_11, window_bounds = array<i64: 32, 16>}, {pipeline_mode = #tpu.pipeline_mode<synchronous>, transform_indices = @transform_12, window_bounds = array<i64: 32, 16>}, {pipeline_mode = #tpu.pipeline_mode<synchronous>, transform_indices = @transform_13, window_bounds = array<i64: 1, 16>}, {pipeline_mode = #tpu.pipeline_mode<synchronous>, transform_indices = @transform_14, window_bounds = array<i64: 8, 32>}, {pipeline_mode = #tpu.pipeline_mode<synchronous>, transform_indices = @transform_15, window_bounds = array<i64: 8, 32>}, {pipeline_mode = #tpu.pipeline_mode<synchronous>, transform_indices = @transform_16, window_bounds = array<i64: 8, 32>}, {pipeline_mode = #tpu.pipeline_mode<synchronous>, transform_indices = @transform_17, window_bounds = array<i64: 8, 32>}, {pipeline_mode = #tpu.pipeline_mode<synchronous>, transform_indices = @transform_18, window_bounds = array<i64: 8, 8, 32>}, {pipeline_mode = #tpu.pipeline_mode<synchronous>, transform_indices = @transform_19, window_bounds = array<i64: 8, 32>}, {pipeline_mode = #tpu.pipeline_mode<synchronous>, transform_indices = @transform_20, window_bounds = array<i64: 8, 32>}, {pipeline_mode = #tpu.pipeline_mode<synchronous>, transform_indices = @transform_21, window_bounds = array<i64: 8, 32>}, {pipeline_mode = #tpu.pipeline_mode<synchronous>, transform_indices = @transform_22, window_bounds = array<i64: 8, 32>}]} {
    %c0 = arith.constant 0 : index
    %c0_0 = arith.constant 0 : index
    %0 = vector.load %arg3[%c0, %c0_0] : memref<8x1xf32, #tpu.memory_space<vmem>>, vector<8x1xf32>
    %cst = arith.constant 1.000000e+00 : f32
    %1 = vector.broadcast %cst : f32 to vector<8x1xf32>
    %2 = arith.subf %1, %0 : vector<8x1xf32>
    %c0_1 = arith.constant 0 : index
    %c0_2 = arith.constant 0 : index
    %c0_3 = arith.constant 0 : index
    %3 = vector.load %arg5[%c0_1, %c0_2, %c0_3] : memref<2x32x128xf32, #tpu.memory_space<vmem>>, vector<1x32x128xf32>
    %4 = vector.shape_cast %3 : vector<1x32x128xf32> to vector<32x128xf32>
    %c1 = arith.constant 1 : index
    %c0_4 = arith.constant 0 : index
    %c0_5 = arith.constant 0 : index
    %5 = vector.load %arg5[%c1, %c0_4, %c0_5] : memref<2x32x128xf32, #tpu.memory_space<vmem>>, vector<1x32x128xf32>
    %6 = vector.shape_cast %5 : vector<1x32x128xf32> to vector<32x128xf32>
    %c0_6 = arith.constant 0 : index
    %c0_7 = arith.constant 0 : index
    %c0_8 = arith.constant 0 : index
    %7 = vector.load %arg6[%c0_6, %c0_7, %c0_8] : memref<2x16x128xf32, #tpu.memory_space<vmem>>, vector<1x16x128xf32>
    %8 = vector.shape_cast %7 : vector<1x16x128xf32> to vector<16x128xf32>
    %c1_9 = arith.constant 1 : index
    %c0_10 = arith.constant 0 : index
    %c0_11 = arith.constant 0 : index
    %9 = vector.load %arg6[%c1_9, %c0_10, %c0_11] : memref<2x16x128xf32, #tpu.memory_space<vmem>>, vector<1x16x128xf32>
    %10 = vector.shape_cast %9 : vector<1x16x128xf32> to vector<16x128xf32>
    %c0_12 = arith.constant 0 : index
    %c0_13 = arith.constant 0 : index
    %c0_14 = arith.constant 0 : index
    %11 = vector.load %arg7[%c0_12, %c0_13, %c0_14] : memref<2x32x128xf32, #tpu.memory_space<vmem>>, vector<1x32x128xf32>
    %12 = vector.shape_cast %11 : vector<1x32x128xf32> to vector<32x128xf32>
    %c1_15 = arith.constant 1 : index
    %c0_16 = arith.constant 0 : index
    %c0_17 = arith.constant 0 : index
    %13 = vector.load %arg7[%c1_15, %c0_16, %c0_17] : memref<2x32x128xf32, #tpu.memory_space<vmem>>, vector<1x32x128xf32>
    %14 = vector.shape_cast %13 : vector<1x32x128xf32> to vector<32x128xf32>
    %c0_18 = arith.constant 0 : index
    %c0_19 = arith.constant 0 : index
    %15 = vector.load %arg4[%c0_18, %c0_19] : memref<8x128xf32, #tpu.memory_space<vmem>>, vector<8x128xf32>
    %c0_20 = arith.constant 0 : index
    %c0_21 = arith.constant 0 : index
    %16 = vector.load %arg8[%c0_20, %c0_21] : memref<2x8xf32, #tpu.memory_space<vmem>>, vector<2x8xf32>
    %c0_22 = arith.constant 0 : index
    %c0_23 = arith.constant 0 : index
    %17 = vector.load %arg9[%c0_22, %c0_23] : memref<8x2xf32, #tpu.memory_space<vmem>>, vector<8x2xf32>
    %c0_24 = arith.constant 0 : index
    %c0_25 = arith.constant 0 : index
    %18 = vector.load %arg10[%c0_24, %c0_25] : memref<32x32xf32, #tpu.memory_space<vmem>>, vector<32x32xf32>
    %c0_26 = arith.constant 0 : index
    %c0_27 = arith.constant 0 : index
    %19 = vector.load %arg11[%c0_26, %c0_27] : memref<1x32xf32, #tpu.memory_space<vmem>>, vector<1x32xf32>
    %c0_28 = arith.constant 0 : index
    %c0_29 = arith.constant 0 : index
    %20 = vector.load %arg12[%c0_28, %c0_29] : memref<32x16xf32, #tpu.memory_space<vmem>>, vector<32x16xf32>
    %c0_30 = arith.constant 0 : index
    %c0_31 = arith.constant 0 : index
    %21 = vector.load %arg13[%c0_30, %c0_31] : memref<32x16xf32, #tpu.memory_space<vmem>>, vector<32x16xf32>
    %c0_32 = arith.constant 0 : index
    %c0_33 = arith.constant 0 : index
    %22 = vector.load %arg14[%c0_32, %c0_33] : memref<1x16xf32, #tpu.memory_space<vmem>>, vector<1x16xf32>
    %c0_34 = arith.constant 0 : index
    %c0_35 = arith.constant 0 : index
    %23 = vector.load %arg15[%c0_34, %c0_35] : memref<8x32xf32, #tpu.memory_space<vmem>>, vector<8x32xf32>
    %c0_36 = arith.constant 0 : index
    %c0_37 = arith.constant 0 : index
    %24 = vector.load %arg16[%c0_36, %c0_37] : memref<8x32xf32, #tpu.memory_space<vmem>>, vector<8x32xf32>
    %c0_38 = arith.constant 0 : index
    %c0_39 = arith.constant 0 : index
    %25 = vector.load %arg17[%c0_38, %c0_39] : memref<8x32xf32, #tpu.memory_space<vmem>>, vector<8x32xf32>
    %c0_40 = arith.constant 0 : index
    %c0_41 = arith.constant 0 : index
    %26 = vector.load %arg18[%c0_40, %c0_41] : memref<8x32xf32, #tpu.memory_space<vmem>>, vector<8x32xf32>
    %c0_i32 = arith.constant 0 : i32
    %27 = arith.index_cast %c0_i32 : i32 to index
    %c0_42 = arith.constant 0 : index
    %c0_43 = arith.constant 0 : index
    %28 = vector.load %arg1[%27, %c0_42, %c0_43] : memref<8x8x128xf32, #tpu.memory_space<vmem>>, vector<1x8x128xf32>
    %29 = vector.shape_cast %28 : vector<1x8x128xf32> to vector<8x128xf32>
    %30 = vector.broadcast %0 : vector<8x1xf32> to vector<8x32xf32>
    %31 = arith.mulf %23, %30 : vector<8x32xf32>
    %cst_44 = arith.constant dense<0.000000e+00> : vector<8x128xf32>
    %32 = tpu.matmul %31, %4, %cst_44 {dimension_numbers = #tpu.dot_dimension_numbers<[1], [0], [0], [1], [0, 0, 1, 1], [], []>} : vector<8x32xf32>, vector<32x128xf32>, vector<8x128xf32> -> vector<8x128xf32>
    %33 = arith.addf %29, %32 : vector<8x128xf32>
    %34 = vector.broadcast %2 : vector<8x1xf32> to vector<8x32xf32>
    %35 = arith.mulf %23, %34 : vector<8x32xf32>
    %cst_45 = arith.constant dense<0.000000e+00> : vector<8x128xf32>
    %36 = tpu.matmul %35, %6, %cst_45 {dimension_numbers = #tpu.dot_dimension_numbers<[1], [0], [0], [1], [0, 0, 1, 1], [], []>} : vector<8x32xf32>, vector<32x128xf32>, vector<8x128xf32> -> vector<8x128xf32>
    %37 = arith.addf %33, %36 : vector<8x128xf32>
    %38 = vector.extract_strided_slice %37 {offsets = [0, 0], sizes = [8, 96], strides = [1, 1]} : vector<8x128xf32> to vector<8x96xf32>
    %39 = arith.negf %38 : vector<8x96xf32>
    %40 = math.exp %39 : vector<8x96xf32>
    %cst_46 = arith.constant 1.000000e+00 : f32
    %41 = vector.broadcast %cst_46 : f32 to vector<8x96xf32>
    %42 = arith.addf %41, %40 : vector<8x96xf32>
    %43 = arith.divf %41, %42 : vector<8x96xf32>
    %44 = vector.extract_strided_slice %37 {offsets = [0, 96], sizes = [8, 32], strides = [1, 1]} : vector<8x128xf32> to vector<8x32xf32>
    %45 = math.tanh %44 : vector<8x32xf32>
    %46 = vector.extract_strided_slice %43 {offsets = [0, 0], sizes = [8, 32], strides = [1, 1]} : vector<8x96xf32> to vector<8x32xf32>
    %47 = vector.extract_strided_slice %43 {offsets = [0, 32], sizes = [8, 32], strides = [1, 1]} : vector<8x96xf32> to vector<8x32xf32>
    %48 = vector.extract_strided_slice %43 {offsets = [0, 64], sizes = [8, 32], strides = [1, 1]} : vector<8x96xf32> to vector<8x32xf32>
    %49 = arith.mulf %47, %24 : vector<8x32xf32>
    %50 = arith.mulf %46, %45 : vector<8x32xf32>
    %51 = arith.addf %49, %50 : vector<8x32xf32>
    %52 = math.tanh %51 : vector<8x32xf32>
    %53 = arith.mulf %48, %52 : vector<8x32xf32>
    %54 = arith.index_cast %c0_i32 : i32 to index
    %c0_47 = arith.constant 0 : index
    %c0_48 = arith.constant 0 : index
    %55 = vector.load %arg2[%54, %c0_47, %c0_48] : memref<8x8x1xf32, #tpu.memory_space<vmem>>, vector<1x8x1xf32>
    %56 = vector.shape_cast %55 : vector<1x8x1xf32> to vector<8x1xf32>
    %cst_49 = arith.constant dense<0.000000e+00> : vector<8x32xf32>
    %57 = tpu.matmul %53, %18, %cst_49 {dimension_numbers = #tpu.dot_dimension_numbers<[1], [0], [0], [1], [0, 0, 1, 1], [], []>} : vector<8x32xf32>, vector<32x32xf32>, vector<8x32xf32> -> vector<8x32xf32>
    %58 = vector.broadcast %19 : vector<1x32xf32> to vector<8x32xf32>
    %59 = arith.addf %57, %58 : vector<8x32xf32>
    %cst_50 = arith.constant 0.000000e+00 : f32
    %60 = vector.broadcast %cst_50 : f32 to vector<8x32xf32>
    %61 = arith.maximumf %59, %60 : vector<8x32xf32>
    %62 = vector.broadcast %56 : vector<8x1xf32> to vector<8x32xf32>
    %63 = arith.mulf %61, %62 : vector<8x32xf32>
    %cst_51 = arith.constant dense<0.000000e+00> : vector<2x32xf32>
    %64 = tpu.matmul %16, %63, %cst_51 {dimension_numbers = #tpu.dot_dimension_numbers<[1], [0], [0], [1], [0, 0, 1, 1], [], []>} : vector<2x8xf32>, vector<8x32xf32>, vector<2x32xf32> -> vector<2x32xf32>
    %cst_52 = arith.constant dense<0.000000e+00> : vector<2x1xf32>
    %65 = tpu.matmul %16, %56, %cst_52 {dimension_numbers = #tpu.dot_dimension_numbers<[1], [0], [0], [1], [0, 0, 1, 1], [], []>} : vector<2x8xf32>, vector<8x1xf32>, vector<2x1xf32> -> vector<2x1xf32>
    %cst_53 = arith.constant 1.000000e+00 : f32
    %66 = vector.broadcast %cst_53 : f32 to vector<2x1xf32>
    %67 = arith.maximumf %65, %66 : vector<2x1xf32>
    %68 = vector.broadcast %67 : vector<2x1xf32> to vector<2x32xf32>
    %69 = arith.divf %64, %68 : vector<2x32xf32>
    %cst_54 = arith.constant dense<0.000000e+00> : vector<2x16xf32>
    %70 = tpu.matmul %69, %21, %cst_54 {dimension_numbers = #tpu.dot_dimension_numbers<[1], [0], [0], [1], [0, 0, 1, 1], [], []>} : vector<2x32xf32>, vector<32x16xf32>, vector<2x16xf32> -> vector<2x16xf32>
    %cst_55 = arith.constant dense<0.000000e+00> : vector<8x16xf32>
    %71 = tpu.matmul %61, %20, %cst_55 {dimension_numbers = #tpu.dot_dimension_numbers<[1], [0], [0], [1], [0, 0, 1, 1], [], []>} : vector<8x32xf32>, vector<32x16xf32>, vector<8x16xf32> -> vector<8x16xf32>
    %cst_56 = arith.constant dense<0.000000e+00> : vector<8x16xf32>
    %72 = tpu.matmul %17, %70, %cst_56 {dimension_numbers = #tpu.dot_dimension_numbers<[1], [0], [0], [1], [0, 0, 1, 1], [], []>} : vector<8x2xf32>, vector<2x16xf32>, vector<8x16xf32> -> vector<8x16xf32>
    %73 = arith.addf %71, %72 : vector<8x16xf32>
    %74 = vector.broadcast %22 : vector<1x16xf32> to vector<8x16xf32>
    %75 = arith.addf %73, %74 : vector<8x16xf32>
    %cst_57 = arith.constant 0.000000e+00 : f32
    %76 = vector.broadcast %cst_57 : f32 to vector<8x16xf32>
    %77 = arith.maximumf %75, %76 : vector<8x16xf32>
    %78 = vector.broadcast %56 : vector<8x1xf32> to vector<8x16xf32>
    %79 = arith.mulf %77, %78 : vector<8x16xf32>
    %80 = vector.broadcast %0 : vector<8x1xf32> to vector<8x16xf32>
    %81 = arith.mulf %79, %80 : vector<8x16xf32>
    %cst_58 = arith.constant dense<0.000000e+00> : vector<8x128xf32>
    %82 = tpu.matmul %81, %8, %cst_58 {dimension_numbers = #tpu.dot_dimension_numbers<[1], [0], [0], [1], [0, 0, 1, 1], [], []>} : vector<8x16xf32>, vector<16x128xf32>, vector<8x128xf32> -> vector<8x128xf32>
    %83 = vector.broadcast %2 : vector<8x1xf32> to vector<8x16xf32>
    %84 = arith.mulf %79, %83 : vector<8x16xf32>
    %cst_59 = arith.constant dense<0.000000e+00> : vector<8x128xf32>
    %85 = tpu.matmul %84, %10, %cst_59 {dimension_numbers = #tpu.dot_dimension_numbers<[1], [0], [0], [1], [0, 0, 1, 1], [], []>} : vector<8x16xf32>, vector<16x128xf32>, vector<8x128xf32> -> vector<8x128xf32>
    %86 = arith.addf %82, %85 : vector<8x128xf32>
    %87 = arith.addf %86, %15 : vector<8x128xf32>
    %88 = vector.broadcast %0 : vector<8x1xf32> to vector<8x32xf32>
    %89 = arith.mulf %25, %88 : vector<8x32xf32>
    %cst_60 = arith.constant dense<0.000000e+00> : vector<8x128xf32>
    %90 = tpu.matmul %89, %12, %cst_60 {dimension_numbers = #tpu.dot_dimension_numbers<[1], [0], [0], [1], [0, 0, 1, 1], [], []>} : vector<8x32xf32>, vector<32x128xf32>, vector<8x128xf32> -> vector<8x128xf32>
    %91 = arith.addf %87, %90 : vector<8x128xf32>
    %92 = vector.broadcast %2 : vector<8x1xf32> to vector<8x32xf32>
    %93 = arith.mulf %25, %92 : vector<8x32xf32>
    %cst_61 = arith.constant dense<0.000000e+00> : vector<8x128xf32>
    %94 = tpu.matmul %93, %14, %cst_61 {dimension_numbers = #tpu.dot_dimension_numbers<[1], [0], [0], [1], [0, 0, 1, 1], [], []>} : vector<8x32xf32>, vector<32x128xf32>, vector<8x128xf32> -> vector<8x128xf32>
    %95 = arith.addf %91, %94 : vector<8x128xf32>
    %96 = vector.extract_strided_slice %95 {offsets = [0, 0], sizes = [8, 96], strides = [1, 1]} : vector<8x128xf32> to vector<8x96xf32>
    %97 = arith.negf %96 : vector<8x96xf32>
    %98 = math.exp %97 : vector<8x96xf32>
    %cst_62 = arith.constant 1.000000e+00 : f32
    %99 = vector.broadcast %cst_62 : f32 to vector<8x96xf32>
    %100 = arith.addf %99, %98 : vector<8x96xf32>
    %101 = arith.divf %99, %100 : vector<8x96xf32>
    %102 = vector.extract_strided_slice %95 {offsets = [0, 96], sizes = [8, 32], strides = [1, 1]} : vector<8x128xf32> to vector<8x32xf32>
    %103 = math.tanh %102 : vector<8x32xf32>
    %104 = vector.extract_strided_slice %101 {offsets = [0, 0], sizes = [8, 32], strides = [1, 1]} : vector<8x96xf32> to vector<8x32xf32>
    %105 = vector.extract_strided_slice %101 {offsets = [0, 32], sizes = [8, 32], strides = [1, 1]} : vector<8x96xf32> to vector<8x32xf32>
    %106 = vector.extract_strided_slice %101 {offsets = [0, 64], sizes = [8, 32], strides = [1, 1]} : vector<8x96xf32> to vector<8x32xf32>
    %107 = arith.mulf %105, %26 : vector<8x32xf32>
    %108 = arith.mulf %104, %103 : vector<8x32xf32>
    %109 = arith.addf %107, %108 : vector<8x32xf32>
    %110 = math.tanh %109 : vector<8x32xf32>
    %111 = arith.mulf %106, %110 : vector<8x32xf32>
    %112 = vector.broadcast %56 : vector<8x1xf32> to vector<8x32xf32>
    %113 = arith.mulf %111, %112 : vector<8x32xf32>
    %114 = arith.index_cast %c0_i32 : i32 to index
    %c0_63 = arith.constant 0 : index
    %c0_64 = arith.constant 0 : index
    %115 = vector.load %arg19[%114, %c0_63, %c0_64] : memref<8x8x32xf32, #tpu.memory_space<vmem>>, vector<1x8x32xf32>
    %116 = vector.shape_cast %115 : vector<1x8x32xf32> to vector<8x32xf32>
    %117 = vector.shape_cast %113 : vector<8x32xf32> to vector<1x8x32xf32>
    tpu.vector_store %arg19[%114, %c0_63, %c0_64], %117 {strides = array<i32>} : memref<8x8x32xf32, #tpu.memory_space<vmem>>, vector<1x8x32xf32>,
    %c1_i32 = arith.constant 1 : i32
    %118 = arith.index_cast %c1_i32 : i32 to index
    %c0_65 = arith.constant 0 : index
    %c0_66 = arith.constant 0 : index
    %119 = vector.load %arg1[%118, %c0_65, %c0_66] : memref<8x8x128xf32, #tpu.memory_space<vmem>>, vector<1x8x128xf32>
    %120 = vector.shape_cast %119 : vector<1x8x128xf32> to vector<8x128xf32>
    %121 = vector.broadcast %0 : vector<8x1xf32> to vector<8x32xf32>
    %122 = arith.mulf %53, %121 : vector<8x32xf32>
    %cst_67 = arith.constant dense<0.000000e+00> : vector<8x128xf32>
    %123 = tpu.matmul %122, %4, %cst_67 {dimension_numbers = #tpu.dot_dimension_numbers<[1], [0], [0], [1], [0, 0, 1, 1], [], []>} : vector<8x32xf32>, vector<32x128xf32>, vector<8x128xf32> -> vector<8x128xf32>
    %124 = arith.addf %120, %123 : vector<8x128xf32>
    %125 = vector.broadcast %2 : vector<8x1xf32> to vector<8x32xf32>
    %126 = arith.mulf %53, %125 : vector<8x32xf32>
    %cst_68 = arith.constant dense<0.000000e+00> : vector<8x128xf32>
    %127 = tpu.matmul %126, %6, %cst_68 {dimension_numbers = #tpu.dot_dimension_numbers<[1], [0], [0], [1], [0, 0, 1, 1], [], []>} : vector<8x32xf32>, vector<32x128xf32>, vector<8x128xf32> -> vector<8x128xf32>
    %128 = arith.addf %124, %127 : vector<8x128xf32>
    %129 = vector.extract_strided_slice %128 {offsets = [0, 0], sizes = [8, 96], strides = [1, 1]} : vector<8x128xf32> to vector<8x96xf32>
    %130 = arith.negf %129 : vector<8x96xf32>
    %131 = math.exp %130 : vector<8x96xf32>
    %cst_69 = arith.constant 1.000000e+00 : f32
    %132 = vector.broadcast %cst_69 : f32 to vector<8x96xf32>
    %133 = arith.addf %132, %131 : vector<8x96xf32>
    %134 = arith.divf %132, %133 : vector<8x96xf32>
    %135 = vector.extract_strided_slice %128 {offsets = [0, 96], sizes = [8, 32], strides = [1, 1]} : vector<8x128xf32> to vector<8x32xf32>
    %136 = math.tanh %135 : vector<8x32xf32>
    %137 = vector.extract_strided_slice %134 {offsets = [0, 0], sizes = [8, 32], strides = [1, 1]} : vector<8x96xf32> to vector<8x32xf32>
    %138 = vector.extract_strided_slice %134 {offsets = [0, 32], sizes = [8, 32], strides = [1, 1]} : vector<8x96xf32> to vector<8x32xf32>
    %139 = vector.extract_strided_slice %134 {offsets = [0, 64], sizes = [8, 32], strides = [1, 1]} : vector<8x96xf32> to vector<8x32xf32>
    %140 = arith.mulf %138, %51 : vector<8x32xf32>
    %141 = arith.mulf %137, %136 : vector<8x32xf32>
    %142 = arith.addf %140, %141 : vector<8x32xf32>
    %143 = math.tanh %142 : vector<8x32xf32>
    %144 = arith.mulf %139, %143 : vector<8x32xf32>
    %145 = arith.index_cast %c1_i32 : i32 to index
    %c0_70 = arith.constant 0 : index
    %c0_71 = arith.constant 0 : index
    %146 = vector.load %arg2[%145, %c0_70, %c0_71] : memref<8x8x1xf32, #tpu.memory_space<vmem>>, vector<1x8x1xf32>
    %147 = vector.shape_cast %146 : vector<1x8x1xf32> to vector<8x1xf32>
    %cst_72 = arith.constant dense<0.000000e+00> : vector<8x32xf32>
    %148 = tpu.matmul %144, %18, %cst_72 {dimension_numbers = #tpu.dot_dimension_numbers<[1], [0], [0], [1], [0, 0, 1, 1], [], []>} : vector<8x32xf32>, vector<32x32xf32>, vector<8x32xf32> -> vector<8x32xf32>
    %149 = vector.broadcast %19 : vector<1x32xf32> to vector<8x32xf32>
    %150 = arith.addf %148, %149 : vector<8x32xf32>
    %cst_73 = arith.constant 0.000000e+00 : f32
    %151 = vector.broadcast %cst_73 : f32 to vector<8x32xf32>
    %152 = arith.maximumf %150, %151 : vector<8x32xf32>
    %153 = vector.broadcast %147 : vector<8x1xf32> to vector<8x32xf32>
    %154 = arith.mulf %152, %153 : vector<8x32xf32>
    %cst_74 = arith.constant dense<0.000000e+00> : vector<2x32xf32>
    %155 = tpu.matmul %16, %154, %cst_74 {dimension_numbers = #tpu.dot_dimension_numbers<[1], [0], [0], [1], [0, 0, 1, 1], [], []>} : vector<2x8xf32>, vector<8x32xf32>, vector<2x32xf32> -> vector<2x32xf32>
    %cst_75 = arith.constant dense<0.000000e+00> : vector<2x1xf32>
    %156 = tpu.matmul %16, %147, %cst_75 {dimension_numbers = #tpu.dot_dimension_numbers<[1], [0], [0], [1], [0, 0, 1, 1], [], []>} : vector<2x8xf32>, vector<8x1xf32>, vector<2x1xf32> -> vector<2x1xf32>
    %cst_76 = arith.constant 1.000000e+00 : f32
    %157 = vector.broadcast %cst_76 : f32 to vector<2x1xf32>
    %158 = arith.maximumf %156, %157 : vector<2x1xf32>
    %159 = vector.broadcast %158 : vector<2x1xf32> to vector<2x32xf32>
    %160 = arith.divf %155, %159 : vector<2x32xf32>
    %cst_77 = arith.constant dense<0.000000e+00> : vector<2x16xf32>
    %161 = tpu.matmul %160, %21, %cst_77 {dimension_numbers = #tpu.dot_dimension_numbers<[1], [0], [0], [1], [0, 0, 1, 1], [], []>} : vector<2x32xf32>, vector<32x16xf32>, vector<2x16xf32> -> vector<2x16xf32>
    %cst_78 = arith.constant dense<0.000000e+00> : vector<8x16xf32>
    %162 = tpu.matmul %152, %20, %cst_78 {dimension_numbers = #tpu.dot_dimension_numbers<[1], [0], [0], [1], [0, 0, 1, 1], [], []>} : vector<8x32xf32>, vector<32x16xf32>, vector<8x16xf32> -> vector<8x16xf32>
    %cst_79 = arith.constant dense<0.000000e+00> : vector<8x16xf32>
    %163 = tpu.matmul %17, %161, %cst_79 {dimension_numbers = #tpu.dot_dimension_numbers<[1], [0], [0], [1], [0, 0, 1, 1], [], []>} : vector<8x2xf32>, vector<2x16xf32>, vector<8x16xf32> -> vector<8x16xf32>
    %164 = arith.addf %162, %163 : vector<8x16xf32>
    %165 = vector.broadcast %22 : vector<1x16xf32> to vector<8x16xf32>
    %166 = arith.addf %164, %165 : vector<8x16xf32>
    %cst_80 = arith.constant 0.000000e+00 : f32
    %167 = vector.broadcast %cst_80 : f32 to vector<8x16xf32>
    %168 = arith.maximumf %166, %167 : vector<8x16xf32>
    %169 = vector.broadcast %147 : vector<8x1xf32> to vector<8x16xf32>
    %170 = arith.mulf %168, %169 : vector<8x16xf32>
    %171 = vector.broadcast %0 : vector<8x1xf32> to vector<8x16xf32>
    %172 = arith.mulf %170, %171 : vector<8x16xf32>
    %cst_81 = arith.constant dense<0.000000e+00> : vector<8x128xf32>
    %173 = tpu.matmul %172, %8, %cst_81 {dimension_numbers = #tpu.dot_dimension_numbers<[1], [0], [0], [1], [0, 0, 1, 1], [], []>} : vector<8x16xf32>, vector<16x128xf32>, vector<8x128xf32> -> vector<8x128xf32>
    %174 = vector.broadcast %2 : vector<8x1xf32> to vector<8x16xf32>
    %175 = arith.mulf %170, %174 : vector<8x16xf32>
    %cst_82 = arith.constant dense<0.000000e+00> : vector<8x128xf32>
    %176 = tpu.matmul %175, %10, %cst_82 {dimension_numbers = #tpu.dot_dimension_numbers<[1], [0], [0], [1], [0, 0, 1, 1], [], []>} : vector<8x16xf32>, vector<16x128xf32>, vector<8x128xf32> -> vector<8x128xf32>
    %177 = arith.addf %173, %176 : vector<8x128xf32>
    %178 = arith.addf %177, %15 : vector<8x128xf32>
    %179 = vector.broadcast %0 : vector<8x1xf32> to vector<8x32xf32>
    %180 = arith.mulf %111, %179 : vector<8x32xf32>
    %cst_83 = arith.constant dense<0.000000e+00> : vector<8x128xf32>
    %181 = tpu.matmul %180, %12, %cst_83 {dimension_numbers = #tpu.dot_dimension_numbers<[1], [0], [0], [1], [0, 0, 1, 1], [], []>} : vector<8x32xf32>, vector<32x128xf32>, vector<8x128xf32> -> vector<8x128xf32>
    %182 = arith.addf %178, %181 : vector<8x128xf32>
    %183 = vector.broadcast %2 : vector<8x1xf32> to vector<8x32xf32>
    %184 = arith.mulf %111, %183 : vector<8x32xf32>
    %cst_84 = arith.constant dense<0.000000e+00> : vector<8x128xf32>
    %185 = tpu.matmul %184, %14, %cst_84 {dimension_numbers = #tpu.dot_dimension_numbers<[1], [0], [0], [1], [0, 0, 1, 1], [], []>} : vector<8x32xf32>, vector<32x128xf32>, vector<8x128xf32> -> vector<8x128xf32>
    %186 = arith.addf %182, %185 : vector<8x128xf32>
    %187 = vector.extract_strided_slice %186 {offsets = [0, 0], sizes = [8, 96], strides = [1, 1]} : vector<8x128xf32> to vector<8x96xf32>
    %188 = arith.negf %187 : vector<8x96xf32>
    %189 = math.exp %188 : vector<8x96xf32>
    %cst_85 = arith.constant 1.000000e+00 : f32
    %190 = vector.broadcast %cst_85 : f32 to vector<8x96xf32>
    %191 = arith.addf %190, %189 : vector<8x96xf32>
    %192 = arith.divf %190, %191 : vector<8x96xf32>
    %193 = vector.extract_strided_slice %186 {offsets = [0, 96], sizes = [8, 32], strides = [1, 1]} : vector<8x128xf32> to vector<8x32xf32>
    %194 = math.tanh %193 : vector<8x32xf32>
    %195 = vector.extract_strided_slice %192 {offsets = [0, 0], sizes = [8, 32], strides = [1, 1]} : vector<8x96xf32> to vector<8x32xf32>
    %196 = vector.extract_strided_slice %192 {offsets = [0, 32], sizes = [8, 32], strides = [1, 1]} : vector<8x96xf32> to vector<8x32xf32>
    %197 = vector.extract_strided_slice %192 {offsets = [0, 64], sizes = [8, 32], strides = [1, 1]} : vector<8x96xf32> to vector<8x32xf32>
    %198 = arith.mulf %196, %109 : vector<8x32xf32>
    %199 = arith.mulf %195, %194 : vector<8x32xf32>
    %200 = arith.addf %198, %199 : vector<8x32xf32>
    %201 = math.tanh %200 : vector<8x32xf32>
    %202 = arith.mulf %197, %201 : vector<8x32xf32>
    %203 = vector.broadcast %147 : vector<8x1xf32> to vector<8x32xf32>
    %204 = arith.mulf %202, %203 : vector<8x32xf32>
    %205 = arith.index_cast %c1_i32 : i32 to index
    %c0_86 = arith.constant 0 : index
    %c0_87 = arith.constant 0 : index
    %206 = vector.load %arg19[%205, %c0_86, %c0_87] : memref<8x8x32xf32, #tpu.memory_space<vmem>>, vector<1x8x32xf32>
    %207 = vector.shape_cast %206 : vector<1x8x32xf32> to vector<8x32xf32>
    %208 = vector.shape_cast %204 : vector<8x32xf32> to vector<1x8x32xf32>
    tpu.vector_store %arg19[%205, %c0_86, %c0_87], %208 {strides = array<i32>} : memref<8x8x32xf32, #tpu.memory_space<vmem>>, vector<1x8x32xf32>,
    %c2_i32 = arith.constant 2 : i32
    %209 = arith.index_cast %c2_i32 : i32 to index
    %c0_88 = arith.constant 0 : index
    %c0_89 = arith.constant 0 : index
    %210 = vector.load %arg1[%209, %c0_88, %c0_89] : memref<8x8x128xf32, #tpu.memory_space<vmem>>, vector<1x8x128xf32>
    %211 = vector.shape_cast %210 : vector<1x8x128xf32> to vector<8x128xf32>
    %212 = vector.broadcast %0 : vector<8x1xf32> to vector<8x32xf32>
    %213 = arith.mulf %144, %212 : vector<8x32xf32>
    %cst_90 = arith.constant dense<0.000000e+00> : vector<8x128xf32>
    %214 = tpu.matmul %213, %4, %cst_90 {dimension_numbers = #tpu.dot_dimension_numbers<[1], [0], [0], [1], [0, 0, 1, 1], [], []>} : vector<8x32xf32>, vector<32x128xf32>, vector<8x128xf32> -> vector<8x128xf32>
    %215 = arith.addf %211, %214 : vector<8x128xf32>
    %216 = vector.broadcast %2 : vector<8x1xf32> to vector<8x32xf32>
    %217 = arith.mulf %144, %216 : vector<8x32xf32>
    %cst_91 = arith.constant dense<0.000000e+00> : vector<8x128xf32>
    %218 = tpu.matmul %217, %6, %cst_91 {dimension_numbers = #tpu.dot_dimension_numbers<[1], [0], [0], [1], [0, 0, 1, 1], [], []>} : vector<8x32xf32>, vector<32x128xf32>, vector<8x128xf32> -> vector<8x128xf32>
    %219 = arith.addf %215, %218 : vector<8x128xf32>
    %220 = vector.extract_strided_slice %219 {offsets = [0, 0], sizes = [8, 96], strides = [1, 1]} : vector<8x128xf32> to vector<8x96xf32>
    %221 = arith.negf %220 : vector<8x96xf32>
    %222 = math.exp %221 : vector<8x96xf32>
    %cst_92 = arith.constant 1.000000e+00 : f32
    %223 = vector.broadcast %cst_92 : f32 to vector<8x96xf32>
    %224 = arith.addf %223, %222 : vector<8x96xf32>
    %225 = arith.divf %223, %224 : vector<8x96xf32>
    %226 = vector.extract_strided_slice %219 {offsets = [0, 96], sizes = [8, 32], strides = [1, 1]} : vector<8x128xf32> to vector<8x32xf32>
    %227 = math.tanh %226 : vector<8x32xf32>
    %228 = vector.extract_strided_slice %225 {offsets = [0, 0], sizes = [8, 32], strides = [1, 1]} : vector<8x96xf32> to vector<8x32xf32>
    %229 = vector.extract_strided_slice %225 {offsets = [0, 32], sizes = [8, 32], strides = [1, 1]} : vector<8x96xf32> to vector<8x32xf32>
    %230 = vector.extract_strided_slice %225 {offsets = [0, 64], sizes = [8, 32], strides = [1, 1]} : vector<8x96xf32> to vector<8x32xf32>
    %231 = arith.mulf %229, %142 : vector<8x32xf32>
    %232 = arith.mulf %228, %227 : vector<8x32xf32>
    %233 = arith.addf %231, %232 : vector<8x32xf32>
    %234 = math.tanh %233 : vector<8x32xf32>
    %235 = arith.mulf %230, %234 : vector<8x32xf32>
    %236 = arith.index_cast %c2_i32 : i32 to index
    %c0_93 = arith.constant 0 : index
    %c0_94 = arith.constant 0 : index
    %237 = vector.load %arg2[%236, %c0_93, %c0_94] : memref<8x8x1xf32, #tpu.memory_space<vmem>>, vector<1x8x1xf32>
    %238 = vector.shape_cast %237 : vector<1x8x1xf32> to vector<8x1xf32>
    %cst_95 = arith.constant dense<0.000000e+00> : vector<8x32xf32>
    %239 = tpu.matmul %235, %18, %cst_95 {dimension_numbers = #tpu.dot_dimension_numbers<[1], [0], [0], [1], [0, 0, 1, 1], [], []>} : vector<8x32xf32>, vector<32x32xf32>, vector<8x32xf32> -> vector<8x32xf32>
    %240 = vector.broadcast %19 : vector<1x32xf32> to vector<8x32xf32>
    %241 = arith.addf %239, %240 : vector<8x32xf32>
    %cst_96 = arith.constant 0.000000e+00 : f32
    %242 = vector.broadcast %cst_96 : f32 to vector<8x32xf32>
    %243 = arith.maximumf %241, %242 : vector<8x32xf32>
    %244 = vector.broadcast %238 : vector<8x1xf32> to vector<8x32xf32>
    %245 = arith.mulf %243, %244 : vector<8x32xf32>
    %cst_97 = arith.constant dense<0.000000e+00> : vector<2x32xf32>
    %246 = tpu.matmul %16, %245, %cst_97 {dimension_numbers = #tpu.dot_dimension_numbers<[1], [0], [0], [1], [0, 0, 1, 1], [], []>} : vector<2x8xf32>, vector<8x32xf32>, vector<2x32xf32> -> vector<2x32xf32>
    %cst_98 = arith.constant dense<0.000000e+00> : vector<2x1xf32>
    %247 = tpu.matmul %16, %238, %cst_98 {dimension_numbers = #tpu.dot_dimension_numbers<[1], [0], [0], [1], [0, 0, 1, 1], [], []>} : vector<2x8xf32>, vector<8x1xf32>, vector<2x1xf32> -> vector<2x1xf32>
    %cst_99 = arith.constant 1.000000e+00 : f32
    %248 = vector.broadcast %cst_99 : f32 to vector<2x1xf32>
    %249 = arith.maximumf %247, %248 : vector<2x1xf32>
    %250 = vector.broadcast %249 : vector<2x1xf32> to vector<2x32xf32>
    %251 = arith.divf %246, %250 : vector<2x32xf32>
    %cst_100 = arith.constant dense<0.000000e+00> : vector<2x16xf32>
    %252 = tpu.matmul %251, %21, %cst_100 {dimension_numbers = #tpu.dot_dimension_numbers<[1], [0], [0], [1], [0, 0, 1, 1], [], []>} : vector<2x32xf32>, vector<32x16xf32>, vector<2x16xf32> -> vector<2x16xf32>
    %cst_101 = arith.constant dense<0.000000e+00> : vector<8x16xf32>
    %253 = tpu.matmul %243, %20, %cst_101 {dimension_numbers = #tpu.dot_dimension_numbers<[1], [0], [0], [1], [0, 0, 1, 1], [], []>} : vector<8x32xf32>, vector<32x16xf32>, vector<8x16xf32> -> vector<8x16xf32>
    %cst_102 = arith.constant dense<0.000000e+00> : vector<8x16xf32>
    %254 = tpu.matmul %17, %252, %cst_102 {dimension_numbers = #tpu.dot_dimension_numbers<[1], [0], [0], [1], [0, 0, 1, 1], [], []>} : vector<8x2xf32>, vector<2x16xf32>, vector<8x16xf32> -> vector<8x16xf32>
    %255 = arith.addf %253, %254 : vector<8x16xf32>
    %256 = vector.broadcast %22 : vector<1x16xf32> to vector<8x16xf32>
    %257 = arith.addf %255, %256 : vector<8x16xf32>
    %cst_103 = arith.constant 0.000000e+00 : f32
    %258 = vector.broadcast %cst_103 : f32 to vector<8x16xf32>
    %259 = arith.maximumf %257, %258 : vector<8x16xf32>
    %260 = vector.broadcast %238 : vector<8x1xf32> to vector<8x16xf32>
    %261 = arith.mulf %259, %260 : vector<8x16xf32>
    %262 = vector.broadcast %0 : vector<8x1xf32> to vector<8x16xf32>
    %263 = arith.mulf %261, %262 : vector<8x16xf32>
    %cst_104 = arith.constant dense<0.000000e+00> : vector<8x128xf32>
    %264 = tpu.matmul %263, %8, %cst_104 {dimension_numbers = #tpu.dot_dimension_numbers<[1], [0], [0], [1], [0, 0, 1, 1], [], []>} : vector<8x16xf32>, vector<16x128xf32>, vector<8x128xf32> -> vector<8x128xf32>
    %265 = vector.broadcast %2 : vector<8x1xf32> to vector<8x16xf32>
    %266 = arith.mulf %261, %265 : vector<8x16xf32>
    %cst_105 = arith.constant dense<0.000000e+00> : vector<8x128xf32>
    %267 = tpu.matmul %266, %10, %cst_105 {dimension_numbers = #tpu.dot_dimension_numbers<[1], [0], [0], [1], [0, 0, 1, 1], [], []>} : vector<8x16xf32>, vector<16x128xf32>, vector<8x128xf32> -> vector<8x128xf32>
    %268 = arith.addf %264, %267 : vector<8x128xf32>
    %269 = arith.addf %268, %15 : vector<8x128xf32>
    %270 = vector.broadcast %0 : vector<8x1xf32> to vector<8x32xf32>
    %271 = arith.mulf %202, %270 : vector<8x32xf32>
    %cst_106 = arith.constant dense<0.000000e+00> : vector<8x128xf32>
    %272 = tpu.matmul %271, %12, %cst_106 {dimension_numbers = #tpu.dot_dimension_numbers<[1], [0], [0], [1], [0, 0, 1, 1], [], []>} : vector<8x32xf32>, vector<32x128xf32>, vector<8x128xf32> -> vector<8x128xf32>
    %273 = arith.addf %269, %272 : vector<8x128xf32>
    %274 = vector.broadcast %2 : vector<8x1xf32> to vector<8x32xf32>
    %275 = arith.mulf %202, %274 : vector<8x32xf32>
    %cst_107 = arith.constant dense<0.000000e+00> : vector<8x128xf32>
    %276 = tpu.matmul %275, %14, %cst_107 {dimension_numbers = #tpu.dot_dimension_numbers<[1], [0], [0], [1], [0, 0, 1, 1], [], []>} : vector<8x32xf32>, vector<32x128xf32>, vector<8x128xf32> -> vector<8x128xf32>
    %277 = arith.addf %273, %276 : vector<8x128xf32>
    %278 = vector.extract_strided_slice %277 {offsets = [0, 0], sizes = [8, 96], strides = [1, 1]} : vector<8x128xf32> to vector<8x96xf32>
    %279 = arith.negf %278 : vector<8x96xf32>
    %280 = math.exp %279 : vector<8x96xf32>
    %cst_108 = arith.constant 1.000000e+00 : f32
    %281 = vector.broadcast %cst_108 : f32 to vector<8x96xf32>
    %282 = arith.addf %281, %280 : vector<8x96xf32>
    %283 = arith.divf %281, %282 : vector<8x96xf32>
    %284 = vector.extract_strided_slice %277 {offsets = [0, 96], sizes = [8, 32], strides = [1, 1]} : vector<8x128xf32> to vector<8x32xf32>
    %285 = math.tanh %284 : vector<8x32xf32>
    %286 = vector.extract_strided_slice %283 {offsets = [0, 0], sizes = [8, 32], strides = [1, 1]} : vector<8x96xf32> to vector<8x32xf32>
    %287 = vector.extract_strided_slice %283 {offsets = [0, 32], sizes = [8, 32], strides = [1, 1]} : vector<8x96xf32> to vector<8x32xf32>
    %288 = vector.extract_strided_slice %283 {offsets = [0, 64], sizes = [8, 32], strides = [1, 1]} : vector<8x96xf32> to vector<8x32xf32>
    %289 = arith.mulf %287, %200 : vector<8x32xf32>
    %290 = arith.mulf %286, %285 : vector<8x32xf32>
    %291 = arith.addf %289, %290 : vector<8x32xf32>
    %292 = math.tanh %291 : vector<8x32xf32>
    %293 = arith.mulf %288, %292 : vector<8x32xf32>
    %294 = vector.broadcast %238 : vector<8x1xf32> to vector<8x32xf32>
    %295 = arith.mulf %293, %294 : vector<8x32xf32>
    %296 = arith.index_cast %c2_i32 : i32 to index
    %c0_109 = arith.constant 0 : index
    %c0_110 = arith.constant 0 : index
    %297 = vector.load %arg19[%296, %c0_109, %c0_110] : memref<8x8x32xf32, #tpu.memory_space<vmem>>, vector<1x8x32xf32>
    %298 = vector.shape_cast %297 : vector<1x8x32xf32> to vector<8x32xf32>
    %299 = vector.shape_cast %295 : vector<8x32xf32> to vector<1x8x32xf32>
    tpu.vector_store %arg19[%296, %c0_109, %c0_110], %299 {strides = array<i32>} : memref<8x8x32xf32, #tpu.memory_space<vmem>>, vector<1x8x32xf32>,
    %c3_i32 = arith.constant 3 : i32
    %300 = arith.index_cast %c3_i32 : i32 to index
    %c0_111 = arith.constant 0 : index
    %c0_112 = arith.constant 0 : index
    %301 = vector.load %arg1[%300, %c0_111, %c0_112] : memref<8x8x128xf32, #tpu.memory_space<vmem>>, vector<1x8x128xf32>
    %302 = vector.shape_cast %301 : vector<1x8x128xf32> to vector<8x128xf32>
    %303 = vector.broadcast %0 : vector<8x1xf32> to vector<8x32xf32>
    %304 = arith.mulf %235, %303 : vector<8x32xf32>
    %cst_113 = arith.constant dense<0.000000e+00> : vector<8x128xf32>
    %305 = tpu.matmul %304, %4, %cst_113 {dimension_numbers = #tpu.dot_dimension_numbers<[1], [0], [0], [1], [0, 0, 1, 1], [], []>} : vector<8x32xf32>, vector<32x128xf32>, vector<8x128xf32> -> vector<8x128xf32>
    %306 = arith.addf %302, %305 : vector<8x128xf32>
    %307 = vector.broadcast %2 : vector<8x1xf32> to vector<8x32xf32>
    %308 = arith.mulf %235, %307 : vector<8x32xf32>
    %cst_114 = arith.constant dense<0.000000e+00> : vector<8x128xf32>
    %309 = tpu.matmul %308, %6, %cst_114 {dimension_numbers = #tpu.dot_dimension_numbers<[1], [0], [0], [1], [0, 0, 1, 1], [], []>} : vector<8x32xf32>, vector<32x128xf32>, vector<8x128xf32> -> vector<8x128xf32>
    %310 = arith.addf %306, %309 : vector<8x128xf32>
    %311 = vector.extract_strided_slice %310 {offsets = [0, 0], sizes = [8, 96], strides = [1, 1]} : vector<8x128xf32> to vector<8x96xf32>
    %312 = arith.negf %311 : vector<8x96xf32>
    %313 = math.exp %312 : vector<8x96xf32>
    %cst_115 = arith.constant 1.000000e+00 : f32
    %314 = vector.broadcast %cst_115 : f32 to vector<8x96xf32>
    %315 = arith.addf %314, %313 : vector<8x96xf32>
    %316 = arith.divf %314, %315 : vector<8x96xf32>
    %317 = vector.extract_strided_slice %310 {offsets = [0, 96], sizes = [8, 32], strides = [1, 1]} : vector<8x128xf32> to vector<8x32xf32>
    %318 = math.tanh %317 : vector<8x32xf32>
    %319 = vector.extract_strided_slice %316 {offsets = [0, 0], sizes = [8, 32], strides = [1, 1]} : vector<8x96xf32> to vector<8x32xf32>
    %320 = vector.extract_strided_slice %316 {offsets = [0, 32], sizes = [8, 32], strides = [1, 1]} : vector<8x96xf32> to vector<8x32xf32>
    %321 = vector.extract_strided_slice %316 {offsets = [0, 64], sizes = [8, 32], strides = [1, 1]} : vector<8x96xf32> to vector<8x32xf32>
    %322 = arith.mulf %320, %233 : vector<8x32xf32>
    %323 = arith.mulf %319, %318 : vector<8x32xf32>
    %324 = arith.addf %322, %323 : vector<8x32xf32>
    %325 = math.tanh %324 : vector<8x32xf32>
    %326 = arith.mulf %321, %325 : vector<8x32xf32>
    %327 = arith.index_cast %c3_i32 : i32 to index
    %c0_116 = arith.constant 0 : index
    %c0_117 = arith.constant 0 : index
    %328 = vector.load %arg2[%327, %c0_116, %c0_117] : memref<8x8x1xf32, #tpu.memory_space<vmem>>, vector<1x8x1xf32>
    %329 = vector.shape_cast %328 : vector<1x8x1xf32> to vector<8x1xf32>
    %cst_118 = arith.constant dense<0.000000e+00> : vector<8x32xf32>
    %330 = tpu.matmul %326, %18, %cst_118 {dimension_numbers = #tpu.dot_dimension_numbers<[1], [0], [0], [1], [0, 0, 1, 1], [], []>} : vector<8x32xf32>, vector<32x32xf32>, vector<8x32xf32> -> vector<8x32xf32>
    %331 = vector.broadcast %19 : vector<1x32xf32> to vector<8x32xf32>
    %332 = arith.addf %330, %331 : vector<8x32xf32>
    %cst_119 = arith.constant 0.000000e+00 : f32
    %333 = vector.broadcast %cst_119 : f32 to vector<8x32xf32>
    %334 = arith.maximumf %332, %333 : vector<8x32xf32>
    %335 = vector.broadcast %329 : vector<8x1xf32> to vector<8x32xf32>
    %336 = arith.mulf %334, %335 : vector<8x32xf32>
    %cst_120 = arith.constant dense<0.000000e+00> : vector<2x32xf32>
    %337 = tpu.matmul %16, %336, %cst_120 {dimension_numbers = #tpu.dot_dimension_numbers<[1], [0], [0], [1], [0, 0, 1, 1], [], []>} : vector<2x8xf32>, vector<8x32xf32>, vector<2x32xf32> -> vector<2x32xf32>
    %cst_121 = arith.constant dense<0.000000e+00> : vector<2x1xf32>
    %338 = tpu.matmul %16, %329, %cst_121 {dimension_numbers = #tpu.dot_dimension_numbers<[1], [0], [0], [1], [0, 0, 1, 1], [], []>} : vector<2x8xf32>, vector<8x1xf32>, vector<2x1xf32> -> vector<2x1xf32>
    %cst_122 = arith.constant 1.000000e+00 : f32
    %339 = vector.broadcast %cst_122 : f32 to vector<2x1xf32>
    %340 = arith.maximumf %338, %339 : vector<2x1xf32>
    %341 = vector.broadcast %340 : vector<2x1xf32> to vector<2x32xf32>
    %342 = arith.divf %337, %341 : vector<2x32xf32>
    %cst_123 = arith.constant dense<0.000000e+00> : vector<2x16xf32>
    %343 = tpu.matmul %342, %21, %cst_123 {dimension_numbers = #tpu.dot_dimension_numbers<[1], [0], [0], [1], [0, 0, 1, 1], [], []>} : vector<2x32xf32>, vector<32x16xf32>, vector<2x16xf32> -> vector<2x16xf32>
    %cst_124 = arith.constant dense<0.000000e+00> : vector<8x16xf32>
    %344 = tpu.matmul %334, %20, %cst_124 {dimension_numbers = #tpu.dot_dimension_numbers<[1], [0], [0], [1], [0, 0, 1, 1], [], []>} : vector<8x32xf32>, vector<32x16xf32>, vector<8x16xf32> -> vector<8x16xf32>
    %cst_125 = arith.constant dense<0.000000e+00> : vector<8x16xf32>
    %345 = tpu.matmul %17, %343, %cst_125 {dimension_numbers = #tpu.dot_dimension_numbers<[1], [0], [0], [1], [0, 0, 1, 1], [], []>} : vector<8x2xf32>, vector<2x16xf32>, vector<8x16xf32> -> vector<8x16xf32>
    %346 = arith.addf %344, %345 : vector<8x16xf32>
    %347 = vector.broadcast %22 : vector<1x16xf32> to vector<8x16xf32>
    %348 = arith.addf %346, %347 : vector<8x16xf32>
    %cst_126 = arith.constant 0.000000e+00 : f32
    %349 = vector.broadcast %cst_126 : f32 to vector<8x16xf32>
    %350 = arith.maximumf %348, %349 : vector<8x16xf32>
    %351 = vector.broadcast %329 : vector<8x1xf32> to vector<8x16xf32>
    %352 = arith.mulf %350, %351 : vector<8x16xf32>
    %353 = vector.broadcast %0 : vector<8x1xf32> to vector<8x16xf32>
    %354 = arith.mulf %352, %353 : vector<8x16xf32>
    %cst_127 = arith.constant dense<0.000000e+00> : vector<8x128xf32>
    %355 = tpu.matmul %354, %8, %cst_127 {dimension_numbers = #tpu.dot_dimension_numbers<[1], [0], [0], [1], [0, 0, 1, 1], [], []>} : vector<8x16xf32>, vector<16x128xf32>, vector<8x128xf32> -> vector<8x128xf32>
    %356 = vector.broadcast %2 : vector<8x1xf32> to vector<8x16xf32>
    %357 = arith.mulf %352, %356 : vector<8x16xf32>
    %cst_128 = arith.constant dense<0.000000e+00> : vector<8x128xf32>
    %358 = tpu.matmul %357, %10, %cst_128 {dimension_numbers = #tpu.dot_dimension_numbers<[1], [0], [0], [1], [0, 0, 1, 1], [], []>} : vector<8x16xf32>, vector<16x128xf32>, vector<8x128xf32> -> vector<8x128xf32>
    %359 = arith.addf %355, %358 : vector<8x128xf32>
    %360 = arith.addf %359, %15 : vector<8x128xf32>
    %361 = vector.broadcast %0 : vector<8x1xf32> to vector<8x32xf32>
    %362 = arith.mulf %293, %361 : vector<8x32xf32>
    %cst_129 = arith.constant dense<0.000000e+00> : vector<8x128xf32>
    %363 = tpu.matmul %362, %12, %cst_129 {dimension_numbers = #tpu.dot_dimension_numbers<[1], [0], [0], [1], [0, 0, 1, 1], [], []>} : vector<8x32xf32>, vector<32x128xf32>, vector<8x128xf32> -> vector<8x128xf32>
    %364 = arith.addf %360, %363 : vector<8x128xf32>
    %365 = vector.broadcast %2 : vector<8x1xf32> to vector<8x32xf32>
    %366 = arith.mulf %293, %365 : vector<8x32xf32>
    %cst_130 = arith.constant dense<0.000000e+00> : vector<8x128xf32>
    %367 = tpu.matmul %366, %14, %cst_130 {dimension_numbers = #tpu.dot_dimension_numbers<[1], [0], [0], [1], [0, 0, 1, 1], [], []>} : vector<8x32xf32>, vector<32x128xf32>, vector<8x128xf32> -> vector<8x128xf32>
    %368 = arith.addf %364, %367 : vector<8x128xf32>
    %369 = vector.extract_strided_slice %368 {offsets = [0, 0], sizes = [8, 96], strides = [1, 1]} : vector<8x128xf32> to vector<8x96xf32>
    %370 = arith.negf %369 : vector<8x96xf32>
    %371 = math.exp %370 : vector<8x96xf32>
    %cst_131 = arith.constant 1.000000e+00 : f32
    %372 = vector.broadcast %cst_131 : f32 to vector<8x96xf32>
    %373 = arith.addf %372, %371 : vector<8x96xf32>
    %374 = arith.divf %372, %373 : vector<8x96xf32>
    %375 = vector.extract_strided_slice %368 {offsets = [0, 96], sizes = [8, 32], strides = [1, 1]} : vector<8x128xf32> to vector<8x32xf32>
    %376 = math.tanh %375 : vector<8x32xf32>
    %377 = vector.extract_strided_slice %374 {offsets = [0, 0], sizes = [8, 32], strides = [1, 1]} : vector<8x96xf32> to vector<8x32xf32>
    %378 = vector.extract_strided_slice %374 {offsets = [0, 32], sizes = [8, 32], strides = [1, 1]} : vector<8x96xf32> to vector<8x32xf32>
    %379 = vector.extract_strided_slice %374 {offsets = [0, 64], sizes = [8, 32], strides = [1, 1]} : vector<8x96xf32> to vector<8x32xf32>
    %380 = arith.mulf %378, %291 : vector<8x32xf32>
    %381 = arith.mulf %377, %376 : vector<8x32xf32>
    %382 = arith.addf %380, %381 : vector<8x32xf32>
    %383 = math.tanh %382 : vector<8x32xf32>
    %384 = arith.mulf %379, %383 : vector<8x32xf32>
    %385 = vector.broadcast %329 : vector<8x1xf32> to vector<8x32xf32>
    %386 = arith.mulf %384, %385 : vector<8x32xf32>
    %387 = arith.index_cast %c3_i32 : i32 to index
    %c0_132 = arith.constant 0 : index
    %c0_133 = arith.constant 0 : index
    %388 = vector.load %arg19[%387, %c0_132, %c0_133] : memref<8x8x32xf32, #tpu.memory_space<vmem>>, vector<1x8x32xf32>
    %389 = vector.shape_cast %388 : vector<1x8x32xf32> to vector<8x32xf32>
    %390 = vector.shape_cast %386 : vector<8x32xf32> to vector<1x8x32xf32>
    tpu.vector_store %arg19[%387, %c0_132, %c0_133], %390 {strides = array<i32>} : memref<8x8x32xf32, #tpu.memory_space<vmem>>, vector<1x8x32xf32>,
    %c4_i32 = arith.constant 4 : i32
    %391 = arith.index_cast %c4_i32 : i32 to index
    %c0_134 = arith.constant 0 : index
    %c0_135 = arith.constant 0 : index
    %392 = vector.load %arg1[%391, %c0_134, %c0_135] : memref<8x8x128xf32, #tpu.memory_space<vmem>>, vector<1x8x128xf32>
    %393 = vector.shape_cast %392 : vector<1x8x128xf32> to vector<8x128xf32>
    %394 = vector.broadcast %0 : vector<8x1xf32> to vector<8x32xf32>
    %395 = arith.mulf %326, %394 : vector<8x32xf32>
    %cst_136 = arith.constant dense<0.000000e+00> : vector<8x128xf32>
    %396 = tpu.matmul %395, %4, %cst_136 {dimension_numbers = #tpu.dot_dimension_numbers<[1], [0], [0], [1], [0, 0, 1, 1], [], []>} : vector<8x32xf32>, vector<32x128xf32>, vector<8x128xf32> -> vector<8x128xf32>
    %397 = arith.addf %393, %396 : vector<8x128xf32>
    %398 = vector.broadcast %2 : vector<8x1xf32> to vector<8x32xf32>
    %399 = arith.mulf %326, %398 : vector<8x32xf32>
    %cst_137 = arith.constant dense<0.000000e+00> : vector<8x128xf32>
    %400 = tpu.matmul %399, %6, %cst_137 {dimension_numbers = #tpu.dot_dimension_numbers<[1], [0], [0], [1], [0, 0, 1, 1], [], []>} : vector<8x32xf32>, vector<32x128xf32>, vector<8x128xf32> -> vector<8x128xf32>
    %401 = arith.addf %397, %400 : vector<8x128xf32>
    %402 = vector.extract_strided_slice %401 {offsets = [0, 0], sizes = [8, 96], strides = [1, 1]} : vector<8x128xf32> to vector<8x96xf32>
    %403 = arith.negf %402 : vector<8x96xf32>
    %404 = math.exp %403 : vector<8x96xf32>
    %cst_138 = arith.constant 1.000000e+00 : f32
    %405 = vector.broadcast %cst_138 : f32 to vector<8x96xf32>
    %406 = arith.addf %405, %404 : vector<8x96xf32>
    %407 = arith.divf %405, %406 : vector<8x96xf32>
    %408 = vector.extract_strided_slice %401 {offsets = [0, 96], sizes = [8, 32], strides = [1, 1]} : vector<8x128xf32> to vector<8x32xf32>
    %409 = math.tanh %408 : vector<8x32xf32>
    %410 = vector.extract_strided_slice %407 {offsets = [0, 0], sizes = [8, 32], strides = [1, 1]} : vector<8x96xf32> to vector<8x32xf32>
    %411 = vector.extract_strided_slice %407 {offsets = [0, 32], sizes = [8, 32], strides = [1, 1]} : vector<8x96xf32> to vector<8x32xf32>
    %412 = vector.extract_strided_slice %407 {offsets = [0, 64], sizes = [8, 32], strides = [1, 1]} : vector<8x96xf32> to vector<8x32xf32>
    %413 = arith.mulf %411, %324 : vector<8x32xf32>
    %414 = arith.mulf %410, %409 : vector<8x32xf32>
    %415 = arith.addf %413, %414 : vector<8x32xf32>
    %416 = math.tanh %415 : vector<8x32xf32>
    %417 = arith.mulf %412, %416 : vector<8x32xf32>
    %418 = arith.index_cast %c4_i32 : i32 to index
    %c0_139 = arith.constant 0 : index
    %c0_140 = arith.constant 0 : index
    %419 = vector.load %arg2[%418, %c0_139, %c0_140] : memref<8x8x1xf32, #tpu.memory_space<vmem>>, vector<1x8x1xf32>
    %420 = vector.shape_cast %419 : vector<1x8x1xf32> to vector<8x1xf32>
    %cst_141 = arith.constant dense<0.000000e+00> : vector<8x32xf32>
    %421 = tpu.matmul %417, %18, %cst_141 {dimension_numbers = #tpu.dot_dimension_numbers<[1], [0], [0], [1], [0, 0, 1, 1], [], []>} : vector<8x32xf32>, vector<32x32xf32>, vector<8x32xf32> -> vector<8x32xf32>
    %422 = vector.broadcast %19 : vector<1x32xf32> to vector<8x32xf32>
    %423 = arith.addf %421, %422 : vector<8x32xf32>
    %cst_142 = arith.constant 0.000000e+00 : f32
    %424 = vector.broadcast %cst_142 : f32 to vector<8x32xf32>
    %425 = arith.maximumf %423, %424 : vector<8x32xf32>
    %426 = vector.broadcast %420 : vector<8x1xf32> to vector<8x32xf32>
    %427 = arith.mulf %425, %426 : vector<8x32xf32>
    %cst_143 = arith.constant dense<0.000000e+00> : vector<2x32xf32>
    %428 = tpu.matmul %16, %427, %cst_143 {dimension_numbers = #tpu.dot_dimension_numbers<[1], [0], [0], [1], [0, 0, 1, 1], [], []>} : vector<2x8xf32>, vector<8x32xf32>, vector<2x32xf32> -> vector<2x32xf32>
    %cst_144 = arith.constant dense<0.000000e+00> : vector<2x1xf32>
    %429 = tpu.matmul %16, %420, %cst_144 {dimension_numbers = #tpu.dot_dimension_numbers<[1], [0], [0], [1], [0, 0, 1, 1], [], []>} : vector<2x8xf32>, vector<8x1xf32>, vector<2x1xf32> -> vector<2x1xf32>
    %cst_145 = arith.constant 1.000000e+00 : f32
    %430 = vector.broadcast %cst_145 : f32 to vector<2x1xf32>
    %431 = arith.maximumf %429, %430 : vector<2x1xf32>
    %432 = vector.broadcast %431 : vector<2x1xf32> to vector<2x32xf32>
    %433 = arith.divf %428, %432 : vector<2x32xf32>
    %cst_146 = arith.constant dense<0.000000e+00> : vector<2x16xf32>
    %434 = tpu.matmul %433, %21, %cst_146 {dimension_numbers = #tpu.dot_dimension_numbers<[1], [0], [0], [1], [0, 0, 1, 1], [], []>} : vector<2x32xf32>, vector<32x16xf32>, vector<2x16xf32> -> vector<2x16xf32>
    %cst_147 = arith.constant dense<0.000000e+00> : vector<8x16xf32>
    %435 = tpu.matmul %425, %20, %cst_147 {dimension_numbers = #tpu.dot_dimension_numbers<[1], [0], [0], [1], [0, 0, 1, 1], [], []>} : vector<8x32xf32>, vector<32x16xf32>, vector<8x16xf32> -> vector<8x16xf32>
    %cst_148 = arith.constant dense<0.000000e+00> : vector<8x16xf32>
    %436 = tpu.matmul %17, %434, %cst_148 {dimension_numbers = #tpu.dot_dimension_numbers<[1], [0], [0], [1], [0, 0, 1, 1], [], []>} : vector<8x2xf32>, vector<2x16xf32>, vector<8x16xf32> -> vector<8x16xf32>
    %437 = arith.addf %435, %436 : vector<8x16xf32>
    %438 = vector.broadcast %22 : vector<1x16xf32> to vector<8x16xf32>
    %439 = arith.addf %437, %438 : vector<8x16xf32>
    %cst_149 = arith.constant 0.000000e+00 : f32
    %440 = vector.broadcast %cst_149 : f32 to vector<8x16xf32>
    %441 = arith.maximumf %439, %440 : vector<8x16xf32>
    %442 = vector.broadcast %420 : vector<8x1xf32> to vector<8x16xf32>
    %443 = arith.mulf %441, %442 : vector<8x16xf32>
    %444 = vector.broadcast %0 : vector<8x1xf32> to vector<8x16xf32>
    %445 = arith.mulf %443, %444 : vector<8x16xf32>
    %cst_150 = arith.constant dense<0.000000e+00> : vector<8x128xf32>
    %446 = tpu.matmul %445, %8, %cst_150 {dimension_numbers = #tpu.dot_dimension_numbers<[1], [0], [0], [1], [0, 0, 1, 1], [], []>} : vector<8x16xf32>, vector<16x128xf32>, vector<8x128xf32> -> vector<8x128xf32>
    %447 = vector.broadcast %2 : vector<8x1xf32> to vector<8x16xf32>
    %448 = arith.mulf %443, %447 : vector<8x16xf32>
    %cst_151 = arith.constant dense<0.000000e+00> : vector<8x128xf32>
    %449 = tpu.matmul %448, %10, %cst_151 {dimension_numbers = #tpu.dot_dimension_numbers<[1], [0], [0], [1], [0, 0, 1, 1], [], []>} : vector<8x16xf32>, vector<16x128xf32>, vector<8x128xf32> -> vector<8x128xf32>
    %450 = arith.addf %446, %449 : vector<8x128xf32>
    %451 = arith.addf %450, %15 : vector<8x128xf32>
    %452 = vector.broadcast %0 : vector<8x1xf32> to vector<8x32xf32>
    %453 = arith.mulf %384, %452 : vector<8x32xf32>
    %cst_152 = arith.constant dense<0.000000e+00> : vector<8x128xf32>
    %454 = tpu.matmul %453, %12, %cst_152 {dimension_numbers = #tpu.dot_dimension_numbers<[1], [0], [0], [1], [0, 0, 1, 1], [], []>} : vector<8x32xf32>, vector<32x128xf32>, vector<8x128xf32> -> vector<8x128xf32>
    %455 = arith.addf %451, %454 : vector<8x128xf32>
    %456 = vector.broadcast %2 : vector<8x1xf32> to vector<8x32xf32>
    %457 = arith.mulf %384, %456 : vector<8x32xf32>
    %cst_153 = arith.constant dense<0.000000e+00> : vector<8x128xf32>
    %458 = tpu.matmul %457, %14, %cst_153 {dimension_numbers = #tpu.dot_dimension_numbers<[1], [0], [0], [1], [0, 0, 1, 1], [], []>} : vector<8x32xf32>, vector<32x128xf32>, vector<8x128xf32> -> vector<8x128xf32>
    %459 = arith.addf %455, %458 : vector<8x128xf32>
    %460 = vector.extract_strided_slice %459 {offsets = [0, 0], sizes = [8, 96], strides = [1, 1]} : vector<8x128xf32> to vector<8x96xf32>
    %461 = arith.negf %460 : vector<8x96xf32>
    %462 = math.exp %461 : vector<8x96xf32>
    %cst_154 = arith.constant 1.000000e+00 : f32
    %463 = vector.broadcast %cst_154 : f32 to vector<8x96xf32>
    %464 = arith.addf %463, %462 : vector<8x96xf32>
    %465 = arith.divf %463, %464 : vector<8x96xf32>
    %466 = vector.extract_strided_slice %459 {offsets = [0, 96], sizes = [8, 32], strides = [1, 1]} : vector<8x128xf32> to vector<8x32xf32>
    %467 = math.tanh %466 : vector<8x32xf32>
    %468 = vector.extract_strided_slice %465 {offsets = [0, 0], sizes = [8, 32], strides = [1, 1]} : vector<8x96xf32> to vector<8x32xf32>
    %469 = vector.extract_strided_slice %465 {offsets = [0, 32], sizes = [8, 32], strides = [1, 1]} : vector<8x96xf32> to vector<8x32xf32>
    %470 = vector.extract_strided_slice %465 {offsets = [0, 64], sizes = [8, 32], strides = [1, 1]} : vector<8x96xf32> to vector<8x32xf32>
    %471 = arith.mulf %469, %382 : vector<8x32xf32>
    %472 = arith.mulf %468, %467 : vector<8x32xf32>
    %473 = arith.addf %471, %472 : vector<8x32xf32>
    %474 = math.tanh %473 : vector<8x32xf32>
    %475 = arith.mulf %470, %474 : vector<8x32xf32>
    %476 = vector.broadcast %420 : vector<8x1xf32> to vector<8x32xf32>
    %477 = arith.mulf %475, %476 : vector<8x32xf32>
    %478 = arith.index_cast %c4_i32 : i32 to index
    %c0_155 = arith.constant 0 : index
    %c0_156 = arith.constant 0 : index
    %479 = vector.load %arg19[%478, %c0_155, %c0_156] : memref<8x8x32xf32, #tpu.memory_space<vmem>>, vector<1x8x32xf32>
    %480 = vector.shape_cast %479 : vector<1x8x32xf32> to vector<8x32xf32>
    %481 = vector.shape_cast %477 : vector<8x32xf32> to vector<1x8x32xf32>
    tpu.vector_store %arg19[%478, %c0_155, %c0_156], %481 {strides = array<i32>} : memref<8x8x32xf32, #tpu.memory_space<vmem>>, vector<1x8x32xf32>,
    %c5_i32 = arith.constant 5 : i32
    %482 = arith.index_cast %c5_i32 : i32 to index
    %c0_157 = arith.constant 0 : index
    %c0_158 = arith.constant 0 : index
    %483 = vector.load %arg1[%482, %c0_157, %c0_158] : memref<8x8x128xf32, #tpu.memory_space<vmem>>, vector<1x8x128xf32>
    %484 = vector.shape_cast %483 : vector<1x8x128xf32> to vector<8x128xf32>
    %485 = vector.broadcast %0 : vector<8x1xf32> to vector<8x32xf32>
    %486 = arith.mulf %417, %485 : vector<8x32xf32>
    %cst_159 = arith.constant dense<0.000000e+00> : vector<8x128xf32>
    %487 = tpu.matmul %486, %4, %cst_159 {dimension_numbers = #tpu.dot_dimension_numbers<[1], [0], [0], [1], [0, 0, 1, 1], [], []>} : vector<8x32xf32>, vector<32x128xf32>, vector<8x128xf32> -> vector<8x128xf32>
    %488 = arith.addf %484, %487 : vector<8x128xf32>
    %489 = vector.broadcast %2 : vector<8x1xf32> to vector<8x32xf32>
    %490 = arith.mulf %417, %489 : vector<8x32xf32>
    %cst_160 = arith.constant dense<0.000000e+00> : vector<8x128xf32>
    %491 = tpu.matmul %490, %6, %cst_160 {dimension_numbers = #tpu.dot_dimension_numbers<[1], [0], [0], [1], [0, 0, 1, 1], [], []>} : vector<8x32xf32>, vector<32x128xf32>, vector<8x128xf32> -> vector<8x128xf32>
    %492 = arith.addf %488, %491 : vector<8x128xf32>
    %493 = vector.extract_strided_slice %492 {offsets = [0, 0], sizes = [8, 96], strides = [1, 1]} : vector<8x128xf32> to vector<8x96xf32>
    %494 = arith.negf %493 : vector<8x96xf32>
    %495 = math.exp %494 : vector<8x96xf32>
    %cst_161 = arith.constant 1.000000e+00 : f32
    %496 = vector.broadcast %cst_161 : f32 to vector<8x96xf32>
    %497 = arith.addf %496, %495 : vector<8x96xf32>
    %498 = arith.divf %496, %497 : vector<8x96xf32>
    %499 = vector.extract_strided_slice %492 {offsets = [0, 96], sizes = [8, 32], strides = [1, 1]} : vector<8x128xf32> to vector<8x32xf32>
    %500 = math.tanh %499 : vector<8x32xf32>
    %501 = vector.extract_strided_slice %498 {offsets = [0, 0], sizes = [8, 32], strides = [1, 1]} : vector<8x96xf32> to vector<8x32xf32>
    %502 = vector.extract_strided_slice %498 {offsets = [0, 32], sizes = [8, 32], strides = [1, 1]} : vector<8x96xf32> to vector<8x32xf32>
    %503 = vector.extract_strided_slice %498 {offsets = [0, 64], sizes = [8, 32], strides = [1, 1]} : vector<8x96xf32> to vector<8x32xf32>
    %504 = arith.mulf %502, %415 : vector<8x32xf32>
    %505 = arith.mulf %501, %500 : vector<8x32xf32>
    %506 = arith.addf %504, %505 : vector<8x32xf32>
    %507 = math.tanh %506 : vector<8x32xf32>
    %508 = arith.mulf %503, %507 : vector<8x32xf32>
    %509 = arith.index_cast %c5_i32 : i32 to index
    %c0_162 = arith.constant 0 : index
    %c0_163 = arith.constant 0 : index
    %510 = vector.load %arg2[%509, %c0_162, %c0_163] : memref<8x8x1xf32, #tpu.memory_space<vmem>>, vector<1x8x1xf32>
    %511 = vector.shape_cast %510 : vector<1x8x1xf32> to vector<8x1xf32>
    %cst_164 = arith.constant dense<0.000000e+00> : vector<8x32xf32>
    %512 = tpu.matmul %508, %18, %cst_164 {dimension_numbers = #tpu.dot_dimension_numbers<[1], [0], [0], [1], [0, 0, 1, 1], [], []>} : vector<8x32xf32>, vector<32x32xf32>, vector<8x32xf32> -> vector<8x32xf32>
    %513 = vector.broadcast %19 : vector<1x32xf32> to vector<8x32xf32>
    %514 = arith.addf %512, %513 : vector<8x32xf32>
    %cst_165 = arith.constant 0.000000e+00 : f32
    %515 = vector.broadcast %cst_165 : f32 to vector<8x32xf32>
    %516 = arith.maximumf %514, %515 : vector<8x32xf32>
    %517 = vector.broadcast %511 : vector<8x1xf32> to vector<8x32xf32>
    %518 = arith.mulf %516, %517 : vector<8x32xf32>
    %cst_166 = arith.constant dense<0.000000e+00> : vector<2x32xf32>
    %519 = tpu.matmul %16, %518, %cst_166 {dimension_numbers = #tpu.dot_dimension_numbers<[1], [0], [0], [1], [0, 0, 1, 1], [], []>} : vector<2x8xf32>, vector<8x32xf32>, vector<2x32xf32> -> vector<2x32xf32>
    %cst_167 = arith.constant dense<0.000000e+00> : vector<2x1xf32>
    %520 = tpu.matmul %16, %511, %cst_167 {dimension_numbers = #tpu.dot_dimension_numbers<[1], [0], [0], [1], [0, 0, 1, 1], [], []>} : vector<2x8xf32>, vector<8x1xf32>, vector<2x1xf32> -> vector<2x1xf32>
    %cst_168 = arith.constant 1.000000e+00 : f32
    %521 = vector.broadcast %cst_168 : f32 to vector<2x1xf32>
    %522 = arith.maximumf %520, %521 : vector<2x1xf32>
    %523 = vector.broadcast %522 : vector<2x1xf32> to vector<2x32xf32>
    %524 = arith.divf %519, %523 : vector<2x32xf32>
    %cst_169 = arith.constant dense<0.000000e+00> : vector<2x16xf32>
    %525 = tpu.matmul %524, %21, %cst_169 {dimension_numbers = #tpu.dot_dimension_numbers<[1], [0], [0], [1], [0, 0, 1, 1], [], []>} : vector<2x32xf32>, vector<32x16xf32>, vector<2x16xf32> -> vector<2x16xf32>
    %cst_170 = arith.constant dense<0.000000e+00> : vector<8x16xf32>
    %526 = tpu.matmul %516, %20, %cst_170 {dimension_numbers = #tpu.dot_dimension_numbers<[1], [0], [0], [1], [0, 0, 1, 1], [], []>} : vector<8x32xf32>, vector<32x16xf32>, vector<8x16xf32> -> vector<8x16xf32>
    %cst_171 = arith.constant dense<0.000000e+00> : vector<8x16xf32>
    %527 = tpu.matmul %17, %525, %cst_171 {dimension_numbers = #tpu.dot_dimension_numbers<[1], [0], [0], [1], [0, 0, 1, 1], [], []>} : vector<8x2xf32>, vector<2x16xf32>, vector<8x16xf32> -> vector<8x16xf32>
    %528 = arith.addf %526, %527 : vector<8x16xf32>
    %529 = vector.broadcast %22 : vector<1x16xf32> to vector<8x16xf32>
    %530 = arith.addf %528, %529 : vector<8x16xf32>
    %cst_172 = arith.constant 0.000000e+00 : f32
    %531 = vector.broadcast %cst_172 : f32 to vector<8x16xf32>
    %532 = arith.maximumf %530, %531 : vector<8x16xf32>
    %533 = vector.broadcast %511 : vector<8x1xf32> to vector<8x16xf32>
    %534 = arith.mulf %532, %533 : vector<8x16xf32>
    %535 = vector.broadcast %0 : vector<8x1xf32> to vector<8x16xf32>
    %536 = arith.mulf %534, %535 : vector<8x16xf32>
    %cst_173 = arith.constant dense<0.000000e+00> : vector<8x128xf32>
    %537 = tpu.matmul %536, %8, %cst_173 {dimension_numbers = #tpu.dot_dimension_numbers<[1], [0], [0], [1], [0, 0, 1, 1], [], []>} : vector<8x16xf32>, vector<16x128xf32>, vector<8x128xf32> -> vector<8x128xf32>
    %538 = vector.broadcast %2 : vector<8x1xf32> to vector<8x16xf32>
    %539 = arith.mulf %534, %538 : vector<8x16xf32>
    %cst_174 = arith.constant dense<0.000000e+00> : vector<8x128xf32>
    %540 = tpu.matmul %539, %10, %cst_174 {dimension_numbers = #tpu.dot_dimension_numbers<[1], [0], [0], [1], [0, 0, 1, 1], [], []>} : vector<8x16xf32>, vector<16x128xf32>, vector<8x128xf32> -> vector<8x128xf32>
    %541 = arith.addf %537, %540 : vector<8x128xf32>
    %542 = arith.addf %541, %15 : vector<8x128xf32>
    %543 = vector.broadcast %0 : vector<8x1xf32> to vector<8x32xf32>
    %544 = arith.mulf %475, %543 : vector<8x32xf32>
    %cst_175 = arith.constant dense<0.000000e+00> : vector<8x128xf32>
    %545 = tpu.matmul %544, %12, %cst_175 {dimension_numbers = #tpu.dot_dimension_numbers<[1], [0], [0], [1], [0, 0, 1, 1], [], []>} : vector<8x32xf32>, vector<32x128xf32>, vector<8x128xf32> -> vector<8x128xf32>
    %546 = arith.addf %542, %545 : vector<8x128xf32>
    %547 = vector.broadcast %2 : vector<8x1xf32> to vector<8x32xf32>
    %548 = arith.mulf %475, %547 : vector<8x32xf32>
    %cst_176 = arith.constant dense<0.000000e+00> : vector<8x128xf32>
    %549 = tpu.matmul %548, %14, %cst_176 {dimension_numbers = #tpu.dot_dimension_numbers<[1], [0], [0], [1], [0, 0, 1, 1], [], []>} : vector<8x32xf32>, vector<32x128xf32>, vector<8x128xf32> -> vector<8x128xf32>
    %550 = arith.addf %546, %549 : vector<8x128xf32>
    %551 = vector.extract_strided_slice %550 {offsets = [0, 0], sizes = [8, 96], strides = [1, 1]} : vector<8x128xf32> to vector<8x96xf32>
    %552 = arith.negf %551 : vector<8x96xf32>
    %553 = math.exp %552 : vector<8x96xf32>
    %cst_177 = arith.constant 1.000000e+00 : f32
    %554 = vector.broadcast %cst_177 : f32 to vector<8x96xf32>
    %555 = arith.addf %554, %553 : vector<8x96xf32>
    %556 = arith.divf %554, %555 : vector<8x96xf32>
    %557 = vector.extract_strided_slice %550 {offsets = [0, 96], sizes = [8, 32], strides = [1, 1]} : vector<8x128xf32> to vector<8x32xf32>
    %558 = math.tanh %557 : vector<8x32xf32>
    %559 = vector.extract_strided_slice %556 {offsets = [0, 0], sizes = [8, 32], strides = [1, 1]} : vector<8x96xf32> to vector<8x32xf32>
    %560 = vector.extract_strided_slice %556 {offsets = [0, 32], sizes = [8, 32], strides = [1, 1]} : vector<8x96xf32> to vector<8x32xf32>
    %561 = vector.extract_strided_slice %556 {offsets = [0, 64], sizes = [8, 32], strides = [1, 1]} : vector<8x96xf32> to vector<8x32xf32>
    %562 = arith.mulf %560, %473 : vector<8x32xf32>
    %563 = arith.mulf %559, %558 : vector<8x32xf32>
    %564 = arith.addf %562, %563 : vector<8x32xf32>
    %565 = math.tanh %564 : vector<8x32xf32>
    %566 = arith.mulf %561, %565 : vector<8x32xf32>
    %567 = vector.broadcast %511 : vector<8x1xf32> to vector<8x32xf32>
    %568 = arith.mulf %566, %567 : vector<8x32xf32>
    %569 = arith.index_cast %c5_i32 : i32 to index
    %c0_178 = arith.constant 0 : index
    %c0_179 = arith.constant 0 : index
    %570 = vector.load %arg19[%569, %c0_178, %c0_179] : memref<8x8x32xf32, #tpu.memory_space<vmem>>, vector<1x8x32xf32>
    %571 = vector.shape_cast %570 : vector<1x8x32xf32> to vector<8x32xf32>
    %572 = vector.shape_cast %568 : vector<8x32xf32> to vector<1x8x32xf32>
    tpu.vector_store %arg19[%569, %c0_178, %c0_179], %572 {strides = array<i32>} : memref<8x8x32xf32, #tpu.memory_space<vmem>>, vector<1x8x32xf32>,
    %c6_i32 = arith.constant 6 : i32
    %573 = arith.index_cast %c6_i32 : i32 to index
    %c0_180 = arith.constant 0 : index
    %c0_181 = arith.constant 0 : index
    %574 = vector.load %arg1[%573, %c0_180, %c0_181] : memref<8x8x128xf32, #tpu.memory_space<vmem>>, vector<1x8x128xf32>
    %575 = vector.shape_cast %574 : vector<1x8x128xf32> to vector<8x128xf32>
    %576 = vector.broadcast %0 : vector<8x1xf32> to vector<8x32xf32>
    %577 = arith.mulf %508, %576 : vector<8x32xf32>
    %cst_182 = arith.constant dense<0.000000e+00> : vector<8x128xf32>
    %578 = tpu.matmul %577, %4, %cst_182 {dimension_numbers = #tpu.dot_dimension_numbers<[1], [0], [0], [1], [0, 0, 1, 1], [], []>} : vector<8x32xf32>, vector<32x128xf32>, vector<8x128xf32> -> vector<8x128xf32>
    %579 = arith.addf %575, %578 : vector<8x128xf32>
    %580 = vector.broadcast %2 : vector<8x1xf32> to vector<8x32xf32>
    %581 = arith.mulf %508, %580 : vector<8x32xf32>
    %cst_183 = arith.constant dense<0.000000e+00> : vector<8x128xf32>
    %582 = tpu.matmul %581, %6, %cst_183 {dimension_numbers = #tpu.dot_dimension_numbers<[1], [0], [0], [1], [0, 0, 1, 1], [], []>} : vector<8x32xf32>, vector<32x128xf32>, vector<8x128xf32> -> vector<8x128xf32>
    %583 = arith.addf %579, %582 : vector<8x128xf32>
    %584 = vector.extract_strided_slice %583 {offsets = [0, 0], sizes = [8, 96], strides = [1, 1]} : vector<8x128xf32> to vector<8x96xf32>
    %585 = arith.negf %584 : vector<8x96xf32>
    %586 = math.exp %585 : vector<8x96xf32>
    %cst_184 = arith.constant 1.000000e+00 : f32
    %587 = vector.broadcast %cst_184 : f32 to vector<8x96xf32>
    %588 = arith.addf %587, %586 : vector<8x96xf32>
    %589 = arith.divf %587, %588 : vector<8x96xf32>
    %590 = vector.extract_strided_slice %583 {offsets = [0, 96], sizes = [8, 32], strides = [1, 1]} : vector<8x128xf32> to vector<8x32xf32>
    %591 = math.tanh %590 : vector<8x32xf32>
    %592 = vector.extract_strided_slice %589 {offsets = [0, 0], sizes = [8, 32], strides = [1, 1]} : vector<8x96xf32> to vector<8x32xf32>
    %593 = vector.extract_strided_slice %589 {offsets = [0, 32], sizes = [8, 32], strides = [1, 1]} : vector<8x96xf32> to vector<8x32xf32>
    %594 = vector.extract_strided_slice %589 {offsets = [0, 64], sizes = [8, 32], strides = [1, 1]} : vector<8x96xf32> to vector<8x32xf32>
    %595 = arith.mulf %593, %506 : vector<8x32xf32>
    %596 = arith.mulf %592, %591 : vector<8x32xf32>
    %597 = arith.addf %595, %596 : vector<8x32xf32>
    %598 = math.tanh %597 : vector<8x32xf32>
    %599 = arith.mulf %594, %598 : vector<8x32xf32>
    %600 = arith.index_cast %c6_i32 : i32 to index
    %c0_185 = arith.constant 0 : index
    %c0_186 = arith.constant 0 : index
    %601 = vector.load %arg2[%600, %c0_185, %c0_186] : memref<8x8x1xf32, #tpu.memory_space<vmem>>, vector<1x8x1xf32>
    %602 = vector.shape_cast %601 : vector<1x8x1xf32> to vector<8x1xf32>
    %cst_187 = arith.constant dense<0.000000e+00> : vector<8x32xf32>
    %603 = tpu.matmul %599, %18, %cst_187 {dimension_numbers = #tpu.dot_dimension_numbers<[1], [0], [0], [1], [0, 0, 1, 1], [], []>} : vector<8x32xf32>, vector<32x32xf32>, vector<8x32xf32> -> vector<8x32xf32>
    %604 = vector.broadcast %19 : vector<1x32xf32> to vector<8x32xf32>
    %605 = arith.addf %603, %604 : vector<8x32xf32>
    %cst_188 = arith.constant 0.000000e+00 : f32
    %606 = vector.broadcast %cst_188 : f32 to vector<8x32xf32>
    %607 = arith.maximumf %605, %606 : vector<8x32xf32>
    %608 = vector.broadcast %602 : vector<8x1xf32> to vector<8x32xf32>
    %609 = arith.mulf %607, %608 : vector<8x32xf32>
    %cst_189 = arith.constant dense<0.000000e+00> : vector<2x32xf32>
    %610 = tpu.matmul %16, %609, %cst_189 {dimension_numbers = #tpu.dot_dimension_numbers<[1], [0], [0], [1], [0, 0, 1, 1], [], []>} : vector<2x8xf32>, vector<8x32xf32>, vector<2x32xf32> -> vector<2x32xf32>
    %cst_190 = arith.constant dense<0.000000e+00> : vector<2x1xf32>
    %611 = tpu.matmul %16, %602, %cst_190 {dimension_numbers = #tpu.dot_dimension_numbers<[1], [0], [0], [1], [0, 0, 1, 1], [], []>} : vector<2x8xf32>, vector<8x1xf32>, vector<2x1xf32> -> vector<2x1xf32>
    %cst_191 = arith.constant 1.000000e+00 : f32
    %612 = vector.broadcast %cst_191 : f32 to vector<2x1xf32>
    %613 = arith.maximumf %611, %612 : vector<2x1xf32>
    %614 = vector.broadcast %613 : vector<2x1xf32> to vector<2x32xf32>
    %615 = arith.divf %610, %614 : vector<2x32xf32>
    %cst_192 = arith.constant dense<0.000000e+00> : vector<2x16xf32>
    %616 = tpu.matmul %615, %21, %cst_192 {dimension_numbers = #tpu.dot_dimension_numbers<[1], [0], [0], [1], [0, 0, 1, 1], [], []>} : vector<2x32xf32>, vector<32x16xf32>, vector<2x16xf32> -> vector<2x16xf32>
    %cst_193 = arith.constant dense<0.000000e+00> : vector<8x16xf32>
    %617 = tpu.matmul %607, %20, %cst_193 {dimension_numbers = #tpu.dot_dimension_numbers<[1], [0], [0], [1], [0, 0, 1, 1], [], []>} : vector<8x32xf32>, vector<32x16xf32>, vector<8x16xf32> -> vector<8x16xf32>
    %cst_194 = arith.constant dense<0.000000e+00> : vector<8x16xf32>
    %618 = tpu.matmul %17, %616, %cst_194 {dimension_numbers = #tpu.dot_dimension_numbers<[1], [0], [0], [1], [0, 0, 1, 1], [], []>} : vector<8x2xf32>, vector<2x16xf32>, vector<8x16xf32> -> vector<8x16xf32>
    %619 = arith.addf %617, %618 : vector<8x16xf32>
    %620 = vector.broadcast %22 : vector<1x16xf32> to vector<8x16xf32>
    %621 = arith.addf %619, %620 : vector<8x16xf32>
    %cst_195 = arith.constant 0.000000e+00 : f32
    %622 = vector.broadcast %cst_195 : f32 to vector<8x16xf32>
    %623 = arith.maximumf %621, %622 : vector<8x16xf32>
    %624 = vector.broadcast %602 : vector<8x1xf32> to vector<8x16xf32>
    %625 = arith.mulf %623, %624 : vector<8x16xf32>
    %626 = vector.broadcast %0 : vector<8x1xf32> to vector<8x16xf32>
    %627 = arith.mulf %625, %626 : vector<8x16xf32>
    %cst_196 = arith.constant dense<0.000000e+00> : vector<8x128xf32>
    %628 = tpu.matmul %627, %8, %cst_196 {dimension_numbers = #tpu.dot_dimension_numbers<[1], [0], [0], [1], [0, 0, 1, 1], [], []>} : vector<8x16xf32>, vector<16x128xf32>, vector<8x128xf32> -> vector<8x128xf32>
    %629 = vector.broadcast %2 : vector<8x1xf32> to vector<8x16xf32>
    %630 = arith.mulf %625, %629 : vector<8x16xf32>
    %cst_197 = arith.constant dense<0.000000e+00> : vector<8x128xf32>
    %631 = tpu.matmul %630, %10, %cst_197 {dimension_numbers = #tpu.dot_dimension_numbers<[1], [0], [0], [1], [0, 0, 1, 1], [], []>} : vector<8x16xf32>, vector<16x128xf32>, vector<8x128xf32> -> vector<8x128xf32>
    %632 = arith.addf %628, %631 : vector<8x128xf32>
    %633 = arith.addf %632, %15 : vector<8x128xf32>
    %634 = vector.broadcast %0 : vector<8x1xf32> to vector<8x32xf32>
    %635 = arith.mulf %566, %634 : vector<8x32xf32>
    %cst_198 = arith.constant dense<0.000000e+00> : vector<8x128xf32>
    %636 = tpu.matmul %635, %12, %cst_198 {dimension_numbers = #tpu.dot_dimension_numbers<[1], [0], [0], [1], [0, 0, 1, 1], [], []>} : vector<8x32xf32>, vector<32x128xf32>, vector<8x128xf32> -> vector<8x128xf32>
    %637 = arith.addf %633, %636 : vector<8x128xf32>
    %638 = vector.broadcast %2 : vector<8x1xf32> to vector<8x32xf32>
    %639 = arith.mulf %566, %638 : vector<8x32xf32>
    %cst_199 = arith.constant dense<0.000000e+00> : vector<8x128xf32>
    %640 = tpu.matmul %639, %14, %cst_199 {dimension_numbers = #tpu.dot_dimension_numbers<[1], [0], [0], [1], [0, 0, 1, 1], [], []>} : vector<8x32xf32>, vector<32x128xf32>, vector<8x128xf32> -> vector<8x128xf32>
    %641 = arith.addf %637, %640 : vector<8x128xf32>
    %642 = vector.extract_strided_slice %641 {offsets = [0, 0], sizes = [8, 96], strides = [1, 1]} : vector<8x128xf32> to vector<8x96xf32>
    %643 = arith.negf %642 : vector<8x96xf32>
    %644 = math.exp %643 : vector<8x96xf32>
    %cst_200 = arith.constant 1.000000e+00 : f32
    %645 = vector.broadcast %cst_200 : f32 to vector<8x96xf32>
    %646 = arith.addf %645, %644 : vector<8x96xf32>
    %647 = arith.divf %645, %646 : vector<8x96xf32>
    %648 = vector.extract_strided_slice %641 {offsets = [0, 96], sizes = [8, 32], strides = [1, 1]} : vector<8x128xf32> to vector<8x32xf32>
    %649 = math.tanh %648 : vector<8x32xf32>
    %650 = vector.extract_strided_slice %647 {offsets = [0, 0], sizes = [8, 32], strides = [1, 1]} : vector<8x96xf32> to vector<8x32xf32>
    %651 = vector.extract_strided_slice %647 {offsets = [0, 32], sizes = [8, 32], strides = [1, 1]} : vector<8x96xf32> to vector<8x32xf32>
    %652 = vector.extract_strided_slice %647 {offsets = [0, 64], sizes = [8, 32], strides = [1, 1]} : vector<8x96xf32> to vector<8x32xf32>
    %653 = arith.mulf %651, %564 : vector<8x32xf32>
    %654 = arith.mulf %650, %649 : vector<8x32xf32>
    %655 = arith.addf %653, %654 : vector<8x32xf32>
    %656 = math.tanh %655 : vector<8x32xf32>
    %657 = arith.mulf %652, %656 : vector<8x32xf32>
    %658 = vector.broadcast %602 : vector<8x1xf32> to vector<8x32xf32>
    %659 = arith.mulf %657, %658 : vector<8x32xf32>
    %660 = arith.index_cast %c6_i32 : i32 to index
    %c0_201 = arith.constant 0 : index
    %c0_202 = arith.constant 0 : index
    %661 = vector.load %arg19[%660, %c0_201, %c0_202] : memref<8x8x32xf32, #tpu.memory_space<vmem>>, vector<1x8x32xf32>
    %662 = vector.shape_cast %661 : vector<1x8x32xf32> to vector<8x32xf32>
    %663 = vector.shape_cast %659 : vector<8x32xf32> to vector<1x8x32xf32>
    tpu.vector_store %arg19[%660, %c0_201, %c0_202], %663 {strides = array<i32>} : memref<8x8x32xf32, #tpu.memory_space<vmem>>, vector<1x8x32xf32>,
    %c7_i32 = arith.constant 7 : i32
    %664 = arith.index_cast %c7_i32 : i32 to index
    %c0_203 = arith.constant 0 : index
    %c0_204 = arith.constant 0 : index
    %665 = vector.load %arg1[%664, %c0_203, %c0_204] : memref<8x8x128xf32, #tpu.memory_space<vmem>>, vector<1x8x128xf32>
    %666 = vector.shape_cast %665 : vector<1x8x128xf32> to vector<8x128xf32>
    %667 = vector.broadcast %0 : vector<8x1xf32> to vector<8x32xf32>
    %668 = arith.mulf %599, %667 : vector<8x32xf32>
    %cst_205 = arith.constant dense<0.000000e+00> : vector<8x128xf32>
    %669 = tpu.matmul %668, %4, %cst_205 {dimension_numbers = #tpu.dot_dimension_numbers<[1], [0], [0], [1], [0, 0, 1, 1], [], []>} : vector<8x32xf32>, vector<32x128xf32>, vector<8x128xf32> -> vector<8x128xf32>
    %670 = arith.addf %666, %669 : vector<8x128xf32>
    %671 = vector.broadcast %2 : vector<8x1xf32> to vector<8x32xf32>
    %672 = arith.mulf %599, %671 : vector<8x32xf32>
    %cst_206 = arith.constant dense<0.000000e+00> : vector<8x128xf32>
    %673 = tpu.matmul %672, %6, %cst_206 {dimension_numbers = #tpu.dot_dimension_numbers<[1], [0], [0], [1], [0, 0, 1, 1], [], []>} : vector<8x32xf32>, vector<32x128xf32>, vector<8x128xf32> -> vector<8x128xf32>
    %674 = arith.addf %670, %673 : vector<8x128xf32>
    %675 = vector.extract_strided_slice %674 {offsets = [0, 0], sizes = [8, 96], strides = [1, 1]} : vector<8x128xf32> to vector<8x96xf32>
    %676 = arith.negf %675 : vector<8x96xf32>
    %677 = math.exp %676 : vector<8x96xf32>
    %cst_207 = arith.constant 1.000000e+00 : f32
    %678 = vector.broadcast %cst_207 : f32 to vector<8x96xf32>
    %679 = arith.addf %678, %677 : vector<8x96xf32>
    %680 = arith.divf %678, %679 : vector<8x96xf32>
    %681 = vector.extract_strided_slice %674 {offsets = [0, 96], sizes = [8, 32], strides = [1, 1]} : vector<8x128xf32> to vector<8x32xf32>
    %682 = math.tanh %681 : vector<8x32xf32>
    %683 = vector.extract_strided_slice %680 {offsets = [0, 0], sizes = [8, 32], strides = [1, 1]} : vector<8x96xf32> to vector<8x32xf32>
    %684 = vector.extract_strided_slice %680 {offsets = [0, 32], sizes = [8, 32], strides = [1, 1]} : vector<8x96xf32> to vector<8x32xf32>
    %685 = vector.extract_strided_slice %680 {offsets = [0, 64], sizes = [8, 32], strides = [1, 1]} : vector<8x96xf32> to vector<8x32xf32>
    %686 = arith.mulf %684, %597 : vector<8x32xf32>
    %687 = arith.mulf %683, %682 : vector<8x32xf32>
    %688 = arith.addf %686, %687 : vector<8x32xf32>
    %689 = math.tanh %688 : vector<8x32xf32>
    %690 = arith.mulf %685, %689 : vector<8x32xf32>
    %691 = arith.index_cast %c7_i32 : i32 to index
    %c0_208 = arith.constant 0 : index
    %c0_209 = arith.constant 0 : index
    %692 = vector.load %arg2[%691, %c0_208, %c0_209] : memref<8x8x1xf32, #tpu.memory_space<vmem>>, vector<1x8x1xf32>
    %693 = vector.shape_cast %692 : vector<1x8x1xf32> to vector<8x1xf32>
    %cst_210 = arith.constant dense<0.000000e+00> : vector<8x32xf32>
    %694 = tpu.matmul %690, %18, %cst_210 {dimension_numbers = #tpu.dot_dimension_numbers<[1], [0], [0], [1], [0, 0, 1, 1], [], []>} : vector<8x32xf32>, vector<32x32xf32>, vector<8x32xf32> -> vector<8x32xf32>
    %695 = vector.broadcast %19 : vector<1x32xf32> to vector<8x32xf32>
    %696 = arith.addf %694, %695 : vector<8x32xf32>
    %cst_211 = arith.constant 0.000000e+00 : f32
    %697 = vector.broadcast %cst_211 : f32 to vector<8x32xf32>
    %698 = arith.maximumf %696, %697 : vector<8x32xf32>
    %699 = vector.broadcast %693 : vector<8x1xf32> to vector<8x32xf32>
    %700 = arith.mulf %698, %699 : vector<8x32xf32>
    %cst_212 = arith.constant dense<0.000000e+00> : vector<2x32xf32>
    %701 = tpu.matmul %16, %700, %cst_212 {dimension_numbers = #tpu.dot_dimension_numbers<[1], [0], [0], [1], [0, 0, 1, 1], [], []>} : vector<2x8xf32>, vector<8x32xf32>, vector<2x32xf32> -> vector<2x32xf32>
    %cst_213 = arith.constant dense<0.000000e+00> : vector<2x1xf32>
    %702 = tpu.matmul %16, %693, %cst_213 {dimension_numbers = #tpu.dot_dimension_numbers<[1], [0], [0], [1], [0, 0, 1, 1], [], []>} : vector<2x8xf32>, vector<8x1xf32>, vector<2x1xf32> -> vector<2x1xf32>
    %cst_214 = arith.constant 1.000000e+00 : f32
    %703 = vector.broadcast %cst_214 : f32 to vector<2x1xf32>
    %704 = arith.maximumf %702, %703 : vector<2x1xf32>
    %705 = vector.broadcast %704 : vector<2x1xf32> to vector<2x32xf32>
    %706 = arith.divf %701, %705 : vector<2x32xf32>
    %cst_215 = arith.constant dense<0.000000e+00> : vector<2x16xf32>
    %707 = tpu.matmul %706, %21, %cst_215 {dimension_numbers = #tpu.dot_dimension_numbers<[1], [0], [0], [1], [0, 0, 1, 1], [], []>} : vector<2x32xf32>, vector<32x16xf32>, vector<2x16xf32> -> vector<2x16xf32>
    %cst_216 = arith.constant dense<0.000000e+00> : vector<8x16xf32>
    %708 = tpu.matmul %698, %20, %cst_216 {dimension_numbers = #tpu.dot_dimension_numbers<[1], [0], [0], [1], [0, 0, 1, 1], [], []>} : vector<8x32xf32>, vector<32x16xf32>, vector<8x16xf32> -> vector<8x16xf32>
    %cst_217 = arith.constant dense<0.000000e+00> : vector<8x16xf32>
    %709 = tpu.matmul %17, %707, %cst_217 {dimension_numbers = #tpu.dot_dimension_numbers<[1], [0], [0], [1], [0, 0, 1, 1], [], []>} : vector<8x2xf32>, vector<2x16xf32>, vector<8x16xf32> -> vector<8x16xf32>
    %710 = arith.addf %708, %709 : vector<8x16xf32>
    %711 = vector.broadcast %22 : vector<1x16xf32> to vector<8x16xf32>
    %712 = arith.addf %710, %711 : vector<8x16xf32>
    %cst_218 = arith.constant 0.000000e+00 : f32
    %713 = vector.broadcast %cst_218 : f32 to vector<8x16xf32>
    %714 = arith.maximumf %712, %713 : vector<8x16xf32>
    %715 = vector.broadcast %693 : vector<8x1xf32> to vector<8x16xf32>
    %716 = arith.mulf %714, %715 : vector<8x16xf32>
    %717 = vector.broadcast %0 : vector<8x1xf32> to vector<8x16xf32>
    %718 = arith.mulf %716, %717 : vector<8x16xf32>
    %cst_219 = arith.constant dense<0.000000e+00> : vector<8x128xf32>
    %719 = tpu.matmul %718, %8, %cst_219 {dimension_numbers = #tpu.dot_dimension_numbers<[1], [0], [0], [1], [0, 0, 1, 1], [], []>} : vector<8x16xf32>, vector<16x128xf32>, vector<8x128xf32> -> vector<8x128xf32>
    %720 = vector.broadcast %2 : vector<8x1xf32> to vector<8x16xf32>
    %721 = arith.mulf %716, %720 : vector<8x16xf32>
    %cst_220 = arith.constant dense<0.000000e+00> : vector<8x128xf32>
    %722 = tpu.matmul %721, %10, %cst_220 {dimension_numbers = #tpu.dot_dimension_numbers<[1], [0], [0], [1], [0, 0, 1, 1], [], []>} : vector<8x16xf32>, vector<16x128xf32>, vector<8x128xf32> -> vector<8x128xf32>
    %723 = arith.addf %719, %722 : vector<8x128xf32>
    %724 = arith.addf %723, %15 : vector<8x128xf32>
    %725 = vector.broadcast %0 : vector<8x1xf32> to vector<8x32xf32>
    %726 = arith.mulf %657, %725 : vector<8x32xf32>
    %cst_221 = arith.constant dense<0.000000e+00> : vector<8x128xf32>
    %727 = tpu.matmul %726, %12, %cst_221 {dimension_numbers = #tpu.dot_dimension_numbers<[1], [0], [0], [1], [0, 0, 1, 1], [], []>} : vector<8x32xf32>, vector<32x128xf32>, vector<8x128xf32> -> vector<8x128xf32>
    %728 = arith.addf %724, %727 : vector<8x128xf32>
    %729 = vector.broadcast %2 : vector<8x1xf32> to vector<8x32xf32>
    %730 = arith.mulf %657, %729 : vector<8x32xf32>
    %cst_222 = arith.constant dense<0.000000e+00> : vector<8x128xf32>
    %731 = tpu.matmul %730, %14, %cst_222 {dimension_numbers = #tpu.dot_dimension_numbers<[1], [0], [0], [1], [0, 0, 1, 1], [], []>} : vector<8x32xf32>, vector<32x128xf32>, vector<8x128xf32> -> vector<8x128xf32>
    %732 = arith.addf %728, %731 : vector<8x128xf32>
    %733 = vector.extract_strided_slice %732 {offsets = [0, 0], sizes = [8, 96], strides = [1, 1]} : vector<8x128xf32> to vector<8x96xf32>
    %734 = arith.negf %733 : vector<8x96xf32>
    %735 = math.exp %734 : vector<8x96xf32>
    %cst_223 = arith.constant 1.000000e+00 : f32
    %736 = vector.broadcast %cst_223 : f32 to vector<8x96xf32>
    %737 = arith.addf %736, %735 : vector<8x96xf32>
    %738 = arith.divf %736, %737 : vector<8x96xf32>
    %739 = vector.extract_strided_slice %732 {offsets = [0, 96], sizes = [8, 32], strides = [1, 1]} : vector<8x128xf32> to vector<8x32xf32>
    %740 = math.tanh %739 : vector<8x32xf32>
    %741 = vector.extract_strided_slice %738 {offsets = [0, 0], sizes = [8, 32], strides = [1, 1]} : vector<8x96xf32> to vector<8x32xf32>
    %742 = vector.extract_strided_slice %738 {offsets = [0, 32], sizes = [8, 32], strides = [1, 1]} : vector<8x96xf32> to vector<8x32xf32>
    %743 = vector.extract_strided_slice %738 {offsets = [0, 64], sizes = [8, 32], strides = [1, 1]} : vector<8x96xf32> to vector<8x32xf32>
    %744 = arith.mulf %742, %655 : vector<8x32xf32>
    %745 = arith.mulf %741, %740 : vector<8x32xf32>
    %746 = arith.addf %744, %745 : vector<8x32xf32>
    %747 = math.tanh %746 : vector<8x32xf32>
    %748 = arith.mulf %743, %747 : vector<8x32xf32>
    %749 = vector.broadcast %693 : vector<8x1xf32> to vector<8x32xf32>
    %750 = arith.mulf %748, %749 : vector<8x32xf32>
    %751 = arith.index_cast %c7_i32 : i32 to index
    %c0_224 = arith.constant 0 : index
    %c0_225 = arith.constant 0 : index
    %752 = vector.load %arg19[%751, %c0_224, %c0_225] : memref<8x8x32xf32, #tpu.memory_space<vmem>>, vector<1x8x32xf32>
    %753 = vector.shape_cast %752 : vector<1x8x32xf32> to vector<8x32xf32>
    %754 = vector.shape_cast %750 : vector<8x32xf32> to vector<1x8x32xf32>
    tpu.vector_store %arg19[%751, %c0_224, %c0_225], %754 {strides = array<i32>} : memref<8x8x32xf32, #tpu.memory_space<vmem>>, vector<1x8x32xf32>,
    %c8_i32 = arith.constant 8 : i32
    %c0_226 = arith.constant 0 : index
    %c0_227 = arith.constant 0 : index
    %755 = vector.load %arg20[%c0_226, %c0_227] : memref<8x32xf32, #tpu.memory_space<vmem>>, vector<8x32xf32>
    tpu.vector_store %arg20[%c0_226, %c0_227], %690 {strides = array<i32>} : memref<8x32xf32, #tpu.memory_space<vmem>>, vector<8x32xf32>,
    %c0_228 = arith.constant 0 : index
    %c0_229 = arith.constant 0 : index
    %756 = vector.load %arg21[%c0_228, %c0_229] : memref<8x32xf32, #tpu.memory_space<vmem>>, vector<8x32xf32>
    tpu.vector_store %arg21[%c0_228, %c0_229], %688 {strides = array<i32>} : memref<8x32xf32, #tpu.memory_space<vmem>>, vector<8x32xf32>,
    %c0_230 = arith.constant 0 : index
    %c0_231 = arith.constant 0 : index
    %757 = vector.load %arg22[%c0_230, %c0_231] : memref<8x32xf32, #tpu.memory_space<vmem>>, vector<8x32xf32>
    tpu.vector_store %arg22[%c0_230, %c0_231], %748 {strides = array<i32>} : memref<8x32xf32, #tpu.memory_space<vmem>>, vector<8x32xf32>,
    %c0_232 = arith.constant 0 : index
    %c0_233 = arith.constant 0 : index
    %758 = vector.load %arg23[%c0_232, %c0_233] : memref<8x32xf32, #tpu.memory_space<vmem>>, vector<8x32xf32>
    tpu.vector_store %arg23[%c0_232, %c0_233], %746 {strides = array<i32>} : memref<8x32xf32, #tpu.memory_space<vmem>>, vector<8x32xf32>,
    return
  }
  func.func @transform_0(%arg0: i32) -> (i32, i32, i32) {
    %c0_i32 = arith.constant 0 : i32
    %c0_i32_0 = arith.constant 0 : i32
    %c0_i32_1 = arith.constant 0 : i32
    %c0_i32_2 = arith.constant 0 : i32
    return %c0_i32, %c0_i32_0, %c0_i32_1 : i32, i32, i32
  }
  func.func @transform_1(%arg0: i32) -> (i32, i32, i32) {
    %c0_i32 = arith.constant 0 : i32
    %c0_i32_0 = arith.constant 0 : i32
    %c0_i32_1 = arith.constant 0 : i32
    %c0_i32_2 = arith.constant 0 : i32
    return %c0_i32, %c0_i32_0, %c0_i32_1 : i32, i32, i32
  }
  func.func @transform_2(%arg0: i32) -> (i32, i32) {
    %c0_i32 = arith.constant 0 : i32
    %c0_i32_0 = arith.constant 0 : i32
    %c0_i32_1 = arith.constant 0 : i32
    return %c0_i32, %c0_i32_0 : i32, i32
  }
  func.func @transform_3(%arg0: i32) -> (i32, i32) {
    %c0_i32 = arith.constant 0 : i32
    %c0_i32_0 = arith.constant 0 : i32
    %c0_i32_1 = arith.constant 0 : i32
    return %c0_i32, %c0_i32_0 : i32, i32
  }
  func.func @transform_4(%arg0: i32) -> (i32, i32, i32) {
    %c0_i32 = arith.constant 0 : i32
    %c0_i32_0 = arith.constant 0 : i32
    %c0_i32_1 = arith.constant 0 : i32
    %c0_i32_2 = arith.constant 0 : i32
    return %c0_i32, %c0_i32_0, %c0_i32_1 : i32, i32, i32
  }
  func.func @transform_5(%arg0: i32) -> (i32, i32, i32) {
    %c0_i32 = arith.constant 0 : i32
    %c0_i32_0 = arith.constant 0 : i32
    %c0_i32_1 = arith.constant 0 : i32
    %c0_i32_2 = arith.constant 0 : i32
    return %c0_i32, %c0_i32_0, %c0_i32_1 : i32, i32, i32
  }
  func.func @transform_6(%arg0: i32) -> (i32, i32, i32) {
    %c0_i32 = arith.constant 0 : i32
    %c0_i32_0 = arith.constant 0 : i32
    %c0_i32_1 = arith.constant 0 : i32
    %c0_i32_2 = arith.constant 0 : i32
    return %c0_i32, %c0_i32_0, %c0_i32_1 : i32, i32, i32
  }
  func.func @transform_7(%arg0: i32) -> (i32, i32) {
    %c0_i32 = arith.constant 0 : i32
    %c0_i32_0 = arith.constant 0 : i32
    %c0_i32_1 = arith.constant 0 : i32
    return %c0_i32, %c0_i32_0 : i32, i32
  }
  func.func @transform_8(%arg0: i32) -> (i32, i32) {
    %c0_i32 = arith.constant 0 : i32
    %c0_i32_0 = arith.constant 0 : i32
    %c0_i32_1 = arith.constant 0 : i32
    return %c0_i32, %c0_i32_0 : i32, i32
  }
  func.func @transform_9(%arg0: i32) -> (i32, i32) {
    %c0_i32 = arith.constant 0 : i32
    %c0_i32_0 = arith.constant 0 : i32
    %c0_i32_1 = arith.constant 0 : i32
    return %c0_i32, %c0_i32_0 : i32, i32
  }
  func.func @transform_10(%arg0: i32) -> (i32, i32) {
    %c0_i32 = arith.constant 0 : i32
    %c0_i32_0 = arith.constant 0 : i32
    %c0_i32_1 = arith.constant 0 : i32
    return %c0_i32, %c0_i32_0 : i32, i32
  }
  func.func @transform_11(%arg0: i32) -> (i32, i32) {
    %c0_i32 = arith.constant 0 : i32
    %c0_i32_0 = arith.constant 0 : i32
    %c0_i32_1 = arith.constant 0 : i32
    return %c0_i32, %c0_i32_0 : i32, i32
  }
  func.func @transform_12(%arg0: i32) -> (i32, i32) {
    %c0_i32 = arith.constant 0 : i32
    %c0_i32_0 = arith.constant 0 : i32
    %c0_i32_1 = arith.constant 0 : i32
    return %c0_i32, %c0_i32_0 : i32, i32
  }
  func.func @transform_13(%arg0: i32) -> (i32, i32) {
    %c0_i32 = arith.constant 0 : i32
    %c0_i32_0 = arith.constant 0 : i32
    %c0_i32_1 = arith.constant 0 : i32
    return %c0_i32, %c0_i32_0 : i32, i32
  }
  func.func @transform_14(%arg0: i32) -> (i32, i32) {
    %c0_i32 = arith.constant 0 : i32
    %c0_i32_0 = arith.constant 0 : i32
    %c0_i32_1 = arith.constant 0 : i32
    return %c0_i32, %c0_i32_0 : i32, i32
  }
  func.func @transform_15(%arg0: i32) -> (i32, i32) {
    %c0_i32 = arith.constant 0 : i32
    %c0_i32_0 = arith.constant 0 : i32
    %c0_i32_1 = arith.constant 0 : i32
    return %c0_i32, %c0_i32_0 : i32, i32
  }
  func.func @transform_16(%arg0: i32) -> (i32, i32) {
    %c0_i32 = arith.constant 0 : i32
    %c0_i32_0 = arith.constant 0 : i32
    %c0_i32_1 = arith.constant 0 : i32
    return %c0_i32, %c0_i32_0 : i32, i32
  }
  func.func @transform_17(%arg0: i32) -> (i32, i32) {
    %c0_i32 = arith.constant 0 : i32
    %c0_i32_0 = arith.constant 0 : i32
    %c0_i32_1 = arith.constant 0 : i32
    return %c0_i32, %c0_i32_0 : i32, i32
  }
  func.func @transform_18(%arg0: i32) -> (i32, i32, i32) {
    %c0_i32 = arith.constant 0 : i32
    %c0_i32_0 = arith.constant 0 : i32
    %c0_i32_1 = arith.constant 0 : i32
    %c0_i32_2 = arith.constant 0 : i32
    return %c0_i32, %c0_i32_0, %c0_i32_1 : i32, i32, i32
  }
  func.func @transform_19(%arg0: i32) -> (i32, i32) {
    %c0_i32 = arith.constant 0 : i32
    %c0_i32_0 = arith.constant 0 : i32
    %c0_i32_1 = arith.constant 0 : i32
    return %c0_i32, %c0_i32_0 : i32, i32
  }
  func.func @transform_20(%arg0: i32) -> (i32, i32) {
    %c0_i32 = arith.constant 0 : i32
    %c0_i32_0 = arith.constant 0 : i32
    %c0_i32_1 = arith.constant 0 : i32
    return %c0_i32, %c0_i32_0 : i32, i32
  }
  func.func @transform_21(%arg0: i32) -> (i32, i32) {
    %c0_i32 = arith.constant 0 : i32
    %c0_i32_0 = arith.constant 0 : i32
    %c0_i32_1 = arith.constant 0 : i32
    return %c0_i32, %c0_i32_0 : i32, i32
  }
  func.func @transform_22(%arg0: i32) -> (i32, i32) {
    %c0_i32 = arith.constant 0 : i32
    %c0_i32_0 = arith.constant 0 : i32
    %c0_i32_1 = arith.constant 0 : i32
    return %c0_i32, %c0_i32_0 : i32, i32
  }
}

</mosaic_0001>

<llo_original>
// kernel: gnn_lstm2_forward.1
$region0: #{gnn_lstm2_forward.1}
  #allocation0 [shape = 'u32[]', space=smem, size = 0x4, offset = 0x4, fixed_abs, tag = 'smem constant byte address 0x4 - core index']
  #allocation1 [shape = 'u32[144,128]{1,0:T(1,128)}', space=vmem, size = 0x12000, scoped, tag = 'internal scratch']
  %s0 = inlined_call_operand.vmem [shape: f32[8,8,128], index: 0, kind: input, shape index: {}]
  %s1 = inlined_call_operand.vmem [shape: f32[8,8,1], index: 1, kind: input, shape index: {}]
  %s2 = inlined_call_operand.vmem [shape: f32[8,1], index: 2, kind: input, shape index: {}]
  %s3 = inlined_call_operand.vmem [shape: f32[8,128], index: 3, kind: input, shape index: {}]
  %s4 = inlined_call_operand.vmem [shape: f32[2,32,128], index: 4, kind: input, shape index: {}]
  %s5 = inlined_call_operand.vmem [shape: f32[2,16,128], index: 5, kind: input, shape index: {}]
  %s6 = inlined_call_operand.vmem [shape: f32[2,32,128], index: 6, kind: input, shape index: {}]
  %s7 = inlined_call_operand.vmem [shape: f32[2,8], index: 7, kind: input, shape index: {}]
  %s8 = inlined_call_operand.vmem [shape: f32[8,2], index: 8, kind: input, shape index: {}]
  %s9 = inlined_call_operand.vmem [shape: f32[32,32], index: 9, kind: input, shape index: {}]
  %s10 = inlined_call_operand.vmem [shape: f32[1,32], index: 10, kind: input, shape index: {}]
  %s11 = inlined_call_operand.vmem [shape: f32[32,16], index: 11, kind: input, shape index: {}]
  %s12 = inlined_call_operand.vmem [shape: f32[32,16], index: 12, kind: input, shape index: {}]
  %s13 = inlined_call_operand.vmem [shape: f32[1,16], index: 13, kind: input, shape index: {}]
  %s14 = inlined_call_operand.vmem [shape: f32[8,32], index: 14, kind: input, shape index: {}]
  %s15 = inlined_call_operand.vmem [shape: f32[8,32], index: 15, kind: input, shape index: {}]
  %s16 = inlined_call_operand.vmem [shape: f32[8,32], index: 16, kind: input, shape index: {}]
  %s17 = inlined_call_operand.vmem [shape: f32[8,32], index: 17, kind: input, shape index: {}]
  %s18 = inlined_call_operand.vmem [shape: f32[8,8,32], index: 18, kind: output, shape index: {0}]
  %s19 = inlined_call_operand.hbm [shape: f32[8,32], index: 19, kind: output, shape index: {1}]
  %s20 = inlined_call_operand.hbm [shape: f32[8,32], index: 20, kind: output, shape index: {2}]
  %s21 = inlined_call_operand.hbm [shape: f32[8,32], index: 21, kind: output, shape index: {3}]
  %s22 = inlined_call_operand.hbm [shape: f32[8,32], index: 22, kind: output, shape index: {4}]
  %23 = xla_tuple %s18, %s19, %s20, %s21, %s22
  %s24 = sld [smem:[#allocation0]]
  $region114: #{gnn_lstm2_forward.1} parent=0
    _
  %s26 = ssub.s32 1, %s24
  %s27 = scalar_select 0, %s26, %s24
  $region1: #{gnn_lstm2_forward.1} parent=0
    #allocation2 [shape = 'u8[4096]{0}', space=vmem, size = 0x1000, scoped, tag = 'output window, operand 1, single buffered']
    #allocation3 [shape = 's32[1]{0}', space=sflag, size = 0x4, scoped, tag = 'scoped memory for gnn_lstm2_forward.1']
    #allocation4 [shape = 'u8[4096]{0}', space=vmem, size = 0x1000, scoped, tag = 'output window, operand 2, single buffered']
    #allocation5 [shape = 's32[1]{0}', space=sflag, size = 0x4, scoped, tag = 'scoped memory for gnn_lstm2_forward.1']
    #allocation6 [shape = 'u8[4096]{0}', space=vmem, size = 0x1000, scoped, tag = 'output window, operand 3, single buffered']
    #allocation7 [shape = 'u8[4096]{0}', space=vmem, size = 0x1000, scoped, tag = 'output window, operand 4, single buffered']
    #allocation8 [shape = 's32[1]{0}', space=sflag, size = 0x4, scoped, tag = 'scoped memory for gnn_lstm2_forward.1']
    %28 = vsyncpa [#allocation3], 0
    %29 = vsyncpa [#allocation5], 0
    %30 = vsyncpa [#allocation8], 0
    // Predicated region
    $region2: #{gnn_lstm2_forward.1} parent=1 // pred_check
      _
    $region3: #{gnn_lstm2_forward.1} parent=1 // pred_check_branch
      %32 = sbr.rel (0) target = $region5
    $region4: #{gnn_lstm2_forward.1} parent=1 // pred_region
      _
    $region5: #{gnn_lstm2_forward.1} parent=1 // pred_fallthru
      _
    // Predicated region
    $region6: #{gnn_lstm2_forward.1} parent=1 // pred_check
      _
    $region7: #{gnn_lstm2_forward.1} parent=1 // pred_check_branch
      %34 = sbr.rel (0) target = $region9
    $region8: #{gnn_lstm2_forward.1} parent=1 // pred_region
      _
    $region9: #{gnn_lstm2_forward.1} parent=1 // pred_fallthru
      _
    // Predicated region
    $region10: #{gnn_lstm2_forward.1} parent=1 // pred_check
      _
    $region11: #{gnn_lstm2_forward.1} parent=1 // pred_check_branch
      %36 = sbr.rel (0) target = $region13
    $region12: #{gnn_lstm2_forward.1} parent=1 // pred_region
      _
    $region13: #{gnn_lstm2_forward.1} parent=1 // pred_fallthru
      _
    // Predicated region
    $region14: #{gnn_lstm2_forward.1} parent=1 // pred_check
      _
    $region15: #{gnn_lstm2_forward.1} parent=1 // pred_check_branch
      %38 = sbr.rel (0) target = $region17
    $region16: #{gnn_lstm2_forward.1} parent=1 // pred_region
      _
    $region17: #{gnn_lstm2_forward.1} parent=1 // pred_fallthru
      _
    // Predicated region
    $region18: #{gnn_lstm2_forward.1} parent=1 // pred_check
      _
    $region19: #{gnn_lstm2_forward.1} parent=1 // pred_check_branch
      %40 = sbr.rel (0) target = $region21
    $region20: #{gnn_lstm2_forward.1} parent=1 // pred_region
      _
    $region21: #{gnn_lstm2_forward.1} parent=1 // pred_fallthru
      _
    // Predicated region
    $region22: #{gnn_lstm2_forward.1} parent=1 // pred_check
      _
    $region23: #{gnn_lstm2_forward.1} parent=1 // pred_check_branch
      %42 = sbr.rel (0) target = $region25
    $region24: #{gnn_lstm2_forward.1} parent=1 // pred_region
      _
    $region25: #{gnn_lstm2_forward.1} parent=1 // pred_fallthru
      _
    // Predicated region
    $region26: #{gnn_lstm2_forward.1} parent=1 // pred_check
      _
    $region27: #{gnn_lstm2_forward.1} parent=1 // pred_check_branch
      %44 = sbr.rel (0) target = $region29
    $region28: #{gnn_lstm2_forward.1} parent=1 // pred_region
      _
    $region29: #{gnn_lstm2_forward.1} parent=1 // pred_fallthru
      _
    // Predicated region
    $region30: #{gnn_lstm2_forward.1} parent=1 // pred_check
      _
    $region31: #{gnn_lstm2_forward.1} parent=1 // pred_check_branch
      %46 = sbr.rel (0) target = $region33
    $region32: #{gnn_lstm2_forward.1} parent=1 // pred_region
      _
    $region33: #{gnn_lstm2_forward.1} parent=1 // pred_fallthru
      _
    // Predicated region
    $region34: #{gnn_lstm2_forward.1} parent=1 // pred_check
      _
    $region35: #{gnn_lstm2_forward.1} parent=1 // pred_check_branch
      %48 = sbr.rel (0) target = $region37
    $region36: #{gnn_lstm2_forward.1} parent=1 // pred_region
      _
    $region37: #{gnn_lstm2_forward.1} parent=1 // pred_fallthru
      _
    // Predicated region
    $region38: #{gnn_lstm2_forward.1} parent=1 // pred_check
      _
    $region39: #{gnn_lstm2_forward.1} parent=1 // pred_check_branch
      %50 = sbr.rel (0) target = $region41
    $region40: #{gnn_lstm2_forward.1} parent=1 // pred_region
      _
    $region41: #{gnn_lstm2_forward.1} parent=1 // pred_fallthru
      _
    // Predicated region
    $region42: #{gnn_lstm2_forward.1} parent=1 // pred_check
      _
    $region43: #{gnn_lstm2_forward.1} parent=1 // pred_check_branch
      %52 = sbr.rel (0) target = $region45
    $region44: #{gnn_lstm2_forward.1} parent=1 // pred_region
      _
    $region45: #{gnn_lstm2_forward.1} parent=1 // pred_fallthru
      _
    // Predicated region
    $region46: #{gnn_lstm2_forward.1} parent=1 // pred_check
      _
    $region47: #{gnn_lstm2_forward.1} parent=1 // pred_check_branch
      %54 = sbr.rel (0) target = $region49
    $region48: #{gnn_lstm2_forward.1} parent=1 // pred_region
      _
    $region49: #{gnn_lstm2_forward.1} parent=1 // pred_fallthru
      _
    // Predicated region
    $region50: #{gnn_lstm2_forward.1} parent=1 // pred_check
      _
    $region51: #{gnn_lstm2_forward.1} parent=1 // pred_check_branch
      %56 = sbr.rel (0) target = $region53
    $region52: #{gnn_lstm2_forward.1} parent=1 // pred_region
      _
    $region53: #{gnn_lstm2_forward.1} parent=1 // pred_fallthru
      _
    // Predicated region
    $region54: #{gnn_lstm2_forward.1} parent=1 // pred_check
      _
    $region55: #{gnn_lstm2_forward.1} parent=1 // pred_check_branch
      %58 = sbr.rel (0) target = $region57
    $region56: #{gnn_lstm2_forward.1} parent=1 // pred_region
      _
    $region57: #{gnn_lstm2_forward.1} parent=1 // pred_fallthru
      _
    // Predicated region
    $region58: #{gnn_lstm2_forward.1} parent=1 // pred_check
      _
    $region59: #{gnn_lstm2_forward.1} parent=1 // pred_check_branch
      %60 = sbr.rel (0) target = $region61
    $region60: #{gnn_lstm2_forward.1} parent=1 // pred_region
      _
    $region61: #{gnn_lstm2_forward.1} parent=1 // pred_fallthru
      _
    // Predicated region
    $region62: #{gnn_lstm2_forward.1} parent=1 // pred_check
      _
    $region63: #{gnn_lstm2_forward.1} parent=1 // pred_check_branch
      %62 = sbr.rel (0) target = $region65
    $region64: #{gnn_lstm2_forward.1} parent=1 // pred_region
      _
    $region65: #{gnn_lstm2_forward.1} parent=1 // pred_fallthru
      _
    // Predicated region
    $region66: #{gnn_lstm2_forward.1} parent=1 // pred_check
      _
    $region67: #{gnn_lstm2_forward.1} parent=1 // pred_check_branch
      %64 = sbr.rel (0) target = $region69
    $region68: #{gnn_lstm2_forward.1} parent=1 // pred_region
      _
    $region69: #{gnn_lstm2_forward.1} parent=1 // pred_fallthru
      _
    // Predicated region
    $region70: #{gnn_lstm2_forward.1} parent=1 // pred_check
      _
    $region71: #{gnn_lstm2_forward.1} parent=1 // pred_check_branch
      %66 = sbr.rel (0) target = $region73
    $region72: #{gnn_lstm2_forward.1} parent=1 // pred_region
      _
    $region73: #{gnn_lstm2_forward.1} parent=1 // pred_fallthru
      _
    %v67 = vld [vmem:[%s2] sm:$0xff]
    %v68 = vsub.f32 1.0, %v67
    %v69 = vld [vmem:[%s4] sm:$0xff]
    %v70 = vld [vmem:[%s4 + $0x8] sm:$0xff]
    %v71 = vld [vmem:[%s4 + $0x10] sm:$0xff]
    %v72 = vld [vmem:[%s4 + $0x18] sm:$0xff]
    %s73 = scalar_lea.vmem %s4, 32
    %v74 = vld [vmem:[%s73] sm:$0xff]
    %v75 = vld [vmem:[%s73 + $0x8] sm:$0xff]
    %v76 = vld [vmem:[%s73 + $0x10] sm:$0xff]
    %v77 = vld [vmem:[%s73 + $0x18] sm:$0xff]
    %v78 = vld [vmem:[%s5] sm:$0xff]
    %v79 = vld [vmem:[%s5 + $0x8] sm:$0xff]
    %s80 = scalar_lea.vmem %s5, 16
    %v81 = vld [vmem:[%s80] sm:$0xff]
    %v82 = vld [vmem:[%s80 + $0x8] sm:$0xff]
    %v83 = vld [vmem:[%s6] sm:$0xff]
    %v84 = vld [vmem:[%s6 + $0x8] sm:$0xff]
    %v85 = vld [vmem:[%s6 + $0x10] sm:$0xff]
    %v86 = vld [vmem:[%s6 + $0x18] sm:$0xff]
    %s87 = scalar_lea.vmem %s6, 32
    %v88 = vld [vmem:[%s87] sm:$0xff]
    %v89 = vld [vmem:[%s87 + $0x8] sm:$0xff]
    %v90 = vld [vmem:[%s87 + $0x10] sm:$0xff]
    %v91 = vld [vmem:[%s87 + $0x18] sm:$0xff]
    %v92 = vld [vmem:[%s3] sm:$0xff]
    %v93 = vld [vmem:[%s7] sm:$0x3]
    %v94 = vld [vmem:[%s8] sm:$0xff]
    %v95 = vld [vmem:[%s9] sm:$0xff]
    %v96 = vld [vmem:[%s9 + $0x8] sm:$0xff]
    %v97 = vld [vmem:[%s9 + $0x10] sm:$0xff]
    %v98 = vld [vmem:[%s9 + $0x18] sm:$0xff]
    %v99 = vld [vmem:[%s10] sm:$0x1]
    %v100 = vld [vmem:[%s11] sm:$0xff]
    %v101 = vld [vmem:[%s11 + $0x8] sm:$0xff]
    %v102 = vld [vmem:[%s11 + $0x10] sm:$0xff]
    %v103 = vld [vmem:[%s11 + $0x18] sm:$0xff]
    %v104 = vld [vmem:[%s12] sm:$0xff]
    %v105 = vld [vmem:[%s12 + $0x8] sm:$0xff]
    %v106 = vld [vmem:[%s12 + $0x10] sm:$0xff]
    %v107 = vld [vmem:[%s12 + $0x18] sm:$0xff]
    %v108 = vld [vmem:[%s13] sm:$0x1]
    %v109 = vld [vmem:[%s14] sm:$0xff]
    %v110 = vld [vmem:[%s15] sm:$0xff]
    %v111 = vld [vmem:[%s16] sm:$0xff]
    %v112 = vld [vmem:[%s17] sm:$0xff]
    %v113 = vld [vmem:[%s0] sm:$0xff]
    %115 = vset.pattern.permute.xlu0 0
    %116 = vperm.xlu0 %115, %v67
    %v117 = vpop.permute.xlu0 %116
    %v119 = vmul.f32 %v109, %v117
    %vm120 = vcmask 261120
    %v122 = vsel %vm120, %v119, 0
    %124 = vmatprep.subr.mxu0 0.0
    %125 = vmatpush1.msra.mxu0 %v69
    %126 = vmatprep.subr.mxu0 0.0
    %127 = vmatpush1.msra.mxu0 %v70
    %128 = vmatprep.subr.mxu0 0.0
    %129 = vmatpush1.msra.mxu0 %v71
    %130 = vmatprep.subr.mxu0 0.0
    %131 = vmatpush1.msra.mxu0 %v72
    %132 = vmatprep.subr.mxu0 0.0
    %133 = vmatpush1.msra.mxu0 0.0
    %134 = vmatprep.subr.mxu0 0.0
    %135 = vmatpush1.msra.mxu0 0.0
    %136 = vmatprep.subr.mxu0 0.0
    %137 = vmatpush1.msra.mxu0 0.0
    %138 = vmatprep.subr.mxu0 0.0
    %139 = vmatpush1.msra.mxu0 0.0
    %140 = vmatprep.subr.mxu0 0.0
    %141 = vmatpush1.msra.mxu0 0.0
    %142 = vmatprep.subr.mxu0 0.0
    %143 = vmatpush1.msra.mxu0 0.0
    %144 = vmatprep.subr.mxu0 0.0
    %145 = vmatpush1.msra.mxu0 0.0
    %146 = vmatprep.subr.mxu0 0.0
    %147 = vmatpush1.msra.mxu0 0.0
    %148 = vmatprep.subr.mxu0 0.0
    %149 = vmatpush1.msra.mxu0 0.0
    %150 = vmatprep.subr.mxu0 0.0
    %151 = vmatpush1.msra.mxu0 0.0
    %152 = vmatprep.subr.mxu0 0.0
    %153 = vmatpush1.msra.mxu0 0.0
    %154 = vmatprep.subr.mxu0 0.0
    %155 = vmatpush1.msra.mxu0 0.0
    %156 = vmatprep.subr.mxu0 0.0
    %157 = vmatpush1.msra.mxu0 0.0
    %158 = vmatprep.subr.mxu0 0.0
    %159 = vmatpush1.msra.mxu0 0.0
    %160 = vmatprep.subr.mxu0 0.0
    %161 = vmatpush1.msra.mxu0 0.0
    %162 = vmatprep.subr.mxu0 0.0
    %163 = vmatpush1.msra.mxu0 0.0
    %164 = vmatprep.subr.mxu0 0.0
    %165 = vmatpush1.msra.mxu0 0.0
    %166 = vmatprep.subr.mxu0 0.0
    %167 = vmatpush1.msra.mxu0 0.0
    %168 = vmatprep.subr.mxu0 0.0
    %169 = vmatpush1.msra.mxu0 0.0
    %170 = vmatprep.subr.mxu0 0.0
    %171 = vmatpush1.msra.mxu0 0.0
    %172 = vmatprep.subr.mxu0 0.0
    %173 = vmatpush1.msra.mxu0 0.0
    %174 = vmatprep.subr.mxu0 0.0
    %175 = vmatpush1.msra.mxu0 0.0
    %176 = vmatprep.subr.mxu0 0.0
    %177 = vmatpush1.msra.mxu0 0.0
    %178 = vmatprep.subr.mxu0 0.0
    %179 = vmatpush1.msra.mxu0 0.0
    %180 = vmatprep.subr.mxu0 0.0
    %181 = vmatpush1.msra.mxu0 0.0
    %182 = vmatprep.subr.mxu0 0.0
    %183 = vmatpush1.msra.mxu0 0.0
    %184 = vmatprep.subr.mxu0 0.0
    %185 = vmatpush1.msra.mxu0 0.0
    %186 = vmatprep.subr.mxu0 0.0
    %187 = vmatpush1.msra.mxu0 0.0
    %188 = vmatprep.mubr.f32.mxu0 0.0
    %189 = vmatmul.mubr.f32.gmra.mrb[0].mxu0 %v122
    %v190 = vpop.f32.mrb[0].mxu0
    %v191 = vadd.f32 0.0, %v190
    %v192 = vpop.f32.mrb[0].mxu0
    %193 = vdwg.mxu0
    %v194 = vadd.f32 %v113, %v191
    %196 = vset.pattern.permute.xlu0 0
    %197 = vperm.xlu0 %196, %v68
    %v198 = vpop.permute.xlu0 %197
    %v200 = vmul.f32 %v109, %v198
    %v202 = vsel %vm120, %v200, 0
    %204 = vmatprep.subr.mxu0 0.0
    %205 = vmatpush1.msra.mxu0 %v74
    %206 = vmatprep.subr.mxu0 0.0
    %207 = vmatpush1.msra.mxu0 %v75
    %208 = vmatprep.subr.mxu0 0.0
    %209 = vmatpush1.msra.mxu0 %v76
    %210 = vmatprep.subr.mxu0 0.0
    %211 = vmatpush1.msra.mxu0 %v77
    %212 = vmatprep.subr.mxu0 0.0
    %213 = vmatpush1.msra.mxu0 0.0
    %214 = vmatprep.subr.mxu0 0.0
    %215 = vmatpush1.msra.mxu0 0.0
    %216 = vmatprep.subr.mxu0 0.0
    %217 = vmatpush1.msra.mxu0 0.0
    %218 = vmatprep.subr.mxu0 0.0
    %219 = vmatpush1.msra.mxu0 0.0
    %220 = vmatprep.subr.mxu0 0.0
    %221 = vmatpush1.msra.mxu0 0.0
    %222 = vmatprep.subr.mxu0 0.0
    %223 = vmatpush1.msra.mxu0 0.0
    %224 = vmatprep.subr.mxu0 0.0
    %225 = vmatpush1.msra.mxu0 0.0
    %226 = vmatprep.subr.mxu0 0.0
    %227 = vmatpush1.msra.mxu0 0.0
    %228 = vmatprep.subr.mxu0 0.0
    %229 = vmatpush1.msra.mxu0 0.0
    %230 = vmatprep.subr.mxu0 0.0
    %231 = vmatpush1.msra.mxu0 0.0
    %232 = vmatprep.subr.mxu0 0.0
    %233 = vmatpush1.msra.mxu0 0.0
    %234 = vmatprep.subr.mxu0 0.0
    %235 = vmatpush1.msra.mxu0 0.0
    %236 = vmatprep.subr.mxu0 0.0
    %237 = vmatpush1.msra.mxu0 0.0
    %238 = vmatprep.subr.mxu0 0.0
    %239 = vmatpush1.msra.mxu0 0.0
    %240 = vmatprep.subr.mxu0 0.0
    %241 = vmatpush1.msra.mxu0 0.0
    %242 = vmatprep.subr.mxu0 0.0
    %243 = vmatpush1.msra.mxu0 0.0
    %244 = vmatprep.subr.mxu0 0.0
    %245 = vmatpush1.msra.mxu0 0.0
    %246 = vmatprep.subr.mxu0 0.0
    %247 = vmatpush1.msra.mxu0 0.0
    %248 = vmatprep.subr.mxu0 0.0
    %249 = vmatpush1.msra.mxu0 0.0
    %250 = vmatprep.subr.mxu0 0.0
    %251 = vmatpush1.msra.mxu0 0.0
    %252 = vmatprep.subr.mxu0 0.0
    %253 = vmatpush1.msra.mxu0 0.0
    %254 = vmatprep.subr.mxu0 0.0
    %255 = vmatpush1.msra.mxu0 0.0
    %256 = vmatprep.subr.mxu0 0.0
    %257 = vmatpush1.msra.mxu0 0.0
    %258 = vmatprep.subr.mxu0 0.0
    %259 = vmatpush1.msra.mxu0 0.0
    %260 = vmatprep.subr.mxu0 0.0
    %261 = vmatpush1.msra.mxu0 0.0
    %262 = vmatprep.subr.mxu0 0.0
    %263 = vmatpush1.msra.mxu0 0.0
    %264 = vmatprep.subr.mxu0 0.0
    %265 = vmatpush1.msra.mxu0 0.0
    %266 = vmatprep.subr.mxu0 0.0
    %267 = vmatpush1.msra.mxu0 0.0
    %268 = vmatprep.mubr.f32.mxu0 0.0
    %269 = vmatmul.mubr.f32.gmra.mrb[0].mxu0 %v202
    %v270 = vpop.f32.mrb[0].mxu0
    %v271 = vadd.f32 0.0, %v270
    %v272 = vpop.f32.mrb[0].mxu0
    %273 = vdwg.mxu0
    %v274 = vadd.f32 %v194, %v271
    %v275 = vxor.u32 %v274, 2147483648
    %v276 = vmul.f32 %v275, 1.442695
    %v277 = vpow.pop %v276
    %v278 = vadd.f32 %v277, 1.0
    %v279 = vrcp.pop %v278
    %v280 = vmul.f32 1.0, %v279
    %v281 = vtanh.pop %v274
    %283 = vrot.lane.b32.xlu0 %v110, 32
    %v284 = vpop.permute.xlu0 %283
    %v286 = vmul.f32 %v280, %v284
    %288 = vrot.lane.b32.xlu0 %v281, 32
    %v289 = vpop.permute.xlu0 %288
    %v291 = vmul.f32 %v280, %v289
    %293 = vrot.lane.b32.xlu0 %v291, 32
    %v294 = vpop.permute.xlu0 %293
    %v296 = vadd.f32 %v286, %v294
    %v297 = vtanh.pop %v296
    %299 = vrot.lane.b32.xlu0 %v297, 32
    %v300 = vpop.permute.xlu0 %299
    %v302 = vmul.f32 %v280, %v300
    %v303 = vld [vmem:[%s1] sm:$0xff]
    %v305 = vlaneseq
    %v306 = vshrl.u32 %v305, 7
    %v307 = vsub.s32 0, %v306
    %v308 = vrot.slane %v99, %v307
    %311 = vrot.lane.b32.xlu0 %v302, 64
    %v312 = vpop.permute.xlu0 %311
    %v313 = vsel %vm120, %v312, 0
    %315 = vmatprep.subr.mxu0 0.0
    %316 = vmatpush1.msra.mxu0 %v95
    %317 = vmatprep.subr.mxu0 0.0
    %318 = vmatpush1.msra.mxu0 %v96
    %319 = vmatprep.subr.mxu0 0.0
    %320 = vmatpush1.msra.mxu0 %v97
    %321 = vmatprep.subr.mxu0 0.0
    %322 = vmatpush1.msra.mxu0 %v98
    %323 = vmatprep.subr.mxu0 0.0
    %324 = vmatpush1.msra.mxu0 0.0
    %325 = vmatprep.subr.mxu0 0.0
    %326 = vmatpush1.msra.mxu0 0.0
    %327 = vmatprep.subr.mxu0 0.0
    %328 = vmatpush1.msra.mxu0 0.0
    %329 = vmatprep.subr.mxu0 0.0
    %330 = vmatpush1.msra.mxu0 0.0
    %331 = vmatprep.subr.mxu0 0.0
    %332 = vmatpush1.msra.mxu0 0.0
    %333 = vmatprep.subr.mxu0 0.0
    %334 = vmatpush1.msra.mxu0 0.0
    %335 = vmatprep.subr.mxu0 0.0
    %336 = vmatpush1.msra.mxu0 0.0
    %337 = vmatprep.subr.mxu0 0.0
    %338 = vmatpush1.msra.mxu0 0.0
    %339 = vmatprep.subr.mxu0 0.0
    %340 = vmatpush1.msra.mxu0 0.0
    %341 = vmatprep.subr.mxu0 0.0
    %342 = vmatpush1.msra.mxu0 0.0
    %343 = vmatprep.subr.mxu0 0.0
    %344 = vmatpush1.msra.mxu0 0.0
    %345 = vmatprep.subr.mxu0 0.0
    %346 = vmatpush1.msra.mxu0 0.0
    %347 = vmatprep.subr.mxu0 0.0
    %348 = vmatpush1.msra.mxu0 0.0
    %349 = vmatprep.subr.mxu0 0.0
    %350 = vmatpush1.msra.mxu0 0.0
    %351 = vmatprep.subr.mxu0 0.0
    %352 = vmatpush1.msra.mxu0 0.0
    %353 = vmatprep.subr.mxu0 0.0
    %354 = vmatpush1.msra.mxu0 0.0
    %355 = vmatprep.subr.mxu0 0.0
    %356 = vmatpush1.msra.mxu0 0.0
    %357 = vmatprep.subr.mxu0 0.0
    %358 = vmatpush1.msra.mxu0 0.0
    %359 = vmatprep.subr.mxu0 0.0
    %360 = vmatpush1.msra.mxu0 0.0
    %361 = vmatprep.subr.mxu0 0.0
    %362 = vmatpush1.msra.mxu0 0.0
    %363 = vmatprep.subr.mxu0 0.0
    %364 = vmatpush1.msra.mxu0 0.0
    %365 = vmatprep.subr.mxu0 0.0
    %366 = vmatpush1.msra.mxu0 0.0
    %367 = vmatprep.subr.mxu0 0.0
    %368 = vmatpush1.msra.mxu0 0.0
    %369 = vmatprep.subr.mxu0 0.0
    %370 = vmatpush1.msra.mxu0 0.0
    %371 = vmatprep.subr.mxu0 0.0
    %372 = vmatpush1.msra.mxu0 0.0
    %373 = vmatprep.subr.mxu0 0.0
    %374 = vmatpush1.msra.mxu0 0.0
    %375 = vmatprep.subr.mxu0 0.0
    %376 = vmatpush1.msra.mxu0 0.0
    %377 = vmatprep.subr.mxu0 0.0
    %378 = vmatpush1.msra.mxu0 0.0
    %379 = vmatprep.mubr.f32.mxu0 0.0
    %380 = vmatmul.mubr.f32.gmra.mrb[0].mxu0 %v313
    %v381 = vpop.f32.mrb[0].mxu0
    %v382 = vadd.f32 %v308, %v381
    %v383 = vpop.f32.mrb[0].mxu0
    %384 = vdwg.mxu0
    %v385 = vmax.f32 %v382, 0.0
    %387 = vset.pattern.permute.xlu0 0
    %388 = vperm.xlu0 %387, %v303
    %v389 = vpop.permute.xlu0 %388
    %v391 = vmul.f32 %v385, %v389
    %vm392 = vcmask 64512
    %v394 = vsel %vm392, %v93, 0
    %396 = vmatprep.subr.mxu0 0.0
    %397 = vmatpush1.msra.mxu0 %v391
    %398 = vmatprep.subr.mxu0 0.0
    %399 = vmatpush1.msra.mxu0 0.0
    %400 = vmatprep.subr.mxu0 0.0
    %401 = vmatpush1.msra.mxu0 0.0
    %402 = vmatprep.subr.mxu0 0.0
    %403 = vmatpush1.msra.mxu0 0.0
    %404 = vmatprep.subr.mxu0 0.0
    %405 = vmatpush1.msra.mxu0 0.0
    %406 = vmatprep.subr.mxu0 0.0
    %407 = vmatpush1.msra.mxu0 0.0
    %408 = vmatprep.subr.mxu0 0.0
    %409 = vmatpush1.msra.mxu0 0.0
    %410 = vmatprep.subr.mxu0 0.0
    %411 = vmatpush1.msra.mxu0 0.0
    %412 = vmatprep.subr.mxu0 0.0
    %413 = vmatpush1.msra.mxu0 0.0
    %414 = vmatprep.subr.mxu0 0.0
    %415 = vmatpush1.msra.mxu0 0.0
    %416 = vmatprep.subr.mxu0 0.0
    %417 = vmatpush1.msra.mxu0 0.0
    %418 = vmatprep.subr.mxu0 0.0
    %419 = vmatpush1.msra.mxu0 0.0
    %420 = vmatprep.subr.mxu0 0.0
    %421 = vmatpush1.msra.mxu0 0.0
    %422 = vmatprep.subr.mxu0 0.0
    %423 = vmatpush1.msra.mxu0 0.0
    %424 = vmatprep.subr.mxu0 0.0
    %425 = vmatpush1.msra.mxu0 0.0
    %426 = vmatprep.subr.mxu0 0.0
    %427 = vmatpush1.msra.mxu0 0.0
    %428 = vmatprep.subr.mxu0 0.0
    %429 = vmatpush1.msra.mxu0 0.0
    %430 = vmatprep.subr.mxu0 0.0
    %431 = vmatpush1.msra.mxu0 0.0
    %432 = vmatprep.subr.mxu0 0.0
    %433 = vmatpush1.msra.mxu0 0.0
    %434 = vmatprep.subr.mxu0 0.0
    %435 = vmatpush1.msra.mxu0 0.0
    %436 = vmatprep.subr.mxu0 0.0
    %437 = vmatpush1.msra.mxu0 0.0
    %438 = vmatprep.subr.mxu0 0.0
    %439 = vmatpush1.msra.mxu0 0.0
    %440 = vmatprep.subr.mxu0 0.0
    %441 = vmatpush1.msra.mxu0 0.0
    %442 = vmatprep.subr.mxu0 0.0
    %443 = vmatpush1.msra.mxu0 0.0
    %444 = vmatprep.subr.mxu0 0.0
    %445 = vmatpush1.msra.mxu0 0.0
    %446 = vmatprep.subr.mxu0 0.0
    %447 = vmatpush1.msra.mxu0 0.0
    %448 = vmatprep.subr.mxu0 0.0
    %449 = vmatpush1.msra.mxu0 0.0
    %450 = vmatprep.subr.mxu0 0.0
    %451 = vmatpush1.msra.mxu0 0.0
    %452 = vmatprep.subr.mxu0 0.0
    %453 = vmatpush1.msra.mxu0 0.0
    %454 = vmatprep.subr.mxu0 0.0
    %455 = vmatpush1.msra.mxu0 0.0
    %456 = vmatprep.subr.mxu0 0.0
    %457 = vmatpush1.msra.mxu0 0.0
    %458 = vmatprep.subr.mxu0 0.0
    %459 = vmatpush1.msra.mxu0 0.0
    %460 = vmatprep.mubr.f32.mxu0 0.0
    %461 = vmatmul.mubr.f32.gmra.mrb[0].mxu0 %v394
    %v462 = vpop.f32.mrb[0].mxu0
    %v463 = vadd.f32 0.0, %v462
    %v464 = vpop.f32.mrb[0].mxu0
    %465 = vdwg.mxu0
    %466 = vmatprep.subr.mxu0 0.0
    %467 = vmatpush1.msra.mxu0 %v303
    %468 = vmatprep.subr.mxu0 0.0
    %469 = vmatpush1.msra.mxu0 0.0
    %470 = vmatprep.subr.mxu0 0.0
    %471 = vmatpush1.msra.mxu0 0.0
    %472 = vmatprep.subr.mxu0 0.0
    %473 = vmatpush1.msra.mxu0 0.0
    %474 = vmatprep.subr.mxu0 0.0
    %475 = vmatpush1.msra.mxu0 0.0
    %476 = vmatprep.subr.mxu0 0.0
    %477 = vmatpush1.msra.mxu0 0.0
    %478 = vmatprep.subr.mxu0 0.0
    %479 = vmatpush1.msra.mxu0 0.0
    %480 = vmatprep.subr.mxu0 0.0
    %481 = vmatpush1.msra.mxu0 0.0
    %482 = vmatprep.subr.mxu0 0.0
    %483 = vmatpush1.msra.mxu0 0.0
    %484 = vmatprep.subr.mxu0 0.0
    %485 = vmatpush1.msra.mxu0 0.0
    %486 = vmatprep.subr.mxu0 0.0
    %487 = vmatpush1.msra.mxu0 0.0
    %488 = vmatprep.subr.mxu0 0.0
    %489 = vmatpush1.msra.mxu0 0.0
    %490 = vmatprep.subr.mxu0 0.0
    %491 = vmatpush1.msra.mxu0 0.0
    %492 = vmatprep.subr.mxu0 0.0
    %493 = vmatpush1.msra.mxu0 0.0
    %494 = vmatprep.subr.mxu0 0.0
    %495 = vmatpush1.msra.mxu0 0.0
    %496 = vmatprep.subr.mxu0 0.0
    %497 = vmatpush1.msra.mxu0 0.0
    %498 = vmatprep.subr.mxu0 0.0
    %499 = vmatpush1.msra.mxu0 0.0
    %500 = vmatprep.subr.mxu0 0.0
    %501 = vmatpush1.msra.mxu0 0.0
    %502 = vmatprep.subr.mxu0 0.0
    %503 = vmatpush1.msra.mxu0 0.0
    %504 = vmatprep.subr.mxu0 0.0
    %505 = vmatpush1.msra.mxu0 0.0
    %506 = vmatprep.subr.mxu0 0.0
    %507 = vmatpush1.msra.mxu0 0.0
    %508 = vmatprep.subr.mxu0 0.0
    %509 = vmatpush1.msra.mxu0 0.0
    %510 = vmatprep.subr.mxu0 0.0
    %511 = vmatpush1.msra.mxu0 0.0
    %512 = vmatprep.subr.mxu0 0.0
    %513 = vmatpush1.msra.mxu0 0.0
    %514 = vmatprep.subr.mxu0 0.0
    %515 = vmatpush1.msra.mxu0 0.0
    %516 = vmatprep.subr.mxu0 0.0
    %517 = vmatpush1.msra.mxu0 0.0
    %518 = vmatprep.subr.mxu0 0.0
    %519 = vmatpush1.msra.mxu0 0.0
    %520 = vmatprep.subr.mxu0 0.0
    %521 = vmatpush1.msra.mxu0 0.0
    %522 = vmatprep.subr.mxu0 0.0
    %523 = vmatpush1.msra.mxu0 0.0
    %524 = vmatprep.subr.mxu0 0.0
    %525 = vmatpush1.msra.mxu0 0.0
    %526 = vmatprep.subr.mxu0 0.0
    %527 = vmatpush1.msra.mxu0 0.0
    %528 = vmatprep.subr.mxu0 0.0
    %529 = vmatpush1.msra.mxu0 0.0
    %530 = vmatprep.mubr.f32.mxu0 0.0
    %531 = vmatmul.mubr.f32.gmra.mrb[0].mxu0 %v394
    %v532 = vpop.f32.mrb[0].mxu0
    %v533 = vadd.f32 0.0, %v532
    %v534 = vpop.f32.mrb[0].mxu0
    %535 = vdwg.mxu0
    %v536 = vmax.f32 %v533, 1.0
    %538 = vset.pattern.permute.xlu0 0
    %539 = vperm.xlu0 %538, %v536
    %v540 = vpop.permute.xlu0 %539
    %v542 = vrcp.pop %v540
    %v543 = vmul.f32 %v463, %v542
    %v545 = vsel %vm120, %v543, 0
    %547 = vmatprep.subr.mxu0 0.0
    %548 = vmatpush1.msra.mxu0 %v104
    %549 = vmatprep.subr.mxu0 0.0
    %550 = vmatpush1.msra.mxu0 %v105
    %551 = vmatprep.subr.mxu0 0.0
    %552 = vmatpush1.msra.mxu0 %v106
    %553 = vmatprep.subr.mxu0 0.0
    %554 = vmatpush1.msra.mxu0 %v107
    %555 = vmatprep.subr.mxu0 0.0
    %556 = vmatpush1.msra.mxu0 0.0
    %557 = vmatprep.subr.mxu0 0.0
    %558 = vmatpush1.msra.mxu0 0.0
    %559 = vmatprep.subr.mxu0 0.0
    %560 = vmatpush1.msra.mxu0 0.0
    %561 = vmatprep.subr.mxu0 0.0
    %562 = vmatpush1.msra.mxu0 0.0
    %563 = vmatprep.subr.mxu0 0.0
    %564 = vmatpush1.msra.mxu0 0.0
    %565 = vmatprep.subr.mxu0 0.0
    %566 = vmatpush1.msra.mxu0 0.0
    %567 = vmatprep.subr.mxu0 0.0
    %568 = vmatpush1.msra.mxu0 0.0
    %569 = vmatprep.subr.mxu0 0.0
    %570 = vmatpush1.msra.mxu0 0.0
    %571 = vmatprep.subr.mxu0 0.0
    %572 = vmatpush1.msra.mxu0 0.0
    %573 = vmatprep.subr.mxu0 0.0
    %574 = vmatpush1.msra.mxu0 0.0
    %575 = vmatprep.subr.mxu0 0.0
    %576 = vmatpush1.msra.mxu0 0.0
    %577 = vmatprep.subr.mxu0 0.0
    %578 = vmatpush1.msra.mxu0 0.0
    %579 = vmatprep.subr.mxu0 0.0
    %580 = vmatpush1.msra.mxu0 0.0
    %581 = vmatprep.subr.mxu0 0.0
    %582 = vmatpush1.msra.mxu0 0.0
    %583 = vmatprep.subr.mxu0 0.0
    %584 = vmatpush1.msra.mxu0 0.0
    %585 = vmatprep.subr.mxu0 0.0
    %586 = vmatpush1.msra.mxu0 0.0
    %587 = vmatprep.subr.mxu0 0.0
    %588 = vmatpush1.msra.mxu0 0.0
    %589 = vmatprep.subr.mxu0 0.0
    %590 = vmatpush1.msra.mxu0 0.0
    %591 = vmatprep.subr.mxu0 0.0
    %592 = vmatpush1.msra.mxu0 0.0
    %593 = vmatprep.subr.mxu0 0.0
    %594 = vmatpush1.msra.mxu0 0.0
    %595 = vmatprep.subr.mxu0 0.0
    %596 = vmatpush1.msra.mxu0 0.0
    %597 = vmatprep.subr.mxu0 0.0
    %598 = vmatpush1.msra.mxu0 0.0
    %599 = vmatprep.subr.mxu0 0.0
    %600 = vmatpush1.msra.mxu0 0.0
    %601 = vmatprep.subr.mxu0 0.0
    %602 = vmatpush1.msra.mxu0 0.0
    %603 = vmatprep.subr.mxu0 0.0
    %604 = vmatpush1.msra.mxu0 0.0
    %605 = vmatprep.subr.mxu0 0.0
    %606 = vmatpush1.msra.mxu0 0.0
    %607 = vmatprep.subr.mxu0 0.0
    %608 = vmatpush1.msra.mxu0 0.0
    %609 = vmatprep.subr.mxu0 0.0
    %610 = vmatpush1.msra.mxu0 0.0
    %611 = vmatprep.mubr.f32.mxu0 0.0
    %612 = vmatmul.mubr.f32.gmra.mrb[0].mxu0 %v545
    %v613 = vpop.f32.mrb[0].mxu0
    %v614 = vadd.f32 0.0, %v613
    %v615 = vpop.f32.mrb[0].mxu0
    %616 = vdwg.mxu0
    %vm617 = vcmask 15360
    %v619 = vsel %vm617, %v94, 0
    %vm621 = vcmask 1041408
    %v623 = vsel %vm621, %v614, 0
    %625 = vmatprep.subr.mxu0 0.0
    %626 = vmatpush1.msra.mxu0 %v623
    %627 = vmatprep.subr.mxu0 0.0
    %628 = vmatpush1.msra.mxu0 0.0
    %629 = vmatprep.subr.mxu0 0.0
    %630 = vmatpush1.msra.mxu0 0.0
    %631 = vmatprep.subr.mxu0 0.0
    %632 = vmatpush1.msra.mxu0 0.0
    %633 = vmatprep.subr.mxu0 0.0
    %634 = vmatpush1.msra.mxu0 0.0
    %635 = vmatprep.subr.mxu0 0.0
    %636 = vmatpush1.msra.mxu0 0.0
    %637 = vmatprep.subr.mxu0 0.0
    %638 = vmatpush1.msra.mxu0 0.0
    %639 = vmatprep.subr.mxu0 0.0
    %640 = vmatpush1.msra.mxu0 0.0
    %641 = vmatprep.subr.mxu0 0.0
    %642 = vmatpush1.msra.mxu0 0.0
    %643 = vmatprep.subr.mxu0 0.0
    %644 = vmatpush1.msra.mxu0 0.0
    %645 = vmatprep.subr.mxu0 0.0
    %646 = vmatpush1.msra.mxu0 0.0
    %647 = vmatprep.subr.mxu0 0.0
    %648 = vmatpush1.msra.mxu0 0.0
    %649 = vmatprep.subr.mxu0 0.0
    %650 = vmatpush1.msra.mxu0 0.0
    %651 = vmatprep.subr.mxu0 0.0
    %652 = vmatpush1.msra.mxu0 0.0
    %653 = vmatprep.subr.mxu0 0.0
    %654 = vmatpush1.msra.mxu0 0.0
    %655 = vmatprep.subr.mxu0 0.0
    %656 = vmatpush1.msra.mxu0 0.0
    %657 = vmatprep.subr.mxu0 0.0
    %658 = vmatpush1.msra.mxu0 0.0
    %659 = vmatprep.subr.mxu0 0.0
    %660 = vmatpush1.msra.mxu0 0.0
    %661 = vmatprep.subr.mxu0 0.0
    %662 = vmatpush1.msra.mxu0 0.0
    %663 = vmatprep.subr.mxu0 0.0
    %664 = vmatpush1.msra.mxu0 0.0
    %665 = vmatprep.subr.mxu0 0.0
    %666 = vmatpush1.msra.mxu0 0.0
    %667 = vmatprep.subr.mxu0 0.0
    %668 = vmatpush1.msra.mxu0 0.0
    %669 = vmatprep.subr.mxu0 0.0
    %670 = vmatpush1.msra.mxu0 0.0
    %671 = vmatprep.subr.mxu0 0.0
    %672 = vmatpush1.msra.mxu0 0.0
    %673 = vmatprep.subr.mxu0 0.0
    %674 = vmatpush1.msra.mxu0 0.0
    %675 = vmatprep.subr.mxu0 0.0
    %676 = vmatpush1.msra.mxu0 0.0
    %677 = vmatprep.subr.mxu0 0.0
    %678 = vmatpush1.msra.mxu0 0.0
    %679 = vmatprep.subr.mxu0 0.0
    %680 = vmatpush1.msra.mxu0 0.0
    %681 = vmatprep.subr.mxu0 0.0
    %682 = vmatpush1.msra.mxu0 0.0
    %683 = vmatprep.subr.mxu0 0.0
    %684 = vmatpush1.msra.mxu0 0.0
    %685 = vmatprep.subr.mxu0 0.0
    %686 = vmatpush1.msra.mxu0 0.0
    %687 = vmatprep.subr.mxu0 0.0
    %688 = vmatpush1.msra.mxu0 0.0
    %689 = vmatprep.mubr.f32.mxu0 0.0
    %690 = vmatmul.mubr.f32.gmra.mrb[0].mxu0 %v619
    %v691 = vpop.f32.mrb[0].mxu0
    %v692 = vadd.f32 0.0, %v691
    %v693 = vpop.f32.mrb[0].mxu0
    %694 = vdwg.mxu0
    %v696 = vsel %vm120, %v385, 0
    %698 = vmatprep.subr.mxu0 0.0
    %699 = vmatpush1.msra.mxu0 %v100
    %700 = vmatprep.subr.mxu0 0.0
    %701 = vmatpush1.msra.mxu0 %v101
    %702 = vmatprep.subr.mxu0 0.0
    %703 = vmatpush1.msra.mxu0 %v102
    %704 = vmatprep.subr.mxu0 0.0
    %705 = vmatpush1.msra.mxu0 %v103
    %706 = vmatprep.subr.mxu0 0.0
    %707 = vmatpush1.msra.mxu0 0.0
    %708 = vmatprep.subr.mxu0 0.0
    %709 = vmatpush1.msra.mxu0 0.0
    %710 = vmatprep.subr.mxu0 0.0
    %711 = vmatpush1.msra.mxu0 0.0
    %712 = vmatprep.subr.mxu0 0.0
    %713 = vmatpush1.msra.mxu0 0.0
    %714 = vmatprep.subr.mxu0 0.0
    %715 = vmatpush1.msra.mxu0 0.0
    %716 = vmatprep.subr.mxu0 0.0
    %717 = vmatpush1.msra.mxu0 0.0
    %718 = vmatprep.subr.mxu0 0.0
    %719 = vmatpush1.msra.mxu0 0.0
    %720 = vmatprep.subr.mxu0 0.0
    %721 = vmatpush1.msra.mxu0 0.0
    %722 = vmatprep.subr.mxu0 0.0
    %723 = vmatpush1.msra.mxu0 0.0
    %724 = vmatprep.subr.mxu0 0.0
    %725 = vmatpush1.msra.mxu0 0.0
    %726 = vmatprep.subr.mxu0 0.0
    %727 = vmatpush1.msra.mxu0 0.0
    %728 = vmatprep.subr.mxu0 0.0
    %729 = vmatpush1.msra.mxu0 0.0
    %730 = vmatprep.subr.mxu0 0.0
    %731 = vmatpush1.msra.mxu0 0.0
    %732 = vmatprep.subr.mxu0 0.0
    %733 = vmatpush1.msra.mxu0 0.0
    %734 = vmatprep.subr.mxu0 0.0
    %735 = vmatpush1.msra.mxu0 0.0
    %736 = vmatprep.subr.mxu0 0.0
    %737 = vmatpush1.msra.mxu0 0.0
    %738 = vmatprep.subr.mxu0 0.0
    %739 = vmatpush1.msra.mxu0 0.0
    %740 = vmatprep.subr.mxu0 0.0
    %741 = vmatpush1.msra.mxu0 0.0
    %742 = vmatprep.subr.mxu0 0.0
    %743 = vmatpush1.msra.mxu0 0.0
    %744 = vmatprep.subr.mxu0 0.0
    %745 = vmatpush1.msra.mxu0 0.0
    %746 = vmatprep.subr.mxu0 0.0
    %747 = vmatpush1.msra.mxu0 0.0
    %748 = vmatprep.subr.mxu0 0.0
    %749 = vmatpush1.msra.mxu0 0.0
    %750 = vmatprep.subr.mxu0 0.0
    %751 = vmatpush1.msra.mxu0 0.0
    %752 = vmatprep.subr.mxu0 0.0
    %753 = vmatpush1.msra.mxu0 0.0
    %754 = vmatprep.subr.mxu0 0.0
    %755 = vmatpush1.msra.mxu0 0.0
    %756 = vmatprep.subr.mxu0 0.0
    %757 = vmatpush1.msra.mxu0 0.0
    %758 = vmatprep.subr.mxu0 0.0
    %759 = vmatpush1.msra.mxu0 0.0
    %760 = vmatprep.subr.mxu0 0.0
    %761 = vmatpush1.msra.mxu0 0.0
    %762 = vmatprep.mubr.f32.mxu0 0.0
    %763 = vmatmul.mubr.f32.gmra.mrb[0].mxu0 %v696
    %v764 = vpop.f32.mrb[0].mxu0
    %v765 = vadd.f32 %v692, %v764
    %v766 = vpop.f32.mrb[0].mxu0
    %767 = vdwg.mxu0
    %v769 = vlaneseq
    %v770 = vshrl.u32 %v769, 7
    %v771 = vsub.s32 0, %v770
    %v772 = vrot.slane %v108, %v771
    %v774 = vadd.f32 %v765, %v772
    %v775 = vmax.f32 %v774, 0.0
    %v776 = vmul.f32 %v775, %v389
    %v777 = vmul.f32 %v776, %v117
    %v778 = vmul.f32 %v776, %v198
    %vm779 = vcmask 130048
    %v781 = vsel %vm779, %v778, 0
    %783 = vmatprep.subr.mxu0 0.0
    %784 = vmatpush1.msra.mxu0 %v81
    %785 = vmatprep.subr.mxu0 0.0
    %786 = vmatpush1.msra.mxu0 %v82
    %787 = vmatprep.subr.mxu0 0.0
    %788 = vmatpush1.msra.mxu0 0.0
    %789 = vmatprep.subr.mxu0 0.0
    %790 = vmatpush1.msra.mxu0 0.0
    %791 = vmatprep.subr.mxu0 0.0
    %792 = vmatpush1.msra.mxu0 0.0
    %793 = vmatprep.subr.mxu0 0.0
    %794 = vmatpush1.msra.mxu0 0.0
    %795 = vmatprep.subr.mxu0 0.0
    %796 = vmatpush1.msra.mxu0 0.0
    %797 = vmatprep.subr.mxu0 0.0
    %798 = vmatpush1.msra.mxu0 0.0
    %799 = vmatprep.subr.mxu0 0.0
    %800 = vmatpush1.msra.mxu0 0.0
    %801 = vmatprep.subr.mxu0 0.0
    %802 = vmatpush1.msra.mxu0 0.0
    %803 = vmatprep.subr.mxu0 0.0
    %804 = vmatpush1.msra.mxu0 0.0
    %805 = vmatprep.subr.mxu0 0.0
    %806 = vmatpush1.msra.mxu0 0.0
    %807 = vmatprep.subr.mxu0 0.0
    %808 = vmatpush1.msra.mxu0 0.0
    %809 = vmatprep.subr.mxu0 0.0
    %810 = vmatpush1.msra.mxu0 0.0
    %811 = vmatprep.subr.mxu0 0.0
    %812 = vmatpush1.msra.mxu0 0.0
    %813 = vmatprep.subr.mxu0 0.0
    %814 = vmatpush1.msra.mxu0 0.0
    %815 = vmatprep.subr.mxu0 0.0
    %816 = vmatpush1.msra.mxu0 0.0
    %817 = vmatprep.subr.mxu0 0.0
    %818 = vmatpush1.msra.mxu0 0.0
    %819 = vmatprep.subr.mxu0 0.0
    %820 = vmatpush1.msra.mxu0 0.0
    %821 = vmatprep.subr.mxu0 0.0
    %822 = vmatpush1.msra.mxu0 0.0
    %823 = vmatprep.subr.mxu0 0.0
    %824 = vmatpush1.msra.mxu0 0.0
    %825 = vmatprep.subr.mxu0 0.0
    %826 = vmatpush1.msra.mxu0 0.0
    %827 = vmatprep.subr.mxu0 0.0
    %828 = vmatpush1.msra.mxu0 0.0
    %829 = vmatprep.subr.mxu0 0.0
    %830 = vmatpush1.msra.mxu0 0.0
    %831 = vmatprep.subr.mxu0 0.0
    %832 = vmatpush1.msra.mxu0 0.0
    %833 = vmatprep.subr.mxu0 0.0
    %834 = vmatpush1.msra.mxu0 0.0
    %835 = vmatprep.subr.mxu0 0.0
    %836 = vmatpush1.msra.mxu0 0.0
    %837 = vmatprep.subr.mxu0 0.0
    %838 = vmatpush1.msra.mxu0 0.0
    %839 = vmatprep.subr.mxu0 0.0
    %840 = vmatpush1.msra.mxu0 0.0
    %841 = vmatprep.subr.mxu0 0.0
    %842 = vmatpush1.msra.mxu0 0.0
    %843 = vmatprep.subr.mxu0 0.0
    %844 = vmatpush1.msra.mxu0 0.0
    %845 = vmatprep.subr.mxu0 0.0
    %846 = vmatpush1.msra.mxu0 0.0
    %847 = vmatprep.mubr.f32.mxu0 0.0
    %848 = vmatmul.mubr.f32.gmra.mrb[0].mxu0 %v781
    %v849 = vpop.f32.mrb[0].mxu0
    %v850 = vadd.f32 0.0, %v849
    %v851 = vpop.f32.mrb[0].mxu0
    %852 = vdwg.mxu0
    %v854 = vsel %vm779, %v777, 0
    %856 = vmatprep.subr.mxu0 0.0
    %857 = vmatpush1.msra.mxu0 %v78
    %858 = vmatprep.subr.mxu0 0.0
    %859 = vmatpush1.msra.mxu0 %v79
    %860 = vmatprep.subr.mxu0 0.0
    %861 = vmatpush1.msra.mxu0 0.0
    %862 = vmatprep.subr.mxu0 0.0
    %863 = vmatpush1.msra.mxu0 0.0
    %864 = vmatprep.subr.mxu0 0.0
    %865 = vmatpush1.msra.mxu0 0.0
    %866 = vmatprep.subr.mxu0 0.0
    %867 = vmatpush1.msra.mxu0 0.0
    %868 = vmatprep.subr.mxu0 0.0
    %869 = vmatpush1.msra.mxu0 0.0
    %870 = vmatprep.subr.mxu0 0.0
    %871 = vmatpush1.msra.mxu0 0.0
    %872 = vmatprep.subr.mxu0 0.0
    %873 = vmatpush1.msra.mxu0 0.0
    %874 = vmatprep.subr.mxu0 0.0
    %875 = vmatpush1.msra.mxu0 0.0
    %876 = vmatprep.subr.mxu0 0.0
    %877 = vmatpush1.msra.mxu0 0.0
    %878 = vmatprep.subr.mxu0 0.0
    %879 = vmatpush1.msra.mxu0 0.0
    %880 = vmatprep.subr.mxu0 0.0
    %881 = vmatpush1.msra.mxu0 0.0
    %882 = vmatprep.subr.mxu0 0.0
    %883 = vmatpush1.msra.mxu0 0.0
    %884 = vmatprep.subr.mxu0 0.0
    %885 = vmatpush1.msra.mxu0 0.0
    %886 = vmatprep.subr.mxu0 0.0
    %887 = vmatpush1.msra.mxu0 0.0
    %888 = vmatprep.subr.mxu0 0.0
    %889 = vmatpush1.msra.mxu0 0.0
    %890 = vmatprep.subr.mxu0 0.0
    %891 = vmatpush1.msra.mxu0 0.0
    %892 = vmatprep.subr.mxu0 0.0
    %893 = vmatpush1.msra.mxu0 0.0
    %894 = vmatprep.subr.mxu0 0.0
    %895 = vmatpush1.msra.mxu0 0.0
    %896 = vmatprep.subr.mxu0 0.0
    %897 = vmatpush1.msra.mxu0 0.0
    %898 = vmatprep.subr.mxu0 0.0
    %899 = vmatpush1.msra.mxu0 0.0
    %900 = vmatprep.subr.mxu0 0.0
    %901 = vmatpush1.msra.mxu0 0.0
    %902 = vmatprep.subr.mxu0 0.0
    %903 = vmatpush1.msra.mxu0 0.0
    %904 = vmatprep.subr.mxu0 0.0
    %905 = vmatpush1.msra.mxu0 0.0
    %906 = vmatprep.subr.mxu0 0.0
    %907 = vmatpush1.msra.mxu0 0.0
    %908 = vmatprep.subr.mxu0 0.0
    %909 = vmatpush1.msra.mxu0 0.0
    %910 = vmatprep.subr.mxu0 0.0
    %911 = vmatpush1.msra.mxu0 0.0
    %912 = vmatprep.subr.mxu0 0.0
    %913 = vmatpush1.msra.mxu0 0.0
    %914 = vmatprep.subr.mxu0 0.0
    %915 = vmatpush1.msra.mxu0 0.0
    %916 = vmatprep.subr.mxu0 0.0
    %917 = vmatpush1.msra.mxu0 0.0
    %918 = vmatprep.subr.mxu0 0.0
    %919 = vmatpush1.msra.mxu0 0.0
    %920 = vmatprep.mubr.f32.mxu0 0.0
    %921 = vmatmul.mubr.f32.gmra.mrb[0].mxu0 %v854
    %v922 = vpop.f32.mrb[0].mxu0
    %v923 = vadd.f32 %v850, %v922
    %v924 = vpop.f32.mrb[0].mxu0
    %925 = vdwg.mxu0
    %v926 = vadd.f32 %v923, %v92
    %v927 = vmul.f32 %v111, %v117
    %v929 = vsel %vm120, %v927, 0
    %931 = vmatprep.subr.mxu0 0.0
    %932 = vmatpush1.msra.mxu0 %v83
    %933 = vmatprep.subr.mxu0 0.0
    %934 = vmatpush1.msra.mxu0 %v84
    %935 = vmatprep.subr.mxu0 0.0
    %936 = vmatpush1.msra.mxu0 %v85
    %937 = vmatprep.subr.mxu0 0.0
    %938 = vmatpush1.msra.mxu0 %v86
    %939 = vmatprep.subr.mxu0 0.0
    %940 = vmatpush1.msra.mxu0 0.0
    %941 = vmatprep.subr.mxu0 0.0
    %942 = vmatpush1.msra.mxu0 0.0
    %943 = vmatprep.subr.mxu0 0.0
    %944 = vmatpush1.msra.mxu0 0.0
    %945 = vmatprep.subr.mxu0 0.0
    %946 = vmatpush1.msra.mxu0 0.0
    %947 = vmatprep.subr.mxu0 0.0
    %948 = vmatpush1.msra.mxu0 0.0
    %949 = vmatprep.subr.mxu0 0.0
    %950 = vmatpush1.msra.mxu0 0.0
    %951 = vmatprep.subr.mxu0 0.0
    %952 = vmatpush1.msra.mxu0 0.0
    %953 = vmatprep.subr.mxu0 0.0
    %954 = vmatpush1.msra.mxu0 0.0
    %955 = vmatprep.subr.mxu0 0.0
    %956 = vmatpush1.msra.mxu0 0.0
    %957 = vmatprep.subr.mxu0 0.0
    %958 = vmatpush1.msra.mxu0 0.0
    %959 = vmatprep.subr.mxu0 0.0
    %960 = vmatpush1.msra.mxu0 0.0
    %961 = vmatprep.subr.mxu0 0.0
    %962 = vmatpush1.msra.mxu0 0.0
    %963 = vmatprep.subr.mxu0 0.0
    %964 = vmatpush1.msra.mxu0 0.0
    %965 = vmatprep.subr.mxu0 0.0
    %966 = vmatpush1.msra.mxu0 0.0
    %967 = vmatprep.subr.mxu0 0.0
    %968 = vmatpush1.msra.mxu0 0.0
    %969 = vmatprep.subr.mxu0 0.0
    %970 = vmatpush1.msra.mxu0 0.0
    %971 = vmatprep.subr.mxu0 0.0
    %972 = vmatpush1.msra.mxu0 0.0
    %973 = vmatprep.subr.mxu0 0.0
    %974 = vmatpush1.msra.mxu0 0.0
    %975 = vmatprep.subr.mxu0 0.0
    %976 = vmatpush1.msra.mxu0 0.0
    %977 = vmatprep.subr.mxu0 0.0
    %978 = vmatpush1.msra.mxu0 0.0
    %979 = vmatprep.subr.mxu0 0.0
    %980 = vmatpush1.msra.mxu0 0.0
    %981 = vmatprep.subr.mxu0 0.0
    %982 = vmatpush1.msra.mxu0 0.0
    %983 = vmatprep.subr.mxu0 0.0
    %984 = vmatpush1.msra.mxu0 0.0
    %985 = vmatprep.subr.mxu0 0.0
    %986 = vmatpush1.msra.mxu0 0.0
    %987 = vmatprep.subr.mxu0 0.0
    %988 = vmatpush1.msra.mxu0 0.0
    %989 = vmatprep.subr.mxu0 0.0
    %990 = vmatpush1.msra.mxu0 0.0
    %991 = vmatprep.subr.mxu0 0.0
    %992 = vmatpush1.msra.mxu0 0.0
    %993 = vmatprep.subr.mxu0 0.0
    %994 = vmatpush1.msra.mxu0 0.0
    %995 = vmatprep.mubr.f32.mxu0 0.0
    %996 = vmatmul.mubr.f32.gmra.mrb[0].mxu0 %v929
    %v997 = vpop.f32.mrb[0].mxu0
    %v998 = vadd.f32 0.0, %v997
    %v999 = vpop.f32.mrb[0].mxu0
    %1000 = vdwg.mxu0
    %v1001 = vadd.f32 %v926, %v998
    %v1002 = vmul.f32 %v111, %v198
    %v1004 = vsel %vm120, %v1002, 0
    %1006 = vmatprep.subr.mxu0 0.0
    %1007 = vmatpush1.msra.mxu0 %v88
    %1008 = vmatprep.subr.mxu0 0.0
    %1009 = vmatpush1.msra.mxu0 %v89
    %1010 = vmatprep.subr.mxu0 0.0
    %1011 = vmatpush1.msra.mxu0 %v90
    %1012 = vmatprep.subr.mxu0 0.0
    %1013 = vmatpush1.msra.mxu0 %v91
    %1014 = vmatprep.subr.mxu0 0.0
    %1015 = vmatpush1.msra.mxu0 0.0
    %1016 = vmatprep.subr.mxu0 0.0
    %1017 = vmatpush1.msra.mxu0 0.0
    %1018 = vmatprep.subr.mxu0 0.0
    %1019 = vmatpush1.msra.mxu0 0.0
    %1020 = vmatprep.subr.mxu0 0.0
    %1021 = vmatpush1.msra.mxu0 0.0
    %1022 = vmatprep.subr.mxu0 0.0
    %1023 = vmatpush1.msra.mxu0 0.0
    %1024 = vmatprep.subr.mxu0 0.0
    %1025 = vmatpush1.msra.mxu0 0.0
    %1026 = vmatprep.subr.mxu0 0.0
    %1027 = vmatpush1.msra.mxu0 0.0
    %1028 = vmatprep.subr.mxu0 0.0
    %1029 = vmatpush1.msra.mxu0 0.0
    %1030 = vmatprep.subr.mxu0 0.0
    %1031 = vmatpush1.msra.mxu0 0.0
    %1032 = vmatprep.subr.mxu0 0.0
    %1033 = vmatpush1.msra.mxu0 0.0
    %1034 = vmatprep.subr.mxu0 0.0
    %1035 = vmatpush1.msra.mxu0 0.0
    %1036 = vmatprep.subr.mxu0 0.0
    %1037 = vmatpush1.msra.mxu0 0.0
    %1038 = vmatprep.subr.mxu0 0.0
    %1039 = vmatpush1.msra.mxu0 0.0
    %1040 = vmatprep.subr.mxu0 0.0
    %1041 = vmatpush1.msra.mxu0 0.0
    %1042 = vmatprep.subr.mxu0 0.0
    %1043 = vmatpush1.msra.mxu0 0.0
    %1044 = vmatprep.subr.mxu0 0.0
    %1045 = vmatpush1.msra.mxu0 0.0
    %1046 = vmatprep.subr.mxu0 0.0
    %1047 = vmatpush1.msra.mxu0 0.0
    %1048 = vmatprep.subr.mxu0 0.0
    %1049 = vmatpush1.msra.mxu0 0.0
    %1050 = vmatprep.subr.mxu0 0.0
    %1051 = vmatpush1.msra.mxu0 0.0
    %1052 = vmatprep.subr.mxu0 0.0
    %1053 = vmatpush1.msra.mxu0 0.0
    %1054 = vmatprep.subr.mxu0 0.0
    %1055 = vmatpush1.msra.mxu0 0.0
    %1056 = vmatprep.subr.mxu0 0.0
    %1057 = vmatpush1.msra.mxu0 0.0
    %1058 = vmatprep.subr.mxu0 0.0
    %1059 = vmatpush1.msra.mxu0 0.0
    %1060 = vmatprep.subr.mxu0 0.0
    %1061 = vmatpush1.msra.mxu0 0.0
    %1062 = vmatprep.subr.mxu0 0.0
    %1063 = vmatpush1.msra.mxu0 0.0
    %1064 = vmatprep.subr.mxu0 0.0
    %1065 = vmatpush1.msra.mxu0 0.0
    %1066 = vmatprep.subr.mxu0 0.0
    %1067 = vmatpush1.msra.mxu0 0.0
    %1068 = vmatprep.subr.mxu0 0.0
    %1069 = vmatpush1.msra.mxu0 0.0
    %1070 = vmatprep.mubr.f32.mxu0 0.0
    %1071 = vmatmul.mubr.f32.gmra.mrb[0].mxu0 %v1004
    %v1072 = vpop.f32.mrb[0].mxu0
    %v1073 = vadd.f32 0.0, %v1072
    %v1074 = vpop.f32.mrb[0].mxu0
    %1075 = vdwg.mxu0
    %v1076 = vadd.f32 %v1001, %v1073
    %v1077 = vxor.u32 %v1076, 2147483648
    %v1078 = vmul.f32 %v1077, 1.442695
    %v1079 = vpow.pop %v1078
    %v1080 = vadd.f32 %v1079, 1.0
    %v1081 = vrcp.pop %v1080
    %v1082 = vmul.f32 1.0, %v1081
    %v1083 = vtanh.pop %v1076
    %1085 = vrot.lane.b32.xlu0 %v112, 32
    %v1086 = vpop.permute.xlu0 %1085
    %v1088 = vmul.f32 %v1082, %v1086
    %1090 = vrot.lane.b32.xlu0 %v1083, 32
    %v1091 = vpop.permute.xlu0 %1090
    %v1093 = vmul.f32 %v1082, %v1091
    %1095 = vrot.lane.b32.xlu0 %v1093, 32
    %v1096 = vpop.permute.xlu0 %1095
    %v1098 = vadd.f32 %v1088, %v1096
    %v1099 = vtanh.pop %v1098
    %1101 = vrot.lane.b32.xlu0 %v1099, 32
    %v1102 = vpop.permute.xlu0 %1101
    %v1104 = vmul.f32 %v1082, %v1102
    %v1105 = vmul.f32 %v1104, %v389
    %1107 = vrot.lane.b32.xlu0 %v1105, 64
    %v1108 = vpop.permute.xlu0 %1107
    %1110 = vst.msk [vmem:[%s18] sm:$0xff] %vm120, %v1108
    %s1111 = scalar_lea.vmem %s0, 8
    %v1112 = vld [vmem:[%s1111] sm:$0xff]
    %v1113 = vmul.f32 %v302, %v117
    %1115 = vrot.lane.b32.xlu0 %v1113, 64
    %v1116 = vpop.permute.xlu0 %1115
    %v1117 = vsel %vm120, %v1116, 0
    %1119 = vmatprep.subr.mxu0 0.0
    %1120 = vmatpush1.msra.mxu0 %v69
    %1121 = vmatprep.subr.mxu0 0.0
    %1122 = vmatpush1.msra.mxu0 %v70
    %1123 = vmatprep.subr.mxu0 0.0
    %1124 = vmatpush1.msra.mxu0 %v71
    %1125 = vmatprep.subr.mxu0 0.0
    %1126 = vmatpush1.msra.mxu0 %v72
    %1127 = vmatprep.subr.mxu0 0.0
    %1128 = vmatpush1.msra.mxu0 0.0
    %1129 = vmatprep.subr.mxu0 0.0
    %1130 = vmatpush1.msra.mxu0 0.0
    %1131 = vmatprep.subr.mxu0 0.0
    %1132 = vmatpush1.msra.mxu0 0.0
    %1133 = vmatprep.subr.mxu0 0.0
    %1134 = vmatpush1.msra.mxu0 0.0
    %1135 = vmatprep.subr.mxu0 0.0
    %1136 = vmatpush1.msra.mxu0 0.0
    %1137 = vmatprep.subr.mxu0 0.0
    %1138 = vmatpush1.msra.mxu0 0.0
    %1139 = vmatprep.subr.mxu0 0.0
    %1140 = vmatpush1.msra.mxu0 0.0
    %1141 = vmatprep.subr.mxu0 0.0
    %1142 = vmatpush1.msra.mxu0 0.0
    %1143 = vmatprep.subr.mxu0 0.0
    %1144 = vmatpush1.msra.mxu0 0.0
    %1145 = vmatprep.subr.mxu0 0.0
    %1146 = vmatpush1.msra.mxu0 0.0
    %1147 = vmatprep.subr.mxu0 0.0
    %1148 = vmatpush1.msra.mxu0 0.0
    %1149 = vmatprep.subr.mxu0 0.0
    %1150 = vmatpush1.msra.mxu0 0.0
    %1151 = vmatprep.subr.mxu0 0.0
    %1152 = vmatpush1.msra.mxu0 0.0
    %1153 = vmatprep.subr.mxu0 0.0
    %1154 = vmatpush1.msra.mxu0 0.0
    %1155 = vmatprep.subr.mxu0 0.0
    %1156 = vmatpush1.msra.mxu0 0.0
    %1157 = vmatprep.subr.mxu0 0.0
    %1158 = vmatpush1.msra.mxu0 0.0
    %1159 = vmatprep.subr.mxu0 0.0
    %1160 = vmatpush1.msra.mxu0 0.0
    %1161 = vmatprep.subr.mxu0 0.0
    %1162 = vmatpush1.msra.mxu0 0.0
    %1163 = vmatprep.subr.mxu0 0.0
    %1164 = vmatpush1.msra.mxu0 0.0
    %1165 = vmatprep.subr.mxu0 0.0
    %1166 = vmatpush1.msra.mxu0 0.0
    %1167 = vmatprep.subr.mxu0 0.0
    %1168 = vmatpush1.msra.mxu0 0.0
    %1169 = vmatprep.subr.mxu0 0.0
    %1170 = vmatpush1.msra.mxu0 0.0
    %1171 = vmatprep.subr.mxu0 0.0
    %1172 = vmatpush1.msra.mxu0 0.0
    %1173 = vmatprep.subr.mxu0 0.0
    %1174 = vmatpush1.msra.mxu0 0.0
    %1175 = vmatprep.subr.mxu0 0.0
    %1176 = vmatpush1.msra.mxu0 0.0
    %1177 = vmatprep.subr.mxu0 0.0
    %1178 = vmatpush1.msra.mxu0 0.0
    %1179 = vmatprep.subr.mxu0 0.0
    %1180 = vmatpush1.msra.mxu0 0.0
    %1181 = vmatprep.subr.mxu0 0.0
    %1182 = vmatpush1.msra.mxu0 0.0
    %1183 = vmatprep.mubr.f32.mxu0 0.0
    %1184 = vmatmul.mubr.f32.gmra.mrb[0].mxu0 %v1117
    %v1185 = vpop.f32.mrb[0].mxu0
    %v1186 = vadd.f32 0.0, %v1185
    %v1187 = vpop.f32.mrb[0].mxu0
    %1188 = vdwg.mxu0
    %v1189 = vadd.f32 %v1112, %v1186
    %v1190 = vmul.f32 %v302, %v198
    %1192 = vrot.lane.b32.xlu0 %v1190, 64
    %v1193 = vpop.permute.xlu0 %1192
    %v1194 = vsel %vm120, %v1193, 0
    %1196 = vmatprep.subr.mxu0 0.0
    %1197 = vmatpush1.msra.mxu0 %v74
    %1198 = vmatprep.subr.mxu0 0.0
    %1199 = vmatpush1.msra.mxu0 %v75
    %1200 = vmatprep.subr.mxu0 0.0
    %1201 = vmatpush1.msra.mxu0 %v76
    %1202 = vmatprep.subr.mxu0 0.0
    %1203 = vmatpush1.msra.mxu0 %v77
    %1204 = vmatprep.subr.mxu0 0.0
    %1205 = vmatpush1.msra.mxu0 0.0
    %1206 = vmatprep.subr.mxu0 0.0
    %1207 = vmatpush1.msra.mxu0 0.0
    %1208 = vmatprep.subr.mxu0 0.0
    %1209 = vmatpush1.msra.mxu0 0.0
    %1210 = vmatprep.subr.mxu0 0.0
    %1211 = vmatpush1.msra.mxu0 0.0
    %1212 = vmatprep.subr.mxu0 0.0
    %1213 = vmatpush1.msra.mxu0 0.0
    %1214 = vmatprep.subr.mxu0 0.0
    %1215 = vmatpush1.msra.mxu0 0.0
    %1216 = vmatprep.subr.mxu0 0.0
    %1217 = vmatpush1.msra.mxu0 0.0
    %1218 = vmatprep.subr.mxu0 0.0
    %1219 = vmatpush1.msra.mxu0 0.0
    %1220 = vmatprep.subr.mxu0 0.0
    %1221 = vmatpush1.msra.mxu0 0.0
    %1222 = vmatprep.subr.mxu0 0.0
    %1223 = vmatpush1.msra.mxu0 0.0
    %1224 = vmatprep.subr.mxu0 0.0
    %1225 = vmatpush1.msra.mxu0 0.0
    %1226 = vmatprep.subr.mxu0 0.0
    %1227 = vmatpush1.msra.mxu0 0.0
    %1228 = vmatprep.subr.mxu0 0.0
    %1229 = vmatpush1.msra.mxu0 0.0
    %1230 = vmatprep.subr.mxu0 0.0
    %1231 = vmatpush1.msra.mxu0 0.0
    %1232 = vmatprep.subr.mxu0 0.0
    %1233 = vmatpush1.msra.mxu0 0.0
    %1234 = vmatprep.subr.mxu0 0.0
    %1235 = vmatpush1.msra.mxu0 0.0
    %1236 = vmatprep.subr.mxu0 0.0
    %1237 = vmatpush1.msra.mxu0 0.0
    %1238 = vmatprep.subr.mxu0 0.0
    %1239 = vmatpush1.msra.mxu0 0.0
    %1240 = vmatprep.subr.mxu0 0.0
    %1241 = vmatpush1.msra.mxu0 0.0
    %1242 = vmatprep.subr.mxu0 0.0
    %1243 = vmatpush1.msra.mxu0 0.0
    %1244 = vmatprep.subr.mxu0 0.0
    %1245 = vmatpush1.msra.mxu0 0.0
    %1246 = vmatprep.subr.mxu0 0.0
    %1247 = vmatpush1.msra.mxu0 0.0
    %1248 = vmatprep.subr.mxu0 0.0
    %1249 = vmatpush1.msra.mxu0 0.0
    %1250 = vmatprep.subr.mxu0 0.0
    %1251 = vmatpush1.msra.mxu0 0.0
    %1252 = vmatprep.subr.mxu0 0.0
    %1253 = vmatpush1.msra.mxu0 0.0
    %1254 = vmatprep.subr.mxu0 0.0
    %1255 = vmatpush1.msra.mxu0 0.0
    %1256 = vmatprep.subr.mxu0 0.0
    %1257 = vmatpush1.msra.mxu0 0.0
    %1258 = vmatprep.subr.mxu0 0.0
    %1259 = vmatpush1.msra.mxu0 0.0
    %1260 = vmatprep.mubr.f32.mxu0 0.0
    %1261 = vmatmul.mubr.f32.gmra.mrb[0].mxu0 %v1194
    %v1262 = vpop.f32.mrb[0].mxu0
    %v1263 = vadd.f32 0.0, %v1262
    %v1264 = vpop.f32.mrb[0].mxu0
    %1265 = vdwg.mxu0
    %v1266 = vadd.f32 %v1189, %v1263
    %v1267 = vxor.u32 %v1266, 2147483648
    %v1268 = vmul.f32 %v1267, 1.442695
    %v1269 = vpow.pop %v1268
    %v1270 = vadd.f32 %v1269, 1.0
    %v1271 = vrcp.pop %v1270
    %v1272 = vmul.f32 1.0, %v1271
    %v1273 = vtanh.pop %v1266
    %v1274 = vmul.f32 %v1272, %v296
    %1276 = vrot.lane.b32.xlu0 %v1273, 32
    %v1277 = vpop.permute.xlu0 %1276
    %v1279 = vmul.f32 %v1272, %v1277
    %1281 = vrot.lane.b32.xlu0 %v1279, 32
    %v1282 = vpop.permute.xlu0 %1281
    %v1284 = vadd.f32 %v1274, %v1282
    %v1285 = vtanh.pop %v1284
    %1287 = vrot.lane.b32.xlu0 %v1285, 32
    %v1288 = vpop.permute.xlu0 %1287
    %v1290 = vmul.f32 %v1272, %v1288
    %s1291 = scalar_lea.vmem %s1, 8
    %v1292 = vld [vmem:[%s1291] sm:$0xff]
    %1294 = vrot.lane.b32.xlu0 %v1290, 64
    %v1295 = vpop.permute.xlu0 %1294
    %v1296 = vsel %vm120, %v1295, 0
    %1298 = vmatprep.subr.mxu0 0.0
    %1299 = vmatpush1.msra.mxu0 %v95
    %1300 = vmatprep.subr.mxu0 0.0
    %1301 = vmatpush1.msra.mxu0 %v96
    %1302 = vmatprep.subr.mxu0 0.0
    %1303 = vmatpush1.msra.mxu0 %v97
    %1304 = vmatprep.subr.mxu0 0.0
    %1305 = vmatpush1.msra.mxu0 %v98
    %1306 = vmatprep.subr.mxu0 0.0
    %1307 = vmatpush1.msra.mxu0 0.0
    %1308 = vmatprep.subr.mxu0 0.0
    %1309 = vmatpush1.msra.mxu0 0.0
    %1310 = vmatprep.subr.mxu0 0.0
    %1311 = vmatpush1.msra.mxu0 0.0
    %1312 = vmatprep.subr.mxu0 0.0
    %1313 = vmatpush1.msra.mxu0 0.0
    %1314 = vmatprep.subr.mxu0 0.0
    %1315 = vmatpush1.msra.mxu0 0.0
    %1316 = vmatprep.subr.mxu0 0.0
    %1317 = vmatpush1.msra.mxu0 0.0
    %1318 = vmatprep.subr.mxu0 0.0
    %1319 = vmatpush1.msra.mxu0 0.0
    %1320 = vmatprep.subr.mxu0 0.0
    %1321 = vmatpush1.msra.mxu0 0.0
    %1322 = vmatprep.subr.mxu0 0.0
    %1323 = vmatpush1.msra.mxu0 0.0
    %1324 = vmatprep.subr.mxu0 0.0
    %1325 = vmatpush1.msra.mxu0 0.0
    %1326 = vmatprep.subr.mxu0 0.0
    %1327 = vmatpush1.msra.mxu0 0.0
    %1328 = vmatprep.subr.mxu0 0.0
    %1329 = vmatpush1.msra.mxu0 0.0
    %1330 = vmatprep.subr.mxu0 0.0
    %1331 = vmatpush1.msra.mxu0 0.0
    %1332 = vmatprep.subr.mxu0 0.0
    %1333 = vmatpush1.msra.mxu0 0.0
    %1334 = vmatprep.subr.mxu0 0.0
    %1335 = vmatpush1.msra.mxu0 0.0
    %1336 = vmatprep.subr.mxu0 0.0
    %1337 = vmatpush1.msra.mxu0 0.0
    %1338 = vmatprep.subr.mxu0 0.0
    %1339 = vmatpush1.msra.mxu0 0.0
    %1340 = vmatprep.subr.mxu0 0.0
    %1341 = vmatpush1.msra.mxu0 0.0
    %1342 = vmatprep.subr.mxu0 0.0
    %1343 = vmatpush1.msra.mxu0 0.0
    %1344 = vmatprep.subr.mxu0 0.0
    %1345 = vmatpush1.msra.mxu0 0.0
    %1346 = vmatprep.subr.mxu0 0.0
    %1347 = vmatpush1.msra.mxu0 0.0
    %1348 = vmatprep.subr.mxu0 0.0
    %1349 = vmatpush1.msra.mxu0 0.0
    %1350 = vmatprep.subr.mxu0 0.0
    %1351 = vmatpush1.msra.mxu0 0.0
    %1352 = vmatprep.subr.mxu0 0.0
    %1353 = vmatpush1.msra.mxu0 0.0
    %1354 = vmatprep.subr.mxu0 0.0
    %1355 = vmatpush1.msra.mxu0 0.0
    %1356 = vmatprep.subr.mxu0 0.0
    %1357 = vmatpush1.msra.mxu0 0.0
    %1358 = vmatprep.subr.mxu0 0.0
    %1359 = vmatpush1.msra.mxu0 0.0
    %1360 = vmatprep.subr.mxu0 0.0
    %1361 = vmatpush1.msra.mxu0 0.0
    %1362 = vmatprep.mubr.f32.mxu0 0.0
    %1363 = vmatmul.mubr.f32.gmra.mrb[0].mxu0 %v1296
    %v1364 = vpop.f32.mrb[0].mxu0
    %v1365 = vadd.f32 %v308, %v1364
    %v1366 = vpop.f32.mrb[0].mxu0
    %1367 = vdwg.mxu0
    %v1368 = vmax.f32 %v1365, 0.0
    %1370 = vset.pattern.permute.xlu0 0
    %1371 = vperm.xlu0 %1370, %v1292
    %v1372 = vpop.permute.xlu0 %1371
    %v1374 = vmul.f32 %v1368, %v1372
    %1375 = vmatprep.subr.mxu0 0.0
    %1376 = vmatpush1.msra.mxu0 %v1374
    %1377 = vmatprep.subr.mxu0 0.0
    %1378 = vmatpush1.msra.mxu0 0.0
    %1379 = vmatprep.subr.mxu0 0.0
    %1380 = vmatpush1.msra.mxu0 0.0
    %1381 = vmatprep.subr.mxu0 0.0
    %1382 = vmatpush1.msra.mxu0 0.0
    %1383 = vmatprep.subr.mxu0 0.0
    %1384 = vmatpush1.msra.mxu0 0.0
    %1385 = vmatprep.subr.mxu0 0.0
    %1386 = vmatpush1.msra.mxu0 0.0
    %1387 = vmatprep.subr.mxu0 0.0
    %1388 = vmatpush1.msra.mxu0 0.0
    %1389 = vmatprep.subr.mxu0 0.0
    %1390 = vmatpush1.msra.mxu0 0.0
    %1391 = vmatprep.subr.mxu0 0.0
    %1392 = vmatpush1.msra.mxu0 0.0
    %1393 = vmatprep.subr.mxu0 0.0
    %1394 = vmatpush1.msra.mxu0 0.0
    %1395 = vmatprep.subr.mxu0 0.0
    %1396 = vmatpush1.msra.mxu0 0.0
    %1397 = vmatprep.subr.mxu0 0.0
    %1398 = vmatpush1.msra.mxu0 0.0
    %1399 = vmatprep.subr.mxu0 0.0
    %1400 = vmatpush1.msra.mxu0 0.0
    %1401 = vmatprep.subr.mxu0 0.0
    %1402 = vmatpush1.msra.mxu0 0.0
    %1403 = vmatprep.subr.mxu0 0.0
    %1404 = vmatpush1.msra.mxu0 0.0
    %1405 = vmatprep.subr.mxu0 0.0
    %1406 = vmatpush1.msra.mxu0 0.0
    %1407 = vmatprep.subr.mxu0 0.0
    %1408 = vmatpush1.msra.mxu0 0.0
    %1409 = vmatprep.subr.mxu0 0.0
    %1410 = vmatpush1.msra.mxu0 0.0
    %1411 = vmatprep.subr.mxu0 0.0
    %1412 = vmatpush1.msra.mxu0 0.0
    %1413 = vmatprep.subr.mxu0 0.0
    %1414 = vmatpush1.msra.mxu0 0.0
    %1415 = vmatprep.subr.mxu0 0.0
    %1416 = vmatpush1.msra.mxu0 0.0
    %1417 = vmatprep.subr.mxu0 0.0
    %1418 = vmatpush1.msra.mxu0 0.0
    %1419 = vmatprep.subr.mxu0 0.0
    %1420 = vmatpush1.msra.mxu0 0.0
    %1421 = vmatprep.subr.mxu0 0.0
    %1422 = vmatpush1.msra.mxu0 0.0
    %1423 = vmatprep.subr.mxu0 0.0
    %1424 = vmatpush1.msra.mxu0 0.0
    %1425 = vmatprep.subr.mxu0 0.0
    %1426 = vmatpush1.msra.mxu0 0.0
    %1427 = vmatprep.subr.mxu0 0.0
    %1428 = vmatpush1.msra.mxu0 0.0
    %1429 = vmatprep.subr.mxu0 0.0
    %1430 = vmatpush1.msra.mxu0 0.0
    %1431 = vmatprep.subr.mxu0 0.0
    %1432 = vmatpush1.msra.mxu0 0.0
    %1433 = vmatprep.subr.mxu0 0.0
    %1434 = vmatpush1.msra.mxu0 0.0
    %1435 = vmatprep.subr.mxu0 0.0
    %1436 = vmatpush1.msra.mxu0 0.0
    %1437 = vmatprep.subr.mxu0 0.0
    %1438 = vmatpush1.msra.mxu0 0.0
    %1439 = vmatprep.mubr.f32.mxu0 0.0
    %1440 = vmatmul.mubr.f32.gmra.mrb[0].mxu0 %v394
    %v1441 = vpop.f32.mrb[0].mxu0
    %v1442 = vadd.f32 0.0, %v1441
    %v1443 = vpop.f32.mrb[0].mxu0
    %1444 = vdwg.mxu0
    %1445 = vmatprep.subr.mxu0 0.0
    %1446 = vmatpush1.msra.mxu0 %v1292
    %1447 = vmatprep.subr.mxu0 0.0
    %1448 = vmatpush1.msra.mxu0 0.0
    %1449 = vmatprep.subr.mxu0 0.0
    %1450 = vmatpush1.msra.mxu0 0.0
    %1451 = vmatprep.subr.mxu0 0.0
    %1452 = vmatpush1.msra.mxu0 0.0
    %1453 = vmatprep.subr.mxu0 0.0
    %1454 = vmatpush1.msra.mxu0 0.0
    %1455 = vmatprep.subr.mxu0 0.0
    %1456 = vmatpush1.msra.mxu0 0.0
    %1457 = vmatprep.subr.mxu0 0.0
    %1458 = vmatpush1.msra.mxu0 0.0
    %1459 = vmatprep.subr.mxu0 0.0
    %1460 = vmatpush1.msra.mxu0 0.0
    %1461 = vmatprep.subr.mxu0 0.0
    %1462 = vmatpush1.msra.mxu0 0.0
    %1463 = vmatprep.subr.mxu0 0.0
    %1464 = vmatpush1.msra.mxu0 0.0
    %1465 = vmatprep.subr.mxu0 0.0
    %1466 = vmatpush1.msra.mxu0 0.0
    %1467 = vmatprep.subr.mxu0 0.0
    %1468 = vmatpush1.msra.mxu0 0.0
    %1469 = vmatprep.subr.mxu0 0.0
    %1470 = vmatpush1.msra.mxu0 0.0
    %1471 = vmatprep.subr.mxu0 0.0
    %1472 = vmatpush1.msra.mxu0 0.0
    %1473 = vmatprep.subr.mxu0 0.0
    %1474 = vmatpush1.msra.mxu0 0.0
    %1475 = vmatprep.subr.mxu0 0.0
    %1476 = vmatpush1.msra.mxu0 0.0
    %1477 = vmatprep.subr.mxu0 0.0
    %1478 = vmatpush1.msra.mxu0 0.0
    %1479 = vmatprep.subr.mxu0 0.0
    %1480 = vmatpush1.msra.mxu0 0.0
    %1481 = vmatprep.subr.mxu0 0.0
    %1482 = vmatpush1.msra.mxu0 0.0
    %1483 = vmatprep.subr.mxu0 0.0
    %1484 = vmatpush1.msra.mxu0 0.0
    %1485 = vmatprep.subr.mxu0 0.0
    %1486 = vmatpush1.msra.mxu0 0.0
    %1487 = vmatprep.subr.mxu0 0.0
    %1488 = vmatpush1.msra.mxu0 0.0
    %1489 = vmatprep.subr.mxu0 0.0
    %1490 = vmatpush1.msra.mxu0 0.0
    %1491 = vmatprep.subr.mxu0 0.0
    %1492 = vmatpush1.msra.mxu0 0.0
    %1493 = vmatprep.subr.mxu0 0.0
    %1494 = vmatpush1.msra.mxu0 0.0
    %1495 = vmatprep.subr.mxu0 0.0
    %1496 = vmatpush1.msra.mxu0 0.0
    %1497 = vmatprep.subr.mxu0 0.0
    %1498 = vmatpush1.msra.mxu0 0.0
    %1499 = vmatprep.subr.mxu0 0.0
    %1500 = vmatpush1.msra.mxu0 0.0
    %1501 = vmatprep.subr.mxu0 0.0
    %1502 = vmatpush1.msra.mxu0 0.0
    %1503 = vmatprep.subr.mxu0 0.0
    %1504 = vmatpush1.msra.mxu0 0.0
    %1505 = vmatprep.subr.mxu0 0.0
    %1506 = vmatpush1.msra.mxu0 0.0
    %1507 = vmatprep.subr.mxu0 0.0
    %1508 = vmatpush1.msra.mxu0 0.0
    %1509 = vmatprep.mubr.f32.mxu0 0.0
    %1510 = vmatmul.mubr.f32.gmra.mrb[0].mxu0 %v394
    %v1511 = vpop.f32.mrb[0].mxu0
    %v1512 = vadd.f32 0.0, %v1511
    %v1513 = vpop.f32.mrb[0].mxu0
    %1514 = vdwg.mxu0
    %v1515 = vmax.f32 %v1512, 1.0
    %1517 = vset.pattern.permute.xlu0 0
    %1518 = vperm.xlu0 %1517, %v1515
    %v1519 = vpop.permute.xlu0 %1518
    %v1521 = vrcp.pop %v1519
    %v1522 = vmul.f32 %v1442, %v1521
    %v1524 = vsel %vm120, %v1522, 0
    %1526 = vmatprep.subr.mxu0 0.0
    %1527 = vmatpush1.msra.mxu0 %v104
    %1528 = vmatprep.subr.mxu0 0.0
    %1529 = vmatpush1.msra.mxu0 %v105
    %1530 = vmatprep.subr.mxu0 0.0
    %1531 = vmatpush1.msra.mxu0 %v106
    %1532 = vmatprep.subr.mxu0 0.0
    %1533 = vmatpush1.msra.mxu0 %v107
    %1534 = vmatprep.subr.mxu0 0.0
    %1535 = vmatpush1.msra.mxu0 0.0
    %1536 = vmatprep.subr.mxu0 0.0
    %1537 = vmatpush1.msra.mxu0 0.0
    %1538 = vmatprep.subr.mxu0 0.0
    %1539 = vmatpush1.msra.mxu0 0.0
    %1540 = vmatprep.subr.mxu0 0.0
    %1541 = vmatpush1.msra.mxu0 0.0
    %1542 = vmatprep.subr.mxu0 0.0
    %1543 = vmatpush1.msra.mxu0 0.0
    %1544 = vmatprep.subr.mxu0 0.0
    %1545 = vmatpush1.msra.mxu0 0.0
    %1546 = vmatprep.subr.mxu0 0.0
    %1547 = vmatpush1.msra.mxu0 0.0
    %1548 = vmatprep.subr.mxu0 0.0
    %1549 = vmatpush1.msra.mxu0 0.0
    %1550 = vmatprep.subr.mxu0 0.0
    %1551 = vmatpush1.msra.mxu0 0.0
    %1552 = vmatprep.subr.mxu0 0.0
    %1553 = vmatpush1.msra.mxu0 0.0
    %1554 = vmatprep.subr.mxu0 0.0
    %1555 = vmatpush1.msra.mxu0 0.0
    %1556 = vmatprep.subr.mxu0 0.0
    %1557 = vmatpush1.msra.mxu0 0.0
    %1558 = vmatprep.subr.mxu0 0.0
    %1559 = vmatpush1.msra.mxu0 0.0
    %1560 = vmatprep.subr.mxu0 0.0
    %1561 = vmatpush1.msra.mxu0 0.0
    %1562 = vmatprep.subr.mxu0 0.0
    %1563 = vmatpush1.msra.mxu0 0.0
    %1564 = vmatprep.subr.mxu0 0.0
    %1565 = vmatpush1.msra.mxu0 0.0
    %1566 = vmatprep.subr.mxu0 0.0
    %1567 = vmatpush1.msra.mxu0 0.0
    %1568 = vmatprep.subr.mxu0 0.0
    %1569 = vmatpush1.msra.mxu0 0.0
    %1570 = vmatprep.subr.mxu0 0.0
    %1571 = vmatpush1.msra.mxu0 0.0
    %1572 = vmatprep.subr.mxu0 0.0
    %1573 = vmatpush1.msra.mxu0 0.0
    %1574 = vmatprep.subr.mxu0 0.0
    %1575 = vmatpush1.msra.mxu0 0.0
    %1576 = vmatprep.subr.mxu0 0.0
    %1577 = vmatpush1.msra.mxu0 0.0
    %1578 = vmatprep.subr.mxu0 0.0
    %1579 = vmatpush1.msra.mxu0 0.0
    %1580 = vmatprep.subr.mxu0 0.0
    %1581 = vmatpush1.msra.mxu0 0.0
    %1582 = vmatprep.subr.mxu0 0.0
    %1583 = vmatpush1.msra.mxu0 0.0
    %1584 = vmatprep.subr.mxu0 0.0
    %1585 = vmatpush1.msra.mxu0 0.0
    %1586 = vmatprep.subr.mxu0 0.0
    %1587 = vmatpush1.msra.mxu0 0.0
    %1588 = vmatprep.subr.mxu0 0.0
    %1589 = vmatpush1.msra.mxu0 0.0
    %1590 = vmatprep.mubr.f32.mxu0 0.0
    %1591 = vmatmul.mubr.f32.gmra.mrb[0].mxu0 %v1524
    %v1592 = vpop.f32.mrb[0].mxu0
    %v1593 = vadd.f32 0.0, %v1592
    %v1594 = vpop.f32.mrb[0].mxu0
    %1595 = vdwg.mxu0
    %v1597 = vsel %vm621, %v1593, 0
    %1599 = vmatprep.subr.mxu0 0.0
    %1600 = vmatpush1.msra.mxu0 %v1597
    %1601 = vmatprep.subr.mxu0 0.0
    %1602 = vmatpush1.msra.mxu0 0.0
    %1603 = vmatprep.subr.mxu0 0.0
    %1604 = vmatpush1.msra.mxu0 0.0
    %1605 = vmatprep.subr.mxu0 0.0
    %1606 = vmatpush1.msra.mxu0 0.0
    %1607 = vmatprep.subr.mxu0 0.0
    %1608 = vmatpush1.msra.mxu0 0.0
    %1609 = vmatprep.subr.mxu0 0.0
    %1610 = vmatpush1.msra.mxu0 0.0
    %1611 = vmatprep.subr.mxu0 0.0
    %1612 = vmatpush1.msra.mxu0 0.0
    %1613 = vmatprep.subr.mxu0 0.0
    %1614 = vmatpush1.msra.mxu0 0.0
    %1615 = vmatprep.subr.mxu0 0.0
    %1616 = vmatpush1.msra.mxu0 0.0
    %1617 = vmatprep.subr.mxu0 0.0
    %1618 = vmatpush1.msra.mxu0 0.0
    %1619 = vmatprep.subr.mxu0 0.0
    %1620 = vmatpush1.msra.mxu0 0.0
    %1621 = vmatprep.subr.mxu0 0.0
    %1622 = vmatpush1.msra.mxu0 0.0
    %1623 = vmatprep.subr.mxu0 0.0
    %1624 = vmatpush1.msra.mxu0 0.0
    %1625 = vmatprep.subr.mxu0 0.0
    %1626 = vmatpush1.msra.mxu0 0.0
    %1627 = vmatprep.subr.mxu0 0.0
    %1628 = vmatpush1.msra.mxu0 0.0
    %1629 = vmatprep.subr.mxu0 0.0
    %1630 = vmatpush1.msra.mxu0 0.0
    %1631 = vmatprep.subr.mxu0 0.0
    %1632 = vmatpush1.msra.mxu0 0.0
    %1633 = vmatprep.subr.mxu0 0.0
    %1634 = vmatpush1.msra.mxu0 0.0
    %1635 = vmatprep.subr.mxu0 0.0
    %1636 = vmatpush1.msra.mxu0 0.0
    %1637 = vmatprep.subr.mxu0 0.0
    %1638 = vmatpush1.msra.mxu0 0.0
    %1639 = vmatprep.subr.mxu0 0.0
    %1640 = vmatpush1.msra.mxu0 0.0
    %1641 = vmatprep.subr.mxu0 0.0
    %1642 = vmatpush1.msra.mxu0 0.0
    %1643 = vmatprep.subr.mxu0 0.0
    %1644 = vmatpush1.msra.mxu0 0.0
    %1645 = vmatprep.subr.mxu0 0.0
    %1646 = vmatpush1.msra.mxu0 0.0
    %1647 = vmatprep.subr.mxu0 0.0
    %1648 = vmatpush1.msra.mxu0 0.0
    %1649 = vmatprep.subr.mxu0 0.0
    %1650 = vmatpush1.msra.mxu0 0.0
    %1651 = vmatprep.subr.mxu0 0.0
    %1652 = vmatpush1.msra.mxu0 0.0
    %1653 = vmatprep.subr.mxu0 0.0
    %1654 = vmatpush1.msra.mxu0 0.0
    %1655 = vmatprep.subr.mxu0 0.0
    %1656 = vmatpush1.msra.mxu0 0.0
    %1657 = vmatprep.subr.mxu0 0.0
    %1658 = vmatpush1.msra.mxu0 0.0
    %1659 = vmatprep.subr.mxu0 0.0
    %1660 = vmatpush1.msra.mxu0 0.0
    %1661 = vmatprep.subr.mxu0 0.0
    %1662 = vmatpush1.msra.mxu0 0.0
    %1663 = vmatprep.mubr.f32.mxu0 0.0
    %1664 = vmatmul.mubr.f32.gmra.mrb[0].mxu0 %v619
    %v1665 = vpop.f32.mrb[0].mxu0
    %v1666 = vadd.f32 0.0, %v1665
    %v1667 = vpop.f32.mrb[0].mxu0
    %1668 = vdwg.mxu0
    %v1670 = vsel %vm120, %v1368, 0
    %1672 = vmatprep.subr.mxu0 0.0
    %1673 = vmatpush1.msra.mxu0 %v100
    %1674 = vmatprep.subr.mxu0 0.0
    %1675 = vmatpush1.msra.mxu0 %v101
    %1676 = vmatprep.subr.mxu0 0.0
    %1677 = vmatpush1.msra.mxu0 %v102
    %1678 = vmatprep.subr.mxu0 0.0
    %1679 = vmatpush1.msra.mxu0 %v103
    %1680 = vmatprep.subr.mxu0 0.0
    %1681 = vmatpush1.msra.mxu0 0.0
    %1682 = vmatprep.subr.mxu0 0.0
    %1683 = vmatpush1.msra.mxu0 0.0
    %1684 = vmatprep.subr.mxu0 0.0
    %1685 = vmatpush1.msra.mxu0 0.0
    %1686 = vmatprep.subr.mxu0 0.0
    %1687 = vmatpush1.msra.mxu0 0.0
    %1688 = vmatprep.subr.mxu0 0.0
    %1689 = vmatpush1.msra.mxu0 0.0
    %1690 = vmatprep.subr.mxu0 0.0
    %1691 = vmatpush1.msra.mxu0 0.0
    %1692 = vmatprep.subr.mxu0 0.0
    %1693 = vmatpush1.msra.mxu0 0.0
    %1694 = vmatprep.subr.mxu0 0.0
    %1695 = vmatpush1.msra.mxu0 0.0
    %1696 = vmatprep.subr.mxu0 0.0
    %1697 = vmatpush1.msra.mxu0 0.0
    %1698 = vmatprep.subr.mxu0 0.0
    %1699 = vmatpush1.msra.mxu0 0.0
    %1700 = vmatprep.subr.mxu0 0.0
    %1701 = vmatpush1.msra.mxu0 0.0
    %1702 = vmatprep.subr.mxu0 0.0
    %1703 = vmatpush1.msra.mxu0 0.0
    %1704 = vmatprep.subr.mxu0 0.0
    %1705 = vmatpush1.msra.mxu0 0.0
    %1706 = vmatprep.subr.mxu0 0.0
    %1707 = vmatpush1.msra.mxu0 0.0
    %1708 = vmatprep.subr.mxu0 0.0
    %1709 = vmatpush1.msra.mxu0 0.0
    %1710 = vmatprep.subr.mxu0 0.0
    %1711 = vmatpush1.msra.mxu0 0.0
    %1712 = vmatprep.subr.mxu0 0.0
    %1713 = vmatpush1.msra.mxu0 0.0
    %1714 = vmatprep.subr.mxu0 0.0
    %1715 = vmatpush1.msra.mxu0 0.0
    %1716 = vmatprep.subr.mxu0 0.0
    %1717 = vmatpush1.msra.mxu0 0.0
    %1718 = vmatprep.subr.mxu0 0.0
    %1719 = vmatpush1.msra.mxu0 0.0
    %1720 = vmatprep.subr.mxu0 0.0
    %1721 = vmatpush1.msra.mxu0 0.0
    %1722 = vmatprep.subr.mxu0 0.0
    %1723 = vmatpush1.msra.mxu0 0.0
    %1724 = vmatprep.subr.mxu0 0.0
    %1725 = vmatpush1.msra.mxu0 0.0
    %1726 = vmatprep.subr.mxu0 0.0
    %1727 = vmatpush1.msra.mxu0 0.0
    %1728 = vmatprep.subr.mxu0 0.0
    %1729 = vmatpush1.msra.mxu0 0.0
    %1730 = vmatprep.subr.mxu0 0.0
    %1731 = vmatpush1.msra.mxu0 0.0
    %1732 = vmatprep.subr.mxu0 0.0
    %1733 = vmatpush1.msra.mxu0 0.0
    %1734 = vmatprep.subr.mxu0 0.0
    %1735 = vmatpush1.msra.mxu0 0.0
    %1736 = vmatprep.mubr.f32.mxu0 0.0
    %1737 = vmatmul.mubr.f32.gmra.mrb[0].mxu0 %v1670
    %v1738 = vpop.f32.mrb[0].mxu0
    %v1739 = vadd.f32 %v1666, %v1738
    %v1740 = vpop.f32.mrb[0].mxu0
    %1741 = vdwg.mxu0
    %v1742 = vadd.f32 %v1739, %v772
    %v1743 = vmax.f32 %v1742, 0.0
    %v1744 = vmul.f32 %v1743, %v1372
    %v1745 = vmul.f32 %v1744, %v117
    %v1746 = vmul.f32 %v1744, %v198
    %v1748 = vsel %vm779, %v1746, 0
    %1750 = vmatprep.subr.mxu0 0.0
    %1751 = vmatpush1.msra.mxu0 %v81
    %1752 = vmatprep.subr.mxu0 0.0
    %1753 = vmatpush1.msra.mxu0 %v82
    %1754 = vmatprep.subr.mxu0 0.0
    %1755 = vmatpush1.msra.mxu0 0.0
    %1756 = vmatprep.subr.mxu0 0.0
    %1757 = vmatpush1.msra.mxu0 0.0
    %1758 = vmatprep.subr.mxu0 0.0
    %1759 = vmatpush1.msra.mxu0 0.0
    %1760 = vmatprep.subr.mxu0 0.0
    %1761 = vmatpush1.msra.mxu0 0.0
    %1762 = vmatprep.subr.mxu0 0.0
    %1763 = vmatpush1.msra.mxu0 0.0
    %1764 = vmatprep.subr.mxu0 0.0
    %1765 = vmatpush1.msra.mxu0 0.0
    %1766 = vmatprep.subr.mxu0 0.0
    %1767 = vmatpush1.msra.mxu0 0.0
    %1768 = vmatprep.subr.mxu0 0.0
    %1769 = vmatpush1.msra.mxu0 0.0
    %1770 = vmatprep.subr.mxu0 0.0
    %1771 = vmatpush1.msra.mxu0 0.0
    %1772 = vmatprep.subr.mxu0 0.0
    %1773 = vmatpush1.msra.mxu0 0.0
    %1774 = vmatprep.subr.mxu0 0.0
    %1775 = vmatpush1.msra.mxu0 0.0
    %1776 = vmatprep.subr.mxu0 0.0
    %1777 = vmatpush1.msra.mxu0 0.0
    %1778 = vmatprep.subr.mxu0 0.0
    %1779 = vmatpush1.msra.mxu0 0.0
    %1780 = vmatprep.subr.mxu0 0.0
    %1781 = vmatpush1.msra.mxu0 0.0
    %1782 = vmatprep.subr.mxu0 0.0
    %1783 = vmatpush1.msra.mxu0 0.0
    %1784 = vmatprep.subr.mxu0 0.0
    %1785 = vmatpush1.msra.mxu0 0.0
    %1786 = vmatprep.subr.mxu0 0.0
    %1787 = vmatpush1.msra.mxu0 0.0
    %1788 = vmatprep.subr.mxu0 0.0
    %1789 = vmatpush1.msra.mxu0 0.0
    %1790 = vmatprep.subr.mxu0 0.0
    %1791 = vmatpush1.msra.mxu0 0.0
    %1792 = vmatprep.subr.mxu0 0.0
    %1793 = vmatpush1.msra.mxu0 0.0
    %1794 = vmatprep.subr.mxu0 0.0
    %1795 = vmatpush1.msra.mxu0 0.0
    %1796 = vmatprep.subr.mxu0 0.0
    %1797 = vmatpush1.msra.mxu0 0.0
    %1798 = vmatprep.subr.mxu0 0.0
    %1799 = vmatpush1.msra.mxu0 0.0
    %1800 = vmatprep.subr.mxu0 0.0
    %1801 = vmatpush1.msra.mxu0 0.0
    %1802 = vmatprep.subr.mxu0 0.0
    %1803 = vmatpush1.msra.mxu0 0.0
    %1804 = vmatprep.subr.mxu0 0.0
    %1805 = vmatpush1.msra.mxu0 0.0
    %1806 = vmatprep.subr.mxu0 0.0
    %1807 = vmatpush1.msra.mxu0 0.0
    %1808 = vmatprep.subr.mxu0 0.0
    %1809 = vmatpush1.msra.mxu0 0.0
    %1810 = vmatprep.subr.mxu0 0.0
    %1811 = vmatpush1.msra.mxu0 0.0
    %1812 = vmatprep.subr.mxu0 0.0
    %1813 = vmatpush1.msra.mxu0 0.0
    %1814 = vmatprep.mubr.f32.mxu0 0.0
    %1815 = vmatmul.mubr.f32.gmra.mrb[0].mxu0 %v1748
    %v1816 = vpop.f32.mrb[0].mxu0
    %v1817 = vadd.f32 0.0, %v1816
    %v1818 = vpop.f32.mrb[0].mxu0
    %1819 = vdwg.mxu0
    %v1821 = vsel %vm779, %v1745, 0
    %1823 = vmatprep.subr.mxu0 0.0
    %1824 = vmatpush1.msra.mxu0 %v78
    %1825 = vmatprep.subr.mxu0 0.0
    %1826 = vmatpush1.msra.mxu0 %v79
    %1827 = vmatprep.subr.mxu0 0.0
    %1828 = vmatpush1.msra.mxu0 0.0
    %1829 = vmatprep.subr.mxu0 0.0
    %1830 = vmatpush1.msra.mxu0 0.0
    %1831 = vmatprep.subr.mxu0 0.0
    %1832 = vmatpush1.msra.mxu0 0.0
    %1833 = vmatprep.subr.mxu0 0.0
    %1834 = vmatpush1.msra.mxu0 0.0
    %1835 = vmatprep.subr.mxu0 0.0
    %1836 = vmatpush1.msra.mxu0 0.0
    %1837 = vmatprep.subr.mxu0 0.0
    %1838 = vmatpush1.msra.mxu0 0.0
    %1839 = vmatprep.subr.mxu0 0.0
    %1840 = vmatpush1.msra.mxu0 0.0
    %1841 = vmatprep.subr.mxu0 0.0
    %1842 = vmatpush1.msra.mxu0 0.0
    %1843 = vmatprep.subr.mxu0 0.0
    %1844 = vmatpush1.msra.mxu0 0.0
    %1845 = vmatprep.subr.mxu0 0.0
    %1846 = vmatpush1.msra.mxu0 0.0
    %1847 = vmatprep.subr.mxu0 0.0
    %1848 = vmatpush1.msra.mxu0 0.0
    %1849 = vmatprep.subr.mxu0 0.0
    %1850 = vmatpush1.msra.mxu0 0.0
    %1851 = vmatprep.subr.mxu0 0.0
    %1852 = vmatpush1.msra.mxu0 0.0
    %1853 = vmatprep.subr.mxu0 0.0
    %1854 = vmatpush1.msra.mxu0 0.0
    %1855 = vmatprep.subr.mxu0 0.0
    %1856 = vmatpush1.msra.mxu0 0.0
    %1857 = vmatprep.subr.mxu0 0.0
    %1858 = vmatpush1.msra.mxu0 0.0
    %1859 = vmatprep.subr.mxu0 0.0
    %1860 = vmatpush1.msra.mxu0 0.0
    %1861 = vmatprep.subr.mxu0 0.0
    %1862 = vmatpush1.msra.mxu0 0.0
    %1863 = vmatprep.subr.mxu0 0.0
    %1864 = vmatpush1.msra.mxu0 0.0
    %1865 = vmatprep.subr.mxu0 0.0
    %1866 = vmatpush1.msra.mxu0 0.0
    %1867 = vmatprep.subr.mxu0 0.0
    %1868 = vmatpush1.msra.mxu0 0.0
    %1869 = vmatprep.subr.mxu0 0.0
    %1870 = vmatpush1.msra.mxu0 0.0
    %1871 = vmatprep.subr.mxu0 0.0
    %1872 = vmatpush1.msra.mxu0 0.0
    %1873 = vmatprep.subr.mxu0 0.0
    %1874 = vmatpush1.msra.mxu0 0.0
    %1875 = vmatprep.subr.mxu0 0.0
    %1876 = vmatpush1.msra.mxu0 0.0
    %1877 = vmatprep.subr.mxu0 0.0
    %1878 = vmatpush1.msra.mxu0 0.0
    %1879 = vmatprep.subr.mxu0 0.0
    %1880 = vmatpush1.msra.mxu0 0.0
    %1881 = vmatprep.subr.mxu0 0.0
    %1882 = vmatpush1.msra.mxu0 0.0
    %1883 = vmatprep.subr.mxu0 0.0
    %1884 = vmatpush1.msra.mxu0 0.0
    %1885 = vmatprep.subr.mxu0 0.0
    %1886 = vmatpush1.msra.mxu0 0.0
    %1887 = vmatprep.mubr.f32.mxu0 0.0
    %1888 = vmatmul.mubr.f32.gmra.mrb[0].mxu0 %v1821
    %v1889 = vpop.f32.mrb[0].mxu0
    %v1890 = vadd.f32 %v1817, %v1889
    %v1891 = vpop.f32.mrb[0].mxu0
    %1892 = vdwg.mxu0
    %v1893 = vadd.f32 %v1890, %v92
    %v1894 = vmul.f32 %v1104, %v117
    %1896 = vrot.lane.b32.xlu0 %v1894, 64
    %v1897 = vpop.permute.xlu0 %1896
    %v1898 = vsel %vm120, %v1897, 0
    %1900 = vmatprep.subr.mxu0 0.0
    %1901 = vmatpush1.msra.mxu0 %v83
    %1902 = vmatprep.subr.mxu0 0.0
    %1903 = vmatpush1.msra.mxu0 %v84
    %1904 = vmatprep.subr.mxu0 0.0
    %1905 = vmatpush1.msra.mxu0 %v85
    %1906 = vmatprep.subr.mxu0 0.0
    %1907 = vmatpush1.msra.mxu0 %v86
    %1908 = vmatprep.subr.mxu0 0.0
    %1909 = vmatpush1.msra.mxu0 0.0
    %1910 = vmatprep.subr.mxu0 0.0
    %1911 = vmatpush1.msra.mxu0 0.0
    %1912 = vmatprep.subr.mxu0 0.0
    %1913 = vmatpush1.msra.mxu0 0.0
    %1914 = vmatprep.subr.mxu0 0.0
    %1915 = vmatpush1.msra.mxu0 0.0
    %1916 = vmatprep.subr.mxu0 0.0
    %1917 = vmatpush1.msra.mxu0 0.0
    %1918 = vmatprep.subr.mxu0 0.0
    %1919 = vmatpush1.msra.mxu0 0.0
    %1920 = vmatprep.subr.mxu0 0.0
    %1921 = vmatpush1.msra.mxu0 0.0
    %1922 = vmatprep.subr.mxu0 0.0
    %1923 = vmatpush1.msra.mxu0 0.0
    %1924 = vmatprep.subr.mxu0 0.0
    %1925 = vmatpush1.msra.mxu0 0.0
    %1926 = vmatprep.subr.mxu0 0.0
    %1927 = vmatpush1.msra.mxu0 0.0
    %1928 = vmatprep.subr.mxu0 0.0
    %1929 = vmatpush1.msra.mxu0 0.0
    %1930 = vmatprep.subr.mxu0 0.0
    %1931 = vmatpush1.msra.mxu0 0.0
    %1932 = vmatprep.subr.mxu0 0.0
    %1933 = vmatpush1.msra.mxu0 0.0
    %1934 = vmatprep.subr.mxu0 0.0
    %1935 = vmatpush1.msra.mxu0 0.0
    %1936 = vmatprep.subr.mxu0 0.0
    %1937 = vmatpush1.msra.mxu0 0.0
    %1938 = vmatprep.subr.mxu0 0.0
    %1939 = vmatpush1.msra.mxu0 0.0
    %1940 = vmatprep.subr.mxu0 0.0
    %1941 = vmatpush1.msra.mxu0 0.0
    %1942 = vmatprep.subr.mxu0 0.0
    %1943 = vmatpush1.msra.mxu0 0.0
    %1944 = vmatprep.subr.mxu0 0.0
    %1945 = vmatpush1.msra.mxu0 0.0
    %1946 = vmatprep.subr.mxu0 0.0
    %1947 = vmatpush1.msra.mxu0 0.0
    %1948 = vmatprep.subr.mxu0 0.0
    %1949 = vmatpush1.msra.mxu0 0.0
    %1950 = vmatprep.subr.mxu0 0.0
    %1951 = vmatpush1.msra.mxu0 0.0
    %1952 = vmatprep.subr.mxu0 0.0
    %1953 = vmatpush1.msra.mxu0 0.0
    %1954 = vmatprep.subr.mxu0 0.0
    %1955 = vmatpush1.msra.mxu0 0.0
    %1956 = vmatprep.subr.mxu0 0.0
    %1957 = vmatpush1.msra.mxu0 0.0
    %1958 = vmatprep.subr.mxu0 0.0
    %1959 = vmatpush1.msra.mxu0 0.0
    %1960 = vmatprep.subr.mxu0 0.0
    %1961 = vmatpush1.msra.mxu0 0.0
    %1962 = vmatprep.subr.mxu0 0.0
    %1963 = vmatpush1.msra.mxu0 0.0
    %1964 = vmatprep.mubr.f32.mxu0 0.0
    %1965 = vmatmul.mubr.f32.gmra.mrb[0].mxu0 %v1898
    %v1966 = vpop.f32.mrb[0].mxu0
    %v1967 = vadd.f32 0.0, %v1966
    %v1968 = vpop.f32.mrb[0].mxu0
    %1969 = vdwg.mxu0
    %v1970 = vadd.f32 %v1893, %v1967
    %v1971 = vmul.f32 %v1104, %v198
    %1973 = vrot.lane.b32.xlu0 %v1971, 64
    %v1974 = vpop.permute.xlu0 %1973
    %v1975 = vsel %vm120, %v1974, 0
    %1977 = vmatprep.subr.mxu0 0.0
    %1978 = vmatpush1.msra.mxu0 %v88
    %1979 = vmatprep.subr.mxu0 0.0
    %1980 = vmatpush1.msra.mxu0 %v89
    %1981 = vmatprep.subr.mxu0 0.0
    %1982 = vmatpush1.msra.mxu0 %v90
    %1983 = vmatprep.subr.mxu0 0.0
    %1984 = vmatpush1.msra.mxu0 %v91
    %1985 = vmatprep.subr.mxu0 0.0
    %1986 = vmatpush1.msra.mxu0 0.0
    %1987 = vmatprep.subr.mxu0 0.0
    %1988 = vmatpush1.msra.mxu0 0.0
    %1989 = vmatprep.subr.mxu0 0.0
    %1990 = vmatpush1.msra.mxu0 0.0
    %1991 = vmatprep.subr.mxu0 0.0
    %1992 = vmatpush1.msra.mxu0 0.0
    %1993 = vmatprep.subr.mxu0 0.0
    %1994 = vmatpush1.msra.mxu0 0.0
    %1995 = vmatprep.subr.mxu0 0.0
    %1996 = vmatpush1.msra.mxu0 0.0
    %1997 = vmatprep.subr.mxu0 0.0
    %1998 = vmatpush1.msra.mxu0 0.0
    %1999 = vmatprep.subr.mxu0 0.0
    %2000 = vmatpush1.msra.mxu0 0.0
    %2001 = vmatprep.subr.mxu0 0.0
    %2002 = vmatpush1.msra.mxu0 0.0
    %2003 = vmatprep.subr.mxu0 0.0
    %2004 = vmatpush1.msra.mxu0 0.0
    %2005 = vmatprep.subr.mxu0 0.0
    %2006 = vmatpush1.msra.mxu0 0.0
    %2007 = vmatprep.subr.mxu0 0.0
    %2008 = vmatpush1.msra.mxu0 0.0
    %2009 = vmatprep.subr.mxu0 0.0
    %2010 = vmatpush1.msra.mxu0 0.0
    %2011 = vmatprep.subr.mxu0 0.0
    %2012 = vmatpush1.msra.mxu0 0.0
    %2013 = vmatprep.subr.mxu0 0.0
    %2014 = vmatpush1.msra.mxu0 0.0
    %2015 = vmatprep.subr.mxu0 0.0
    %2016 = vmatpush1.msra.mxu0 0.0
    %2017 = vmatprep.subr.mxu0 0.0
    %2018 = vmatpush1.msra.mxu0 0.0
    %2019 = vmatprep.subr.mxu0 0.0
    %2020 = vmatpush1.msra.mxu0 0.0
    %2021 = vmatprep.subr.mxu0 0.0
    %2022 = vmatpush1.msra.mxu0 0.0
    %2023 = vmatprep.subr.mxu0 0.0
    %2024 = vmatpush1.msra.mxu0 0.0
    %2025 = vmatprep.subr.mxu0 0.0
    %2026 = vmatpush1.msra.mxu0 0.0
    %2027 = vmatprep.subr.mxu0 0.0
    %2028 = vmatpush1.msra.mxu0 0.0
    %2029 = vmatprep.subr.mxu0 0.0
    %2030 = vmatpush1.msra.mxu0 0.0
    %2031 = vmatprep.subr.mxu0 0.0
    %2032 = vmatpush1.msra.mxu0 0.0
    %2033 = vmatprep.subr.mxu0 0.0
    %2034 = vmatpush1.msra.mxu0 0.0
    %2035 = vmatprep.subr.mxu0 0.0
    %2036 = vmatpush1.msra.mxu0 0.0
    %2037 = vmatprep.subr.mxu0 0.0
    %2038 = vmatpush1.msra.mxu0 0.0
    %2039 = vmatprep.subr.mxu0 0.0
    %2040 = vmatpush1.msra.mxu0 0.0
    %2041 = vmatprep.mubr.f32.mxu0 0.0
    %2042 = vmatmul.mubr.f32.gmra.mrb[0].mxu0 %v1975
    %v2043 = vpop.f32.mrb[0].mxu0
    %v2044 = vadd.f32 0.0, %v2043
    %v2045 = vpop.f32.mrb[0].mxu0
    %2046 = vdwg.mxu0
    %v2047 = vadd.f32 %v1970, %v2044
    %v2048 = vxor.u32 %v2047, 2147483648
    %v2049 = vmul.f32 %v2048, 1.442695
    %v2050 = vpow.pop %v2049
    %v2051 = vadd.f32 %v2050, 1.0
    %v2052 = vrcp.pop %v2051
    %v2053 = vmul.f32 1.0, %v2052
    %v2054 = vtanh.pop %v2047
    %v2055 = vmul.f32 %v2053, %v1098
    %2057 = vrot.lane.b32.xlu0 %v2054, 32
    %v2058 = vpop.permute.xlu0 %2057
    %v2060 = vmul.f32 %v2053, %v2058
    %2062 = vrot.lane.b32.xlu0 %v2060, 32
    %v2063 = vpop.permute.xlu0 %2062
    %v2065 = vadd.f32 %v2055, %v2063
    %v2066 = vtanh.pop %v2065
    %2068 = vrot.lane.b32.xlu0 %v2066, 32
    %v2069 = vpop.permute.xlu0 %2068
    %v2071 = vmul.f32 %v2053, %v2069
    %v2072 = vmul.f32 %v2071, %v1372
    %2074 = vrot.lane.b32.xlu0 %v2072, 64
    %v2075 = vpop.permute.xlu0 %2074
    %s2077 = scalar_lea.vmem %s18, 8
    %2078 = vst.msk [vmem:[%s2077] sm:$0xff] %vm120, %v2075
    %s2079 = scalar_lea.vmem %s0, 16
    %v2080 = vld [vmem:[%s2079] sm:$0xff]
    %v2081 = vmul.f32 %v1290, %v117
    %2083 = vrot.lane.b32.xlu0 %v2081, 64
    %v2084 = vpop.permute.xlu0 %2083
    %v2085 = vsel %vm120, %v2084, 0
    %2087 = vmatprep.subr.mxu0 0.0
    %2088 = vmatpush1.msra.mxu0 %v69
    %2089 = vmatprep.subr.mxu0 0.0
    %2090 = vmatpush1.msra.mxu0 %v70
    %2091 = vmatprep.subr.mxu0 0.0
    %2092 = vmatpush1.msra.mxu0 %v71
    %2093 = vmatprep.subr.mxu0 0.0
    %2094 = vmatpush1.msra.mxu0 %v72
    %2095 = vmatprep.subr.mxu0 0.0
    %2096 = vmatpush1.msra.mxu0 0.0
    %2097 = vmatprep.subr.mxu0 0.0
    %2098 = vmatpush1.msra.mxu0 0.0
    %2099 = vmatprep.subr.mxu0 0.0
    %2100 = vmatpush1.msra.mxu0 0.0
    %2101 = vmatprep.subr.mxu0 0.0
    %2102 = vmatpush1.msra.mxu0 0.0
    %2103 = vmatprep.subr.mxu0 0.0
    %2104 = vmatpush1.msra.mxu0 0.0
    %2105 = vmatprep.subr.mxu0 0.0
    %2106 = vmatpush1.msra.mxu0 0.0
    %2107 = vmatprep.subr.mxu0 0.0
    %2108 = vmatpush1.msra.mxu0 0.0
    %2109 = vmatprep.subr.mxu0 0.0
    %2110 = vmatpush1.msra.mxu0 0.0
    %2111 = vmatprep.subr.mxu0 0.0
    %2112 = vmatpush1.msra.mxu0 0.0
    %2113 = vmatprep.subr.mxu0 0.0
    %2114 = vmatpush1.msra.mxu0 0.0
    %2115 = vmatprep.subr.mxu0 0.0
    %2116 = vmatpush1.msra.mxu0 0.0
    %2117 = vmatprep.subr.mxu0 0.0
    %2118 = vmatpush1.msra.mxu0 0.0
    %2119 = vmatprep.subr.mxu0 0.0
    %2120 = vmatpush1.msra.mxu0 0.0
    %2121 = vmatprep.subr.mxu0 0.0
    %2122 = vmatpush1.msra.mxu0 0.0
    %2123 = vmatprep.subr.mxu0 0.0
    %2124 = vmatpush1.msra.mxu0 0.0
    %2125 = vmatprep.subr.mxu0 0.0
    %2126 = vmatpush1.msra.mxu0 0.0
    %2127 = vmatprep.subr.mxu0 0.0
    %2128 = vmatpush1.msra.mxu0 0.0
    %2129 = vmatprep.subr.mxu0 0.0
    %2130 = vmatpush1.msra.mxu0 0.0
    %2131 = vmatprep.subr.mxu0 0.0
    %2132 = vmatpush1.msra.mxu0 0.0
    %2133 = vmatprep.subr.mxu0 0.0
    %2134 = vmatpush1.msra.mxu0 0.0
    %2135 = vmatprep.subr.mxu0 0.0
    %2136 = vmatpush1.msra.mxu0 0.0
    %2137 = vmatprep.subr.mxu0 0.0
    %2138 = vmatpush1.msra.mxu0 0.0
    %2139 = vmatprep.subr.mxu0 0.0
    %2140 = vmatpush1.msra.mxu0 0.0
    %2141 = vmatprep.subr.mxu0 0.0
    %2142 = vmatpush1.msra.mxu0 0.0
    %2143 = vmatprep.subr.mxu0 0.0
    %2144 = vmatpush1.msra.mxu0 0.0
    %2145 = vmatprep.subr.mxu0 0.0
    %2146 = vmatpush1.msra.mxu0 0.0
    %2147 = vmatprep.subr.mxu0 0.0
    %2148 = vmatpush1.msra.mxu0 0.0
    %2149 = vmatprep.subr.mxu0 0.0
    %2150 = vmatpush1.msra.mxu0 0.0
    %2151 = vmatprep.mubr.f32.mxu0 0.0
    %2152 = vmatmul.mubr.f32.gmra.mrb[0].mxu0 %v2085
    %v2153 = vpop.f32.mrb[0].mxu0
    %v2154 = vadd.f32 0.0, %v2153
    %v2155 = vpop.f32.mrb[0].mxu0
    %2156 = vdwg.mxu0
    %v2157 = vadd.f32 %v2080, %v2154
    %v2158 = vmul.f32 %v1290, %v198
    %2160 = vrot.lane.b32.xlu0 %v2158, 64
    %v2161 = vpop.permute.xlu0 %2160
    %v2162 = vsel %vm120, %v2161, 0
    %2164 = vmatprep.subr.mxu0 0.0
    %2165 = vmatpush1.msra.mxu0 %v74
    %2166 = vmatprep.subr.mxu0 0.0
    %2167 = vmatpush1.msra.mxu0 %v75
    %2168 = vmatprep.subr.mxu0 0.0
    %2169 = vmatpush1.msra.mxu0 %v76
    %2170 = vmatprep.subr.mxu0 0.0
    %2171 = vmatpush1.msra.mxu0 %v77
    %2172 = vmatprep.subr.mxu0 0.0
    %2173 = vmatpush1.msra.mxu0 0.0
    %2174 = vmatprep.subr.mxu0 0.0
    %2175 = vmatpush1.msra.mxu0 0.0
    %2176 = vmatprep.subr.mxu0 0.0
    %2177 = vmatpush1.msra.mxu0 0.0
    %2178 = vmatprep.subr.mxu0 0.0
    %2179 = vmatpush1.msra.mxu0 0.0
    %2180 = vmatprep.subr.mxu0 0.0
    %2181 = vmatpush1.msra.mxu0 0.0
    %2182 = vmatprep.subr.mxu0 0.0
    %2183 = vmatpush1.msra.mxu0 0.0
    %2184 = vmatprep.subr.mxu0 0.0
    %2185 = vmatpush1.msra.mxu0 0.0
    %2186 = vmatprep.subr.mxu0 0.0
    %2187 = vmatpush1.msra.mxu0 0.0
    %2188 = vmatprep.subr.mxu0 0.0
    %2189 = vmatpush1.msra.mxu0 0.0
    %2190 = vmatprep.subr.mxu0 0.0
    %2191 = vmatpush1.msra.mxu0 0.0
    %2192 = vmatprep.subr.mxu0 0.0
    %2193 = vmatpush1.msra.mxu0 0.0
    %2194 = vmatprep.subr.mxu0 0.0
    %2195 = vmatpush1.msra.mxu0 0.0
    %2196 = vmatprep.subr.mxu0 0.0
    %2197 = vmatpush1.msra.mxu0 0.0
    %2198 = vmatprep.subr.mxu0 0.0
    %2199 = vmatpush1.msra.mxu0 0.0
    %2200 = vmatprep.subr.mxu0 0.0
    %2201 = vmatpush1.msra.mxu0 0.0
    %2202 = vmatprep.subr.mxu0 0.0
    %2203 = vmatpush1.msra.mxu0 0.0
    %2204 = vmatprep.subr.mxu0 0.0
    %2205 = vmatpush1.msra.mxu0 0.0
    %2206 = vmatprep.subr.mxu0 0.0
    %2207 = vmatpush1.msra.mxu0 0.0
    %2208 = vmatprep.subr.mxu0 0.0
    %2209 = vmatpush1.msra.mxu0 0.0
    %2210 = vmatprep.subr.mxu0 0.0
    %2211 = vmatpush1.msra.mxu0 0.0
    %2212 = vmatprep.subr.mxu0 0.0
    %2213 = vmatpush1.msra.mxu0 0.0
    %2214 = vmatprep.subr.mxu0 0.0
    %2215 = vmatpush1.msra.mxu0 0.0
    %2216 = vmatprep.subr.mxu0 0.0
    %2217 = vmatpush1.msra.mxu0 0.0
    %2218 = vmatprep.subr.mxu0 0.0
    %2219 = vmatpush1.msra.mxu0 0.0
    %2220 = vmatprep.subr.mxu0 0.0
    %2221 = vmatpush1.msra.mxu0 0.0
    %2222 = vmatprep.subr.mxu0 0.0
    %2223 = vmatpush1.msra.mxu0 0.0
    %2224 = vmatprep.subr.mxu0 0.0
    %2225 = vmatpush1.msra.mxu0 0.0
    %2226 = vmatprep.subr.mxu0 0.0
    %2227 = vmatpush1.msra.mxu0 0.0
    %2228 = vmatprep.mubr.f32.mxu0 0.0
    %2229 = vmatmul.mubr.f32.gmra.mrb[0].mxu0 %v2162
    %v2230 = vpop.f32.mrb[0].mxu0
    %v2231 = vadd.f32 0.0, %v2230
    %v2232 = vpop.f32.mrb[0].mxu0
    %2233 = vdwg.mxu0
    %v2234 = vadd.f32 %v2157, %v2231
    %v2235 = vxor.u32 %v2234, 2147483648
    %v2236 = vmul.f32 %v2235, 1.442695
    %v2237 = vpow.pop %v2236
    %v2238 = vadd.f32 %v2237, 1.0
    %v2239 = vrcp.pop %v2238
    %v2240 = vmul.f32 1.0, %v2239
    %v2241 = vtanh.pop %v2234
    %v2242 = vmul.f32 %v2240, %v1284
    %2244 = vrot.lane.b32.xlu0 %v2241, 32
    %v2245 = vpop.permute.xlu0 %2244
    %v2247 = vmul.f32 %v2240, %v2245
    %2249 = vrot.lane.b32.xlu0 %v2247, 32
    %v2250 = vpop.permute.xlu0 %2249
    %v2252 = vadd.f32 %v2242, %v2250
    %v2253 = vtanh.pop %v2252
    %2255 = vrot.lane.b32.xlu0 %v2253, 32
    %v2256 = vpop.permute.xlu0 %2255
    %v2258 = vmul.f32 %v2240, %v2256
    %s2259 = scalar_lea.vmem %s1, 16
    %v2260 = vld [vmem:[%s2259] sm:$0xff]
    %2262 = vrot.lane.b32.xlu0 %v2258, 64
    %v2263 = vpop.permute.xlu0 %2262
    %v2264 = vsel %vm120, %v2263, 0
    %2266 = vmatprep.subr.mxu0 0.0
    %2267 = vmatpush1.msra.mxu0 %v95
    %2268 = vmatprep.subr.mxu0 0.0
    %2269 = vmatpush1.msra.mxu0 %v96
    %2270 = vmatprep.subr.mxu0 0.0
    %2271 = vmatpush1.msra.mxu0 %v97
    %2272 = vmatprep.subr.mxu0 0.0
    %2273 = vmatpush1.msra.mxu0 %v98
    %2274 = vmatprep.subr.mxu0 0.0
    %2275 = vmatpush1.msra.mxu0 0.0
    %2276 = vmatprep.subr.mxu0 0.0
    %2277 = vmatpush1.msra.mxu0 0.0
    %2278 = vmatprep.subr.mxu0 0.0
    %2279 = vmatpush1.msra.mxu0 0.0
    %2280 = vmatprep.subr.mxu0 0.0
    %2281 = vmatpush1.msra.mxu0 0.0
    %2282 = vmatprep.subr.mxu0 0.0
    %2283 = vmatpush1.msra.mxu0 0.0
    %2284 = vmatprep.subr.mxu0 0.0
    %2285 = vmatpush1.msra.mxu0 0.0
    %2286 = vmatprep.subr.mxu0 0.0
    %2287 = vmatpush1.msra.mxu0 0.0
    %2288 = vmatprep.subr.mxu0 0.0
    %2289 = vmatpush1.msra.mxu0 0.0
    %2290 = vmatprep.subr.mxu0 0.0
    %2291 = vmatpush1.msra.mxu0 0.0
    %2292 = vmatprep.subr.mxu0 0.0
    %2293 = vmatpush1.msra.mxu0 0.0
    %2294 = vmatprep.subr.mxu0 0.0
    %2295 = vmatpush1.msra.mxu0 0.0
    %2296 = vmatprep.subr.mxu0 0.0
    %2297 = vmatpush1.msra.mxu0 0.0
    %2298 = vmatprep.subr.mxu0 0.0
    %2299 = vmatpush1.msra.mxu0 0.0
    %2300 = vmatprep.subr.mxu0 0.0
    %2301 = vmatpush1.msra.mxu0 0.0
    %2302 = vmatprep.subr.mxu0 0.0
    %2303 = vmatpush1.msra.mxu0 0.0
    %2304 = vmatprep.subr.mxu0 0.0
    %2305 = vmatpush1.msra.mxu0 0.0
    %2306 = vmatprep.subr.mxu0 0.0
    %2307 = vmatpush1.msra.mxu0 0.0
    %2308 = vmatprep.subr.mxu0 0.0
    %2309 = vmatpush1.msra.mxu0 0.0
    %2310 = vmatprep.subr.mxu0 0.0
    %2311 = vmatpush1.msra.mxu0 0.0
    %2312 = vmatprep.subr.mxu0 0.0
    %2313 = vmatpush1.msra.mxu0 0.0
    %2314 = vmatprep.subr.mxu0 0.0
    %2315 = vmatpush1.msra.mxu0 0.0
    %2316 = vmatprep.subr.mxu0 0.0
    %2317 = vmatpush1.msra.mxu0 0.0
    %2318 = vmatprep.subr.mxu0 0.0
    %2319 = vmatpush1.msra.mxu0 0.0
    %2320 = vmatprep.subr.mxu0 0.0
    %2321 = vmatpush1.msra.mxu0 0.0
    %2322 = vmatprep.subr.mxu0 0.0
    %2323 = vmatpush1.msra.mxu0 0.0
    %2324 = vmatprep.subr.mxu0 0.0
    %2325 = vmatpush1.msra.mxu0 0.0
    %2326 = vmatprep.subr.mxu0 0.0
    %2327 = vmatpush1.msra.mxu0 0.0
    %2328 = vmatprep.subr.mxu0 0.0
    %2329 = vmatpush1.msra.mxu0 0.0
    %2330 = vmatprep.mubr.f32.mxu0 0.0
    %2331 = vmatmul.mubr.f32.gmra.mrb[0].mxu0 %v2264
    %v2332 = vpop.f32.mrb[0].mxu0
    %v2333 = vadd.f32 %v308, %v2332
    %v2334 = vpop.f32.mrb[0].mxu0
    %2335 = vdwg.mxu0
    %v2336 = vmax.f32 %v2333, 0.0
    %2338 = vset.pattern.permute.xlu0 0
    %2339 = vperm.xlu0 %2338, %v2260
    %v2340 = vpop.permute.xlu0 %2339
    %v2342 = vmul.f32 %v2336, %v2340
    %2343 = vmatprep.subr.mxu0 0.0
    %2344 = vmatpush1.msra.mxu0 %v2342
    %2345 = vmatprep.subr.mxu0 0.0
    %2346 = vmatpush1.msra.mxu0 0.0
    %2347 = vmatprep.subr.mxu0 0.0
    %2348 = vmatpush1.msra.mxu0 0.0
    %2349 = vmatprep.subr.mxu0 0.0
    %2350 = vmatpush1.msra.mxu0 0.0
    %2351 = vmatprep.subr.mxu0 0.0
    %2352 = vmatpush1.msra.mxu0 0.0
    %2353 = vmatprep.subr.mxu0 0.0
    %2354 = vmatpush1.msra.mxu0 0.0
    %2355 = vmatprep.subr.mxu0 0.0
    %2356 = vmatpush1.msra.mxu0 0.0
    %2357 = vmatprep.subr.mxu0 0.0
    %2358 = vmatpush1.msra.mxu0 0.0
    %2359 = vmatprep.subr.mxu0 0.0
    %2360 = vmatpush1.msra.mxu0 0.0
    %2361 = vmatprep.subr.mxu0 0.0
    %2362 = vmatpush1.msra.mxu0 0.0
    %2363 = vmatprep.subr.mxu0 0.0
    %2364 = vmatpush1.msra.mxu0 0.0
    %2365 = vmatprep.subr.mxu0 0.0
    %2366 = vmatpush1.msra.mxu0 0.0
    %2367 = vmatprep.subr.mxu0 0.0
    %2368 = vmatpush1.msra.mxu0 0.0
    %2369 = vmatprep.subr.mxu0 0.0
    %2370 = vmatpush1.msra.mxu0 0.0
    %2371 = vmatprep.subr.mxu0 0.0
    %2372 = vmatpush1.msra.mxu0 0.0
    %2373 = vmatprep.subr.mxu0 0.0
    %2374 = vmatpush1.msra.mxu0 0.0
    %2375 = vmatprep.subr.mxu0 0.0
    %2376 = vmatpush1.msra.mxu0 0.0
    %2377 = vmatprep.subr.mxu0 0.0
    %2378 = vmatpush1.msra.mxu0 0.0
    %2379 = vmatprep.subr.mxu0 0.0
    %2380 = vmatpush1.msra.mxu0 0.0
    %2381 = vmatprep.subr.mxu0 0.0
    %2382 = vmatpush1.msra.mxu0 0.0
    %2383 = vmatprep.subr.mxu0 0.0
    %2384 = vmatpush1.msra.mxu0 0.0
    %2385 = vmatprep.subr.mxu0 0.0
    %2386 = vmatpush1.msra.mxu0 0.0
    %2387 = vmatprep.subr.mxu0 0.0
    %2388 = vmatpush1.msra.mxu0 0.0
    %2389 = vmatprep.subr.mxu0 0.0
    %2390 = vmatpush1.msra.mxu0 0.0
    %2391 = vmatprep.subr.mxu0 0.0
    %2392 = vmatpush1.msra.mxu0 0.0
    %2393 = vmatprep.subr.mxu0 0.0
    %2394 = vmatpush1.msra.mxu0 0.0
    %2395 = vmatprep.subr.mxu0 0.0
    %2396 = vmatpush1.msra.mxu0 0.0
    %2397 = vmatprep.subr.mxu0 0.0
    %2398 = vmatpush1.msra.mxu0 0.0
    %2399 = vmatprep.subr.mxu0 0.0
    %2400 = vmatpush1.msra.mxu0 0.0
    %2401 = vmatprep.subr.mxu0 0.0
    %2402 = vmatpush1.msra.mxu0 0.0
    %2403 = vmatprep.subr.mxu0 0.0
    %2404 = vmatpush1.msra.mxu0 0.0
    %2405 = vmatprep.subr.mxu0 0.0
    %2406 = vmatpush1.msra.mxu0 0.0
    %2407 = vmatprep.mubr.f32.mxu0 0.0
    %2408 = vmatmul.mubr.f32.gmra.mrb[0].mxu0 %v394
    %v2409 = vpop.f32.mrb[0].mxu0
    %v2410 = vadd.f32 0.0, %v2409
    %v2411 = vpop.f32.mrb[0].mxu0
    %2412 = vdwg.mxu0
    %2413 = vmatprep.subr.mxu0 0.0
    %2414 = vmatpush1.msra.mxu0 %v2260
    %2415 = vmatprep.subr.mxu0 0.0
    %2416 = vmatpush1.msra.mxu0 0.0
    %2417 = vmatprep.subr.mxu0 0.0
    %2418 = vmatpush1.msra.mxu0 0.0
    %2419 = vmatprep.subr.mxu0 0.0
    %2420 = vmatpush1.msra.mxu0 0.0
    %2421 = vmatprep.subr.mxu0 0.0
    %2422 = vmatpush1.msra.mxu0 0.0
    %2423 = vmatprep.subr.mxu0 0.0
    %2424 = vmatpush1.msra.mxu0 0.0
    %2425 = vmatprep.subr.mxu0 0.0
    %2426 = vmatpush1.msra.mxu0 0.0
    %2427 = vmatprep.subr.mxu0 0.0
    %2428 = vmatpush1.msra.mxu0 0.0
    %2429 = vmatprep.subr.mxu0 0.0
    %2430 = vmatpush1.msra.mxu0 0.0
    %2431 = vmatprep.subr.mxu0 0.0
    %2432 = vmatpush1.msra.mxu0 0.0
    %2433 = vmatprep.subr.mxu0 0.0
    %2434 = vmatpush1.msra.mxu0 0.0
    %2435 = vmatprep.subr.mxu0 0.0
    %2436 = vmatpush1.msra.mxu0 0.0
    %2437 = vmatprep.subr.mxu0 0.0
    %2438 = vmatpush1.msra.mxu0 0.0
    %2439 = vmatprep.subr.mxu0 0.0
    %2440 = vmatpush1.msra.mxu0 0.0
    %2441 = vmatprep.subr.mxu0 0.0
    %2442 = vmatpush1.msra.mxu0 0.0
    %2443 = vmatprep.subr.mxu0 0.0
    %2444 = vmatpush1.msra.mxu0 0.0
    %2445 = vmatprep.subr.mxu0 0.0
    %2446 = vmatpush1.msra.mxu0 0.0
    %2447 = vmatprep.subr.mxu0 0.0
    %2448 = vmatpush1.msra.mxu0 0.0
    %2449 = vmatprep.subr.mxu0 0.0
    %2450 = vmatpush1.msra.mxu0 0.0
    %2451 = vmatprep.subr.mxu0 0.0
    %2452 = vmatpush1.msra.mxu0 0.0
    %2453 = vmatprep.subr.mxu0 0.0
    %2454 = vmatpush1.msra.mxu0 0.0
    %2455 = vmatprep.subr.mxu0 0.0
    %2456 = vmatpush1.msra.mxu0 0.0
    %2457 = vmatprep.subr.mxu0 0.0
    %2458 = vmatpush1.msra.mxu0 0.0
    %2459 = vmatprep.subr.mxu0 0.0
    %2460 = vmatpush1.msra.mxu0 0.0
    %2461 = vmatprep.subr.mxu0 0.0
    %2462 = vmatpush1.msra.mxu0 0.0
    %2463 = vmatprep.subr.mxu0 0.0
    %2464 = vmatpush1.msra.mxu0 0.0
    %2465 = vmatprep.subr.mxu0 0.0
    %2466 = vmatpush1.msra.mxu0 0.0
    %2467 = vmatprep.subr.mxu0 0.0
    %2468 = vmatpush1.msra.mxu0 0.0
    %2469 = vmatprep.subr.mxu0 0.0
    %2470 = vmatpush1.msra.mxu0 0.0
    %2471 = vmatprep.subr.mxu0 0.0
    %2472 = vmatpush1.msra.mxu0 0.0
    %2473 = vmatprep.subr.mxu0 0.0
    %2474 = vmatpush1.msra.mxu0 0.0
    %2475 = vmatprep.subr.mxu0 0.0
    %2476 = vmatpush1.msra.mxu0 0.0
    %2477 = vmatprep.mubr.f32.mxu0 0.0
    %2478 = vmatmul.mubr.f32.gmra.mrb[0].mxu0 %v394
    %v2479 = vpop.f32.mrb[0].mxu0
    %v2480 = vadd.f32 0.0, %v2479
    %v2481 = vpop.f32.mrb[0].mxu0
    %2482 = vdwg.mxu0
    %v2483 = vmax.f32 %v2480, 1.0
    %2485 = vset.pattern.permute.xlu0 0
    %2486 = vperm.xlu0 %2485, %v2483
    %v2487 = vpop.permute.xlu0 %2486
    %v2489 = vrcp.pop %v2487
    %v2490 = vmul.f32 %v2410, %v2489
    %v2492 = vsel %vm120, %v2490, 0
    %2494 = vmatprep.subr.mxu0 0.0
    %2495 = vmatpush1.msra.mxu0 %v104
    %2496 = vmatprep.subr.mxu0 0.0
    %2497 = vmatpush1.msra.mxu0 %v105
    %2498 = vmatprep.subr.mxu0 0.0
    %2499 = vmatpush1.msra.mxu0 %v106
    %2500 = vmatprep.subr.mxu0 0.0
    %2501 = vmatpush1.msra.mxu0 %v107
    %2502 = vmatprep.subr.mxu0 0.0
    %2503 = vmatpush1.msra.mxu0 0.0
    %2504 = vmatprep.subr.mxu0 0.0
    %2505 = vmatpush1.msra.mxu0 0.0
    %2506 = vmatprep.subr.mxu0 0.0
    %2507 = vmatpush1.msra.mxu0 0.0
    %2508 = vmatprep.subr.mxu0 0.0
    %2509 = vmatpush1.msra.mxu0 0.0
    %2510 = vmatprep.subr.mxu0 0.0
    %2511 = vmatpush1.msra.mxu0 0.0
    %2512 = vmatprep.subr.mxu0 0.0
    %2513 = vmatpush1.msra.mxu0 0.0
    %2514 = vmatprep.subr.mxu0 0.0
    %2515 = vmatpush1.msra.mxu0 0.0
    %2516 = vmatprep.subr.mxu0 0.0
    %2517 = vmatpush1.msra.mxu0 0.0
    %2518 = vmatprep.subr.mxu0 0.0
    %2519 = vmatpush1.msra.mxu0 0.0
    %2520 = vmatprep.subr.mxu0 0.0
    %2521 = vmatpush1.msra.mxu0 0.0
    %2522 = vmatprep.subr.mxu0 0.0
    %2523 = vmatpush1.msra.mxu0 0.0
    %2524 = vmatprep.subr.mxu0 0.0
    %2525 = vmatpush1.msra.mxu0 0.0
    %2526 = vmatprep.subr.mxu0 0.0
    %2527 = vmatpush1.msra.mxu0 0.0
    %2528 = vmatprep.subr.mxu0 0.0
    %2529 = vmatpush1.msra.mxu0 0.0
    %2530 = vmatprep.subr.mxu0 0.0
    %2531 = vmatpush1.msra.mxu0 0.0
    %2532 = vmatprep.subr.mxu0 0.0
    %2533 = vmatpush1.msra.mxu0 0.0
    %2534 = vmatprep.subr.mxu0 0.0
    %2535 = vmatpush1.msra.mxu0 0.0
    %2536 = vmatprep.subr.mxu0 0.0
    %2537 = vmatpush1.msra.mxu0 0.0
    %2538 = vmatprep.subr.mxu0 0.0
    %2539 = vmatpush1.msra.mxu0 0.0
    %2540 = vmatprep.subr.mxu0 0.0
    %2541 = vmatpush1.msra.mxu0 0.0
    %2542 = vmatprep.subr.mxu0 0.0
    %2543 = vmatpush1.msra.mxu0 0.0
    %2544 = vmatprep.subr.mxu0 0.0
    %2545 = vmatpush1.msra.mxu0 0.0
    %2546 = vmatprep.subr.mxu0 0.0
    %2547 = vmatpush1.msra.mxu0 0.0
    %2548 = vmatprep.subr.mxu0 0.0
    %2549 = vmatpush1.msra.mxu0 0.0
    %2550 = vmatprep.subr.mxu0 0.0
    %2551 = vmatpush1.msra.mxu0 0.0
    %2552 = vmatprep.subr.mxu0 0.0
    %2553 = vmatpush1.msra.mxu0 0.0
    %2554 = vmatprep.subr.mxu0 0.0
    %2555 = vmatpush1.msra.mxu0 0.0
    %2556 = vmatprep.subr.mxu0 0.0
    %2557 = vmatpush1.msra.mxu0 0.0
    %2558 = vmatprep.mubr.f32.mxu0 0.0
    %2559 = vmatmul.mubr.f32.gmra.mrb[0].mxu0 %v2492
    %v2560 = vpop.f32.mrb[0].mxu0
    %v2561 = vadd.f32 0.0, %v2560
    %v2562 = vpop.f32.mrb[0].mxu0
    %2563 = vdwg.mxu0
    %v2565 = vsel %vm621, %v2561, 0
    %2567 = vmatprep.subr.mxu0 0.0
    %2568 = vmatpush1.msra.mxu0 %v2565
    %2569 = vmatprep.subr.mxu0 0.0
    %2570 = vmatpush1.msra.mxu0 0.0
    %2571 = vmatprep.subr.mxu0 0.0
    %2572 = vmatpush1.msra.mxu0 0.0
    %2573 = vmatprep.subr.mxu0 0.0
    %2574 = vmatpush1.msra.mxu0 0.0
    %2575 = vmatprep.subr.mxu0 0.0
    %2576 = vmatpush1.msra.mxu0 0.0
    %2577 = vmatprep.subr.mxu0 0.0
    %2578 = vmatpush1.msra.mxu0 0.0
    %2579 = vmatprep.subr.mxu0 0.0
    %2580 = vmatpush1.msra.mxu0 0.0
    %2581 = vmatprep.subr.mxu0 0.0
    %2582 = vmatpush1.msra.mxu0 0.0
    %2583 = vmatprep.subr.mxu0 0.0
    %2584 = vmatpush1.msra.mxu0 0.0
    %2585 = vmatprep.subr.mxu0 0.0
    %2586 = vmatpush1.msra.mxu0 0.0
    %2587 = vmatprep.subr.mxu0 0.0
    %2588 = vmatpush1.msra.mxu0 0.0
    %2589 = vmatprep.subr.mxu0 0.0
    %2590 = vmatpush1.msra.mxu0 0.0
    %2591 = vmatprep.subr.mxu0 0.0
    %2592 = vmatpush1.msra.mxu0 0.0
    %2593 = vmatprep.subr.mxu0 0.0
    %2594 = vmatpush1.msra.mxu0 0.0
    %2595 = vmatprep.subr.mxu0 0.0
    %2596 = vmatpush1.msra.mxu0 0.0
    %2597 = vmatprep.subr.mxu0 0.0
    %2598 = vmatpush1.msra.mxu0 0.0
    %2599 = vmatprep.subr.mxu0 0.0
    %2600 = vmatpush1.msra.mxu0 0.0
    %2601 = vmatprep.subr.mxu0 0.0
    %2602 = vmatpush1.msra.mxu0 0.0
    %2603 = vmatprep.subr.mxu0 0.0
    %2604 = vmatpush1.msra.mxu0 0.0
    %2605 = vmatprep.subr.mxu0 0.0
    %2606 = vmatpush1.msra.mxu0 0.0
    %2607 = vmatprep.subr.mxu0 0.0
    %2608 = vmatpush1.msra.mxu0 0.0
    %2609 = vmatprep.subr.mxu0 0.0
    %2610 = vmatpush1.msra.mxu0 0.0
    %2611 = vmatprep.subr.mxu0 0.0
    %2612 = vmatpush1.msra.mxu0 0.0
    %2613 = vmatprep.subr.mxu0 0.0
    %2614 = vmatpush1.msra.mxu0 0.0
    %2615 = vmatprep.subr.mxu0 0.0
    %2616 = vmatpush1.msra.mxu0 0.0
    %2617 = vmatprep.subr.mxu0 0.0
    %2618 = vmatpush1.msra.mxu0 0.0
    %2619 = vmatprep.subr.mxu0 0.0
    %2620 = vmatpush1.msra.mxu0 0.0
    %2621 = vmatprep.subr.mxu0 0.0
    %2622 = vmatpush1.msra.mxu0 0.0
    %2623 = vmatprep.subr.mxu0 0.0
    %2624 = vmatpush1.msra.mxu0 0.0
    %2625 = vmatprep.subr.mxu0 0.0
    %2626 = vmatpush1.msra.mxu0 0.0
    %2627 = vmatprep.subr.mxu0 0.0
    %2628 = vmatpush1.msra.mxu0 0.0
    %2629 = vmatprep.subr.mxu0 0.0
    %2630 = vmatpush1.msra.mxu0 0.0
    %2631 = vmatprep.mubr.f32.mxu0 0.0
    %2632 = vmatmul.mubr.f32.gmra.mrb[0].mxu0 %v619
    %v2633 = vpop.f32.mrb[0].mxu0
    %v2634 = vadd.f32 0.0, %v2633
    %v2635 = vpop.f32.mrb[0].mxu0
    %2636 = vdwg.mxu0
    %v2638 = vsel %vm120, %v2336, 0
    %2640 = vmatprep.subr.mxu0 0.0
    %2641 = vmatpush1.msra.mxu0 %v100
    %2642 = vmatprep.subr.mxu0 0.0
    %2643 = vmatpush1.msra.mxu0 %v101
    %2644 = vmatprep.subr.mxu0 0.0
    %2645 = vmatpush1.msra.mxu0 %v102
    %2646 = vmatprep.subr.mxu0 0.0
    %2647 = vmatpush1.msra.mxu0 %v103
    %2648 = vmatprep.subr.mxu0 0.0
    %2649 = vmatpush1.msra.mxu0 0.0
    %2650 = vmatprep.subr.mxu0 0.0
    %2651 = vmatpush1.msra.mxu0 0.0
    %2652 = vmatprep.subr.mxu0 0.0
    %2653 = vmatpush1.msra.mxu0 0.0
    %2654 = vmatprep.subr.mxu0 0.0
    %2655 = vmatpush1.msra.mxu0 0.0
    %2656 = vmatprep.subr.mxu0 0.0
    %2657 = vmatpush1.msra.mxu0 0.0
    %2658 = vmatprep.subr.mxu0 0.0
    %2659 = vmatpush1.msra.mxu0 0.0
    %2660 = vmatprep.subr.mxu0 0.0
    %2661 = vmatpush1.msra.mxu0 0.0
    %2662 = vmatprep.subr.mxu0 0.0
    %2663 = vmatpush1.msra.mxu0 0.0
    %2664 = vmatprep.subr.mxu0 0.0
    %2665 = vmatpush1.msra.mxu0 0.0
    %2666 = vmatprep.subr.mxu0 0.0
    %2667 = vmatpush1.msra.mxu0 0.0
    %2668 = vmatprep.subr.mxu0 0.0
    %2669 = vmatpush1.msra.mxu0 0.0
    %2670 = vmatprep.subr.mxu0 0.0
    %2671 = vmatpush1.msra.mxu0 0.0
    %2672 = vmatprep.subr.mxu0 0.0
    %2673 = vmatpush1.msra.mxu0 0.0
    %2674 = vmatprep.subr.mxu0 0.0
    %2675 = vmatpush1.msra.mxu0 0.0
    %2676 = vmatprep.subr.mxu0 0.0
    %2677 = vmatpush1.msra.mxu0 0.0
    %2678 = vmatprep.subr.mxu0 0.0
    %2679 = vmatpush1.msra.mxu0 0.0
    %2680 = vmatprep.subr.mxu0 0.0
    %2681 = vmatpush1.msra.mxu0 0.0
    %2682 = vmatprep.subr.mxu0 0.0
    %2683 = vmatpush1.msra.mxu0 0.0
    %2684 = vmatprep.subr.mxu0 0.0
    %2685 = vmatpush1.msra.mxu0 0.0
    %2686 = vmatprep.subr.mxu0 0.0
    %2687 = vmatpush1.msra.mxu0 0.0
    %2688 = vmatprep.subr.mxu0 0.0
    %2689 = vmatpush1.msra.mxu0 0.0
    %2690 = vmatprep.subr.mxu0 0.0
    %2691 = vmatpush1.msra.mxu0 0.0
    %2692 = vmatprep.subr.mxu0 0.0
    %2693 = vmatpush1.msra.mxu0 0.0
    %2694 = vmatprep.subr.mxu0 0.0
    %2695 = vmatpush1.msra.mxu0 0.0
    %2696 = vmatprep.subr.mxu0 0.0
    %2697 = vmatpush1.msra.mxu0 0.0
    %2698 = vmatprep.subr.mxu0 0.0
    %2699 = vmatpush1.msra.mxu0 0.0
    %2700 = vmatprep.subr.mxu0 0.0
    %2701 = vmatpush1.msra.mxu0 0.0
    %2702 = vmatprep.subr.mxu0 0.0
    %2703 = vmatpush1.msra.mxu0 0.0
    %2704 = vmatprep.mubr.f32.mxu0 0.0
    %2705 = vmatmul.mubr.f32.gmra.mrb[0].mxu0 %v2638
    %v2706 = vpop.f32.mrb[0].mxu0
    %v2707 = vadd.f32 %v2634, %v2706
    %v2708 = vpop.f32.mrb[0].mxu0
    %2709 = vdwg.mxu0
    %v2710 = vadd.f32 %v2707, %v772
    %v2711 = vmax.f32 %v2710, 0.0
    %v2712 = vmul.f32 %v2711, %v2340
    %v2713 = vmul.f32 %v2712, %v117
    %v2714 = vmul.f32 %v2712, %v198
    %v2716 = vsel %vm779, %v2714, 0
    %2718 = vmatprep.subr.mxu0 0.0
    %2719 = vmatpush1.msra.mxu0 %v81
    %2720 = vmatprep.subr.mxu0 0.0
    %2721 = vmatpush1.msra.mxu0 %v82
    %2722 = vmatprep.subr.mxu0 0.0
    %2723 = vmatpush1.msra.mxu0 0.0
    %2724 = vmatprep.subr.mxu0 0.0
    %2725 = vmatpush1.msra.mxu0 0.0
    %2726 = vmatprep.subr.mxu0 0.0
    %2727 = vmatpush1.msra.mxu0 0.0
    %2728 = vmatprep.subr.mxu0 0.0
    %2729 = vmatpush1.msra.mxu0 0.0
    %2730 = vmatprep.subr.mxu0 0.0
    %2731 = vmatpush1.msra.mxu0 0.0
    %2732 = vmatprep.subr.mxu0 0.0
    %2733 = vmatpush1.msra.mxu0 0.0
    %2734 = vmatprep.subr.mxu0 0.0
    %2735 = vmatpush1.msra.mxu0 0.0
    %2736 = vmatprep.subr.mxu0 0.0
    %2737 = vmatpush1.msra.mxu0 0.0
    %2738 = vmatprep.subr.mxu0 0.0
    %2739 = vmatpush1.msra.mxu0 0.0
    %2740 = vmatprep.subr.mxu0 0.0
    %2741 = vmatpush1.msra.mxu0 0.0
    %2742 = vmatprep.subr.mxu0 0.0
    %2743 = vmatpush1.msra.mxu0 0.0
    %2744 = vmatprep.subr.mxu0 0.0
    %2745 = vmatpush1.msra.mxu0 0.0
    %2746 = vmatprep.subr.mxu0 0.0
    %2747 = vmatpush1.msra.mxu0 0.0
    %2748 = vmatprep.subr.mxu0 0.0
    %2749 = vmatpush1.msra.mxu0 0.0
    %2750 = vmatprep.subr.mxu0 0.0
    %2751 = vmatpush1.msra.mxu0 0.0
    %2752 = vmatprep.subr.mxu0 0.0
    %2753 = vmatpush1.msra.mxu0 0.0
    %2754 = vmatprep.subr.mxu0 0.0
    %2755 = vmatpush1.msra.mxu0 0.0
    %2756 = vmatprep.subr.mxu0 0.0
    %2757 = vmatpush1.msra.mxu0 0.0
    %2758 = vmatprep.subr.mxu0 0.0
    %2759 = vmatpush1.msra.mxu0 0.0
    %2760 = vmatprep.subr.mxu0 0.0
    %2761 = vmatpush1.msra.mxu0 0.0
    %2762 = vmatprep.subr.mxu0 0.0
    %2763 = vmatpush1.msra.mxu0 0.0
    %2764 = vmatprep.subr.mxu0 0.0
    %2765 = vmatpush1.msra.mxu0 0.0
    %2766 = vmatprep.subr.mxu0 0.0
    %2767 = vmatpush1.msra.mxu0 0.0
    %2768 = vmatprep.subr.mxu0 0.0
    %2769 = vmatpush1.msra.mxu0 0.0
    %2770 = vmatprep.subr.mxu0 0.0
    %2771 = vmatpush1.msra.mxu0 0.0
    %2772 = vmatprep.subr.mxu0 0.0
    %2773 = vmatpush1.msra.mxu0 0.0
    %2774 = vmatprep.subr.mxu0 0.0
    %2775 = vmatpush1.msra.mxu0 0.0
    %2776 = vmatprep.subr.mxu0 0.0
    %2777 = vmatpush1.msra.mxu0 0.0
    %2778 = vmatprep.subr.mxu0 0.0
    %2779 = vmatpush1.msra.mxu0 0.0
    %2780 = vmatprep.subr.mxu0 0.0
    %2781 = vmatpush1.msra.mxu0 0.0
    %2782 = vmatprep.mubr.f32.mxu0 0.0
    %2783 = vmatmul.mubr.f32.gmra.mrb[0].mxu0 %v2716
    %v2784 = vpop.f32.mrb[0].mxu0
    %v2785 = vadd.f32 0.0, %v2784
    %v2786 = vpop.f32.mrb[0].mxu0
    %2787 = vdwg.mxu0
    %v2789 = vsel %vm779, %v2713, 0
    %2791 = vmatprep.subr.mxu0 0.0
    %2792 = vmatpush1.msra.mxu0 %v78
    %2793 = vmatprep.subr.mxu0 0.0
    %2794 = vmatpush1.msra.mxu0 %v79
    %2795 = vmatprep.subr.mxu0 0.0
    %2796 = vmatpush1.msra.mxu0 0.0
    %2797 = vmatprep.subr.mxu0 0.0
    %2798 = vmatpush1.msra.mxu0 0.0
    %2799 = vmatprep.subr.mxu0 0.0
    %2800 = vmatpush1.msra.mxu0 0.0
    %2801 = vmatprep.subr.mxu0 0.0
    %2802 = vmatpush1.msra.mxu0 0.0
    %2803 = vmatprep.subr.mxu0 0.0
    %2804 = vmatpush1.msra.mxu0 0.0
    %2805 = vmatprep.subr.mxu0 0.0
    %2806 = vmatpush1.msra.mxu0 0.0
    %2807 = vmatprep.subr.mxu0 0.0
    %2808 = vmatpush1.msra.mxu0 0.0
    %2809 = vmatprep.subr.mxu0 0.0
    %2810 = vmatpush1.msra.mxu0 0.0
    %2811 = vmatprep.subr.mxu0 0.0
    %2812 = vmatpush1.msra.mxu0 0.0
    %2813 = vmatprep.subr.mxu0 0.0
    %2814 = vmatpush1.msra.mxu0 0.0
    %2815 = vmatprep.subr.mxu0 0.0
    %2816 = vmatpush1.msra.mxu0 0.0
    %2817 = vmatprep.subr.mxu0 0.0
    %2818 = vmatpush1.msra.mxu0 0.0
    %2819 = vmatprep.subr.mxu0 0.0
    %2820 = vmatpush1.msra.mxu0 0.0
    %2821 = vmatprep.subr.mxu0 0.0
    %2822 = vmatpush1.msra.mxu0 0.0
    %2823 = vmatprep.subr.mxu0 0.0
    %2824 = vmatpush1.msra.mxu0 0.0
    %2825 = vmatprep.subr.mxu0 0.0
    %2826 = vmatpush1.msra.mxu0 0.0
    %2827 = vmatprep.subr.mxu0 0.0
    %2828 = vmatpush1.msra.mxu0 0.0
    %2829 = vmatprep.subr.mxu0 0.0
    %2830 = vmatpush1.msra.mxu0 0.0
    %2831 = vmatprep.subr.mxu0 0.0
    %2832 = vmatpush1.msra.mxu0 0.0
    %2833 = vmatprep.subr.mxu0 0.0
    %2834 = vmatpush1.msra.mxu0 0.0
    %2835 = vmatprep.subr.mxu0 0.0
    %2836 = vmatpush1.msra.mxu0 0.0
    %2837 = vmatprep.subr.mxu0 0.0
    %2838 = vmatpush1.msra.mxu0 0.0
    %2839 = vmatprep.subr.mxu0 0.0
    %2840 = vmatpush1.msra.mxu0 0.0
    %2841 = vmatprep.subr.mxu0 0.0
    %2842 = vmatpush1.msra.mxu0 0.0
    %2843 = vmatprep.subr.mxu0 0.0
    %2844 = vmatpush1.msra.mxu0 0.0
    %2845 = vmatprep.subr.mxu0 0.0
    %2846 = vmatpush1.msra.mxu0 0.0
    %2847 = vmatprep.subr.mxu0 0.0
    %2848 = vmatpush1.msra.mxu0 0.0
    %2849 = vmatprep.subr.mxu0 0.0
    %2850 = vmatpush1.msra.mxu0 0.0
    %2851 = vmatprep.subr.mxu0 0.0
    %2852 = vmatpush1.msra.mxu0 0.0
    %2853 = vmatprep.subr.mxu0 0.0
    %2854 = vmatpush1.msra.mxu0 0.0
    %2855 = vmatprep.mubr.f32.mxu0 0.0
    %2856 = vmatmul.mubr.f32.gmra.mrb[0].mxu0 %v2789
    %v2857 = vpop.f32.mrb[0].mxu0
    %v2858 = vadd.f32 %v2785, %v2857
    %v2859 = vpop.f32.mrb[0].mxu0
    %2860 = vdwg.mxu0
    %v2861 = vadd.f32 %v2858, %v92
    %v2862 = vmul.f32 %v2071, %v117
    %2864 = vrot.lane.b32.xlu0 %v2862, 64
    %v2865 = vpop.permute.xlu0 %2864
    %v2866 = vsel %vm120, %v2865, 0
    %2868 = vmatprep.subr.mxu0 0.0
    %2869 = vmatpush1.msra.mxu0 %v83
    %2870 = vmatprep.subr.mxu0 0.0
    %2871 = vmatpush1.msra.mxu0 %v84
    %2872 = vmatprep.subr.mxu0 0.0
    %2873 = vmatpush1.msra.mxu0 %v85
    %2874 = vmatprep.subr.mxu0 0.0
    %2875 = vmatpush1.msra.mxu0 %v86
    %2876 = vmatprep.subr.mxu0 0.0
    %2877 = vmatpush1.msra.mxu0 0.0
    %2878 = vmatprep.subr.mxu0 0.0
    %2879 = vmatpush1.msra.mxu0 0.0
    %2880 = vmatprep.subr.mxu0 0.0
    %2881 = vmatpush1.msra.mxu0 0.0
    %2882 = vmatprep.subr.mxu0 0.0
    %2883 = vmatpush1.msra.mxu0 0.0
    %2884 = vmatprep.subr.mxu0 0.0
    %2885 = vmatpush1.msra.mxu0 0.0
    %2886 = vmatprep.subr.mxu0 0.0
    %2887 = vmatpush1.msra.mxu0 0.0
    %2888 = vmatprep.subr.mxu0 0.0
    %2889 = vmatpush1.msra.mxu0 0.0
    %2890 = vmatprep.subr.mxu0 0.0
    %2891 = vmatpush1.msra.mxu0 0.0
    %2892 = vmatprep.subr.mxu0 0.0
    %2893 = vmatpush1.msra.mxu0 0.0
    %2894 = vmatprep.subr.mxu0 0.0
    %2895 = vmatpush1.msra.mxu0 0.0
    %2896 = vmatprep.subr.mxu0 0.0
    %2897 = vmatpush1.msra.mxu0 0.0
    %2898 = vmatprep.subr.mxu0 0.0
    %2899 = vmatpush1.msra.mxu0 0.0
    %2900 = vmatprep.subr.mxu0 0.0
    %2901 = vmatpush1.msra.mxu0 0.0
    %2902 = vmatprep.subr.mxu0 0.0
    %2903 = vmatpush1.msra.mxu0 0.0
    %2904 = vmatprep.subr.mxu0 0.0
    %2905 = vmatpush1.msra.mxu0 0.0
    %2906 = vmatprep.subr.mxu0 0.0
    %2907 = vmatpush1.msra.mxu0 0.0
    %2908 = vmatprep.subr.mxu0 0.0
    %2909 = vmatpush1.msra.mxu0 0.0
    %2910 = vmatprep.subr.mxu0 0.0
    %2911 = vmatpush1.msra.mxu0 0.0
    %2912 = vmatprep.subr.mxu0 0.0
    %2913 = vmatpush1.msra.mxu0 0.0
    %2914 = vmatprep.subr.mxu0 0.0
    %2915 = vmatpush1.msra.mxu0 0.0
    %2916 = vmatprep.subr.mxu0 0.0
    %2917 = vmatpush1.msra.mxu0 0.0
    %2918 = vmatprep.subr.mxu0 0.0
    %2919 = vmatpush1.msra.mxu0 0.0
    %2920 = vmatprep.subr.mxu0 0.0
    %2921 = vmatpush1.msra.mxu0 0.0
    %2922 = vmatprep.subr.mxu0 0.0
    %2923 = vmatpush1.msra.mxu0 0.0
    %2924 = vmatprep.subr.mxu0 0.0
    %2925 = vmatpush1.msra.mxu0 0.0
    %2926 = vmatprep.subr.mxu0 0.0
    %2927 = vmatpush1.msra.mxu0 0.0
    %2928 = vmatprep.subr.mxu0 0.0
    %2929 = vmatpush1.msra.mxu0 0.0
    %2930 = vmatprep.subr.mxu0 0.0
    %2931 = vmatpush1.msra.mxu0 0.0
    %2932 = vmatprep.mubr.f32.mxu0 0.0
    %2933 = vmatmul.mubr.f32.gmra.mrb[0].mxu0 %v2866
    %v2934 = vpop.f32.mrb[0].mxu0
    %v2935 = vadd.f32 0.0, %v2934
    %v2936 = vpop.f32.mrb[0].mxu0
    %2937 = vdwg.mxu0
    %v2938 = vadd.f32 %v2861, %v2935
    %v2939 = vmul.f32 %v2071, %v198
    %2941 = vrot.lane.b32.xlu0 %v2939, 64
    %v2942 = vpop.permute.xlu0 %2941
    %v2943 = vsel %vm120, %v2942, 0
    %2945 = vmatprep.subr.mxu0 0.0
    %2946 = vmatpush1.msra.mxu0 %v88
    %2947 = vmatprep.subr.mxu0 0.0
    %2948 = vmatpush1.msra.mxu0 %v89
    %2949 = vmatprep.subr.mxu0 0.0
    %2950 = vmatpush1.msra.mxu0 %v90
    %2951 = vmatprep.subr.mxu0 0.0
    %2952 = vmatpush1.msra.mxu0 %v91
    %2953 = vmatprep.subr.mxu0 0.0
    %2954 = vmatpush1.msra.mxu0 0.0
    %2955 = vmatprep.subr.mxu0 0.0
    %2956 = vmatpush1.msra.mxu0 0.0
    %2957 = vmatprep.subr.mxu0 0.0
    %2958 = vmatpush1.msra.mxu0 0.0
    %2959 = vmatprep.subr.mxu0 0.0
    %2960 = vmatpush1.msra.mxu0 0.0
    %2961 = vmatprep.subr.mxu0 0.0
    %2962 = vmatpush1.msra.mxu0 0.0
    %2963 = vmatprep.subr.mxu0 0.0
    %2964 = vmatpush1.msra.mxu0 0.0
    %2965 = vmatprep.subr.mxu0 0.0
    %2966 = vmatpush1.msra.mxu0 0.0
    %2967 = vmatprep.subr.mxu0 0.0
    %2968 = vmatpush1.msra.mxu0 0.0
    %2969 = vmatprep.subr.mxu0 0.0
    %2970 = vmatpush1.msra.mxu0 0.0
    %2971 = vmatprep.subr.mxu0 0.0
    %2972 = vmatpush1.msra.mxu0 0.0
    %2973 = vmatprep.subr.mxu0 0.0
    %2974 = vmatpush1.msra.mxu0 0.0
    %2975 = vmatprep.subr.mxu0 0.0
    %2976 = vmatpush1.msra.mxu0 0.0
    %2977 = vmatprep.subr.mxu0 0.0
    %2978 = vmatpush1.msra.mxu0 0.0
    %2979 = vmatprep.subr.mxu0 0.0
    %2980 = vmatpush1.msra.mxu0 0.0
    %2981 = vmatprep.subr.mxu0 0.0
    %2982 = vmatpush1.msra.mxu0 0.0
    %2983 = vmatprep.subr.mxu0 0.0
    %2984 = vmatpush1.msra.mxu0 0.0
    %2985 = vmatprep.subr.mxu0 0.0
    %2986 = vmatpush1.msra.mxu0 0.0
    %2987 = vmatprep.subr.mxu0 0.0
    %2988 = vmatpush1.msra.mxu0 0.0
    %2989 = vmatprep.subr.mxu0 0.0
    %2990 = vmatpush1.msra.mxu0 0.0
    %2991 = vmatprep.subr.mxu0 0.0
    %2992 = vmatpush1.msra.mxu0 0.0
    %2993 = vmatprep.subr.mxu0 0.0
    %2994 = vmatpush1.msra.mxu0 0.0
    %2995 = vmatprep.subr.mxu0 0.0
    %2996 = vmatpush1.msra.mxu0 0.0
    %2997 = vmatprep.subr.mxu0 0.0
    %2998 = vmatpush1.msra.mxu0 0.0
    %2999 = vmatprep.subr.mxu0 0.0
    %3000 = vmatpush1.msra.mxu0 0.0
    %3001 = vmatprep.subr.mxu0 0.0
    %3002 = vmatpush1.msra.mxu0 0.0
    %3003 = vmatprep.subr.mxu0 0.0
    %3004 = vmatpush1.msra.mxu0 0.0
    %3005 = vmatprep.subr.mxu0 0.0
    %3006 = vmatpush1.msra.mxu0 0.0
    %3007 = vmatprep.subr.mxu0 0.0
    %3008 = vmatpush1.msra.mxu0 0.0
    %3009 = vmatprep.mubr.f32.mxu0 0.0
    %3010 = vmatmul.mubr.f32.gmra.mrb[0].mxu0 %v2943
    %v3011 = vpop.f32.mrb[0].mxu0
    %v3012 = vadd.f32 0.0, %v3011
    %v3013 = vpop.f32.mrb[0].mxu0
    %3014 = vdwg.mxu0
    %v3015 = vadd.f32 %v2938, %v3012
    %v3016 = vxor.u32 %v3015, 2147483648
    %v3017 = vmul.f32 %v3016, 1.442695
    %v3018 = vpow.pop %v3017
    %v3019 = vadd.f32 %v3018, 1.0
    %v3020 = vrcp.pop %v3019
    %v3021 = vmul.f32 1.0, %v3020
    %v3022 = vtanh.pop %v3015
    %v3023 = vmul.f32 %v3021, %v2065
    %3025 = vrot.lane.b32.xlu0 %v3022, 32
    %v3026 = vpop.permute.xlu0 %3025
    %v3028 = vmul.f32 %v3021, %v3026
    %3030 = vrot.lane.b32.xlu0 %v3028, 32
    %v3031 = vpop.permute.xlu0 %3030
    %v3033 = vadd.f32 %v3023, %v3031
    %v3034 = vtanh.pop %v3033
    %3036 = vrot.lane.b32.xlu0 %v3034, 32
    %v3037 = vpop.permute.xlu0 %3036
    %v3039 = vmul.f32 %v3021, %v3037
    %v3040 = vmul.f32 %v3039, %v2340
    %3042 = vrot.lane.b32.xlu0 %v3040, 64
    %v3043 = vpop.permute.xlu0 %3042
    %s3045 = scalar_lea.vmem %s18, 16
    %3046 = vst.msk [vmem:[%s3045] sm:$0xff] %vm120, %v3043
    %s3047 = scalar_lea.vmem %s0, 24
    %v3048 = vld [vmem:[%s3047] sm:$0xff]
    %v3049 = vmul.f32 %v2258, %v117
    %3051 = vrot.lane.b32.xlu0 %v3049, 64
    %v3052 = vpop.permute.xlu0 %3051
    %v3053 = vsel %vm120, %v3052, 0
    %3055 = vmatprep.subr.mxu0 0.0
    %3056 = vmatpush1.msra.mxu0 %v69
    %3057 = vmatprep.subr.mxu0 0.0
    %3058 = vmatpush1.msra.mxu0 %v70
    %3059 = vmatprep.subr.mxu0 0.0
    %3060 = vmatpush1.msra.mxu0 %v71
    %3061 = vmatprep.subr.mxu0 0.0
    %3062 = vmatpush1.msra.mxu0 %v72
    %3063 = vmatprep.subr.mxu0 0.0
    %3064 = vmatpush1.msra.mxu0 0.0
    %3065 = vmatprep.subr.mxu0 0.0
    %3066 = vmatpush1.msra.mxu0 0.0
    %3067 = vmatprep.subr.mxu0 0.0
    %3068 = vmatpush1.msra.mxu0 0.0
    %3069 = vmatprep.subr.mxu0 0.0
    %3070 = vmatpush1.msra.mxu0 0.0
    %3071 = vmatprep.subr.mxu0 0.0
    %3072 = vmatpush1.msra.mxu0 0.0
    %3073 = vmatprep.subr.mxu0 0.0
    %3074 = vmatpush1.msra.mxu0 0.0
    %3075 = vmatprep.subr.mxu0 0.0
    %3076 = vmatpush1.msra.mxu0 0.0
    %3077 = vmatprep.subr.mxu0 0.0
    %3078 = vmatpush1.msra.mxu0 0.0
    %3079 = vmatprep.subr.mxu0 0.0
    %3080 = vmatpush1.msra.mxu0 0.0
    %3081 = vmatprep.subr.mxu0 0.0
    %3082 = vmatpush1.msra.mxu0 0.0
    %3083 = vmatprep.subr.mxu0 0.0
    %3084 = vmatpush1.msra.mxu0 0.0
    %3085 = vmatprep.subr.mxu0 0.0
    %3086 = vmatpush1.msra.mxu0 0.0
    %3087 = vmatprep.subr.mxu0 0.0
    %3088 = vmatpush1.msra.mxu0 0.0
    %3089 = vmatprep.subr.mxu0 0.0
    %3090 = vmatpush1.msra.mxu0 0.0
    %3091 = vmatprep.subr.mxu0 0.0
    %3092 = vmatpush1.msra.mxu0 0.0
    %3093 = vmatprep.subr.mxu0 0.0
    %3094 = vmatpush1.msra.mxu0 0.0
    %3095 = vmatprep.subr.mxu0 0.0
    %3096 = vmatpush1.msra.mxu0 0.0
    %3097 = vmatprep.subr.mxu0 0.0
    %3098 = vmatpush1.msra.mxu0 0.0
    %3099 = vmatprep.subr.mxu0 0.0
    %3100 = vmatpush1.msra.mxu0 0.0
    %3101 = vmatprep.subr.mxu0 0.0
    %3102 = vmatpush1.msra.mxu0 0.0
    %3103 = vmatprep.subr.mxu0 0.0
    %3104 = vmatpush1.msra.mxu0 0.0
    %3105 = vmatprep.subr.mxu0 0.0
    %3106 = vmatpush1.msra.mxu0 0.0
    %3107 = vmatprep.subr.mxu0 0.0
    %3108 = vmatpush1.msra.mxu0 0.0
    %3109 = vmatprep.subr.mxu0 0.0
    %3110 = vmatpush1.msra.mxu0 0.0
    %3111 = vmatprep.subr.mxu0 0.0
    %3112 = vmatpush1.msra.mxu0 0.0
    %3113 = vmatprep.subr.mxu0 0.0
    %3114 = vmatpush1.msra.mxu0 0.0
    %3115 = vmatprep.subr.mxu0 0.0
    %3116 = vmatpush1.msra.mxu0 0.0
    %3117 = vmatprep.subr.mxu0 0.0
    %3118 = vmatpush1.msra.mxu0 0.0
    %3119 = vmatprep.mubr.f32.mxu0 0.0
    %3120 = vmatmul.mubr.f32.gmra.mrb[0].mxu0 %v3053
    %v3121 = vpop.f32.mrb[0].mxu0
    %v3122 = vadd.f32 0.0, %v3121
    %v3123 = vpop.f32.mrb[0].mxu0
    %3124 = vdwg.mxu0
    %v3125 = vadd.f32 %v3048, %v3122
    %v3126 = vmul.f32 %v2258, %v198
    %3128 = vrot.lane.b32.xlu0 %v3126, 64
    %v3129 = vpop.permute.xlu0 %3128
    %v3130 = vsel %vm120, %v3129, 0
    %3132 = vmatprep.subr.mxu0 0.0
    %3133 = vmatpush1.msra.mxu0 %v74
    %3134 = vmatprep.subr.mxu0 0.0
    %3135 = vmatpush1.msra.mxu0 %v75
    %3136 = vmatprep.subr.mxu0 0.0
    %3137 = vmatpush1.msra.mxu0 %v76
    %3138 = vmatprep.subr.mxu0 0.0
    %3139 = vmatpush1.msra.mxu0 %v77
    %3140 = vmatprep.subr.mxu0 0.0
    %3141 = vmatpush1.msra.mxu0 0.0
    %3142 = vmatprep.subr.mxu0 0.0
    %3143 = vmatpush1.msra.mxu0 0.0
    %3144 = vmatprep.subr.mxu0 0.0
    %3145 = vmatpush1.msra.mxu0 0.0
    %3146 = vmatprep.subr.mxu0 0.0
    %3147 = vmatpush1.msra.mxu0 0.0
    %3148 = vmatprep.subr.mxu0 0.0
    %3149 = vmatpush1.msra.mxu0 0.0
    %3150 = vmatprep.subr.mxu0 0.0
    %3151 = vmatpush1.msra.mxu0 0.0
    %3152 = vmatprep.subr.mxu0 0.0
    %3153 = vmatpush1.msra.mxu0 0.0
    %3154 = vmatprep.subr.mxu0 0.0
    %3155 = vmatpush1.msra.mxu0 0.0
    %3156 = vmatprep.subr.mxu0 0.0
    %3157 = vmatpush1.msra.mxu0 0.0
    %3158 = vmatprep.subr.mxu0 0.0
    %3159 = vmatpush1.msra.mxu0 0.0
    %3160 = vmatprep.subr.mxu0 0.0
    %3161 = vmatpush1.msra.mxu0 0.0
    %3162 = vmatprep.subr.mxu0 0.0
    %3163 = vmatpush1.msra.mxu0 0.0
    %3164 = vmatprep.subr.mxu0 0.0
    %3165 = vmatpush1.msra.mxu0 0.0
    %3166 = vmatprep.subr.mxu0 0.0
    %3167 = vmatpush1.msra.mxu0 0.0
    %3168 = vmatprep.subr.mxu0 0.0
    %3169 = vmatpush1.msra.mxu0 0.0
    %3170 = vmatprep.subr.mxu0 0.0
    %3171 = vmatpush1.msra.mxu0 0.0
    %3172 = vmatprep.subr.mxu0 0.0
    %3173 = vmatpush1.msra.mxu0 0.0
    %3174 = vmatprep.subr.mxu0 0.0
    %3175 = vmatpush1.msra.mxu0 0.0
    %3176 = vmatprep.subr.mxu0 0.0
    %3177 = vmatpush1.msra.mxu0 0.0
    %3178 = vmatprep.subr.mxu0 0.0
    %3179 = vmatpush1.msra.mxu0 0.0
    %3180 = vmatprep.subr.mxu0 0.0
    %3181 = vmatpush1.msra.mxu0 0.0
    %3182 = vmatprep.subr.mxu0 0.0
    %3183 = vmatpush1.msra.mxu0 0.0
    %3184 = vmatprep.subr.mxu0 0.0
    %3185 = vmatpush1.msra.mxu0 0.0
    %3186 = vmatprep.subr.mxu0 0.0
    %3187 = vmatpush1.msra.mxu0 0.0
    %3188 = vmatprep.subr.mxu0 0.0
    %3189 = vmatpush1.msra.mxu0 0.0
    %3190 = vmatprep.subr.mxu0 0.0
    %3191 = vmatpush1.msra.mxu0 0.0
    %3192 = vmatprep.subr.mxu0 0.0
    %3193 = vmatpush1.msra.mxu0 0.0
    %3194 = vmatprep.subr.mxu0 0.0
    %3195 = vmatpush1.msra.mxu0 0.0
    %3196 = vmatprep.mubr.f32.mxu0 0.0
    %3197 = vmatmul.mubr.f32.gmra.mrb[0].mxu0 %v3130
    %v3198 = vpop.f32.mrb[0].mxu0
    %v3199 = vadd.f32 0.0, %v3198
    %v3200 = vpop.f32.mrb[0].mxu0
    %3201 = vdwg.mxu0
    %v3202 = vadd.f32 %v3125, %v3199
    %v3203 = vxor.u32 %v3202, 2147483648
    %v3204 = vmul.f32 %v3203, 1.442695
    %v3205 = vpow.pop %v3204
    %v3206 = vadd.f32 %v3205, 1.0
    %v3207 = vrcp.pop %v3206
    %v3208 = vmul.f32 1.0, %v3207
    %v3209 = vtanh.pop %v3202
    %v3210 = vmul.f32 %v3208, %v2252
    %3212 = vrot.lane.b32.xlu0 %v3209, 32
    %v3213 = vpop.permute.xlu0 %3212
    %v3215 = vmul.f32 %v3208, %v3213
    %3217 = vrot.lane.b32.xlu0 %v3215, 32
    %v3218 = vpop.permute.xlu0 %3217
    %v3220 = vadd.f32 %v3210, %v3218
    %v3221 = vtanh.pop %v3220
    %3223 = vrot.lane.b32.xlu0 %v3221, 32
    %v3224 = vpop.permute.xlu0 %3223
    %v3226 = vmul.f32 %v3208, %v3224
    %s3227 = scalar_lea.vmem %s1, 24
    %v3228 = vld [vmem:[%s3227] sm:$0xff]
    %3230 = vrot.lane.b32.xlu0 %v3226, 64
    %v3231 = vpop.permute.xlu0 %3230
    %v3232 = vsel %vm120, %v3231, 0
    %3234 = vmatprep.subr.mxu0 0.0
    %3235 = vmatpush1.msra.mxu0 %v95
    %3236 = vmatprep.subr.mxu0 0.0
    %3237 = vmatpush1.msra.mxu0 %v96
    %3238 = vmatprep.subr.mxu0 0.0
    %3239 = vmatpush1.msra.mxu0 %v97
    %3240 = vmatprep.subr.mxu0 0.0
    %3241 = vmatpush1.msra.mxu0 %v98
    %3242 = vmatprep.subr.mxu0 0.0
    %3243 = vmatpush1.msra.mxu0 0.0
    %3244 = vmatprep.subr.mxu0 0.0
    %3245 = vmatpush1.msra.mxu0 0.0
    %3246 = vmatprep.subr.mxu0 0.0
    %3247 = vmatpush1.msra.mxu0 0.0
    %3248 = vmatprep.subr.mxu0 0.0
    %3249 = vmatpush1.msra.mxu0 0.0
    %3250 = vmatprep.subr.mxu0 0.0
    %3251 = vmatpush1.msra.mxu0 0.0
    %3252 = vmatprep.subr.mxu0 0.0
    %3253 = vmatpush1.msra.mxu0 0.0
    %3254 = vmatprep.subr.mxu0 0.0
    %3255 = vmatpush1.msra.mxu0 0.0
    %3256 = vmatprep.subr.mxu0 0.0
    %3257 = vmatpush1.msra.mxu0 0.0
    %3258 = vmatprep.subr.mxu0 0.0
    %3259 = vmatpush1.msra.mxu0 0.0
    %3260 = vmatprep.subr.mxu0 0.0
    %3261 = vmatpush1.msra.mxu0 0.0
    %3262 = vmatprep.subr.mxu0 0.0
    %3263 = vmatpush1.msra.mxu0 0.0
    %3264 = vmatprep.subr.mxu0 0.0
    %3265 = vmatpush1.msra.mxu0 0.0
    %3266 = vmatprep.subr.mxu0 0.0
    %3267 = vmatpush1.msra.mxu0 0.0
    %3268 = vmatprep.subr.mxu0 0.0
    %3269 = vmatpush1.msra.mxu0 0.0
    %3270 = vmatprep.subr.mxu0 0.0
    %3271 = vmatpush1.msra.mxu0 0.0
    %3272 = vmatprep.subr.mxu0 0.0
    %3273 = vmatpush1.msra.mxu0 0.0
    %3274 = vmatprep.subr.mxu0 0.0
    %3275 = vmatpush1.msra.mxu0 0.0
    %3276 = vmatprep.subr.mxu0 0.0
    %3277 = vmatpush1.msra.mxu0 0.0
    %3278 = vmatprep.subr.mxu0 0.0
    %3279 = vmatpush1.msra.mxu0 0.0
    %3280 = vmatprep.subr.mxu0 0.0
    %3281 = vmatpush1.msra.mxu0 0.0
    %3282 = vmatprep.subr.mxu0 0.0
    %3283 = vmatpush1.msra.mxu0 0.0
    %3284 = vmatprep.subr.mxu0 0.0
    %3285 = vmatpush1.msra.mxu0 0.0
    %3286 = vmatprep.subr.mxu0 0.0
    %3287 = vmatpush1.msra.mxu0 0.0
    %3288 = vmatprep.subr.mxu0 0.0
    %3289 = vmatpush1.msra.mxu0 0.0
    %3290 = vmatprep.subr.mxu0 0.0
    %3291 = vmatpush1.msra.mxu0 0.0
    %3292 = vmatprep.subr.mxu0 0.0
    %3293 = vmatpush1.msra.mxu0 0.0
    %3294 = vmatprep.subr.mxu0 0.0
    %3295 = vmatpush1.msra.mxu0 0.0
    %3296 = vmatprep.subr.mxu0 0.0
    %3297 = vmatpush1.msra.mxu0 0.0
    %3298 = vmatprep.mubr.f32.mxu0 0.0
    %3299 = vmatmul.mubr.f32.gmra.mrb[0].mxu0 %v3232
    %v3300 = vpop.f32.mrb[0].mxu0
    %v3301 = vadd.f32 %v308, %v3300
    %v3302 = vpop.f32.mrb[0].mxu0
    %3303 = vdwg.mxu0
    %v3304 = vmax.f32 %v3301, 0.0
    %3306 = vset.pattern.permute.xlu0 0
    %3307 = vperm.xlu0 %3306, %v3228
    %v3308 = vpop.permute.xlu0 %3307
    %v3310 = vmul.f32 %v3304, %v3308
    %3311 = vmatprep.subr.mxu0 0.0
    %3312 = vmatpush1.msra.mxu0 %v3310
    %3313 = vmatprep.subr.mxu0 0.0
    %3314 = vmatpush1.msra.mxu0 0.0
    %3315 = vmatprep.subr.mxu0 0.0
    %3316 = vmatpush1.msra.mxu0 0.0
    %3317 = vmatprep.subr.mxu0 0.0
    %3318 = vmatpush1.msra.mxu0 0.0
    %3319 = vmatprep.subr.mxu0 0.0
    %3320 = vmatpush1.msra.mxu0 0.0
    %3321 = vmatprep.subr.mxu0 0.0
    %3322 = vmatpush1.msra.mxu0 0.0
    %3323 = vmatprep.subr.mxu0 0.0
    %3324 = vmatpush1.msra.mxu0 0.0
    %3325 = vmatprep.subr.mxu0 0.0
    %3326 = vmatpush1.msra.mxu0 0.0
    %3327 = vmatprep.subr.mxu0 0.0
    %3328 = vmatpush1.msra.mxu0 0.0
    %3329 = vmatprep.subr.mxu0 0.0
    %3330 = vmatpush1.msra.mxu0 0.0
    %3331 = vmatprep.subr.mxu0 0.0
    %3332 = vmatpush1.msra.mxu0 0.0
    %3333 = vmatprep.subr.mxu0 0.0
    %3334 = vmatpush1.msra.mxu0 0.0
    %3335 = vmatprep.subr.mxu0 0.0
    %3336 = vmatpush1.msra.mxu0 0.0
    %3337 = vmatprep.subr.mxu0 0.0
    %3338 = vmatpush1.msra.mxu0 0.0
    %3339 = vmatprep.subr.mxu0 0.0
    %3340 = vmatpush1.msra.mxu0 0.0
    %3341 = vmatprep.subr.mxu0 0.0
    %3342 = vmatpush1.msra.mxu0 0.0
    %3343 = vmatprep.subr.mxu0 0.0
    %3344 = vmatpush1.msra.mxu0 0.0
    %3345 = vmatprep.subr.mxu0 0.0
    %3346 = vmatpush1.msra.mxu0 0.0
    %3347 = vmatprep.subr.mxu0 0.0
    %3348 = vmatpush1.msra.mxu0 0.0
    %3349 = vmatprep.subr.mxu0 0.0
    %3350 = vmatpush1.msra.mxu0 0.0
    %3351 = vmatprep.subr.mxu0 0.0
    %3352 = vmatpush1.msra.mxu0 0.0
    %3353 = vmatprep.subr.mxu0 0.0
    %3354 = vmatpush1.msra.mxu0 0.0
    %3355 = vmatprep.subr.mxu0 0.0
    %3356 = vmatpush1.msra.mxu0 0.0
    %3357 = vmatprep.subr.mxu0 0.0
    %3358 = vmatpush1.msra.mxu0 0.0
    %3359 = vmatprep.subr.mxu0 0.0
    %3360 = vmatpush1.msra.mxu0 0.0
    %3361 = vmatprep.subr.mxu0 0.0
    %3362 = vmatpush1.msra.mxu0 0.0
    %3363 = vmatprep.subr.mxu0 0.0
    %3364 = vmatpush1.msra.mxu0 0.0
    %3365 = vmatprep.subr.mxu0 0.0
    %3366 = vmatpush1.msra.mxu0 0.0
    %3367 = vmatprep.subr.mxu0 0.0
    %3368 = vmatpush1.msra.mxu0 0.0
    %3369 = vmatprep.subr.mxu0 0.0
    %3370 = vmatpush1.msra.mxu0 0.0
    %3371 = vmatprep.subr.mxu0 0.0
    %3372 = vmatpush1.msra.mxu0 0.0
    %3373 = vmatprep.subr.mxu0 0.0
    %3374 = vmatpush1.msra.mxu0 0.0
    %3375 = vmatprep.mubr.f32.mxu0 0.0
    %3376 = vmatmul.mubr.f32.gmra.mrb[0].mxu0 %v394
    %v3377 = vpop.f32.mrb[0].mxu0
    %v3378 = vadd.f32 0.0, %v3377
    %v3379 = vpop.f32.mrb[0].mxu0
    %3380 = vdwg.mxu0
    %3381 = vmatprep.subr.mxu0 0.0
    %3382 = vmatpush1.msra.mxu0 %v3228
    %3383 = vmatprep.subr.mxu0 0.0
    %3384 = vmatpush1.msra.mxu0 0.0
    %3385 = vmatprep.subr.mxu0 0.0
    %3386 = vmatpush1.msra.mxu0 0.0
    %3387 = vmatprep.subr.mxu0 0.0
    %3388 = vmatpush1.msra.mxu0 0.0
    %3389 = vmatprep.subr.mxu0 0.0
    %3390 = vmatpush1.msra.mxu0 0.0
    %3391 = vmatprep.subr.mxu0 0.0
    %3392 = vmatpush1.msra.mxu0 0.0
    %3393 = vmatprep.subr.mxu0 0.0
    %3394 = vmatpush1.msra.mxu0 0.0
    %3395 = vmatprep.subr.mxu0 0.0
    %3396 = vmatpush1.msra.mxu0 0.0
    %3397 = vmatprep.subr.mxu0 0.0
    %3398 = vmatpush1.msra.mxu0 0.0
    %3399 = vmatprep.subr.mxu0 0.0
    %3400 = vmatpush1.msra.mxu0 0.0
    %3401 = vmatprep.subr.mxu0 0.0
    %3402 = vmatpush1.msra.mxu0 0.0
    %3403 = vmatprep.subr.mxu0 0.0
    %3404 = vmatpush1.msra.mxu0 0.0
    %3405 = vmatprep.subr.mxu0 0.0
    %3406 = vmatpush1.msra.mxu0 0.0
    %3407 = vmatprep.subr.mxu0 0.0
    %3408 = vmatpush1.msra.mxu0 0.0
    %3409 = vmatprep.subr.mxu0 0.0
    %3410 = vmatpush1.msra.mxu0 0.0
    %3411 = vmatprep.subr.mxu0 0.0
    %3412 = vmatpush1.msra.mxu0 0.0
    %3413 = vmatprep.subr.mxu0 0.0
    %3414 = vmatpush1.msra.mxu0 0.0
    %3415 = vmatprep.subr.mxu0 0.0
    %3416 = vmatpush1.msra.mxu0 0.0
    %3417 = vmatprep.subr.mxu0 0.0
    %3418 = vmatpush1.msra.mxu0 0.0
    %3419 = vmatprep.subr.mxu0 0.0
    %3420 = vmatpush1.msra.mxu0 0.0
    %3421 = vmatprep.subr.mxu0 0.0
    %3422 = vmatpush1.msra.mxu0 0.0
    %3423 = vmatprep.subr.mxu0 0.0
    %3424 = vmatpush1.msra.mxu0 0.0
    %3425 = vmatprep.subr.mxu0 0.0
    %3426 = vmatpush1.msra.mxu0 0.0
    %3427 = vmatprep.subr.mxu0 0.0
    %3428 = vmatpush1.msra.mxu0 0.0
    %3429 = vmatprep.subr.mxu0 0.0
    %3430 = vmatpush1.msra.mxu0 0.0
    %3431 = vmatprep.subr.mxu0 0.0
    %3432 = vmatpush1.msra.mxu0 0.0
    %3433 = vmatprep.subr.mxu0 0.0
    %3434 = vmatpush1.msra.mxu0 0.0
    %3435 = vmatprep.subr.mxu0 0.0
    %3436 = vmatpush1.msra.mxu0 0.0
    %3437 = vmatprep.subr.mxu0 0.0
    %3438 = vmatpush1.msra.mxu0 0.0
    %3439 = vmatprep.subr.mxu0 0.0
    %3440 = vmatpush1.msra.mxu0 0.0
    %3441 = vmatprep.subr.mxu0 0.0
    %3442 = vmatpush1.msra.mxu0 0.0
    %3443 = vmatprep.subr.mxu0 0.0
    %3444 = vmatpush1.msra.mxu0 0.0
    %3445 = vmatprep.mubr.f32.mxu0 0.0
    %3446 = vmatmul.mubr.f32.gmra.mrb[0].mxu0 %v394
    %v3447 = vpop.f32.mrb[0].mxu0
    %v3448 = vadd.f32 0.0, %v3447
    %v3449 = vpop.f32.mrb[0].mxu0
    %3450 = vdwg.mxu0
    %v3451 = vmax.f32 %v3448, 1.0
    %3453 = vset.pattern.permute.xlu0 0
    %3454 = vperm.xlu0 %3453, %v3451
    %v3455 = vpop.permute.xlu0 %3454
    %v3457 = vrcp.pop %v3455
    %v3458 = vmul.f32 %v3378, %v3457
    %v3460 = vsel %vm120, %v3458, 0
    %3462 = vmatprep.subr.mxu0 0.0
    %3463 = vmatpush1.msra.mxu0 %v104
    %3464 = vmatprep.subr.mxu0 0.0
    %3465 = vmatpush1.msra.mxu0 %v105
    %3466 = vmatprep.subr.mxu0 0.0
    %3467 = vmatpush1.msra.mxu0 %v106
    %3468 = vmatprep.subr.mxu0 0.0
    %3469 = vmatpush1.msra.mxu0 %v107
    %3470 = vmatprep.subr.mxu0 0.0
    %3471 = vmatpush1.msra.mxu0 0.0
    %3472 = vmatprep.subr.mxu0 0.0
    %3473 = vmatpush1.msra.mxu0 0.0
    %3474 = vmatprep.subr.mxu0 0.0
    %3475 = vmatpush1.msra.mxu0 0.0
    %3476 = vmatprep.subr.mxu0 0.0
    %3477 = vmatpush1.msra.mxu0 0.0
    %3478 = vmatprep.subr.mxu0 0.0
    %3479 = vmatpush1.msra.mxu0 0.0
    %3480 = vmatprep.subr.mxu0 0.0
    %3481 = vmatpush1.msra.mxu0 0.0
    %3482 = vmatprep.subr.mxu0 0.0
    %3483 = vmatpush1.msra.mxu0 0.0
    %3484 = vmatprep.subr.mxu0 0.0
    %3485 = vmatpush1.msra.mxu0 0.0
    %3486 = vmatprep.subr.mxu0 0.0
    %3487 = vmatpush1.msra.mxu0 0.0
    %3488 = vmatprep.subr.mxu0 0.0
    %3489 = vmatpush1.msra.mxu0 0.0
    %3490 = vmatprep.subr.mxu0 0.0
    %3491 = vmatpush1.msra.mxu0 0.0
    %3492 = vmatprep.subr.mxu0 0.0
    %3493 = vmatpush1.msra.mxu0 0.0
    %3494 = vmatprep.subr.mxu0 0.0
    %3495 = vmatpush1.msra.mxu0 0.0
    %3496 = vmatprep.subr.mxu0 0.0
    %3497 = vmatpush1.msra.mxu0 0.0
    %3498 = vmatprep.subr.mxu0 0.0
    %3499 = vmatpush1.msra.mxu0 0.0
    %3500 = vmatprep.subr.mxu0 0.0
    %3501 = vmatpush1.msra.mxu0 0.0
    %3502 = vmatprep.subr.mxu0 0.0
    %3503 = vmatpush1.msra.mxu0 0.0
    %3504 = vmatprep.subr.mxu0 0.0
    %3505 = vmatpush1.msra.mxu0 0.0
    %3506 = vmatprep.subr.mxu0 0.0
    %3507 = vmatpush1.msra.mxu0 0.0
    %3508 = vmatprep.subr.mxu0 0.0
    %3509 = vmatpush1.msra.mxu0 0.0
    %3510 = vmatprep.subr.mxu0 0.0
    %3511 = vmatpush1.msra.mxu0 0.0
    %3512 = vmatprep.subr.mxu0 0.0
    %3513 = vmatpush1.msra.mxu0 0.0
    %3514 = vmatprep.subr.mxu0 0.0
    %3515 = vmatpush1.msra.mxu0 0.0
    %3516 = vmatprep.subr.mxu0 0.0
    %3517 = vmatpush1.msra.mxu0 0.0
    %3518 = vmatprep.subr.mxu0 0.0
    %3519 = vmatpush1.msra.mxu0 0.0
    %3520 = vmatprep.subr.mxu0 0.0
    %3521 = vmatpush1.msra.mxu0 0.0
    %3522 = vmatprep.subr.mxu0 0.0
    %3523 = vmatpush1.msra.mxu0 0.0
    %3524 = vmatprep.subr.mxu0 0.0
    %3525 = vmatpush1.msra.mxu0 0.0
    %3526 = vmatprep.mubr.f32.mxu0 0.0
    %3527 = vmatmul.mubr.f32.gmra.mrb[0].mxu0 %v3460
    %v3528 = vpop.f32.mrb[0].mxu0
    %v3529 = vadd.f32 0.0, %v3528
    %v3530 = vpop.f32.mrb[0].mxu0
    %3531 = vdwg.mxu0
    %v3533 = vsel %vm621, %v3529, 0
    %3535 = vmatprep.subr.mxu0 0.0
    %3536 = vmatpush1.msra.mxu0 %v3533
    %3537 = vmatprep.subr.mxu0 0.0
    %3538 = vmatpush1.msra.mxu0 0.0
    %3539 = vmatprep.subr.mxu0 0.0
    %3540 = vmatpush1.msra.mxu0 0.0
    %3541 = vmatprep.subr.mxu0 0.0
    %3542 = vmatpush1.msra.mxu0 0.0
    %3543 = vmatprep.subr.mxu0 0.0
    %3544 = vmatpush1.msra.mxu0 0.0
    %3545 = vmatprep.subr.mxu0 0.0
    %3546 = vmatpush1.msra.mxu0 0.0
    %3547 = vmatprep.subr.mxu0 0.0
    %3548 = vmatpush1.msra.mxu0 0.0
    %3549 = vmatprep.subr.mxu0 0.0
    %3550 = vmatpush1.msra.mxu0 0.0
    %3551 = vmatprep.subr.mxu0 0.0
    %3552 = vmatpush1.msra.mxu0 0.0
    %3553 = vmatprep.subr.mxu0 0.0
    %3554 = vmatpush1.msra.mxu0 0.0
    %3555 = vmatprep.subr.mxu0 0.0
    %3556 = vmatpush1.msra.mxu0 0.0
    %3557 = vmatprep.subr.mxu0 0.0
    %3558 = vmatpush1.msra.mxu0 0.0
    %3559 = vmatprep.subr.mxu0 0.0
    %3560 = vmatpush1.msra.mxu0 0.0
    %3561 = vmatprep.subr.mxu0 0.0
    %3562 = vmatpush1.msra.mxu0 0.0
    %3563 = vmatprep.subr.mxu0 0.0
    %3564 = vmatpush1.msra.mxu0 0.0
    %3565 = vmatprep.subr.mxu0 0.0
    %3566 = vmatpush1.msra.mxu0 0.0
    %3567 = vmatprep.subr.mxu0 0.0
    %3568 = vmatpush1.msra.mxu0 0.0
    %3569 = vmatprep.subr.mxu0 0.0
    %3570 = vmatpush1.msra.mxu0 0.0
    %3571 = vmatprep.subr.mxu0 0.0
    %3572 = vmatpush1.msra.mxu0 0.0
    %3573 = vmatprep.subr.mxu0 0.0
    %3574 = vmatpush1.msra.mxu0 0.0
    %3575 = vmatprep.subr.mxu0 0.0
    %3576 = vmatpush1.msra.mxu0 0.0
    %3577 = vmatprep.subr.mxu0 0.0
    %3578 = vmatpush1.msra.mxu0 0.0
    %3579 = vmatprep.subr.mxu0 0.0
    %3580 = vmatpush1.msra.mxu0 0.0
    %3581 = vmatprep.subr.mxu0 0.0
    %3582 = vmatpush1.msra.mxu0 0.0
    %3583 = vmatprep.subr.mxu0 0.0
    %3584 = vmatpush1.msra.mxu0 0.0
    %3585 = vmatprep.subr.mxu0 0.0
    %3586 = vmatpush1.msra.mxu0 0.0
    %3587 = vmatprep.subr.mxu0 0.0
    %3588 = vmatpush1.msra.mxu0 0.0
    %3589 = vmatprep.subr.mxu0 0.0
    %3590 = vmatpush1.msra.mxu0 0.0
    %3591 = vmatprep.subr.mxu0 0.0
    %3592 = vmatpush1.msra.mxu0 0.0
    %3593 = vmatprep.subr.mxu0 0.0
    %3594 = vmatpush1.msra.mxu0 0.0
    %3595 = vmatprep.subr.mxu0 0.0
    %3596 = vmatpush1.msra.mxu0 0.0
    %3597 = vmatprep.subr.mxu0 0.0
    %3598 = vmatpush1.msra.mxu0 0.0
    %3599 = vmatprep.mubr.f32.mxu0 0.0
    %3600 = vmatmul.mubr.f32.gmra.mrb[0].mxu0 %v619
    %v3601 = vpop.f32.mrb[0].mxu0
    %v3602 = vadd.f32 0.0, %v3601
    %v3603 = vpop.f32.mrb[0].mxu0
    %3604 = vdwg.mxu0
    %v3606 = vsel %vm120, %v3304, 0
    %3608 = vmatprep.subr.mxu0 0.0
    %3609 = vmatpush1.msra.mxu0 %v100
    %3610 = vmatprep.subr.mxu0 0.0
    %3611 = vmatpush1.msra.mxu0 %v101
    %3612 = vmatprep.subr.mxu0 0.0
    %3613 = vmatpush1.msra.mxu0 %v102
    %3614 = vmatprep.subr.mxu0 0.0
    %3615 = vmatpush1.msra.mxu0 %v103
    %3616 = vmatprep.subr.mxu0 0.0
    %3617 = vmatpush1.msra.mxu0 0.0
    %3618 = vmatprep.subr.mxu0 0.0
    %3619 = vmatpush1.msra.mxu0 0.0
    %3620 = vmatprep.subr.mxu0 0.0
    %3621 = vmatpush1.msra.mxu0 0.0
    %3622 = vmatprep.subr.mxu0 0.0
    %3623 = vmatpush1.msra.mxu0 0.0
    %3624 = vmatprep.subr.mxu0 0.0
    %3625 = vmatpush1.msra.mxu0 0.0
    %3626 = vmatprep.subr.mxu0 0.0
    %3627 = vmatpush1.msra.mxu0 0.0
    %3628 = vmatprep.subr.mxu0 0.0
    %3629 = vmatpush1.msra.mxu0 0.0
    %3630 = vmatprep.subr.mxu0 0.0
    %3631 = vmatpush1.msra.mxu0 0.0
    %3632 = vmatprep.subr.mxu0 0.0
    %3633 = vmatpush1.msra.mxu0 0.0
    %3634 = vmatprep.subr.mxu0 0.0
    %3635 = vmatpush1.msra.mxu0 0.0
    %3636 = vmatprep.subr.mxu0 0.0
    %3637 = vmatpush1.msra.mxu0 0.0
    %3638 = vmatprep.subr.mxu0 0.0
    %3639 = vmatpush1.msra.mxu0 0.0
    %3640 = vmatprep.subr.mxu0 0.0
    %3641 = vmatpush1.msra.mxu0 0.0
    %3642 = vmatprep.subr.mxu0 0.0
    %3643 = vmatpush1.msra.mxu0 0.0
    %3644 = vmatprep.subr.mxu0 0.0
    %3645 = vmatpush1.msra.mxu0 0.0
    %3646 = vmatprep.subr.mxu0 0.0
    %3647 = vmatpush1.msra.mxu0 0.0
    %3648 = vmatprep.subr.mxu0 0.0
    %3649 = vmatpush1.msra.mxu0 0.0
    %3650 = vmatprep.subr.mxu0 0.0
    %3651 = vmatpush1.msra.mxu0 0.0
    %3652 = vmatprep.subr.mxu0 0.0
    %3653 = vmatpush1.msra.mxu0 0.0
    %3654 = vmatprep.subr.mxu0 0.0
    %3655 = vmatpush1.msra.mxu0 0.0
    %3656 = vmatprep.subr.mxu0 0.0
    %3657 = vmatpush1.msra.mxu0 0.0
    %3658 = vmatprep.subr.mxu0 0.0
    %3659 = vmatpush1.msra.mxu0 0.0
    %3660 = vmatprep.subr.mxu0 0.0
    %3661 = vmatpush1.msra.mxu0 0.0
    %3662 = vmatprep.subr.mxu0 0.0
    %3663 = vmatpush1.msra.mxu0 0.0
    %3664 = vmatprep.subr.mxu0 0.0
    %3665 = vmatpush1.msra.mxu0 0.0
    %3666 = vmatprep.subr.mxu0 0.0
    %3667 = vmatpush1.msra.mxu0 0.0
    %3668 = vmatprep.subr.mxu0 0.0
    %3669 = vmatpush1.msra.mxu0 0.0
    %3670 = vmatprep.subr.mxu0 0.0
    %3671 = vmatpush1.msra.mxu0 0.0
    %3672 = vmatprep.mubr.f32.mxu0 0.0
    %3673 = vmatmul.mubr.f32.gmra.mrb[0].mxu0 %v3606
    %v3674 = vpop.f32.mrb[0].mxu0
    %v3675 = vadd.f32 %v3602, %v3674
    %v3676 = vpop.f32.mrb[0].mxu0
    %3677 = vdwg.mxu0
    %v3678 = vadd.f32 %v3675, %v772
    %v3679 = vmax.f32 %v3678, 0.0
    %v3680 = vmul.f32 %v3679, %v3308
    %v3681 = vmul.f32 %v3680, %v117
    %v3682 = vmul.f32 %v3680, %v198
    %v3684 = vsel %vm779, %v3682, 0
    %3686 = vmatprep.subr.mxu0 0.0
    %3687 = vmatpush1.msra.mxu0 %v81
    %3688 = vmatprep.subr.mxu0 0.0
    %3689 = vmatpush1.msra.mxu0 %v82
    %3690 = vmatprep.subr.mxu0 0.0
    %3691 = vmatpush1.msra.mxu0 0.0
    %3692 = vmatprep.subr.mxu0 0.0
    %3693 = vmatpush1.msra.mxu0 0.0
    %3694 = vmatprep.subr.mxu0 0.0
    %3695 = vmatpush1.msra.mxu0 0.0
    %3696 = vmatprep.subr.mxu0 0.0
    %3697 = vmatpush1.msra.mxu0 0.0
    %3698 = vmatprep.subr.mxu0 0.0
    %3699 = vmatpush1.msra.mxu0 0.0
    %3700 = vmatprep.subr.mxu0 0.0
    %3701 = vmatpush1.msra.mxu0 0.0
    %3702 = vmatprep.subr.mxu0 0.0
    %3703 = vmatpush1.msra.mxu0 0.0
    %3704 = vmatprep.subr.mxu0 0.0
    %3705 = vmatpush1.msra.mxu0 0.0
    %3706 = vmatprep.subr.mxu0 0.0
    %3707 = vmatpush1.msra.mxu0 0.0
    %3708 = vmatprep.subr.mxu0 0.0
    %3709 = vmatpush1.msra.mxu0 0.0
    %3710 = vmatprep.subr.mxu0 0.0
    %3711 = vmatpush1.msra.mxu0 0.0
    %3712 = vmatprep.subr.mxu0 0.0
    %3713 = vmatpush1.msra.mxu0 0.0
    %3714 = vmatprep.subr.mxu0 0.0
    %3715 = vmatpush1.msra.mxu0 0.0
    %3716 = vmatprep.subr.mxu0 0.0
    %3717 = vmatpush1.msra.mxu0 0.0
    %3718 = vmatprep.subr.mxu0 0.0
    %3719 = vmatpush1.msra.mxu0 0.0
    %3720 = vmatprep.subr.mxu0 0.0
    %3721 = vmatpush1.msra.mxu0 0.0
    %3722 = vmatprep.subr.mxu0 0.0
    %3723 = vmatpush1.msra.mxu0 0.0
    %3724 = vmatprep.subr.mxu0 0.0
    %3725 = vmatpush1.msra.mxu0 0.0
    %3726 = vmatprep.subr.mxu0 0.0
    %3727 = vmatpush1.msra.mxu0 0.0
    %3728 = vmatprep.subr.mxu0 0.0
    %3729 = vmatpush1.msra.mxu0 0.0
    %3730 = vmatprep.subr.mxu0 0.0
    %3731 = vmatpush1.msra.mxu0 0.0
    %3732 = vmatprep.subr.mxu0 0.0
    %3733 = vmatpush1.msra.mxu0 0.0
    %3734 = vmatprep.subr.mxu0 0.0
    %3735 = vmatpush1.msra.mxu0 0.0
    %3736 = vmatprep.subr.mxu0 0.0
    %3737 = vmatpush1.msra.mxu0 0.0
    %3738 = vmatprep.subr.mxu0 0.0
    %3739 = vmatpush1.msra.mxu0 0.0
    %3740 = vmatprep.subr.mxu0 0.0
    %3741 = vmatpush1.msra.mxu0 0.0
    %3742 = vmatprep.subr.mxu0 0.0
    %3743 = vmatpush1.msra.mxu0 0.0
    %3744 = vmatprep.subr.mxu0 0.0
    %3745 = vmatpush1.msra.mxu0 0.0
    %3746 = vmatprep.subr.mxu0 0.0
    %3747 = vmatpush1.msra.mxu0 0.0
    %3748 = vmatprep.subr.mxu0 0.0
    %3749 = vmatpush1.msra.mxu0 0.0
    %3750 = vmatprep.mubr.f32.mxu0 0.0
    %3751 = vmatmul.mubr.f32.gmra.mrb[0].mxu0 %v3684
    %v3752 = vpop.f32.mrb[0].mxu0
    %v3753 = vadd.f32 0.0, %v3752
    %v3754 = vpop.f32.mrb[0].mxu0
    %3755 = vdwg.mxu0
    %v3757 = vsel %vm779, %v3681, 0
    %3759 = vmatprep.subr.mxu0 0.0
    %3760 = vmatpush1.msra.mxu0 %v78
    %3761 = vmatprep.subr.mxu0 0.0
    %3762 = vmatpush1.msra.mxu0 %v79
    %3763 = vmatprep.subr.mxu0 0.0
    %3764 = vmatpush1.msra.mxu0 0.0
    %3765 = vmatprep.subr.mxu0 0.0
    %3766 = vmatpush1.msra.mxu0 0.0
    %3767 = vmatprep.subr.mxu0 0.0
    %3768 = vmatpush1.msra.mxu0 0.0
    %3769 = vmatprep.subr.mxu0 0.0
    %3770 = vmatpush1.msra.mxu0 0.0
    %3771 = vmatprep.subr.mxu0 0.0
    %3772 = vmatpush1.msra.mxu0 0.0
    %3773 = vmatprep.subr.mxu0 0.0
    %3774 = vmatpush1.msra.mxu0 0.0
    %3775 = vmatprep.subr.mxu0 0.0
    %3776 = vmatpush1.msra.mxu0 0.0
    %3777 = vmatprep.subr.mxu0 0.0
    %3778 = vmatpush1.msra.mxu0 0.0
    %3779 = vmatprep.subr.mxu0 0.0
    %3780 = vmatpush1.msra.mxu0 0.0
    %3781 = vmatprep.subr.mxu0 0.0
    %3782 = vmatpush1.msra.mxu0 0.0
    %3783 = vmatprep.subr.mxu0 0.0
    %3784 = vmatpush1.msra.mxu0 0.0
    %3785 = vmatprep.subr.mxu0 0.0
    %3786 = vmatpush1.msra.mxu0 0.0
    %3787 = vmatprep.subr.mxu0 0.0
    %3788 = vmatpush1.msra.mxu0 0.0
    %3789 = vmatprep.subr.mxu0 0.0
    %3790 = vmatpush1.msra.mxu0 0.0
    %3791 = vmatprep.subr.mxu0 0.0
    %3792 = vmatpush1.msra.mxu0 0.0
    %3793 = vmatprep.subr.mxu0 0.0
    %3794 = vmatpush1.msra.mxu0 0.0
    %3795 = vmatprep.subr.mxu0 0.0
    %3796 = vmatpush1.msra.mxu0 0.0
    %3797 = vmatprep.subr.mxu0 0.0
    %3798 = vmatpush1.msra.mxu0 0.0
    %3799 = vmatprep.subr.mxu0 0.0
    %3800 = vmatpush1.msra.mxu0 0.0
    %3801 = vmatprep.subr.mxu0 0.0
    %3802 = vmatpush1.msra.mxu0 0.0
    %3803 = vmatprep.subr.mxu0 0.0
    %3804 = vmatpush1.msra.mxu0 0.0
    %3805 = vmatprep.subr.mxu0 0.0
    %3806 = vmatpush1.msra.mxu0 0.0
    %3807 = vmatprep.subr.mxu0 0.0
    %3808 = vmatpush1.msra.mxu0 0.0
    %3809 = vmatprep.subr.mxu0 0.0
    %3810 = vmatpush1.msra.mxu0 0.0
    %3811 = vmatprep.subr.mxu0 0.0
    %3812 = vmatpush1.msra.mxu0 0.0
    %3813 = vmatprep.subr.mxu0 0.0
    %3814 = vmatpush1.msra.mxu0 0.0
    %3815 = vmatprep.subr.mxu0 0.0
    %3816 = vmatpush1.msra.mxu0 0.0
    %3817 = vmatprep.subr.mxu0 0.0
    %3818 = vmatpush1.msra.mxu0 0.0
    %3819 = vmatprep.subr.mxu0 0.0
    %3820 = vmatpush1.msra.mxu0 0.0
    %3821 = vmatprep.subr.mxu0 0.0
    %3822 = vmatpush1.msra.mxu0 0.0
    %3823 = vmatprep.mubr.f32.mxu0 0.0
    %3824 = vmatmul.mubr.f32.gmra.mrb[0].mxu0 %v3757
    %v3825 = vpop.f32.mrb[0].mxu0
    %v3826 = vadd.f32 %v3753, %v3825
    %v3827 = vpop.f32.mrb[0].mxu0
    %3828 = vdwg.mxu0
    %v3829 = vadd.f32 %v3826, %v92
    %v3830 = vmul.f32 %v3039, %v117
    %3832 = vrot.lane.b32.xlu0 %v3830, 64
    %v3833 = vpop.permute.xlu0 %3832
    %v3834 = vsel %vm120, %v3833, 0
    %3836 = vmatprep.subr.mxu0 0.0
    %3837 = vmatpush1.msra.mxu0 %v83
    %3838 = vmatprep.subr.mxu0 0.0
    %3839 = vmatpush1.msra.mxu0 %v84
    %3840 = vmatprep.subr.mxu0 0.0
    %3841 = vmatpush1.msra.mxu0 %v85
    %3842 = vmatprep.subr.mxu0 0.0
    %3843 = vmatpush1.msra.mxu0 %v86
    %3844 = vmatprep.subr.mxu0 0.0
    %3845 = vmatpush1.msra.mxu0 0.0
    %3846 = vmatprep.subr.mxu0 0.0
    %3847 = vmatpush1.msra.mxu0 0.0
    %3848 = vmatprep.subr.mxu0 0.0
    %3849 = vmatpush1.msra.mxu0 0.0
    %3850 = vmatprep.subr.mxu0 0.0
    %3851 = vmatpush1.msra.mxu0 0.0
    %3852 = vmatprep.subr.mxu0 0.0
    %3853 = vmatpush1.msra.mxu0 0.0
    %3854 = vmatprep.subr.mxu0 0.0
    %3855 = vmatpush1.msra.mxu0 0.0
    %3856 = vmatprep.subr.mxu0 0.0
    %3857 = vmatpush1.msra.mxu0 0.0
    %3858 = vmatprep.subr.mxu0 0.0
    %3859 = vmatpush1.msra.mxu0 0.0
    %3860 = vmatprep.subr.mxu0 0.0
    %3861 = vmatpush1.msra.mxu0 0.0
    %3862 = vmatprep.subr.mxu0 0.0
    %3863 = vmatpush1.msra.mxu0 0.0
    %3864 = vmatprep.subr.mxu0 0.0
    %3865 = vmatpush1.msra.mxu0 0.0
    %3866 = vmatprep.subr.mxu0 0.0
    %3867 = vmatpush1.msra.mxu0 0.0
    %3868 = vmatprep.subr.mxu0 0.0
    %3869 = vmatpush1.msra.mxu0 0.0
    %3870 = vmatprep.subr.mxu0 0.0
    %3871 = vmatpush1.msra.mxu0 0.0
    %3872 = vmatprep.subr.mxu0 0.0
    %3873 = vmatpush1.msra.mxu0 0.0
    %3874 = vmatprep.subr.mxu0 0.0
    %3875 = vmatpush1.msra.mxu0 0.0
    %3876 = vmatprep.subr.mxu0 0.0
    %3877 = vmatpush1.msra.mxu0 0.0
    %3878 = vmatprep.subr.mxu0 0.0
    %3879 = vmatpush1.msra.mxu0 0.0
    %3880 = vmatprep.subr.mxu0 0.0
    %3881 = vmatpush1.msra.mxu0 0.0
    %3882 = vmatprep.subr.mxu0 0.0
    %3883 = vmatpush1.msra.mxu0 0.0
    %3884 = vmatprep.subr.mxu0 0.0
    %3885 = vmatpush1.msra.mxu0 0.0
    %3886 = vmatprep.subr.mxu0 0.0
    %3887 = vmatpush1.msra.mxu0 0.0
    %3888 = vmatprep.subr.mxu0 0.0
    %3889 = vmatpush1.msra.mxu0 0.0
    %3890 = vmatprep.subr.mxu0 0.0
    %3891 = vmatpush1.msra.mxu0 0.0
    %3892 = vmatprep.subr.mxu0 0.0
    %3893 = vmatpush1.msra.mxu0 0.0
    %3894 = vmatprep.subr.mxu0 0.0
    %3895 = vmatpush1.msra.mxu0 0.0
    %3896 = vmatprep.subr.mxu0 0.0
    %3897 = vmatpush1.msra.mxu0 0.0
    %3898 = vmatprep.subr.mxu0 0.0
    %3899 = vmatpush1.msra.mxu0 0.0
    %3900 = vmatprep.mubr.f32.mxu0 0.0
    %3901 = vmatmul.mubr.f32.gmra.mrb[0].mxu0 %v3834
    %v3902 = vpop.f32.mrb[0].mxu0
    %v3903 = vadd.f32 0.0, %v3902
    %v3904 = vpop.f32.mrb[0].mxu0
    %3905 = vdwg.mxu0
    %v3906 = vadd.f32 %v3829, %v3903
    %v3907 = vmul.f32 %v3039, %v198
    %3909 = vrot.lane.b32.xlu0 %v3907, 64
    %v3910 = vpop.permute.xlu0 %3909
    %v3911 = vsel %vm120, %v3910, 0
    %3913 = vmatprep.subr.mxu0 0.0
    %3914 = vmatpush1.msra.mxu0 %v88
    %3915 = vmatprep.subr.mxu0 0.0
    %3916 = vmatpush1.msra.mxu0 %v89
    %3917 = vmatprep.subr.mxu0 0.0
    %3918 = vmatpush1.msra.mxu0 %v90
    %3919 = vmatprep.subr.mxu0 0.0
    %3920 = vmatpush1.msra.mxu0 %v91
    %3921 = vmatprep.subr.mxu0 0.0
    %3922 = vmatpush1.msra.mxu0 0.0
    %3923 = vmatprep.subr.mxu0 0.0
    %3924 = vmatpush1.msra.mxu0 0.0
    %3925 = vmatprep.subr.mxu0 0.0
    %3926 = vmatpush1.msra.mxu0 0.0
    %3927 = vmatprep.subr.mxu0 0.0
    %3928 = vmatpush1.msra.mxu0 0.0
    %3929 = vmatprep.subr.mxu0 0.0
    %3930 = vmatpush1.msra.mxu0 0.0
    %3931 = vmatprep.subr.mxu0 0.0
    %3932 = vmatpush1.msra.mxu0 0.0
    %3933 = vmatprep.subr.mxu0 0.0
    %3934 = vmatpush1.msra.mxu0 0.0
    %3935 = vmatprep.subr.mxu0 0.0
    %3936 = vmatpush1.msra.mxu0 0.0
    %3937 = vmatprep.subr.mxu0 0.0
    %3938 = vmatpush1.msra.mxu0 0.0
    %3939 = vmatprep.subr.mxu0 0.0
    %3940 = vmatpush1.msra.mxu0 0.0
    %3941 = vmatprep.subr.mxu0 0.0
    %3942 = vmatpush1.msra.mxu0 0.0
    %3943 = vmatprep.subr.mxu0 0.0
    %3944 = vmatpush1.msra.mxu0 0.0
    %3945 = vmatprep.subr.mxu0 0.0
    %3946 = vmatpush1.msra.mxu0 0.0
    %3947 = vmatprep.subr.mxu0 0.0
    %3948 = vmatpush1.msra.mxu0 0.0
    %3949 = vmatprep.subr.mxu0 0.0
    %3950 = vmatpush1.msra.mxu0 0.0
    %3951 = vmatprep.subr.mxu0 0.0
    %3952 = vmatpush1.msra.mxu0 0.0
    %3953 = vmatprep.subr.mxu0 0.0
    %3954 = vmatpush1.msra.mxu0 0.0
    %3955 = vmatprep.subr.mxu0 0.0
    %3956 = vmatpush1.msra.mxu0 0.0
    %3957 = vmatprep.subr.mxu0 0.0
    %3958 = vmatpush1.msra.mxu0 0.0
    %3959 = vmatprep.subr.mxu0 0.0
    %3960 = vmatpush1.msra.mxu0 0.0
    %3961 = vmatprep.subr.mxu0 0.0
    %3962 = vmatpush1.msra.mxu0 0.0
    %3963 = vmatprep.subr.mxu0 0.0
    %3964 = vmatpush1.msra.mxu0 0.0
    %3965 = vmatprep.subr.mxu0 0.0
    %3966 = vmatpush1.msra.mxu0 0.0
    %3967 = vmatprep.subr.mxu0 0.0
    %3968 = vmatpush1.msra.mxu0 0.0
    %3969 = vmatprep.subr.mxu0 0.0
    %3970 = vmatpush1.msra.mxu0 0.0
    %3971 = vmatprep.subr.mxu0 0.0
    %3972 = vmatpush1.msra.mxu0 0.0
    %3973 = vmatprep.subr.mxu0 0.0
    %3974 = vmatpush1.msra.mxu0 0.0
    %3975 = vmatprep.subr.mxu0 0.0
    %3976 = vmatpush1.msra.mxu0 0.0
    %3977 = vmatprep.mubr.f32.mxu0 0.0
    %3978 = vmatmul.mubr.f32.gmra.mrb[0].mxu0 %v3911
    %v3979 = vpop.f32.mrb[0].mxu0
    %v3980 = vadd.f32 0.0, %v3979
    %v3981 = vpop.f32.mrb[0].mxu0
    %3982 = vdwg.mxu0
    %v3983 = vadd.f32 %v3906, %v3980
    %v3984 = vxor.u32 %v3983, 2147483648
    %v3985 = vmul.f32 %v3984, 1.442695
    %v3986 = vpow.pop %v3985
    %v3987 = vadd.f32 %v3986, 1.0
    %v3988 = vrcp.pop %v3987
    %v3989 = vmul.f32 1.0, %v3988
    %v3990 = vtanh.pop %v3983
    %v3991 = vmul.f32 %v3989, %v3033
    %3993 = vrot.lane.b32.xlu0 %v3990, 32
    %v3994 = vpop.permute.xlu0 %3993
    %v3996 = vmul.f32 %v3989, %v3994
    %3998 = vrot.lane.b32.xlu0 %v3996, 32
    %v3999 = vpop.permute.xlu0 %3998
    %v4001 = vadd.f32 %v3991, %v3999
    %v4002 = vtanh.pop %v4001
    %4004 = vrot.lane.b32.xlu0 %v4002, 32
    %v4005 = vpop.permute.xlu0 %4004
    %v4007 = vmul.f32 %v3989, %v4005
    %v4008 = vmul.f32 %v4007, %v3308
    %4010 = vrot.lane.b32.xlu0 %v4008, 64
    %v4011 = vpop.permute.xlu0 %4010
    %s4013 = scalar_lea.vmem %s18, 24
    %4014 = vst.msk [vmem:[%s4013] sm:$0xff] %vm120, %v4011
    %s4015 = scalar_lea.vmem %s0, 32
    %v4016 = vld [vmem:[%s4015] sm:$0xff]
    %v4017 = vmul.f32 %v3226, %v117
    %4019 = vrot.lane.b32.xlu0 %v4017, 64
    %v4020 = vpop.permute.xlu0 %4019
    %v4021 = vsel %vm120, %v4020, 0
    %4023 = vmatprep.subr.mxu0 0.0
    %4024 = vmatpush1.msra.mxu0 %v69
    %4025 = vmatprep.subr.mxu0 0.0
    %4026 = vmatpush1.msra.mxu0 %v70
    %4027 = vmatprep.subr.mxu0 0.0
    %4028 = vmatpush1.msra.mxu0 %v71
    %4029 = vmatprep.subr.mxu0 0.0
    %4030 = vmatpush1.msra.mxu0 %v72
    %4031 = vmatprep.subr.mxu0 0.0
    %4032 = vmatpush1.msra.mxu0 0.0
    %4033 = vmatprep.subr.mxu0 0.0
    %4034 = vmatpush1.msra.mxu0 0.0
    %4035 = vmatprep.subr.mxu0 0.0
    %4036 = vmatpush1.msra.mxu0 0.0
    %4037 = vmatprep.subr.mxu0 0.0
    %4038 = vmatpush1.msra.mxu0 0.0
    %4039 = vmatprep.subr.mxu0 0.0
    %4040 = vmatpush1.msra.mxu0 0.0
    %4041 = vmatprep.subr.mxu0 0.0
    %4042 = vmatpush1.msra.mxu0 0.0
    %4043 = vmatprep.subr.mxu0 0.0
    %4044 = vmatpush1.msra.mxu0 0.0
    %4045 = vmatprep.subr.mxu0 0.0
    %4046 = vmatpush1.msra.mxu0 0.0
    %4047 = vmatprep.subr.mxu0 0.0
    %4048 = vmatpush1.msra.mxu0 0.0
    %4049 = vmatprep.subr.mxu0 0.0
    %4050 = vmatpush1.msra.mxu0 0.0
    %4051 = vmatprep.subr.mxu0 0.0
    %4052 = vmatpush1.msra.mxu0 0.0
    %4053 = vmatprep.subr.mxu0 0.0
    %4054 = vmatpush1.msra.mxu0 0.0
    %4055 = vmatprep.subr.mxu0 0.0
    %4056 = vmatpush1.msra.mxu0 0.0
    %4057 = vmatprep.subr.mxu0 0.0
    %4058 = vmatpush1.msra.mxu0 0.0
    %4059 = vmatprep.subr.mxu0 0.0
    %4060 = vmatpush1.msra.mxu0 0.0
    %4061 = vmatprep.subr.mxu0 0.0
    %4062 = vmatpush1.msra.mxu0 0.0
    %4063 = vmatprep.subr.mxu0 0.0
    %4064 = vmatpush1.msra.mxu0 0.0
    %4065 = vmatprep.subr.mxu0 0.0
    %4066 = vmatpush1.msra.mxu0 0.0
    %4067 = vmatprep.subr.mxu0 0.0
    %4068 = vmatpush1.msra.mxu0 0.0
    %4069 = vmatprep.subr.mxu0 0.0
    %4070 = vmatpush1.msra.mxu0 0.0
    %4071 = vmatprep.subr.mxu0 0.0
    %4072 = vmatpush1.msra.mxu0 0.0
    %4073 = vmatprep.subr.mxu0 0.0
    %4074 = vmatpush1.msra.mxu0 0.0
    %4075 = vmatprep.subr.mxu0 0.0
    %4076 = vmatpush1.msra.mxu0 0.0
    %4077 = vmatprep.subr.mxu0 0.0
    %4078 = vmatpush1.msra.mxu0 0.0
    %4079 = vmatprep.subr.mxu0 0.0
    %4080 = vmatpush1.msra.mxu0 0.0
    %4081 = vmatprep.subr.mxu0 0.0
    %4082 = vmatpush1.msra.mxu0 0.0
    %4083 = vmatprep.subr.mxu0 0.0
    %4084 = vmatpush1.msra.mxu0 0.0
    %4085 = vmatprep.subr.mxu0 0.0
    %4086 = vmatpush1.msra.mxu0 0.0
    %4087 = vmatprep.mubr.f32.mxu0 0.0
    %4088 = vmatmul.mubr.f32.gmra.mrb[0].mxu0 %v4021
    %v4089 = vpop.f32.mrb[0].mxu0
    %v4090 = vadd.f32 0.0, %v4089
    %v4091 = vpop.f32.mrb[0].mxu0
    %4092 = vdwg.mxu0
    %v4093 = vadd.f32 %v4016, %v4090
    %v4094 = vmul.f32 %v3226, %v198
    %4096 = vrot.lane.b32.xlu0 %v4094, 64
    %v4097 = vpop.permute.xlu0 %4096
    %v4098 = vsel %vm120, %v4097, 0
    %4100 = vmatprep.subr.mxu0 0.0
    %4101 = vmatpush1.msra.mxu0 %v74
    %4102 = vmatprep.subr.mxu0 0.0
    %4103 = vmatpush1.msra.mxu0 %v75
    %4104 = vmatprep.subr.mxu0 0.0
    %4105 = vmatpush1.msra.mxu0 %v76
    %4106 = vmatprep.subr.mxu0 0.0
    %4107 = vmatpush1.msra.mxu0 %v77
    %4108 = vmatprep.subr.mxu0 0.0
    %4109 = vmatpush1.msra.mxu0 0.0
    %4110 = vmatprep.subr.mxu0 0.0
    %4111 = vmatpush1.msra.mxu0 0.0
    %4112 = vmatprep.subr.mxu0 0.0
    %4113 = vmatpush1.msra.mxu0 0.0
    %4114 = vmatprep.subr.mxu0 0.0
    %4115 = vmatpush1.msra.mxu0 0.0
    %4116 = vmatprep.subr.mxu0 0.0
    %4117 = vmatpush1.msra.mxu0 0.0
    %4118 = vmatprep.subr.mxu0 0.0
    %4119 = vmatpush1.msra.mxu0 0.0
    %4120 = vmatprep.subr.mxu0 0.0
    %4121 = vmatpush1.msra.mxu0 0.0
    %4122 = vmatprep.subr.mxu0 0.0
    %4123 = vmatpush1.msra.mxu0 0.0
    %4124 = vmatprep.subr.mxu0 0.0
    %4125 = vmatpush1.msra.mxu0 0.0
    %4126 = vmatprep.subr.mxu0 0.0
    %4127 = vmatpush1.msra.mxu0 0.0
    %4128 = vmatprep.subr.mxu0 0.0
    %4129 = vmatpush1.msra.mxu0 0.0
    %4130 = vmatprep.subr.mxu0 0.0
    %4131 = vmatpush1.msra.mxu0 0.0
    %4132 = vmatprep.subr.mxu0 0.0
    %4133 = vmatpush1.msra.mxu0 0.0
    %4134 = vmatprep.subr.mxu0 0.0
    %4135 = vmatpush1.msra.mxu0 0.0
    %4136 = vmatprep.subr.mxu0 0.0
    %4137 = vmatpush1.msra.mxu0 0.0
    %4138 = vmatprep.subr.mxu0 0.0
    %4139 = vmatpush1.msra.mxu0 0.0
    %4140 = vmatprep.subr.mxu0 0.0
    %4141 = vmatpush1.msra.mxu0 0.0
    %4142 = vmatprep.subr.mxu0 0.0
    %4143 = vmatpush1.msra.mxu0 0.0
    %4144 = vmatprep.subr.mxu0 0.0
    %4145 = vmatpush1.msra.mxu0 0.0
    %4146 = vmatprep.subr.mxu0 0.0
    %4147 = vmatpush1.msra.mxu0 0.0
    %4148 = vmatprep.subr.mxu0 0.0
    %4149 = vmatpush1.msra.mxu0 0.0
    %4150 = vmatprep.subr.mxu0 0.0
    %4151 = vmatpush1.msra.mxu0 0.0
    %4152 = vmatprep.subr.mxu0 0.0
    %4153 = vmatpush1.msra.mxu0 0.0
    %4154 = vmatprep.subr.mxu0 0.0
    %4155 = vmatpush1.msra.mxu0 0.0
    %4156 = vmatprep.subr.mxu0 0.0
    %4157 = vmatpush1.msra.mxu0 0.0
    %4158 = vmatprep.subr.mxu0 0.0
    %4159 = vmatpush1.msra.mxu0 0.0
    %4160 = vmatprep.subr.mxu0 0.0
    %4161 = vmatpush1.msra.mxu0 0.0
    %4162 = vmatprep.subr.mxu0 0.0
    %4163 = vmatpush1.msra.mxu0 0.0
    %4164 = vmatprep.mubr.f32.mxu0 0.0
    %4165 = vmatmul.mubr.f32.gmra.mrb[0].mxu0 %v4098
    %v4166 = vpop.f32.mrb[0].mxu0
    %v4167 = vadd.f32 0.0, %v4166
    %v4168 = vpop.f32.mrb[0].mxu0
    %4169 = vdwg.mxu0
    %v4170 = vadd.f32 %v4093, %v4167
    %v4171 = vxor.u32 %v4170, 2147483648
    %v4172 = vmul.f32 %v4171, 1.442695
    %v4173 = vpow.pop %v4172
    %v4174 = vadd.f32 %v4173, 1.0
    %v4175 = vrcp.pop %v4174
    %v4176 = vmul.f32 1.0, %v4175
    %v4177 = vtanh.pop %v4170
    %v4178 = vmul.f32 %v4176, %v3220
    %4180 = vrot.lane.b32.xlu0 %v4177, 32
    %v4181 = vpop.permute.xlu0 %4180
    %v4183 = vmul.f32 %v4176, %v4181
    %4185 = vrot.lane.b32.xlu0 %v4183, 32
    %v4186 = vpop.permute.xlu0 %4185
    %v4188 = vadd.f32 %v4178, %v4186
    %v4189 = vtanh.pop %v4188
    %4191 = vrot.lane.b32.xlu0 %v4189, 32
    %v4192 = vpop.permute.xlu0 %4191
    %v4194 = vmul.f32 %v4176, %v4192
    %s4195 = scalar_lea.vmem %s1, 32
    %v4196 = vld [vmem:[%s4195] sm:$0xff]
    %4198 = vrot.lane.b32.xlu0 %v4194, 64
    %v4199 = vpop.permute.xlu0 %4198
    %v4200 = vsel %vm120, %v4199, 0
    %4202 = vmatprep.subr.mxu0 0.0
    %4203 = vmatpush1.msra.mxu0 %v95
    %4204 = vmatprep.subr.mxu0 0.0
    %4205 = vmatpush1.msra.mxu0 %v96
    %4206 = vmatprep.subr.mxu0 0.0
    %4207 = vmatpush1.msra.mxu0 %v97
    %4208 = vmatprep.subr.mxu0 0.0
    %4209 = vmatpush1.msra.mxu0 %v98
    %4210 = vmatprep.subr.mxu0 0.0
    %4211 = vmatpush1.msra.mxu0 0.0
    %4212 = vmatprep.subr.mxu0 0.0
    %4213 = vmatpush1.msra.mxu0 0.0
    %4214 = vmatprep.subr.mxu0 0.0
    %4215 = vmatpush1.msra.mxu0 0.0
    %4216 = vmatprep.subr.mxu0 0.0
    %4217 = vmatpush1.msra.mxu0 0.0
    %4218 = vmatprep.subr.mxu0 0.0
    %4219 = vmatpush1.msra.mxu0 0.0
    %4220 = vmatprep.subr.mxu0 0.0
    %4221 = vmatpush1.msra.mxu0 0.0
    %4222 = vmatprep.subr.mxu0 0.0
    %4223 = vmatpush1.msra.mxu0 0.0
    %4224 = vmatprep.subr.mxu0 0.0
    %4225 = vmatpush1.msra.mxu0 0.0
    %4226 = vmatprep.subr.mxu0 0.0
    %4227 = vmatpush1.msra.mxu0 0.0
    %4228 = vmatprep.subr.mxu0 0.0
    %4229 = vmatpush1.msra.mxu0 0.0
    %4230 = vmatprep.subr.mxu0 0.0
    %4231 = vmatpush1.msra.mxu0 0.0
    %4232 = vmatprep.subr.mxu0 0.0
    %4233 = vmatpush1.msra.mxu0 0.0
    %4234 = vmatprep.subr.mxu0 0.0
    %4235 = vmatpush1.msra.mxu0 0.0
    %4236 = vmatprep.subr.mxu0 0.0
    %4237 = vmatpush1.msra.mxu0 0.0
    %4238 = vmatprep.subr.mxu0 0.0
    %4239 = vmatpush1.msra.mxu0 0.0
    %4240 = vmatprep.subr.mxu0 0.0
    %4241 = vmatpush1.msra.mxu0 0.0
    %4242 = vmatprep.subr.mxu0 0.0
    %4243 = vmatpush1.msra.mxu0 0.0
    %4244 = vmatprep.subr.mxu0 0.0
    %4245 = vmatpush1.msra.mxu0 0.0
    %4246 = vmatprep.subr.mxu0 0.0
    %4247 = vmatpush1.msra.mxu0 0.0
    %4248 = vmatprep.subr.mxu0 0.0
    %4249 = vmatpush1.msra.mxu0 0.0
    %4250 = vmatprep.subr.mxu0 0.0
    %4251 = vmatpush1.msra.mxu0 0.0
    %4252 = vmatprep.subr.mxu0 0.0
    %4253 = vmatpush1.msra.mxu0 0.0
    %4254 = vmatprep.subr.mxu0 0.0
    %4255 = vmatpush1.msra.mxu0 0.0
    %4256 = vmatprep.subr.mxu0 0.0
    %4257 = vmatpush1.msra.mxu0 0.0
    %4258 = vmatprep.subr.mxu0 0.0
    %4259 = vmatpush1.msra.mxu0 0.0
    %4260 = vmatprep.subr.mxu0 0.0
    %4261 = vmatpush1.msra.mxu0 0.0
    %4262 = vmatprep.subr.mxu0 0.0
    %4263 = vmatpush1.msra.mxu0 0.0
    %4264 = vmatprep.subr.mxu0 0.0
    %4265 = vmatpush1.msra.mxu0 0.0
    %4266 = vmatprep.mubr.f32.mxu0 0.0
    %4267 = vmatmul.mubr.f32.gmra.mrb[0].mxu0 %v4200
    %v4268 = vpop.f32.mrb[0].mxu0
    %v4269 = vadd.f32 %v308, %v4268
    %v4270 = vpop.f32.mrb[0].mxu0
    %4271 = vdwg.mxu0
    %v4272 = vmax.f32 %v4269, 0.0
    %4274 = vset.pattern.permute.xlu0 0
    %4275 = vperm.xlu0 %4274, %v4196
    %v4276 = vpop.permute.xlu0 %4275
    %v4278 = vmul.f32 %v4272, %v4276
    %4279 = vmatprep.subr.mxu0 0.0
    %4280 = vmatpush1.msra.mxu0 %v4278
    %4281 = vmatprep.subr.mxu0 0.0
    %4282 = vmatpush1.msra.mxu0 0.0
    %4283 = vmatprep.subr.mxu0 0.0
    %4284 = vmatpush1.msra.mxu0 0.0
    %4285 = vmatprep.subr.mxu0 0.0
    %4286 = vmatpush1.msra.mxu0 0.0
    %4287 = vmatprep.subr.mxu0 0.0
    %4288 = vmatpush1.msra.mxu0 0.0
    %4289 = vmatprep.subr.mxu0 0.0
    %4290 = vmatpush1.msra.mxu0 0.0
    %4291 = vmatprep.subr.mxu0 0.0
    %4292 = vmatpush1.msra.mxu0 0.0
    %4293 = vmatprep.subr.mxu0 0.0
    %4294 = vmatpush1.msra.mxu0 0.0
    %4295 = vmatprep.subr.mxu0 0.0
    %4296 = vmatpush1.msra.mxu0 0.0
    %4297 = vmatprep.subr.mxu0 0.0
    %4298 = vmatpush1.msra.mxu0 0.0
    %4299 = vmatprep.subr.mxu0 0.0
    %4300 = vmatpush1.msra.mxu0 0.0
    %4301 = vmatprep.subr.mxu0 0.0
    %4302 = vmatpush1.msra.mxu0 0.0
    %4303 = vmatprep.subr.mxu0 0.0
    %4304 = vmatpush1.msra.mxu0 0.0
    %4305 = vmatprep.subr.mxu0 0.0
    %4306 = vmatpush1.msra.mxu0 0.0
    %4307 = vmatprep.subr.mxu0 0.0
    %4308 = vmatpush1.msra.mxu0 0.0
    %4309 = vmatprep.subr.mxu0 0.0
    %4310 = vmatpush1.msra.mxu0 0.0
    %4311 = vmatprep.subr.mxu0 0.0
    %4312 = vmatpush1.msra.mxu0 0.0
    %4313 = vmatprep.subr.mxu0 0.0
    %4314 = vmatpush1.msra.mxu0 0.0
    %4315 = vmatprep.subr.mxu0 0.0
    %4316 = vmatpush1.msra.mxu0 0.0
    %4317 = vmatprep.subr.mxu0 0.0
    %4318 = vmatpush1.msra.mxu0 0.0
    %4319 = vmatprep.subr.mxu0 0.0
    %4320 = vmatpush1.msra.mxu0 0.0
    %4321 = vmatprep.subr.mxu0 0.0
    %4322 = vmatpush1.msra.mxu0 0.0
    %4323 = vmatprep.subr.mxu0 0.0
    %4324 = vmatpush1.msra.mxu0 0.0
    %4325 = vmatprep.subr.mxu0 0.0
    %4326 = vmatpush1.msra.mxu0 0.0
    %4327 = vmatprep.subr.mxu0 0.0
    %4328 = vmatpush1.msra.mxu0 0.0
    %4329 = vmatprep.subr.mxu0 0.0
    %4330 = vmatpush1.msra.mxu0 0.0
    %4331 = vmatprep.subr.mxu0 0.0
    %4332 = vmatpush1.msra.mxu0 0.0
    %4333 = vmatprep.subr.mxu0 0.0
    %4334 = vmatpush1.msra.mxu0 0.0
    %4335 = vmatprep.subr.mxu0 0.0
    %4336 = vmatpush1.msra.mxu0 0.0
    %4337 = vmatprep.subr.mxu0 0.0
    %4338 = vmatpush1.msra.mxu0 0.0
    %4339 = vmatprep.subr.mxu0 0.0
    %4340 = vmatpush1.msra.mxu0 0.0
    %4341 = vmatprep.subr.mxu0 0.0
    %4342 = vmatpush1.msra.mxu0 0.0
    %4343 = vmatprep.mubr.f32.mxu0 0.0
    %4344 = vmatmul.mubr.f32.gmra.mrb[0].mxu0 %v394
    %v4345 = vpop.f32.mrb[0].mxu0
    %v4346 = vadd.f32 0.0, %v4345
    %v4347 = vpop.f32.mrb[0].mxu0
    %4348 = vdwg.mxu0
    %4349 = vmatprep.subr.mxu0 0.0
    %4350 = vmatpush1.msra.mxu0 %v4196
    %4351 = vmatprep.subr.mxu0 0.0
    %4352 = vmatpush1.msra.mxu0 0.0
    %4353 = vmatprep.subr.mxu0 0.0
    %4354 = vmatpush1.msra.mxu0 0.0
    %4355 = vmatprep.subr.mxu0 0.0
    %4356 = vmatpush1.msra.mxu0 0.0
    %4357 = vmatprep.subr.mxu0 0.0
    %4358 = vmatpush1.msra.mxu0 0.0
    %4359 = vmatprep.subr.mxu0 0.0
    %4360 = vmatpush1.msra.mxu0 0.0
    %4361 = vmatprep.subr.mxu0 0.0
    %4362 = vmatpush1.msra.mxu0 0.0
    %4363 = vmatprep.subr.mxu0 0.0
    %4364 = vmatpush1.msra.mxu0 0.0
    %4365 = vmatprep.subr.mxu0 0.0
    %4366 = vmatpush1.msra.mxu0 0.0
    %4367 = vmatprep.subr.mxu0 0.0
    %4368 = vmatpush1.msra.mxu0 0.0
    %4369 = vmatprep.subr.mxu0 0.0
    %4370 = vmatpush1.msra.mxu0 0.0
    %4371 = vmatprep.subr.mxu0 0.0
    %4372 = vmatpush1.msra.mxu0 0.0
    %4373 = vmatprep.subr.mxu0 0.0
    %4374 = vmatpush1.msra.mxu0 0.0
    %4375 = vmatprep.subr.mxu0 0.0
    %4376 = vmatpush1.msra.mxu0 0.0
    %4377 = vmatprep.subr.mxu0 0.0
    %4378 = vmatpush1.msra.mxu0 0.0
    %4379 = vmatprep.subr.mxu0 0.0
    %4380 = vmatpush1.msra.mxu0 0.0
    %4381 = vmatprep.subr.mxu0 0.0
    %4382 = vmatpush1.msra.mxu0 0.0
    %4383 = vmatprep.subr.mxu0 0.0
    %4384 = vmatpush1.msra.mxu0 0.0
    %4385 = vmatprep.subr.mxu0 0.0
    %4386 = vmatpush1.msra.mxu0 0.0
    %4387 = vmatprep.subr.mxu0 0.0
    %4388 = vmatpush1.msra.mxu0 0.0
    %4389 = vmatprep.subr.mxu0 0.0
    %4390 = vmatpush1.msra.mxu0 0.0
    %4391 = vmatprep.subr.mxu0 0.0
    %4392 = vmatpush1.msra.mxu0 0.0
    %4393 = vmatprep.subr.mxu0 0.0
    %4394 = vmatpush1.msra.mxu0 0.0
    %4395 = vmatprep.subr.mxu0 0.0
    %4396 = vmatpush1.msra.mxu0 0.0
    %4397 = vmatprep.subr.mxu0 0.0
    %4398 = vmatpush1.msra.mxu0 0.0
    %4399 = vmatprep.subr.mxu0 0.0
    %4400 = vmatpush1.msra.mxu0 0.0
    %4401 = vmatprep.subr.mxu0 0.0
    %4402 = vmatpush1.msra.mxu0 0.0
    %4403 = vmatprep.subr.mxu0 0.0
    %4404 = vmatpush1.msra.mxu0 0.0
    %4405 = vmatprep.subr.mxu0 0.0
    %4406 = vmatpush1.msra.mxu0 0.0
    %4407 = vmatprep.subr.mxu0 0.0
    %4408 = vmatpush1.msra.mxu0 0.0
    %4409 = vmatprep.subr.mxu0 0.0
    %4410 = vmatpush1.msra.mxu0 0.0
    %4411 = vmatprep.subr.mxu0 0.0
    %4412 = vmatpush1.msra.mxu0 0.0
    %4413 = vmatprep.mubr.f32.mxu0 0.0
    %4414 = vmatmul.mubr.f32.gmra.mrb[0].mxu0 %v394
    %v4415 = vpop.f32.mrb[0].mxu0
    %v4416 = vadd.f32 0.0, %v4415
    %v4417 = vpop.f32.mrb[0].mxu0
    %4418 = vdwg.mxu0
    %v4419 = vmax.f32 %v4416, 1.0
    %4421 = vset.pattern.permute.xlu0 0
    %4422 = vperm.xlu0 %4421, %v4419
    %v4423 = vpop.permute.xlu0 %4422
    %v4425 = vrcp.pop %v4423
    %v4426 = vmul.f32 %v4346, %v4425
    %v4428 = vsel %vm120, %v4426, 0
    %4430 = vmatprep.subr.mxu0 0.0
    %4431 = vmatpush1.msra.mxu0 %v104
    %4432 = vmatprep.subr.mxu0 0.0
    %4433 = vmatpush1.msra.mxu0 %v105
    %4434 = vmatprep.subr.mxu0 0.0
    %4435 = vmatpush1.msra.mxu0 %v106
    %4436 = vmatprep.subr.mxu0 0.0
    %4437 = vmatpush1.msra.mxu0 %v107
    %4438 = vmatprep.subr.mxu0 0.0
    %4439 = vmatpush1.msra.mxu0 0.0
    %4440 = vmatprep.subr.mxu0 0.0
    %4441 = vmatpush1.msra.mxu0 0.0
    %4442 = vmatprep.subr.mxu0 0.0
    %4443 = vmatpush1.msra.mxu0 0.0
    %4444 = vmatprep.subr.mxu0 0.0
    %4445 = vmatpush1.msra.mxu0 0.0
    %4446 = vmatprep.subr.mxu0 0.0
    %4447 = vmatpush1.msra.mxu0 0.0
    %4448 = vmatprep.subr.mxu0 0.0
    %4449 = vmatpush1.msra.mxu0 0.0
    %4450 = vmatprep.subr.mxu0 0.0
    %4451 = vmatpush1.msra.mxu0 0.0
    %4452 = vmatprep.subr.mxu0 0.0
    %4453 = vmatpush1.msra.mxu0 0.0
    %4454 = vmatprep.subr.mxu0 0.0
    %4455 = vmatpush1.msra.mxu0 0.0
    %4456 = vmatprep.subr.mxu0 0.0
    %4457 = vmatpush1.msra.mxu0 0.0
    %4458 = vmatprep.subr.mxu0 0.0
    %4459 = vmatpush1.msra.mxu0 0.0
    %4460 = vmatprep.subr.mxu0 0.0
    %4461 = vmatpush1.msra.mxu0 0.0
    %4462 = vmatprep.subr.mxu0 0.0
    %4463 = vmatpush1.msra.mxu0 0.0
    %4464 = vmatprep.subr.mxu0 0.0
    %4465 = vmatpush1.msra.mxu0 0.0
    %4466 = vmatprep.subr.mxu0 0.0
    %4467 = vmatpush1.msra.mxu0 0.0
    %4468 = vmatprep.subr.mxu0 0.0
    %4469 = vmatpush1.msra.mxu0 0.0
    %4470 = vmatprep.subr.mxu0 0.0
    %4471 = vmatpush1.msra.mxu0 0.0
    %4472 = vmatprep.subr.mxu0 0.0
    %4473 = vmatpush1.msra.mxu0 0.0
    %4474 = vmatprep.subr.mxu0 0.0
    %4475 = vmatpush1.msra.mxu0 0.0
    %4476 = vmatprep.subr.mxu0 0.0
    %4477 = vmatpush1.msra.mxu0 0.0
    %4478 = vmatprep.subr.mxu0 0.0
    %4479 = vmatpush1.msra.mxu0 0.0
    %4480 = vmatprep.subr.mxu0 0.0
    %4481 = vmatpush1.msra.mxu0 0.0
    %4482 = vmatprep.subr.mxu0 0.0
    %4483 = vmatpush1.msra.mxu0 0.0
    %4484 = vmatprep.subr.mxu0 0.0
    %4485 = vmatpush1.msra.mxu0 0.0
    %4486 = vmatprep.subr.mxu0 0.0
    %4487 = vmatpush1.msra.mxu0 0.0
    %4488 = vmatprep.subr.mxu0 0.0
    %4489 = vmatpush1.msra.mxu0 0.0
    %4490 = vmatprep.subr.mxu0 0.0
    %4491 = vmatpush1.msra.mxu0 0.0
    %4492 = vmatprep.subr.mxu0 0.0
    %4493 = vmatpush1.msra.mxu0 0.0
    %4494 = vmatprep.mubr.f32.mxu0 0.0
    %4495 = vmatmul.mubr.f32.gmra.mrb[0].mxu0 %v4428
    %v4496 = vpop.f32.mrb[0].mxu0
    %v4497 = vadd.f32 0.0, %v4496
    %v4498 = vpop.f32.mrb[0].mxu0
    %4499 = vdwg.mxu0
    %v4501 = vsel %vm621, %v4497, 0
    %4503 = vmatprep.subr.mxu0 0.0
    %4504 = vmatpush1.msra.mxu0 %v4501
    %4505 = vmatprep.subr.mxu0 0.0
    %4506 = vmatpush1.msra.mxu0 0.0
    %4507 = vmatprep.subr.mxu0 0.0
    %4508 = vmatpush1.msra.mxu0 0.0
    %4509 = vmatprep.subr.mxu0 0.0
    %4510 = vmatpush1.msra.mxu0 0.0
    %4511 = vmatprep.subr.mxu0 0.0
    %4512 = vmatpush1.msra.mxu0 0.0
    %4513 = vmatprep.subr.mxu0 0.0
    %4514 = vmatpush1.msra.mxu0 0.0
    %4515 = vmatprep.subr.mxu0 0.0
    %4516 = vmatpush1.msra.mxu0 0.0
    %4517 = vmatprep.subr.mxu0 0.0
    %4518 = vmatpush1.msra.mxu0 0.0
    %4519 = vmatprep.subr.mxu0 0.0
    %4520 = vmatpush1.msra.mxu0 0.0
    %4521 = vmatprep.subr.mxu0 0.0
    %4522 = vmatpush1.msra.mxu0 0.0
    %4523 = vmatprep.subr.mxu0 0.0
    %4524 = vmatpush1.msra.mxu0 0.0
    %4525 = vmatprep.subr.mxu0 0.0
    %4526 = vmatpush1.msra.mxu0 0.0
    %4527 = vmatprep.subr.mxu0 0.0
    %4528 = vmatpush1.msra.mxu0 0.0
    %4529 = vmatprep.subr.mxu0 0.0
    %4530 = vmatpush1.msra.mxu0 0.0
    %4531 = vmatprep.subr.mxu0 0.0
    %4532 = vmatpush1.msra.mxu0 0.0
    %4533 = vmatprep.subr.mxu0 0.0
    %4534 = vmatpush1.msra.mxu0 0.0
    %4535 = vmatprep.subr.mxu0 0.0
    %4536 = vmatpush1.msra.mxu0 0.0
    %4537 = vmatprep.subr.mxu0 0.0
    %4538 = vmatpush1.msra.mxu0 0.0
    %4539 = vmatprep.subr.mxu0 0.0
    %4540 = vmatpush1.msra.mxu0 0.0
    %4541 = vmatprep.subr.mxu0 0.0
    %4542 = vmatpush1.msra.mxu0 0.0
    %4543 = vmatprep.subr.mxu0 0.0
    %4544 = vmatpush1.msra.mxu0 0.0
    %4545 = vmatprep.subr.mxu0 0.0
    %4546 = vmatpush1.msra.mxu0 0.0
    %4547 = vmatprep.subr.mxu0 0.0
    %4548 = vmatpush1.msra.mxu0 0.0
    %4549 = vmatprep.subr.mxu0 0.0
    %4550 = vmatpush1.msra.mxu0 0.0
    %4551 = vmatprep.subr.mxu0 0.0
    %4552 = vmatpush1.msra.mxu0 0.0
    %4553 = vmatprep.subr.mxu0 0.0
    %4554 = vmatpush1.msra.mxu0 0.0
    %4555 = vmatprep.subr.mxu0 0.0
    %4556 = vmatpush1.msra.mxu0 0.0
    %4557 = vmatprep.subr.mxu0 0.0
    %4558 = vmatpush1.msra.mxu0 0.0
    %4559 = vmatprep.subr.mxu0 0.0
    %4560 = vmatpush1.msra.mxu0 0.0
    %4561 = vmatprep.subr.mxu0 0.0
    %4562 = vmatpush1.msra.mxu0 0.0
    %4563 = vmatprep.subr.mxu0 0.0
    %4564 = vmatpush1.msra.mxu0 0.0
    %4565 = vmatprep.subr.mxu0 0.0
    %4566 = vmatpush1.msra.mxu0 0.0
    %4567 = vmatprep.mubr.f32.mxu0 0.0
    %4568 = vmatmul.mubr.f32.gmra.mrb[0].mxu0 %v619
    %v4569 = vpop.f32.mrb[0].mxu0
    %v4570 = vadd.f32 0.0, %v4569
    %v4571 = vpop.f32.mrb[0].mxu0
    %4572 = vdwg.mxu0
    %v4574 = vsel %vm120, %v4272, 0
    %4576 = vmatprep.subr.mxu0 0.0
    %4577 = vmatpush1.msra.mxu0 %v100
    %4578 = vmatprep.subr.mxu0 0.0
    %4579 = vmatpush1.msra.mxu0 %v101
    %4580 = vmatprep.subr.mxu0 0.0
    %4581 = vmatpush1.msra.mxu0 %v102
    %4582 = vmatprep.subr.mxu0 0.0
    %4583 = vmatpush1.msra.mxu0 %v103
    %4584 = vmatprep.subr.mxu0 0.0
    %4585 = vmatpush1.msra.mxu0 0.0
    %4586 = vmatprep.subr.mxu0 0.0
    %4587 = vmatpush1.msra.mxu0 0.0
    %4588 = vmatprep.subr.mxu0 0.0
    %4589 = vmatpush1.msra.mxu0 0.0
    %4590 = vmatprep.subr.mxu0 0.0
    %4591 = vmatpush1.msra.mxu0 0.0
    %4592 = vmatprep.subr.mxu0 0.0
    %4593 = vmatpush1.msra.mxu0 0.0
    %4594 = vmatprep.subr.mxu0 0.0
    %4595 = vmatpush1.msra.mxu0 0.0
    %4596 = vmatprep.subr.mxu0 0.0
    %4597 = vmatpush1.msra.mxu0 0.0
    %4598 = vmatprep.subr.mxu0 0.0
    %4599 = vmatpush1.msra.mxu0 0.0
    %4600 = vmatprep.subr.mxu0 0.0
    %4601 = vmatpush1.msra.mxu0 0.0
    %4602 = vmatprep.subr.mxu0 0.0
    %4603 = vmatpush1.msra.mxu0 0.0
    %4604 = vmatprep.subr.mxu0 0.0
    %4605 = vmatpush1.msra.mxu0 0.0
    %4606 = vmatprep.subr.mxu0 0.0
    %4607 = vmatpush1.msra.mxu0 0.0
    %4608 = vmatprep.subr.mxu0 0.0
    %4609 = vmatpush1.msra.mxu0 0.0
    %4610 = vmatprep.subr.mxu0 0.0
    %4611 = vmatpush1.msra.mxu0 0.0
    %4612 = vmatprep.subr.mxu0 0.0
    %4613 = vmatpush1.msra.mxu0 0.0
    %4614 = vmatprep.subr.mxu0 0.0
    %4615 = vmatpush1.msra.mxu0 0.0
    %4616 = vmatprep.subr.mxu0 0.0
    %4617 = vmatpush1.msra.mxu0 0.0
    %4618 = vmatprep.subr.mxu0 0.0
    %4619 = vmatpush1.msra.mxu0 0.0
    %4620 = vmatprep.subr.mxu0 0.0
    %4621 = vmatpush1.msra.mxu0 0.0
    %4622 = vmatprep.subr.mxu0 0.0
    %4623 = vmatpush1.msra.mxu0 0.0
    %4624 = vmatprep.subr.mxu0 0.0
    %4625 = vmatpush1.msra.mxu0 0.0
    %4626 = vmatprep.subr.mxu0 0.0
    %4627 = vmatpush1.msra.mxu0 0.0
    %4628 = vmatprep.subr.mxu0 0.0
    %4629 = vmatpush1.msra.mxu0 0.0
    %4630 = vmatprep.subr.mxu0 0.0
    %4631 = vmatpush1.msra.mxu0 0.0
    %4632 = vmatprep.subr.mxu0 0.0
    %4633 = vmatpush1.msra.mxu0 0.0
    %4634 = vmatprep.subr.mxu0 0.0
    %4635 = vmatpush1.msra.mxu0 0.0
    %4636 = vmatprep.subr.mxu0 0.0
    %4637 = vmatpush1.msra.mxu0 0.0
    %4638 = vmatprep.subr.mxu0 0.0
    %4639 = vmatpush1.msra.mxu0 0.0
    %4640 = vmatprep.mubr.f32.mxu0 0.0
    %4641 = vmatmul.mubr.f32.gmra.mrb[0].mxu0 %v4574
    %v4642 = vpop.f32.mrb[0].mxu0
    %v4643 = vadd.f32 %v4570, %v4642
    %v4644 = vpop.f32.mrb[0].mxu0
    %4645 = vdwg.mxu0
    %v4646 = vadd.f32 %v4643, %v772
    %v4647 = vmax.f32 %v4646, 0.0
    %v4648 = vmul.f32 %v4647, %v4276
    %v4649 = vmul.f32 %v4648, %v117
    %v4650 = vmul.f32 %v4648, %v198
    %v4652 = vsel %vm779, %v4650, 0
    %4654 = vmatprep.subr.mxu0 0.0
    %4655 = vmatpush1.msra.mxu0 %v81
    %4656 = vmatprep.subr.mxu0 0.0
    %4657 = vmatpush1.msra.mxu0 %v82
    %4658 = vmatprep.subr.mxu0 0.0
    %4659 = vmatpush1.msra.mxu0 0.0
    %4660 = vmatprep.subr.mxu0 0.0
    %4661 = vmatpush1.msra.mxu0 0.0
    %4662 = vmatprep.subr.mxu0 0.0
    %4663 = vmatpush1.msra.mxu0 0.0
    %4664 = vmatprep.subr.mxu0 0.0
    %4665 = vmatpush1.msra.mxu0 0.0
    %4666 = vmatprep.subr.mxu0 0.0
    %4667 = vmatpush1.msra.mxu0 0.0
    %4668 = vmatprep.subr.mxu0 0.0
    %4669 = vmatpush1.msra.mxu0 0.0
    %4670 = vmatprep.subr.mxu0 0.0
    %4671 = vmatpush1.msra.mxu0 0.0
    %4672 = vmatprep.subr.mxu0 0.0
    %4673 = vmatpush1.msra.mxu0 0.0
    %4674 = vmatprep.subr.mxu0 0.0
    %4675 = vmatpush1.msra.mxu0 0.0
    %4676 = vmatprep.subr.mxu0 0.0
    %4677 = vmatpush1.msra.mxu0 0.0
    %4678 = vmatprep.subr.mxu0 0.0
    %4679 = vmatpush1.msra.mxu0 0.0
    %4680 = vmatprep.subr.mxu0 0.0
    %4681 = vmatpush1.msra.mxu0 0.0
    %4682 = vmatprep.subr.mxu0 0.0
    %4683 = vmatpush1.msra.mxu0 0.0
    %4684 = vmatprep.subr.mxu0 0.0
    %4685 = vmatpush1.msra.mxu0 0.0
    %4686 = vmatprep.subr.mxu0 0.0
    %4687 = vmatpush1.msra.mxu0 0.0
    %4688 = vmatprep.subr.mxu0 0.0
    %4689 = vmatpush1.msra.mxu0 0.0
    %4690 = vmatprep.subr.mxu0 0.0
    %4691 = vmatpush1.msra.mxu0 0.0
    %4692 = vmatprep.subr.mxu0 0.0
    %4693 = vmatpush1.msra.mxu0 0.0
    %4694 = vmatprep.subr.mxu0 0.0
    %4695 = vmatpush1.msra.mxu0 0.0
    %4696 = vmatprep.subr.mxu0 0.0
    %4697 = vmatpush1.msra.mxu0 0.0
    %4698 = vmatprep.subr.mxu0 0.0
    %4699 = vmatpush1.msra.mxu0 0.0
    %4700 = vmatprep.subr.mxu0 0.0
    %4701 = vmatpush1.msra.mxu0 0.0
    %4702 = vmatprep.subr.mxu0 0.0
    %4703 = vmatpush1.msra.mxu0 0.0
    %4704 = vmatprep.subr.mxu0 0.0
    %4705 = vmatpush1.msra.mxu0 0.0
    %4706 = vmatprep.subr.mxu0 0.0
    %4707 = vmatpush1.msra.mxu0 0.0
    %4708 = vmatprep.subr.mxu0 0.0
    %4709 = vmatpush1.msra.mxu0 0.0
    %4710 = vmatprep.subr.mxu0 0.0
    %4711 = vmatpush1.msra.mxu0 0.0
    %4712 = vmatprep.subr.mxu0 0.0
    %4713 = vmatpush1.msra.mxu0 0.0
    %4714 = vmatprep.subr.mxu0 0.0
    %4715 = vmatpush1.msra.mxu0 0.0
    %4716 = vmatprep.subr.mxu0 0.0
    %4717 = vmatpush1.msra.mxu0 0.0
    %4718 = vmatprep.mubr.f32.mxu0 0.0
    %4719 = vmatmul.mubr.f32.gmra.mrb[0].mxu0 %v4652
    %v4720 = vpop.f32.mrb[0].mxu0
    %v4721 = vadd.f32 0.0, %v4720
    %v4722 = vpop.f32.mrb[0].mxu0
    %4723 = vdwg.mxu0
    %v4725 = vsel %vm779, %v4649, 0
    %4727 = vmatprep.subr.mxu0 0.0
    %4728 = vmatpush1.msra.mxu0 %v78
    %4729 = vmatprep.subr.mxu0 0.0
    %4730 = vmatpush1.msra.mxu0 %v79
    %4731 = vmatprep.subr.mxu0 0.0
    %4732 = vmatpush1.msra.mxu0 0.0
    %4733 = vmatprep.subr.mxu0 0.0
    %4734 = vmatpush1.msra.mxu0 0.0
    %4735 = vmatprep.subr.mxu0 0.0
    %4736 = vmatpush1.msra.mxu0 0.0
    %4737 = vmatprep.subr.mxu0 0.0
    %4738 = vmatpush1.msra.mxu0 0.0
    %4739 = vmatprep.subr.mxu0 0.0
    %4740 = vmatpush1.msra.mxu0 0.0
    %4741 = vmatprep.subr.mxu0 0.0
    %4742 = vmatpush1.msra.mxu0 0.0
    %4743 = vmatprep.subr.mxu0 0.0
    %4744 = vmatpush1.msra.mxu0 0.0
    %4745 = vmatprep.subr.mxu0 0.0
    %4746 = vmatpush1.msra.mxu0 0.0
    %4747 = vmatprep.subr.mxu0 0.0
    %4748 = vmatpush1.msra.mxu0 0.0
    %4749 = vmatprep.subr.mxu0 0.0
    %4750 = vmatpush1.msra.mxu0 0.0
    %4751 = vmatprep.subr.mxu0 0.0
    %4752 = vmatpush1.msra.mxu0 0.0
    %4753 = vmatprep.subr.mxu0 0.0
    %4754 = vmatpush1.msra.mxu0 0.0
    %4755 = vmatprep.subr.mxu0 0.0
    %4756 = vmatpush1.msra.mxu0 0.0
    %4757 = vmatprep.subr.mxu0 0.0
    %4758 = vmatpush1.msra.mxu0 0.0
    %4759 = vmatprep.subr.mxu0 0.0
    %4760 = vmatpush1.msra.mxu0 0.0
    %4761 = vmatprep.subr.mxu0 0.0
    %4762 = vmatpush1.msra.mxu0 0.0
    %4763 = vmatprep.subr.mxu0 0.0
    %4764 = vmatpush1.msra.mxu0 0.0
    %4765 = vmatprep.subr.mxu0 0.0
    %4766 = vmatpush1.msra.mxu0 0.0
    %4767 = vmatprep.subr.mxu0 0.0
    %4768 = vmatpush1.msra.mxu0 0.0
    %4769 = vmatprep.subr.mxu0 0.0
    %4770 = vmatpush1.msra.mxu0 0.0
    %4771 = vmatprep.subr.mxu0 0.0
    %4772 = vmatpush1.msra.mxu0 0.0
    %4773 = vmatprep.subr.mxu0 0.0
    %4774 = vmatpush1.msra.mxu0 0.0
    %4775 = vmatprep.subr.mxu0 0.0
    %4776 = vmatpush1.msra.mxu0 0.0
    %4777 = vmatprep.subr.mxu0 0.0
    %4778 = vmatpush1.msra.mxu0 0.0
    %4779 = vmatprep.subr.mxu0 0.0
    %4780 = vmatpush1.msra.mxu0 0.0
    %4781 = vmatprep.subr.mxu0 0.0
    %4782 = vmatpush1.msra.mxu0 0.0
    %4783 = vmatprep.subr.mxu0 0.0
    %4784 = vmatpush1.msra.mxu0 0.0
    %4785 = vmatprep.subr.mxu0 0.0
    %4786 = vmatpush1.msra.mxu0 0.0
    %4787 = vmatprep.subr.mxu0 0.0
    %4788 = vmatpush1.msra.mxu0 0.0
    %4789 = vmatprep.subr.mxu0 0.0
    %4790 = vmatpush1.msra.mxu0 0.0
    %4791 = vmatprep.mubr.f32.mxu0 0.0
    %4792 = vmatmul.mubr.f32.gmra.mrb[0].mxu0 %v4725
    %v4793 = vpop.f32.mrb[0].mxu0
    %v4794 = vadd.f32 %v4721, %v4793
    %v4795 = vpop.f32.mrb[0].mxu0
    %4796 = vdwg.mxu0
    %v4797 = vadd.f32 %v4794, %v92
    %v4798 = vmul.f32 %v4007, %v117
    %4800 = vrot.lane.b32.xlu0 %v4798, 64
    %v4801 = vpop.permute.xlu0 %4800
    %v4802 = vsel %vm120, %v4801, 0
    %4804 = vmatprep.subr.mxu0 0.0
    %4805 = vmatpush1.msra.mxu0 %v83
    %4806 = vmatprep.subr.mxu0 0.0
    %4807 = vmatpush1.msra.mxu0 %v84
    %4808 = vmatprep.subr.mxu0 0.0
    %4809 = vmatpush1.msra.mxu0 %v85
    %4810 = vmatprep.subr.mxu0 0.0
    %4811 = vmatpush1.msra.mxu0 %v86
    %4812 = vmatprep.subr.mxu0 0.0
    %4813 = vmatpush1.msra.mxu0 0.0
    %4814 = vmatprep.subr.mxu0 0.0
    %4815 = vmatpush1.msra.mxu0 0.0
    %4816 = vmatprep.subr.mxu0 0.0
    %4817 = vmatpush1.msra.mxu0 0.0
    %4818 = vmatprep.subr.mxu0 0.0
    %4819 = vmatpush1.msra.mxu0 0.0
    %4820 = vmatprep.subr.mxu0 0.0
    %4821 = vmatpush1.msra.mxu0 0.0
    %4822 = vmatprep.subr.mxu0 0.0
    %4823 = vmatpush1.msra.mxu0 0.0
    %4824 = vmatprep.subr.mxu0 0.0
    %4825 = vmatpush1.msra.mxu0 0.0
    %4826 = vmatprep.subr.mxu0 0.0
    %4827 = vmatpush1.msra.mxu0 0.0
    %4828 = vmatprep.subr.mxu0 0.0
    %4829 = vmatpush1.msra.mxu0 0.0
    %4830 = vmatprep.subr.mxu0 0.0
    %4831 = vmatpush1.msra.mxu0 0.0
    %4832 = vmatprep.subr.mxu0 0.0
    %4833 = vmatpush1.msra.mxu0 0.0
    %4834 = vmatprep.subr.mxu0 0.0
    %4835 = vmatpush1.msra.mxu0 0.0
    %4836 = vmatprep.subr.mxu0 0.0
    %4837 = vmatpush1.msra.mxu0 0.0
    %4838 = vmatprep.subr.mxu0 0.0
    %4839 = vmatpush1.msra.mxu0 0.0
    %4840 = vmatprep.subr.mxu0 0.0
    %4841 = vmatpush1.msra.mxu0 0.0
    %4842 = vmatprep.subr.mxu0 0.0
    %4843 = vmatpush1.msra.mxu0 0.0
    %4844 = vmatprep.subr.mxu0 0.0
    %4845 = vmatpush1.msra.mxu0 0.0
    %4846 = vmatprep.subr.mxu0 0.0
    %4847 = vmatpush1.msra.mxu0 0.0
    %4848 = vmatprep.subr.mxu0 0.0
    %4849 = vmatpush1.msra.mxu0 0.0
    %4850 = vmatprep.subr.mxu0 0.0
    %4851 = vmatpush1.msra.mxu0 0.0
    %4852 = vmatprep.subr.mxu0 0.0
    %4853 = vmatpush1.msra.mxu0 0.0
    %4854 = vmatprep.subr.mxu0 0.0
    %4855 = vmatpush1.msra.mxu0 0.0
    %4856 = vmatprep.subr.mxu0 0.0
    %4857 = vmatpush1.msra.mxu0 0.0
    %4858 = vmatprep.subr.mxu0 0.0
    %4859 = vmatpush1.msra.mxu0 0.0
    %4860 = vmatprep.subr.mxu0 0.0
    %4861 = vmatpush1.msra.mxu0 0.0
    %4862 = vmatprep.subr.mxu0 0.0
    %4863 = vmatpush1.msra.mxu0 0.0
    %4864 = vmatprep.subr.mxu0 0.0
    %4865 = vmatpush1.msra.mxu0 0.0
    %4866 = vmatprep.subr.mxu0 0.0
    %4867 = vmatpush1.msra.mxu0 0.0
    %4868 = vmatprep.mubr.f32.mxu0 0.0
    %4869 = vmatmul.mubr.f32.gmra.mrb[0].mxu0 %v4802
    %v4870 = vpop.f32.mrb[0].mxu0
    %v4871 = vadd.f32 0.0, %v4870
    %v4872 = vpop.f32.mrb[0].mxu0
    %4873 = vdwg.mxu0
    %v4874 = vadd.f32 %v4797, %v4871
    %v4875 = vmul.f32 %v4007, %v198
    %4877 = vrot.lane.b32.xlu0 %v4875, 64
    %v4878 = vpop.permute.xlu0 %4877
    %v4879 = vsel %vm120, %v4878, 0
    %4881 = vmatprep.subr.mxu0 0.0
    %4882 = vmatpush1.msra.mxu0 %v88
    %4883 = vmatprep.subr.mxu0 0.0
    %4884 = vmatpush1.msra.mxu0 %v89
    %4885 = vmatprep.subr.mxu0 0.0
    %4886 = vmatpush1.msra.mxu0 %v90
    %4887 = vmatprep.subr.mxu0 0.0
    %4888 = vmatpush1.msra.mxu0 %v91
    %4889 = vmatprep.subr.mxu0 0.0
    %4890 = vmatpush1.msra.mxu0 0.0
    %4891 = vmatprep.subr.mxu0 0.0
    %4892 = vmatpush1.msra.mxu0 0.0
    %4893 = vmatprep.subr.mxu0 0.0
    %4894 = vmatpush1.msra.mxu0 0.0
    %4895 = vmatprep.subr.mxu0 0.0
    %4896 = vmatpush1.msra.mxu0 0.0
    %4897 = vmatprep.subr.mxu0 0.0
    %4898 = vmatpush1.msra.mxu0 0.0
    %4899 = vmatprep.subr.mxu0 0.0
    %4900 = vmatpush1.msra.mxu0 0.0
    %4901 = vmatprep.subr.mxu0 0.0
    %4902 = vmatpush1.msra.mxu0 0.0
    %4903 = vmatprep.subr.mxu0 0.0
    %4904 = vmatpush1.msra.mxu0 0.0
    %4905 = vmatprep.subr.mxu0 0.0
    %4906 = vmatpush1.msra.mxu0 0.0
    %4907 = vmatprep.subr.mxu0 0.0
    %4908 = vmatpush1.msra.mxu0 0.0
    %4909 = vmatprep.subr.mxu0 0.0
    %4910 = vmatpush1.msra.mxu0 0.0
    %4911 = vmatprep.subr.mxu0 0.0
    %4912 = vmatpush1.msra.mxu0 0.0
    %4913 = vmatprep.subr.mxu0 0.0
    %4914 = vmatpush1.msra.mxu0 0.0
    %4915 = vmatprep.subr.mxu0 0.0
    %4916 = vmatpush1.msra.mxu0 0.0
    %4917 = vmatprep.subr.mxu0 0.0
    %4918 = vmatpush1.msra.mxu0 0.0
    %4919 = vmatprep.subr.mxu0 0.0
    %4920 = vmatpush1.msra.mxu0 0.0
    %4921 = vmatprep.subr.mxu0 0.0
    %4922 = vmatpush1.msra.mxu0 0.0
    %4923 = vmatprep.subr.mxu0 0.0
    %4924 = vmatpush1.msra.mxu0 0.0
    %4925 = vmatprep.subr.mxu0 0.0
    %4926 = vmatpush1.msra.mxu0 0.0
    %4927 = vmatprep.subr.mxu0 0.0
    %4928 = vmatpush1.msra.mxu0 0.0
    %4929 = vmatprep.subr.mxu0 0.0
    %4930 = vmatpush1.msra.mxu0 0.0
    %4931 = vmatprep.subr.mxu0 0.0
    %4932 = vmatpush1.msra.mxu0 0.0
    %4933 = vmatprep.subr.mxu0 0.0
    %4934 = vmatpush1.msra.mxu0 0.0
    %4935 = vmatprep.subr.mxu0 0.0
    %4936 = vmatpush1.msra.mxu0 0.0
    %4937 = vmatprep.subr.mxu0 0.0
    %4938 = vmatpush1.msra.mxu0 0.0
    %4939 = vmatprep.subr.mxu0 0.0
    %4940 = vmatpush1.msra.mxu0 0.0
    %4941 = vmatprep.subr.mxu0 0.0
    %4942 = vmatpush1.msra.mxu0 0.0
    %4943 = vmatprep.subr.mxu0 0.0
    %4944 = vmatpush1.msra.mxu0 0.0
    %4945 = vmatprep.mubr.f32.mxu0 0.0
    %4946 = vmatmul.mubr.f32.gmra.mrb[0].mxu0 %v4879
    %v4947 = vpop.f32.mrb[0].mxu0
    %v4948 = vadd.f32 0.0, %v4947
    %v4949 = vpop.f32.mrb[0].mxu0
    %4950 = vdwg.mxu0
    %v4951 = vadd.f32 %v4874, %v4948
    %v4952 = vxor.u32 %v4951, 2147483648
    %v4953 = vmul.f32 %v4952, 1.442695
    %v4954 = vpow.pop %v4953
    %v4955 = vadd.f32 %v4954, 1.0
    %v4956 = vrcp.pop %v4955
    %v4957 = vmul.f32 1.0, %v4956
    %v4958 = vtanh.pop %v4951
    %v4959 = vmul.f32 %v4957, %v4001
    %4961 = vrot.lane.b32.xlu0 %v4958, 32
    %v4962 = vpop.permute.xlu0 %4961
    %v4964 = vmul.f32 %v4957, %v4962
    %4966 = vrot.lane.b32.xlu0 %v4964, 32
    %v4967 = vpop.permute.xlu0 %4966
    %v4969 = vadd.f32 %v4959, %v4967
    %v4970 = vtanh.pop %v4969
    %4972 = vrot.lane.b32.xlu0 %v4970, 32
    %v4973 = vpop.permute.xlu0 %4972
    %v4975 = vmul.f32 %v4957, %v4973
    %v4976 = vmul.f32 %v4975, %v4276
    %4978 = vrot.lane.b32.xlu0 %v4976, 64
    %v4979 = vpop.permute.xlu0 %4978
    %s4981 = scalar_lea.vmem %s18, 32
    %4982 = vst.msk [vmem:[%s4981] sm:$0xff] %vm120, %v4979
    %s4983 = scalar_lea.vmem %s0, 40
    %v4984 = vld [vmem:[%s4983] sm:$0xff]
    %v4985 = vmul.f32 %v4194, %v117
    %4987 = vrot.lane.b32.xlu0 %v4985, 64
    %v4988 = vpop.permute.xlu0 %4987
    %v4989 = vsel %vm120, %v4988, 0
    %4991 = vmatprep.subr.mxu0 0.0
    %4992 = vmatpush1.msra.mxu0 %v69
    %4993 = vmatprep.subr.mxu0 0.0
    %4994 = vmatpush1.msra.mxu0 %v70
    %4995 = vmatprep.subr.mxu0 0.0
    %4996 = vmatpush1.msra.mxu0 %v71
    %4997 = vmatprep.subr.mxu0 0.0
    %4998 = vmatpush1.msra.mxu0 %v72
    %4999 = vmatprep.subr.mxu0 0.0
    %5000 = vmatpush1.msra.mxu0 0.0
    %5001 = vmatprep.subr.mxu0 0.0
    %5002 = vmatpush1.msra.mxu0 0.0
    %5003 = vmatprep.subr.mxu0 0.0
    %5004 = vmatpush1.msra.mxu0 0.0
    %5005 = vmatprep.subr.mxu0 0.0
    %5006 = vmatpush1.msra.mxu0 0.0
    %5007 = vmatprep.subr.mxu0 0.0
    %5008 = vmatpush1.msra.mxu0 0.0
    %5009 = vmatprep.subr.mxu0 0.0
    %5010 = vmatpush1.msra.mxu0 0.0
    %5011 = vmatprep.subr.mxu0 0.0
    %5012 = vmatpush1.msra.mxu0 0.0
    %5013 = vmatprep.subr.mxu0 0.0
    %5014 = vmatpush1.msra.mxu0 0.0
    %5015 = vmatprep.subr.mxu0 0.0
    %5016 = vmatpush1.msra.mxu0 0.0
    %5017 = vmatprep.subr.mxu0 0.0
    %5018 = vmatpush1.msra.mxu0 0.0
    %5019 = vmatprep.subr.mxu0 0.0
    %5020 = vmatpush1.msra.mxu0 0.0
    %5021 = vmatprep.subr.mxu0 0.0
    %5022 = vmatpush1.msra.mxu0 0.0
    %5023 = vmatprep.subr.mxu0 0.0
    %5024 = vmatpush1.msra.mxu0 0.0
    %5025 = vmatprep.subr.mxu0 0.0
    %5026 = vmatpush1.msra.mxu0 0.0
    %5027 = vmatprep.subr.mxu0 0.0
    %5028 = vmatpush1.msra.mxu0 0.0
    %5029 = vmatprep.subr.mxu0 0.0
    %5030 = vmatpush1.msra.mxu0 0.0
    %5031 = vmatprep.subr.mxu0 0.0
    %5032 = vmatpush1.msra.mxu0 0.0
    %5033 = vmatprep.subr.mxu0 0.0
    %5034 = vmatpush1.msra.mxu0 0.0
    %5035 = vmatprep.subr.mxu0 0.0
    %5036 = vmatpush1.msra.mxu0 0.0
    %5037 = vmatprep.subr.mxu0 0.0
    %5038 = vmatpush1.msra.mxu0 0.0
    %5039 = vmatprep.subr.mxu0 0.0
    %5040 = vmatpush1.msra.mxu0 0.0
    %5041 = vmatprep.subr.mxu0 0.0
    %5042 = vmatpush1.msra.mxu0 0.0
    %5043 = vmatprep.subr.mxu0 0.0
    %5044 = vmatpush1.msra.mxu0 0.0
    %5045 = vmatprep.subr.mxu0 0.0
    %5046 = vmatpush1.msra.mxu0 0.0
    %5047 = vmatprep.subr.mxu0 0.0
    %5048 = vmatpush1.msra.mxu0 0.0
    %5049 = vmatprep.subr.mxu0 0.0
    %5050 = vmatpush1.msra.mxu0 0.0
    %5051 = vmatprep.subr.mxu0 0.0
    %5052 = vmatpush1.msra.mxu0 0.0
    %5053 = vmatprep.subr.mxu0 0.0
    %5054 = vmatpush1.msra.mxu0 0.0
    %5055 = vmatprep.mubr.f32.mxu0 0.0
    %5056 = vmatmul.mubr.f32.gmra.mrb[0].mxu0 %v4989
    %v5057 = vpop.f32.mrb[0].mxu0
    %v5058 = vadd.f32 0.0, %v5057
    %v5059 = vpop.f32.mrb[0].mxu0
    %5060 = vdwg.mxu0
    %v5061 = vadd.f32 %v4984, %v5058
    %v5062 = vmul.f32 %v4194, %v198
    %5064 = vrot.lane.b32.xlu0 %v5062, 64
    %v5065 = vpop.permute.xlu0 %5064
    %v5066 = vsel %vm120, %v5065, 0
    %5068 = vmatprep.subr.mxu0 0.0
    %5069 = vmatpush1.msra.mxu0 %v74
    %5070 = vmatprep.subr.mxu0 0.0
    %5071 = vmatpush1.msra.mxu0 %v75
    %5072 = vmatprep.subr.mxu0 0.0
    %5073 = vmatpush1.msra.mxu0 %v76
    %5074 = vmatprep.subr.mxu0 0.0
    %5075 = vmatpush1.msra.mxu0 %v77
    %5076 = vmatprep.subr.mxu0 0.0
    %5077 = vmatpush1.msra.mxu0 0.0
    %5078 = vmatprep.subr.mxu0 0.0
    %5079 = vmatpush1.msra.mxu0 0.0
    %5080 = vmatprep.subr.mxu0 0.0
    %5081 = vmatpush1.msra.mxu0 0.0
    %5082 = vmatprep.subr.mxu0 0.0
    %5083 = vmatpush1.msra.mxu0 0.0
    %5084 = vmatprep.subr.mxu0 0.0
    %5085 = vmatpush1.msra.mxu0 0.0
    %5086 = vmatprep.subr.mxu0 0.0
    %5087 = vmatpush1.msra.mxu0 0.0
    %5088 = vmatprep.subr.mxu0 0.0
    %5089 = vmatpush1.msra.mxu0 0.0
    %5090 = vmatprep.subr.mxu0 0.0
    %5091 = vmatpush1.msra.mxu0 0.0
    %5092 = vmatprep.subr.mxu0 0.0
    %5093 = vmatpush1.msra.mxu0 0.0
    %5094 = vmatprep.subr.mxu0 0.0
    %5095 = vmatpush1.msra.mxu0 0.0
    %5096 = vmatprep.subr.mxu0 0.0
    %5097 = vmatpush1.msra.mxu0 0.0
    %5098 = vmatprep.subr.mxu0 0.0
    %5099 = vmatpush1.msra.mxu0 0.0
    %5100 = vmatprep.subr.mxu0 0.0
    %5101 = vmatpush1.msra.mxu0 0.0
    %5102 = vmatprep.subr.mxu0 0.0
    %5103 = vmatpush1.msra.mxu0 0.0
    %5104 = vmatprep.subr.mxu0 0.0
    %5105 = vmatpush1.msra.mxu0 0.0
    %5106 = vmatprep.subr.mxu0 0.0
    %5107 = vmatpush1.msra.mxu0 0.0
    %5108 = vmatprep.subr.mxu0 0.0
    %5109 = vmatpush1.msra.mxu0 0.0
    %5110 = vmatprep.subr.mxu0 0.0
    %5111 = vmatpush1.msra.mxu0 0.0
    %5112 = vmatprep.subr.mxu0 0.0
    %5113 = vmatpush1.msra.mxu0 0.0
    %5114 = vmatprep.subr.mxu0 0.0
    %5115 = vmatpush1.msra.mxu0 0.0
    %5116 = vmatprep.subr.mxu0 0.0
    %5117 = vmatpush1.msra.mxu0 0.0
    %5118 = vmatprep.subr.mxu0 0.0
    %5119 = vmatpush1.msra.mxu0 0.0
    %5120 = vmatprep.subr.mxu0 0.0
    %5121 = vmatpush1.msra.mxu0 0.0
    %5122 = vmatprep.subr.mxu0 0.0
    %5123 = vmatpush1.msra.mxu0 0.0
    %5124 = vmatprep.subr.mxu0 0.0
    %5125 = vmatpush1.msra.mxu0 0.0
    %5126 = vmatprep.subr.mxu0 0.0
    %5127 = vmatpush1.msra.mxu0 0.0
    %5128 = vmatprep.subr.mxu0 0.0
    %5129 = vmatpush1.msra.mxu0 0.0
    %5130 = vmatprep.subr.mxu0 0.0
    %5131 = vmatpush1.msra.mxu0 0.0
    %5132 = vmatprep.mubr.f32.mxu0 0.0
    %5133 = vmatmul.mubr.f32.gmra.mrb[0].mxu0 %v5066
    %v5134 = vpop.f32.mrb[0].mxu0
    %v5135 = vadd.f32 0.0, %v5134
    %v5136 = vpop.f32.mrb[0].mxu0
    %5137 = vdwg.mxu0
    %v5138 = vadd.f32 %v5061, %v5135
    %v5139 = vxor.u32 %v5138, 2147483648
    %v5140 = vmul.f32 %v5139, 1.442695
    %v5141 = vpow.pop %v5140
    %v5142 = vadd.f32 %v5141, 1.0
    %v5143 = vrcp.pop %v5142
    %v5144 = vmul.f32 1.0, %v5143
    %v5145 = vtanh.pop %v5138
    %v5146 = vmul.f32 %v5144, %v4188
    %5148 = vrot.lane.b32.xlu0 %v5145, 32
    %v5149 = vpop.permute.xlu0 %5148
    %v5151 = vmul.f32 %v5144, %v5149
    %5153 = vrot.lane.b32.xlu0 %v5151, 32
    %v5154 = vpop.permute.xlu0 %5153
    %v5156 = vadd.f32 %v5146, %v5154
    %v5157 = vtanh.pop %v5156
    %5159 = vrot.lane.b32.xlu0 %v5157, 32
    %v5160 = vpop.permute.xlu0 %5159
    %v5162 = vmul.f32 %v5144, %v5160
    %s5163 = scalar_lea.vmem %s1, 40
    %v5164 = vld [vmem:[%s5163] sm:$0xff]
    %5166 = vrot.lane.b32.xlu0 %v5162, 64
    %v5167 = vpop.permute.xlu0 %5166
    %v5168 = vsel %vm120, %v5167, 0
    %5170 = vmatprep.subr.mxu0 0.0
    %5171 = vmatpush1.msra.mxu0 %v95
    %5172 = vmatprep.subr.mxu0 0.0
    %5173 = vmatpush1.msra.mxu0 %v96
    %5174 = vmatprep.subr.mxu0 0.0
    %5175 = vmatpush1.msra.mxu0 %v97
    %5176 = vmatprep.subr.mxu0 0.0
    %5177 = vmatpush1.msra.mxu0 %v98
    %5178 = vmatprep.subr.mxu0 0.0
    %5179 = vmatpush1.msra.mxu0 0.0
    %5180 = vmatprep.subr.mxu0 0.0
    %5181 = vmatpush1.msra.mxu0 0.0
    %5182 = vmatprep.subr.mxu0 0.0
    %5183 = vmatpush1.msra.mxu0 0.0
    %5184 = vmatprep.subr.mxu0 0.0
    %5185 = vmatpush1.msra.mxu0 0.0
    %5186 = vmatprep.subr.mxu0 0.0
    %5187 = vmatpush1.msra.mxu0 0.0
    %5188 = vmatprep.subr.mxu0 0.0
    %5189 = vmatpush1.msra.mxu0 0.0
    %5190 = vmatprep.subr.mxu0 0.0
    %5191 = vmatpush1.msra.mxu0 0.0
    %5192 = vmatprep.subr.mxu0 0.0
    %5193 = vmatpush1.msra.mxu0 0.0
    %5194 = vmatprep.subr.mxu0 0.0
    %5195 = vmatpush1.msra.mxu0 0.0
    %5196 = vmatprep.subr.mxu0 0.0
    %5197 = vmatpush1.msra.mxu0 0.0
    %5198 = vmatprep.subr.mxu0 0.0
    %5199 = vmatpush1.msra.mxu0 0.0
    %5200 = vmatprep.subr.mxu0 0.0
    %5201 = vmatpush1.msra.mxu0 0.0
    %5202 = vmatprep.subr.mxu0 0.0
    %5203 = vmatpush1.msra.mxu0 0.0
    %5204 = vmatprep.subr.mxu0 0.0
    %5205 = vmatpush1.msra.mxu0 0.0
    %5206 = vmatprep.subr.mxu0 0.0
    %5207 = vmatpush1.msra.mxu0 0.0
    %5208 = vmatprep.subr.mxu0 0.0
    %5209 = vmatpush1.msra.mxu0 0.0
    %5210 = vmatprep.subr.mxu0 0.0
    %5211 = vmatpush1.msra.mxu0 0.0
    %5212 = vmatprep.subr.mxu0 0.0
    %5213 = vmatpush1.msra.mxu0 0.0
    %5214 = vmatprep.subr.mxu0 0.0
    %5215 = vmatpush1.msra.mxu0 0.0
    %5216 = vmatprep.subr.mxu0 0.0
    %5217 = vmatpush1.msra.mxu0 0.0
    %5218 = vmatprep.subr.mxu0 0.0
    %5219 = vmatpush1.msra.mxu0 0.0
    %5220 = vmatprep.subr.mxu0 0.0
    %5221 = vmatpush1.msra.mxu0 0.0
    %5222 = vmatprep.subr.mxu0 0.0
    %5223 = vmatpush1.msra.mxu0 0.0
    %5224 = vmatprep.subr.mxu0 0.0
    %5225 = vmatpush1.msra.mxu0 0.0
    %5226 = vmatprep.subr.mxu0 0.0
    %5227 = vmatpush1.msra.mxu0 0.0
    %5228 = vmatprep.subr.mxu0 0.0
    %5229 = vmatpush1.msra.mxu0 0.0
    %5230 = vmatprep.subr.mxu0 0.0
    %5231 = vmatpush1.msra.mxu0 0.0
    %5232 = vmatprep.subr.mxu0 0.0
    %5233 = vmatpush1.msra.mxu0 0.0
    %5234 = vmatprep.mubr.f32.mxu0 0.0
    %5235 = vmatmul.mubr.f32.gmra.mrb[0].mxu0 %v5168
    %v5236 = vpop.f32.mrb[0].mxu0
    %v5237 = vadd.f32 %v308, %v5236
    %v5238 = vpop.f32.mrb[0].mxu0
    %5239 = vdwg.mxu0
    %v5240 = vmax.f32 %v5237, 0.0
    %5242 = vset.pattern.permute.xlu0 0
    %5243 = vperm.xlu0 %5242, %v5164
    %v5244 = vpop.permute.xlu0 %5243
    %v5246 = vmul.f32 %v5240, %v5244
    %5247 = vmatprep.subr.mxu0 0.0
    %5248 = vmatpush1.msra.mxu0 %v5246
    %5249 = vmatprep.subr.mxu0 0.0
    %5250 = vmatpush1.msra.mxu0 0.0
    %5251 = vmatprep.subr.mxu0 0.0
    %5252 = vmatpush1.msra.mxu0 0.0
    %5253 = vmatprep.subr.mxu0 0.0
    %5254 = vmatpush1.msra.mxu0 0.0
    %5255 = vmatprep.subr.mxu0 0.0
    %5256 = vmatpush1.msra.mxu0 0.0
    %5257 = vmatprep.subr.mxu0 0.0
    %5258 = vmatpush1.msra.mxu0 0.0
    %5259 = vmatprep.subr.mxu0 0.0
    %5260 = vmatpush1.msra.mxu0 0.0
    %5261 = vmatprep.subr.mxu0 0.0
    %5262 = vmatpush1.msra.mxu0 0.0
    %5263 = vmatprep.subr.mxu0 0.0
    %5264 = vmatpush1.msra.mxu0 0.0
    %5265 = vmatprep.subr.mxu0 0.0
    %5266 = vmatpush1.msra.mxu0 0.0
    %5267 = vmatprep.subr.mxu0 0.0
    %5268 = vmatpush1.msra.mxu0 0.0
    %5269 = vmatprep.subr.mxu0 0.0
    %5270 = vmatpush1.msra.mxu0 0.0
    %5271 = vmatprep.subr.mxu0 0.0
    %5272 = vmatpush1.msra.mxu0 0.0
    %5273 = vmatprep.subr.mxu0 0.0
    %5274 = vmatpush1.msra.mxu0 0.0
    %5275 = vmatprep.subr.mxu0 0.0
    %5276 = vmatpush1.msra.mxu0 0.0
    %5277 = vmatprep.subr.mxu0 0.0
    %5278 = vmatpush1.msra.mxu0 0.0
    %5279 = vmatprep.subr.mxu0 0.0
    %5280 = vmatpush1.msra.mxu0 0.0
    %5281 = vmatprep.subr.mxu0 0.0
    %5282 = vmatpush1.msra.mxu0 0.0
    %5283 = vmatprep.subr.mxu0 0.0
    %5284 = vmatpush1.msra.mxu0 0.0
    %5285 = vmatprep.subr.mxu0 0.0
    %5286 = vmatpush1.msra.mxu0 0.0
    %5287 = vmatprep.subr.mxu0 0.0
    %5288 = vmatpush1.msra.mxu0 0.0
    %5289 = vmatprep.subr.mxu0 0.0
    %5290 = vmatpush1.msra.mxu0 0.0
    %5291 = vmatprep.subr.mxu0 0.0
    %5292 = vmatpush1.msra.mxu0 0.0
    %5293 = vmatprep.subr.mxu0 0.0
    %5294 = vmatpush1.msra.mxu0 0.0
    %5295 = vmatprep.subr.mxu0 0.0
    %5296 = vmatpush1.msra.mxu0 0.0
    %5297 = vmatprep.subr.mxu0 0.0
    %5298 = vmatpush1.msra.mxu0 0.0
    %5299 = vmatprep.subr.mxu0 0.0
    %5300 = vmatpush1.msra.mxu0 0.0
    %5301 = vmatprep.subr.mxu0 0.0
    %5302 = vmatpush1.msra.mxu0 0.0
    %5303 = vmatprep.subr.mxu0 0.0
    %5304 = vmatpush1.msra.mxu0 0.0
    %5305 = vmatprep.subr.mxu0 0.0
    %5306 = vmatpush1.msra.mxu0 0.0
    %5307 = vmatprep.subr.mxu0 0.0
    %5308 = vmatpush1.msra.mxu0 0.0
    %5309 = vmatprep.subr.mxu0 0.0
    %5310 = vmatpush1.msra.mxu0 0.0
    %5311 = vmatprep.mubr.f32.mxu0 0.0
    %5312 = vmatmul.mubr.f32.gmra.mrb[0].mxu0 %v394
    %v5313 = vpop.f32.mrb[0].mxu0
    %v5314 = vadd.f32 0.0, %v5313
    %v5315 = vpop.f32.mrb[0].mxu0
    %5316 = vdwg.mxu0
    %5317 = vmatprep.subr.mxu0 0.0
    %5318 = vmatpush1.msra.mxu0 %v5164
    %5319 = vmatprep.subr.mxu0 0.0
    %5320 = vmatpush1.msra.mxu0 0.0
    %5321 = vmatprep.subr.mxu0 0.0
    %5322 = vmatpush1.msra.mxu0 0.0
    %5323 = vmatprep.subr.mxu0 0.0
    %5324 = vmatpush1.msra.mxu0 0.0
    %5325 = vmatprep.subr.mxu0 0.0
    %5326 = vmatpush1.msra.mxu0 0.0
    %5327 = vmatprep.subr.mxu0 0.0
    %5328 = vmatpush1.msra.mxu0 0.0
    %5329 = vmatprep.subr.mxu0 0.0
    %5330 = vmatpush1.msra.mxu0 0.0
    %5331 = vmatprep.subr.mxu0 0.0
    %5332 = vmatpush1.msra.mxu0 0.0
    %5333 = vmatprep.subr.mxu0 0.0
    %5334 = vmatpush1.msra.mxu0 0.0
    %5335 = vmatprep.subr.mxu0 0.0
    %5336 = vmatpush1.msra.mxu0 0.0
    %5337 = vmatprep.subr.mxu0 0.0
    %5338 = vmatpush1.msra.mxu0 0.0
    %5339 = vmatprep.subr.mxu0 0.0
    %5340 = vmatpush1.msra.mxu0 0.0
    %5341 = vmatprep.subr.mxu0 0.0
    %5342 = vmatpush1.msra.mxu0 0.0
    %5343 = vmatprep.subr.mxu0 0.0
    %5344 = vmatpush1.msra.mxu0 0.0
    %5345 = vmatprep.subr.mxu0 0.0
    %5346 = vmatpush1.msra.mxu0 0.0
    %5347 = vmatprep.subr.mxu0 0.0
    %5348 = vmatpush1.msra.mxu0 0.0
    %5349 = vmatprep.subr.mxu0 0.0
    %5350 = vmatpush1.msra.mxu0 0.0
    %5351 = vmatprep.subr.mxu0 0.0
    %5352 = vmatpush1.msra.mxu0 0.0
    %5353 = vmatprep.subr.mxu0 0.0
    %5354 = vmatpush1.msra.mxu0 0.0
    %5355 = vmatprep.subr.mxu0 0.0
    %5356 = vmatpush1.msra.mxu0 0.0
    %5357 = vmatprep.subr.mxu0 0.0
    %5358 = vmatpush1.msra.mxu0 0.0
    %5359 = vmatprep.subr.mxu0 0.0
    %5360 = vmatpush1.msra.mxu0 0.0
    %5361 = vmatprep.subr.mxu0 0.0
    %5362 = vmatpush1.msra.mxu0 0.0
    %5363 = vmatprep.subr.mxu0 0.0
    %5364 = vmatpush1.msra.mxu0 0.0
    %5365 = vmatprep.subr.mxu0 0.0
    %5366 = vmatpush1.msra.mxu0 0.0
    %5367 = vmatprep.subr.mxu0 0.0
    %5368 = vmatpush1.msra.mxu0 0.0
    %5369 = vmatprep.subr.mxu0 0.0
    %5370 = vmatpush1.msra.mxu0 0.0
    %5371 = vmatprep.subr.mxu0 0.0
    %5372 = vmatpush1.msra.mxu0 0.0
    %5373 = vmatprep.subr.mxu0 0.0
    %5374 = vmatpush1.msra.mxu0 0.0
    %5375 = vmatprep.subr.mxu0 0.0
    %5376 = vmatpush1.msra.mxu0 0.0
    %5377 = vmatprep.subr.mxu0 0.0
    %5378 = vmatpush1.msra.mxu0 0.0
    %5379 = vmatprep.subr.mxu0 0.0
    %5380 = vmatpush1.msra.mxu0 0.0
    %5381 = vmatprep.mubr.f32.mxu0 0.0
    %5382 = vmatmul.mubr.f32.gmra.mrb[0].mxu0 %v394
    %v5383 = vpop.f32.mrb[0].mxu0
    %v5384 = vadd.f32 0.0, %v5383
    %v5385 = vpop.f32.mrb[0].mxu0
    %5386 = vdwg.mxu0
    %v5387 = vmax.f32 %v5384, 1.0
    %5389 = vset.pattern.permute.xlu0 0
    %5390 = vperm.xlu0 %5389, %v5387
    %v5391 = vpop.permute.xlu0 %5390
    %v5393 = vrcp.pop %v5391
    %v5394 = vmul.f32 %v5314, %v5393
    %v5396 = vsel %vm120, %v5394, 0
    %5398 = vmatprep.subr.mxu0 0.0
    %5399 = vmatpush1.msra.mxu0 %v104
    %5400 = vmatprep.subr.mxu0 0.0
    %5401 = vmatpush1.msra.mxu0 %v105
    %5402 = vmatprep.subr.mxu0 0.0
    %5403 = vmatpush1.msra.mxu0 %v106
    %5404 = vmatprep.subr.mxu0 0.0
    %5405 = vmatpush1.msra.mxu0 %v107
    %5406 = vmatprep.subr.mxu0 0.0
    %5407 = vmatpush1.msra.mxu0 0.0
    %5408 = vmatprep.subr.mxu0 0.0
    %5409 = vmatpush1.msra.mxu0 0.0
    %5410 = vmatprep.subr.mxu0 0.0
    %5411 = vmatpush1.msra.mxu0 0.0
    %5412 = vmatprep.subr.mxu0 0.0
    %5413 = vmatpush1.msra.mxu0 0.0
    %5414 = vmatprep.subr.mxu0 0.0
    %5415 = vmatpush1.msra.mxu0 0.0
    %5416 = vmatprep.subr.mxu0 0.0
    %5417 = vmatpush1.msra.mxu0 0.0
    %5418 = vmatprep.subr.mxu0 0.0
    %5419 = vmatpush1.msra.mxu0 0.0
    %5420 = vmatprep.subr.mxu0 0.0
    %5421 = vmatpush1.msra.mxu0 0.0
    %5422 = vmatprep.subr.mxu0 0.0
    %5423 = vmatpush1.msra.mxu0 0.0
    %5424 = vmatprep.subr.mxu0 0.0
    %5425 = vmatpush1.msra.mxu0 0.0
    %5426 = vmatprep.subr.mxu0 0.0
    %5427 = vmatpush1.msra.mxu0 0.0
    %5428 = vmatprep.subr.mxu0 0.0
    %5429 = vmatpush1.msra.mxu0 0.0
    %5430 = vmatprep.subr.mxu0 0.0
    %5431 = vmatpush1.msra.mxu0 0.0
    %5432 = vmatprep.subr.mxu0 0.0
    %5433 = vmatpush1.msra.mxu0 0.0
    %5434 = vmatprep.subr.mxu0 0.0
    %5435 = vmatpush1.msra.mxu0 0.0
    %5436 = vmatprep.subr.mxu0 0.0
    %5437 = vmatpush1.msra.mxu0 0.0
    %5438 = vmatprep.subr.mxu0 0.0
    %5439 = vmatpush1.msra.mxu0 0.0
    %5440 = vmatprep.subr.mxu0 0.0
    %5441 = vmatpush1.msra.mxu0 0.0
    %5442 = vmatprep.subr.mxu0 0.0
    %5443 = vmatpush1.msra.mxu0 0.0
    %5444 = vmatprep.subr.mxu0 0.0
    %5445 = vmatpush1.msra.mxu0 0.0
    %5446 = vmatprep.subr.mxu0 0.0
    %5447 = vmatpush1.msra.mxu0 0.0
    %5448 = vmatprep.subr.mxu0 0.0
    %5449 = vmatpush1.msra.mxu0 0.0
    %5450 = vmatprep.subr.mxu0 0.0
    %5451 = vmatpush1.msra.mxu0 0.0
    %5452 = vmatprep.subr.mxu0 0.0
    %5453 = vmatpush1.msra.mxu0 0.0
    %5454 = vmatprep.subr.mxu0 0.0
    %5455 = vmatpush1.msra.mxu0 0.0
    %5456 = vmatprep.subr.mxu0 0.0
    %5457 = vmatpush1.msra.mxu0 0.0
    %5458 = vmatprep.subr.mxu0 0.0
    %5459 = vmatpush1.msra.mxu0 0.0
    %5460 = vmatprep.subr.mxu0 0.0
    %5461 = vmatpush1.msra.mxu0 0.0
    %5462 = vmatprep.mubr.f32.mxu0 0.0
    %5463 = vmatmul.mubr.f32.gmra.mrb[0].mxu0 %v5396
    %v5464 = vpop.f32.mrb[0].mxu0
    %v5465 = vadd.f32 0.0, %v5464
    %v5466 = vpop.f32.mrb[0].mxu0
    %5467 = vdwg.mxu0
    %v5469 = vsel %vm621, %v5465, 0
    %5471 = vmatprep.subr.mxu0 0.0
    %5472 = vmatpush1.msra.mxu0 %v5469
    %5473 = vmatprep.subr.mxu0 0.0
    %5474 = vmatpush1.msra.mxu0 0.0
    %5475 = vmatprep.subr.mxu0 0.0
    %5476 = vmatpush1.msra.mxu0 0.0
    %5477 = vmatprep.subr.mxu0 0.0
    %5478 = vmatpush1.msra.mxu0 0.0
    %5479 = vmatprep.subr.mxu0 0.0
    %5480 = vmatpush1.msra.mxu0 0.0
    %5481 = vmatprep.subr.mxu0 0.0
    %5482 = vmatpush1.msra.mxu0 0.0
    %5483 = vmatprep.subr.mxu0 0.0
    %5484 = vmatpush1.msra.mxu0 0.0
    %5485 = vmatprep.subr.mxu0 0.0
    %5486 = vmatpush1.msra.mxu0 0.0
    %5487 = vmatprep.subr.mxu0 0.0
    %5488 = vmatpush1.msra.mxu0 0.0
    %5489 = vmatprep.subr.mxu0 0.0
    %5490 = vmatpush1.msra.mxu0 0.0
    %5491 = vmatprep.subr.mxu0 0.0
    %5492 = vmatpush1.msra.mxu0 0.0
    %5493 = vmatprep.subr.mxu0 0.0
    %5494 = vmatpush1.msra.mxu0 0.0
    %5495 = vmatprep.subr.mxu0 0.0
    %5496 = vmatpush1.msra.mxu0 0.0
    %5497 = vmatprep.subr.mxu0 0.0
    %5498 = vmatpush1.msra.mxu0 0.0
    %5499 = vmatprep.subr.mxu0 0.0
    %5500 = vmatpush1.msra.mxu0 0.0
    %5501 = vmatprep.subr.mxu0 0.0
    %5502 = vmatpush1.msra.mxu0 0.0
    %5503 = vmatprep.subr.mxu0 0.0
    %5504 = vmatpush1.msra.mxu0 0.0
    %5505 = vmatprep.subr.mxu0 0.0
    %5506 = vmatpush1.msra.mxu0 0.0
    %5507 = vmatprep.subr.mxu0 0.0
    %5508 = vmatpush1.msra.mxu0 0.0
    %5509 = vmatprep.subr.mxu0 0.0
    %5510 = vmatpush1.msra.mxu0 0.0
    %5511 = vmatprep.subr.mxu0 0.0
    %5512 = vmatpush1.msra.mxu0 0.0
    %5513 = vmatprep.subr.mxu0 0.0
    %5514 = vmatpush1.msra.mxu0 0.0
    %5515 = vmatprep.subr.mxu0 0.0
    %5516 = vmatpush1.msra.mxu0 0.0
    %5517 = vmatprep.subr.mxu0 0.0
    %5518 = vmatpush1.msra.mxu0 0.0
    %5519 = vmatprep.subr.mxu0 0.0
    %5520 = vmatpush1.msra.mxu0 0.0
    %5521 = vmatprep.subr.mxu0 0.0
    %5522 = vmatpush1.msra.mxu0 0.0
    %5523 = vmatprep.subr.mxu0 0.0
    %5524 = vmatpush1.msra.mxu0 0.0
    %5525 = vmatprep.subr.mxu0 0.0
    %5526 = vmatpush1.msra.mxu0 0.0
    %5527 = vmatprep.subr.mxu0 0.0
    %5528 = vmatpush1.msra.mxu0 0.0
    %5529 = vmatprep.subr.mxu0 0.0
    %5530 = vmatpush1.msra.mxu0 0.0
    %5531 = vmatprep.subr.mxu0 0.0
    %5532 = vmatpush1.msra.mxu0 0.0
    %5533 = vmatprep.subr.mxu0 0.0
    %5534 = vmatpush1.msra.mxu0 0.0
    %5535 = vmatprep.mubr.f32.mxu0 0.0
    %5536 = vmatmul.mubr.f32.gmra.mrb[0].mxu0 %v619
    %v5537 = vpop.f32.mrb[0].mxu0
    %v5538 = vadd.f32 0.0, %v5537
    %v5539 = vpop.f32.mrb[0].mxu0
    %5540 = vdwg.mxu0
    %v5542 = vsel %vm120, %v5240, 0
    %5544 = vmatprep.subr.mxu0 0.0
    %5545 = vmatpush1.msra.mxu0 %v100
    %5546 = vmatprep.subr.mxu0 0.0
    %5547 = vmatpush1.msra.mxu0 %v101
    %5548 = vmatprep.subr.mxu0 0.0
    %5549 = vmatpush1.msra.mxu0 %v102
    %5550 = vmatprep.subr.mxu0 0.0
    %5551 = vmatpush1.msra.mxu0 %v103
    %5552 = vmatprep.subr.mxu0 0.0
    %5553 = vmatpush1.msra.mxu0 0.0
    %5554 = vmatprep.subr.mxu0 0.0
    %5555 = vmatpush1.msra.mxu0 0.0
    %5556 = vmatprep.subr.mxu0 0.0
    %5557 = vmatpush1.msra.mxu0 0.0
    %5558 = vmatprep.subr.mxu0 0.0
    %5559 = vmatpush1.msra.mxu0 0.0
    %5560 = vmatprep.subr.mxu0 0.0
    %5561 = vmatpush1.msra.mxu0 0.0
    %5562 = vmatprep.subr.mxu0 0.0
    %5563 = vmatpush1.msra.mxu0 0.0
    %5564 = vmatprep.subr.mxu0 0.0
    %5565 = vmatpush1.msra.mxu0 0.0
    %5566 = vmatprep.subr.mxu0 0.0
    %5567 = vmatpush1.msra.mxu0 0.0
    %5568 = vmatprep.subr.mxu0 0.0
    %5569 = vmatpush1.msra.mxu0 0.0
    %5570 = vmatprep.subr.mxu0 0.0
    %5571 = vmatpush1.msra.mxu0 0.0
    %5572 = vmatprep.subr.mxu0 0.0
    %5573 = vmatpush1.msra.mxu0 0.0
    %5574 = vmatprep.subr.mxu0 0.0
    %5575 = vmatpush1.msra.mxu0 0.0
    %5576 = vmatprep.subr.mxu0 0.0
    %5577 = vmatpush1.msra.mxu0 0.0
    %5578 = vmatprep.subr.mxu0 0.0
    %5579 = vmatpush1.msra.mxu0 0.0
    %5580 = vmatprep.subr.mxu0 0.0
    %5581 = vmatpush1.msra.mxu0 0.0
    %5582 = vmatprep.subr.mxu0 0.0
    %5583 = vmatpush1.msra.mxu0 0.0
    %5584 = vmatprep.subr.mxu0 0.0
    %5585 = vmatpush1.msra.mxu0 0.0
    %5586 = vmatprep.subr.mxu0 0.0
    %5587 = vmatpush1.msra.mxu0 0.0
    %5588 = vmatprep.subr.mxu0 0.0
    %5589 = vmatpush1.msra.mxu0 0.0
    %5590 = vmatprep.subr.mxu0 0.0
    %5591 = vmatpush1.msra.mxu0 0.0
    %5592 = vmatprep.subr.mxu0 0.0
    %5593 = vmatpush1.msra.mxu0 0.0
    %5594 = vmatprep.subr.mxu0 0.0
    %5595 = vmatpush1.msra.mxu0 0.0
    %5596 = vmatprep.subr.mxu0 0.0
    %5597 = vmatpush1.msra.mxu0 0.0
    %5598 = vmatprep.subr.mxu0 0.0
    %5599 = vmatpush1.msra.mxu0 0.0
    %5600 = vmatprep.subr.mxu0 0.0
    %5601 = vmatpush1.msra.mxu0 0.0
    %5602 = vmatprep.subr.mxu0 0.0
    %5603 = vmatpush1.msra.mxu0 0.0
    %5604 = vmatprep.subr.mxu0 0.0
    %5605 = vmatpush1.msra.mxu0 0.0
    %5606 = vmatprep.subr.mxu0 0.0
    %5607 = vmatpush1.msra.mxu0 0.0
    %5608 = vmatprep.mubr.f32.mxu0 0.0
    %5609 = vmatmul.mubr.f32.gmra.mrb[0].mxu0 %v5542
    %v5610 = vpop.f32.mrb[0].mxu0
    %v5611 = vadd.f32 %v5538, %v5610
    %v5612 = vpop.f32.mrb[0].mxu0
    %5613 = vdwg.mxu0
    %v5614 = vadd.f32 %v5611, %v772
    %v5615 = vmax.f32 %v5614, 0.0
    %v5616 = vmul.f32 %v5615, %v5244
    %v5617 = vmul.f32 %v5616, %v117
    %v5618 = vmul.f32 %v5616, %v198
    %v5620 = vsel %vm779, %v5618, 0
    %5622 = vmatprep.subr.mxu0 0.0
    %5623 = vmatpush1.msra.mxu0 %v81
    %5624 = vmatprep.subr.mxu0 0.0
    %5625 = vmatpush1.msra.mxu0 %v82
    %5626 = vmatprep.subr.mxu0 0.0
    %5627 = vmatpush1.msra.mxu0 0.0
    %5628 = vmatprep.subr.mxu0 0.0
    %5629 = vmatpush1.msra.mxu0 0.0
    %5630 = vmatprep.subr.mxu0 0.0
    %5631 = vmatpush1.msra.mxu0 0.0
    %5632 = vmatprep.subr.mxu0 0.0
    %5633 = vmatpush1.msra.mxu0 0.0
    %5634 = vmatprep.subr.mxu0 0.0
    %5635 = vmatpush1.msra.mxu0 0.0
    %5636 = vmatprep.subr.mxu0 0.0
    %5637 = vmatpush1.msra.mxu0 0.0
    %5638 = vmatprep.subr.mxu0 0.0
    %5639 = vmatpush1.msra.mxu0 0.0
    %5640 = vmatprep.subr.mxu0 0.0
    %5641 = vmatpush1.msra.mxu0 0.0
    %5642 = vmatprep.subr.mxu0 0.0
    %5643 = vmatpush1.msra.mxu0 0.0
    %5644 = vmatprep.subr.mxu0 0.0
    %5645 = vmatpush1.msra.mxu0 0.0
    %5646 = vmatprep.subr.mxu0 0.0
    %5647 = vmatpush1.msra.mxu0 0.0
    %5648 = vmatprep.subr.mxu0 0.0
    %5649 = vmatpush1.msra.mxu0 0.0
    %5650 = vmatprep.subr.mxu0 0.0
    %5651 = vmatpush1.msra.mxu0 0.0
    %5652 = vmatprep.subr.mxu0 0.0
    %5653 = vmatpush1.msra.mxu0 0.0
    %5654 = vmatprep.subr.mxu0 0.0
    %5655 = vmatpush1.msra.mxu0 0.0
    %5656 = vmatprep.subr.mxu0 0.0
    %5657 = vmatpush1.msra.mxu0 0.0
    %5658 = vmatprep.subr.mxu0 0.0
    %5659 = vmatpush1.msra.mxu0 0.0
    %5660 = vmatprep.subr.mxu0 0.0
    %5661 = vmatpush1.msra.mxu0 0.0
    %5662 = vmatprep.subr.mxu0 0.0
    %5663 = vmatpush1.msra.mxu0 0.0
    %5664 = vmatprep.subr.mxu0 0.0
    %5665 = vmatpush1.msra.mxu0 0.0
    %5666 = vmatprep.subr.mxu0 0.0
    %5667 = vmatpush1.msra.mxu0 0.0
    %5668 = vmatprep.subr.mxu0 0.0
    %5669 = vmatpush1.msra.mxu0 0.0
    %5670 = vmatprep.subr.mxu0 0.0
    %5671 = vmatpush1.msra.mxu0 0.0
    %5672 = vmatprep.subr.mxu0 0.0
    %5673 = vmatpush1.msra.mxu0 0.0
    %5674 = vmatprep.subr.mxu0 0.0
    %5675 = vmatpush1.msra.mxu0 0.0
    %5676 = vmatprep.subr.mxu0 0.0
    %5677 = vmatpush1.msra.mxu0 0.0
    %5678 = vmatprep.subr.mxu0 0.0
    %5679 = vmatpush1.msra.mxu0 0.0
    %5680 = vmatprep.subr.mxu0 0.0
    %5681 = vmatpush1.msra.mxu0 0.0
    %5682 = vmatprep.subr.mxu0 0.0
    %5683 = vmatpush1.msra.mxu0 0.0
    %5684 = vmatprep.subr.mxu0 0.0
    %5685 = vmatpush1.msra.mxu0 0.0
    %5686 = vmatprep.mubr.f32.mxu0 0.0
    %5687 = vmatmul.mubr.f32.gmra.mrb[0].mxu0 %v5620
    %v5688 = vpop.f32.mrb[0].mxu0
    %v5689 = vadd.f32 0.0, %v5688
    %v5690 = vpop.f32.mrb[0].mxu0
    %5691 = vdwg.mxu0
    %v5693 = vsel %vm779, %v5617, 0
    %5695 = vmatprep.subr.mxu0 0.0
    %5696 = vmatpush1.msra.mxu0 %v78
    %5697 = vmatprep.subr.mxu0 0.0
    %5698 = vmatpush1.msra.mxu0 %v79
    %5699 = vmatprep.subr.mxu0 0.0
    %5700 = vmatpush1.msra.mxu0 0.0
    %5701 = vmatprep.subr.mxu0 0.0
    %5702 = vmatpush1.msra.mxu0 0.0
    %5703 = vmatprep.subr.mxu0 0.0
    %5704 = vmatpush1.msra.mxu0 0.0
    %5705 = vmatprep.subr.mxu0 0.0
    %5706 = vmatpush1.msra.mxu0 0.0
    %5707 = vmatprep.subr.mxu0 0.0
    %5708 = vmatpush1.msra.mxu0 0.0
    %5709 = vmatprep.subr.mxu0 0.0
    %5710 = vmatpush1.msra.mxu0 0.0
    %5711 = vmatprep.subr.mxu0 0.0
    %5712 = vmatpush1.msra.mxu0 0.0
    %5713 = vmatprep.subr.mxu0 0.0
    %5714 = vmatpush1.msra.mxu0 0.0
    %5715 = vmatprep.subr.mxu0 0.0
    %5716 = vmatpush1.msra.mxu0 0.0
    %5717 = vmatprep.subr.mxu0 0.0
    %5718 = vmatpush1.msra.mxu0 0.0
    %5719 = vmatprep.subr.mxu0 0.0
    %5720 = vmatpush1.msra.mxu0 0.0
    %5721 = vmatprep.subr.mxu0 0.0
    %5722 = vmatpush1.msra.mxu0 0.0
    %5723 = vmatprep.subr.mxu0 0.0
    %5724 = vmatpush1.msra.mxu0 0.0
    %5725 = vmatprep.subr.mxu0 0.0
    %5726 = vmatpush1.msra.mxu0 0.0
    %5727 = vmatprep.subr.mxu0 0.0
    %5728 = vmatpush1.msra.mxu0 0.0
    %5729 = vmatprep.subr.mxu0 0.0
    %5730 = vmatpush1.msra.mxu0 0.0
    %5731 = vmatprep.subr.mxu0 0.0
    %5732 = vmatpush1.msra.mxu0 0.0
    %5733 = vmatprep.subr.mxu0 0.0
    %5734 = vmatpush1.msra.mxu0 0.0
    %5735 = vmatprep.subr.mxu0 0.0
    %5736 = vmatpush1.msra.mxu0 0.0
    %5737 = vmatprep.subr.mxu0 0.0
    %5738 = vmatpush1.msra.mxu0 0.0
    %5739 = vmatprep.subr.mxu0 0.0
    %5740 = vmatpush1.msra.mxu0 0.0
    %5741 = vmatprep.subr.mxu0 0.0
    %5742 = vmatpush1.msra.mxu0 0.0
    %5743 = vmatprep.subr.mxu0 0.0
    %5744 = vmatpush1.msra.mxu0 0.0
    %5745 = vmatprep.subr.mxu0 0.0
    %5746 = vmatpush1.msra.mxu0 0.0
    %5747 = vmatprep.subr.mxu0 0.0
    %5748 = vmatpush1.msra.mxu0 0.0
    %5749 = vmatprep.subr.mxu0 0.0
    %5750 = vmatpush1.msra.mxu0 0.0
    %5751 = vmatprep.subr.mxu0 0.0
    %5752 = vmatpush1.msra.mxu0 0.0
    %5753 = vmatprep.subr.mxu0 0.0
    %5754 = vmatpush1.msra.mxu0 0.0
    %5755 = vmatprep.subr.mxu0 0.0
    %5756 = vmatpush1.msra.mxu0 0.0
    %5757 = vmatprep.subr.mxu0 0.0
    %5758 = vmatpush1.msra.mxu0 0.0
    %5759 = vmatprep.mubr.f32.mxu0 0.0
    %5760 = vmatmul.mubr.f32.gmra.mrb[0].mxu0 %v5693
    %v5761 = vpop.f32.mrb[0].mxu0
    %v5762 = vadd.f32 %v5689, %v5761
    %v5763 = vpop.f32.mrb[0].mxu0
    %5764 = vdwg.mxu0
    %v5765 = vadd.f32 %v5762, %v92
    %v5766 = vmul.f32 %v4975, %v117
    %5768 = vrot.lane.b32.xlu0 %v5766, 64
    %v5769 = vpop.permute.xlu0 %5768
    %v5770 = vsel %vm120, %v5769, 0
    %5772 = vmatprep.subr.mxu0 0.0
    %5773 = vmatpush1.msra.mxu0 %v83
    %5774 = vmatprep.subr.mxu0 0.0
    %5775 = vmatpush1.msra.mxu0 %v84
    %5776 = vmatprep.subr.mxu0 0.0
    %5777 = vmatpush1.msra.mxu0 %v85
    %5778 = vmatprep.subr.mxu0 0.0
    %5779 = vmatpush1.msra.mxu0 %v86
    %5780 = vmatprep.subr.mxu0 0.0
    %5781 = vmatpush1.msra.mxu0 0.0
    %5782 = vmatprep.subr.mxu0 0.0
    %5783 = vmatpush1.msra.mxu0 0.0
    %5784 = vmatprep.subr.mxu0 0.0
    %5785 = vmatpush1.msra.mxu0 0.0
    %5786 = vmatprep.subr.mxu0 0.0
    %5787 = vmatpush1.msra.mxu0 0.0
    %5788 = vmatprep.subr.mxu0 0.0
    %5789 = vmatpush1.msra.mxu0 0.0
    %5790 = vmatprep.subr.mxu0 0.0
    %5791 = vmatpush1.msra.mxu0 0.0
    %5792 = vmatprep.subr.mxu0 0.0
    %5793 = vmatpush1.msra.mxu0 0.0
    %5794 = vmatprep.subr.mxu0 0.0
    %5795 = vmatpush1.msra.mxu0 0.0
    %5796 = vmatprep.subr.mxu0 0.0
    %5797 = vmatpush1.msra.mxu0 0.0
    %5798 = vmatprep.subr.mxu0 0.0
    %5799 = vmatpush1.msra.mxu0 0.0
    %5800 = vmatprep.subr.mxu0 0.0
    %5801 = vmatpush1.msra.mxu0 0.0
    %5802 = vmatprep.subr.mxu0 0.0
    %5803 = vmatpush1.msra.mxu0 0.0
    %5804 = vmatprep.subr.mxu0 0.0
    %5805 = vmatpush1.msra.mxu0 0.0
    %5806 = vmatprep.subr.mxu0 0.0
    %5807 = vmatpush1.msra.mxu0 0.0
    %5808 = vmatprep.subr.mxu0 0.0
    %5809 = vmatpush1.msra.mxu0 0.0
    %5810 = vmatprep.subr.mxu0 0.0
    %5811 = vmatpush1.msra.mxu0 0.0
    %5812 = vmatprep.subr.mxu0 0.0
    %5813 = vmatpush1.msra.mxu0 0.0
    %5814 = vmatprep.subr.mxu0 0.0
    %5815 = vmatpush1.msra.mxu0 0.0
    %5816 = vmatprep.subr.mxu0 0.0
    %5817 = vmatpush1.msra.mxu0 0.0
    %5818 = vmatprep.subr.mxu0 0.0
    %5819 = vmatpush1.msra.mxu0 0.0
    %5820 = vmatprep.subr.mxu0 0.0
    %5821 = vmatpush1.msra.mxu0 0.0
    %5822 = vmatprep.subr.mxu0 0.0
    %5823 = vmatpush1.msra.mxu0 0.0
    %5824 = vmatprep.subr.mxu0 0.0
    %5825 = vmatpush1.msra.mxu0 0.0
    %5826 = vmatprep.subr.mxu0 0.0
    %5827 = vmatpush1.msra.mxu0 0.0
    %5828 = vmatprep.subr.mxu0 0.0
    %5829 = vmatpush1.msra.mxu0 0.0
    %5830 = vmatprep.subr.mxu0 0.0
    %5831 = vmatpush1.msra.mxu0 0.0
    %5832 = vmatprep.subr.mxu0 0.0
    %5833 = vmatpush1.msra.mxu0 0.0
    %5834 = vmatprep.subr.mxu0 0.0
    %5835 = vmatpush1.msra.mxu0 0.0
    %5836 = vmatprep.mubr.f32.mxu0 0.0
    %5837 = vmatmul.mubr.f32.gmra.mrb[0].mxu0 %v5770
    %v5838 = vpop.f32.mrb[0].mxu0
    %v5839 = vadd.f32 0.0, %v5838
    %v5840 = vpop.f32.mrb[0].mxu0
    %5841 = vdwg.mxu0
    %v5842 = vadd.f32 %v5765, %v5839
    %v5843 = vmul.f32 %v4975, %v198
    %5845 = vrot.lane.b32.xlu0 %v5843, 64
    %v5846 = vpop.permute.xlu0 %5845
    %v5847 = vsel %vm120, %v5846, 0
    %5849 = vmatprep.subr.mxu0 0.0
    %5850 = vmatpush1.msra.mxu0 %v88
    %5851 = vmatprep.subr.mxu0 0.0
    %5852 = vmatpush1.msra.mxu0 %v89
    %5853 = vmatprep.subr.mxu0 0.0
    %5854 = vmatpush1.msra.mxu0 %v90
    %5855 = vmatprep.subr.mxu0 0.0
    %5856 = vmatpush1.msra.mxu0 %v91
    %5857 = vmatprep.subr.mxu0 0.0
    %5858 = vmatpush1.msra.mxu0 0.0
    %5859 = vmatprep.subr.mxu0 0.0
    %5860 = vmatpush1.msra.mxu0 0.0
    %5861 = vmatprep.subr.mxu0 0.0
    %5862 = vmatpush1.msra.mxu0 0.0
    %5863 = vmatprep.subr.mxu0 0.0
    %5864 = vmatpush1.msra.mxu0 0.0
    %5865 = vmatprep.subr.mxu0 0.0
    %5866 = vmatpush1.msra.mxu0 0.0
    %5867 = vmatprep.subr.mxu0 0.0
    %5868 = vmatpush1.msra.mxu0 0.0
    %5869 = vmatprep.subr.mxu0 0.0
    %5870 = vmatpush1.msra.mxu0 0.0
    %5871 = vmatprep.subr.mxu0 0.0
    %5872 = vmatpush1.msra.mxu0 0.0
    %5873 = vmatprep.subr.mxu0 0.0
    %5874 = vmatpush1.msra.mxu0 0.0
    %5875 = vmatprep.subr.mxu0 0.0
    %5876 = vmatpush1.msra.mxu0 0.0
    %5877 = vmatprep.subr.mxu0 0.0
    %5878 = vmatpush1.msra.mxu0 0.0
    %5879 = vmatprep.subr.mxu0 0.0
    %5880 = vmatpush1.msra.mxu0 0.0
    %5881 = vmatprep.subr.mxu0 0.0
    %5882 = vmatpush1.msra.mxu0 0.0
    %5883 = vmatprep.subr.mxu0 0.0
    %5884 = vmatpush1.msra.mxu0 0.0
    %5885 = vmatprep.subr.mxu0 0.0
    %5886 = vmatpush1.msra.mxu0 0.0
    %5887 = vmatprep.subr.mxu0 0.0
    %5888 = vmatpush1.msra.mxu0 0.0
    %5889 = vmatprep.subr.mxu0 0.0
    %5890 = vmatpush1.msra.mxu0 0.0
    %5891 = vmatprep.subr.mxu0 0.0
    %5892 = vmatpush1.msra.mxu0 0.0
    %5893 = vmatprep.subr.mxu0 0.0
    %5894 = vmatpush1.msra.mxu0 0.0
    %5895 = vmatprep.subr.mxu0 0.0
    %5896 = vmatpush1.msra.mxu0 0.0
    %5897 = vmatprep.subr.mxu0 0.0
    %5898 = vmatpush1.msra.mxu0 0.0
    %5899 = vmatprep.subr.mxu0 0.0
    %5900 = vmatpush1.msra.mxu0 0.0
    %5901 = vmatprep.subr.mxu0 0.0
    %5902 = vmatpush1.msra.mxu0 0.0
    %5903 = vmatprep.subr.mxu0 0.0
    %5904 = vmatpush1.msra.mxu0 0.0
    %5905 = vmatprep.subr.mxu0 0.0
    %5906 = vmatpush1.msra.mxu0 0.0
    %5907 = vmatprep.subr.mxu0 0.0
    %5908 = vmatpush1.msra.mxu0 0.0
    %5909 = vmatprep.subr.mxu0 0.0
    %5910 = vmatpush1.msra.mxu0 0.0
    %5911 = vmatprep.subr.mxu0 0.0
    %5912 = vmatpush1.msra.mxu0 0.0
    %5913 = vmatprep.mubr.f32.mxu0 0.0
    %5914 = vmatmul.mubr.f32.gmra.mrb[0].mxu0 %v5847
    %v5915 = vpop.f32.mrb[0].mxu0
    %v5916 = vadd.f32 0.0, %v5915
    %v5917 = vpop.f32.mrb[0].mxu0
    %5918 = vdwg.mxu0
    %v5919 = vadd.f32 %v5842, %v5916
    %v5920 = vxor.u32 %v5919, 2147483648
    %v5921 = vmul.f32 %v5920, 1.442695
    %v5922 = vpow.pop %v5921
    %v5923 = vadd.f32 %v5922, 1.0
    %v5924 = vrcp.pop %v5923
    %v5925 = vmul.f32 1.0, %v5924
    %v5926 = vtanh.pop %v5919
    %v5927 = vmul.f32 %v5925, %v4969
    %5929 = vrot.lane.b32.xlu0 %v5926, 32
    %v5930 = vpop.permute.xlu0 %5929
    %v5932 = vmul.f32 %v5925, %v5930
    %5934 = vrot.lane.b32.xlu0 %v5932, 32
    %v5935 = vpop.permute.xlu0 %5934
    %v5937 = vadd.f32 %v5927, %v5935
    %v5938 = vtanh.pop %v5937
    %5940 = vrot.lane.b32.xlu0 %v5938, 32
    %v5941 = vpop.permute.xlu0 %5940
    %v5943 = vmul.f32 %v5925, %v5941
    %v5944 = vmul.f32 %v5943, %v5244
    %5946 = vrot.lane.b32.xlu0 %v5944, 64
    %v5947 = vpop.permute.xlu0 %5946
    %s5949 = scalar_lea.vmem %s18, 40
    %5950 = vst.msk [vmem:[%s5949] sm:$0xff] %vm120, %v5947
    %s5951 = scalar_lea.vmem %s0, 48
    %v5952 = vld [vmem:[%s5951] sm:$0xff]
    %v5953 = vmul.f32 %v5162, %v117
    %5955 = vrot.lane.b32.xlu0 %v5953, 64
    %v5956 = vpop.permute.xlu0 %5955
    %v5957 = vsel %vm120, %v5956, 0
    %5959 = vmatprep.subr.mxu0 0.0
    %5960 = vmatpush1.msra.mxu0 %v69
    %5961 = vmatprep.subr.mxu0 0.0
    %5962 = vmatpush1.msra.mxu0 %v70
    %5963 = vmatprep.subr.mxu0 0.0
    %5964 = vmatpush1.msra.mxu0 %v71
    %5965 = vmatprep.subr.mxu0 0.0
    %5966 = vmatpush1.msra.mxu0 %v72
    %5967 = vmatprep.subr.mxu0 0.0
    %5968 = vmatpush1.msra.mxu0 0.0
    %5969 = vmatprep.subr.mxu0 0.0
    %5970 = vmatpush1.msra.mxu0 0.0
    %5971 = vmatprep.subr.mxu0 0.0
    %5972 = vmatpush1.msra.mxu0 0.0
    %5973 = vmatprep.subr.mxu0 0.0
    %5974 = vmatpush1.msra.mxu0 0.0
    %5975 = vmatprep.subr.mxu0 0.0
    %5976 = vmatpush1.msra.mxu0 0.0
    %5977 = vmatprep.subr.mxu0 0.0
    %5978 = vmatpush1.msra.mxu0 0.0
    %5979 = vmatprep.subr.mxu0 0.0
    %5980 = vmatpush1.msra.mxu0 0.0
    %5981 = vmatprep.subr.mxu0 0.0
    %5982 = vmatpush1.msra.mxu0 0.0
    %5983 = vmatprep.subr.mxu0 0.0
    %5984 = vmatpush1.msra.mxu0 0.0
    %5985 = vmatprep.subr.mxu0 0.0
    %5986 = vmatpush1.msra.mxu0 0.0
    %5987 = vmatprep.subr.mxu0 0.0
    %5988 = vmatpush1.msra.mxu0 0.0
    %5989 = vmatprep.subr.mxu0 0.0
    %5990 = vmatpush1.msra.mxu0 0.0
    %5991 = vmatprep.subr.mxu0 0.0
    %5992 = vmatpush1.msra.mxu0 0.0
    %5993 = vmatprep.subr.mxu0 0.0
    %5994 = vmatpush1.msra.mxu0 0.0
    %5995 = vmatprep.subr.mxu0 0.0
    %5996 = vmatpush1.msra.mxu0 0.0
    %5997 = vmatprep.subr.mxu0 0.0
    %5998 = vmatpush1.msra.mxu0 0.0
    %5999 = vmatprep.subr.mxu0 0.0
    %6000 = vmatpush1.msra.mxu0 0.0
    %6001 = vmatprep.subr.mxu0 0.0
    %6002 = vmatpush1.msra.mxu0 0.0
    %6003 = vmatprep.subr.mxu0 0.0
    %6004 = vmatpush1.msra.mxu0 0.0
    %6005 = vmatprep.subr.mxu0 0.0
    %6006 = vmatpush1.msra.mxu0 0.0
    %6007 = vmatprep.subr.mxu0 0.0
    %6008 = vmatpush1.msra.mxu0 0.0
    %6009 = vmatprep.subr.mxu0 0.0
    %6010 = vmatpush1.msra.mxu0 0.0
    %6011 = vmatprep.subr.mxu0 0.0
    %6012 = vmatpush1.msra.mxu0 0.0
    %6013 = vmatprep.subr.mxu0 0.0
    %6014 = vmatpush1.msra.mxu0 0.0
    %6015 = vmatprep.subr.mxu0 0.0
    %6016 = vmatpush1.msra.mxu0 0.0
    %6017 = vmatprep.subr.mxu0 0.0
    %6018 = vmatpush1.msra.mxu0 0.0
    %6019 = vmatprep.subr.mxu0 0.0
    %6020 = vmatpush1.msra.mxu0 0.0
    %6021 = vmatprep.subr.mxu0 0.0
    %6022 = vmatpush1.msra.mxu0 0.0
    %6023 = vmatprep.mubr.f32.mxu0 0.0
    %6024 = vmatmul.mubr.f32.gmra.mrb[0].mxu0 %v5957
    %v6025 = vpop.f32.mrb[0].mxu0
    %v6026 = vadd.f32 0.0, %v6025
    %v6027 = vpop.f32.mrb[0].mxu0
    %6028 = vdwg.mxu0
    %v6029 = vadd.f32 %v5952, %v6026
    %v6030 = vmul.f32 %v5162, %v198
    %6032 = vrot.lane.b32.xlu0 %v6030, 64
    %v6033 = vpop.permute.xlu0 %6032
    %v6034 = vsel %vm120, %v6033, 0
    %6036 = vmatprep.subr.mxu0 0.0
    %6037 = vmatpush1.msra.mxu0 %v74
    %6038 = vmatprep.subr.mxu0 0.0
    %6039 = vmatpush1.msra.mxu0 %v75
    %6040 = vmatprep.subr.mxu0 0.0
    %6041 = vmatpush1.msra.mxu0 %v76
    %6042 = vmatprep.subr.mxu0 0.0
    %6043 = vmatpush1.msra.mxu0 %v77
    %6044 = vmatprep.subr.mxu0 0.0
    %6045 = vmatpush1.msra.mxu0 0.0
    %6046 = vmatprep.subr.mxu0 0.0
    %6047 = vmatpush1.msra.mxu0 0.0
    %6048 = vmatprep.subr.mxu0 0.0
    %6049 = vmatpush1.msra.mxu0 0.0
    %6050 = vmatprep.subr.mxu0 0.0
    %6051 = vmatpush1.msra.mxu0 0.0
    %6052 = vmatprep.subr.mxu0 0.0
    %6053 = vmatpush1.msra.mxu0 0.0
    %6054 = vmatprep.subr.mxu0 0.0
    %6055 = vmatpush1.msra.mxu0 0.0
    %6056 = vmatprep.subr.mxu0 0.0
    %6057 = vmatpush1.msra.mxu0 0.0
    %6058 = vmatprep.subr.mxu0 0.0
    %6059 = vmatpush1.msra.mxu0 0.0
    %6060 = vmatprep.subr.mxu0 0.0
    %6061 = vmatpush1.msra.mxu0 0.0
    %6062 = vmatprep.subr.mxu0 0.0
    %6063 = vmatpush1.msra.mxu0 0.0
    %6064 = vmatprep.subr.mxu0 0.0
    %6065 = vmatpush1.msra.mxu0 0.0
    %6066 = vmatprep.subr.mxu0 0.0
    %6067 = vmatpush1.msra.mxu0 0.0
    %6068 = vmatprep.subr.mxu0 0.0
    %6069 = vmatpush1.msra.mxu0 0.0
    %6070 = vmatprep.subr.mxu0 0.0
    %6071 = vmatpush1.msra.mxu0 0.0
    %6072 = vmatprep.subr.mxu0 0.0
    %6073 = vmatpush1.msra.mxu0 0.0
    %6074 = vmatprep.subr.mxu0 0.0
    %6075 = vmatpush1.msra.mxu0 0.0
    %6076 = vmatprep.subr.mxu0 0.0
    %6077 = vmatpush1.msra.mxu0 0.0
    %6078 = vmatprep.subr.mxu0 0.0
    %6079 = vmatpush1.msra.mxu0 0.0
    %6080 = vmatprep.subr.mxu0 0.0
    %6081 = vmatpush1.msra.mxu0 0.0
    %6082 = vmatprep.subr.mxu0 0.0
    %6083 = vmatpush1.msra.mxu0 0.0
    %6084 = vmatprep.subr.mxu0 0.0
    %6085 = vmatpush1.msra.mxu0 0.0
    %6086 = vmatprep.subr.mxu0 0.0
    %6087 = vmatpush1.msra.mxu0 0.0
    %6088 = vmatprep.subr.mxu0 0.0
    %6089 = vmatpush1.msra.mxu0 0.0
    %6090 = vmatprep.subr.mxu0 0.0
    %6091 = vmatpush1.msra.mxu0 0.0
    %6092 = vmatprep.subr.mxu0 0.0
    %6093 = vmatpush1.msra.mxu0 0.0
    %6094 = vmatprep.subr.mxu0 0.0
    %6095 = vmatpush1.msra.mxu0 0.0
    %6096 = vmatprep.subr.mxu0 0.0
    %6097 = vmatpush1.msra.mxu0 0.0
    %6098 = vmatprep.subr.mxu0 0.0
    %6099 = vmatpush1.msra.mxu0 0.0
    %6100 = vmatprep.mubr.f32.mxu0 0.0
    %6101 = vmatmul.mubr.f32.gmra.mrb[0].mxu0 %v6034
    %v6102 = vpop.f32.mrb[0].mxu0
    %v6103 = vadd.f32 0.0, %v6102
    %v6104 = vpop.f32.mrb[0].mxu0
    %6105 = vdwg.mxu0
    %v6106 = vadd.f32 %v6029, %v6103
    %v6107 = vxor.u32 %v6106, 2147483648
    %v6108 = vmul.f32 %v6107, 1.442695
    %v6109 = vpow.pop %v6108
    %v6110 = vadd.f32 %v6109, 1.0
    %v6111 = vrcp.pop %v6110
    %v6112 = vmul.f32 1.0, %v6111
    %v6113 = vtanh.pop %v6106
    %v6114 = vmul.f32 %v6112, %v5156
    %6116 = vrot.lane.b32.xlu0 %v6113, 32
    %v6117 = vpop.permute.xlu0 %6116
    %v6119 = vmul.f32 %v6112, %v6117
    %6121 = vrot.lane.b32.xlu0 %v6119, 32
    %v6122 = vpop.permute.xlu0 %6121
    %v6124 = vadd.f32 %v6114, %v6122
    %v6125 = vtanh.pop %v6124
    %6127 = vrot.lane.b32.xlu0 %v6125, 32
    %v6128 = vpop.permute.xlu0 %6127
    %v6130 = vmul.f32 %v6112, %v6128
    %s6131 = scalar_lea.vmem %s1, 48
    %v6132 = vld [vmem:[%s6131] sm:$0xff]
    %6134 = vrot.lane.b32.xlu0 %v6130, 64
    %v6135 = vpop.permute.xlu0 %6134
    %v6136 = vsel %vm120, %v6135, 0
    %6138 = vmatprep.subr.mxu0 0.0
    %6139 = vmatpush1.msra.mxu0 %v95
    %6140 = vmatprep.subr.mxu0 0.0
    %6141 = vmatpush1.msra.mxu0 %v96
    %6142 = vmatprep.subr.mxu0 0.0
    %6143 = vmatpush1.msra.mxu0 %v97
    %6144 = vmatprep.subr.mxu0 0.0
    %6145 = vmatpush1.msra.mxu0 %v98
    %6146 = vmatprep.subr.mxu0 0.0
    %6147 = vmatpush1.msra.mxu0 0.0
    %6148 = vmatprep.subr.mxu0 0.0
    %6149 = vmatpush1.msra.mxu0 0.0
    %6150 = vmatprep.subr.mxu0 0.0
    %6151 = vmatpush1.msra.mxu0 0.0
    %6152 = vmatprep.subr.mxu0 0.0
    %6153 = vmatpush1.msra.mxu0 0.0
    %6154 = vmatprep.subr.mxu0 0.0
    %6155 = vmatpush1.msra.mxu0 0.0
    %6156 = vmatprep.subr.mxu0 0.0
    %6157 = vmatpush1.msra.mxu0 0.0
    %6158 = vmatprep.subr.mxu0 0.0
    %6159 = vmatpush1.msra.mxu0 0.0
    %6160 = vmatprep.subr.mxu0 0.0
    %6161 = vmatpush1.msra.mxu0 0.0
    %6162 = vmatprep.subr.mxu0 0.0
    %6163 = vmatpush1.msra.mxu0 0.0
    %6164 = vmatprep.subr.mxu0 0.0
    %6165 = vmatpush1.msra.mxu0 0.0
    %6166 = vmatprep.subr.mxu0 0.0
    %6167 = vmatpush1.msra.mxu0 0.0
    %6168 = vmatprep.subr.mxu0 0.0
    %6169 = vmatpush1.msra.mxu0 0.0
    %6170 = vmatprep.subr.mxu0 0.0
    %6171 = vmatpush1.msra.mxu0 0.0
    %6172 = vmatprep.subr.mxu0 0.0
    %6173 = vmatpush1.msra.mxu0 0.0
    %6174 = vmatprep.subr.mxu0 0.0
    %6175 = vmatpush1.msra.mxu0 0.0
    %6176 = vmatprep.subr.mxu0 0.0
    %6177 = vmatpush1.msra.mxu0 0.0
    %6178 = vmatprep.subr.mxu0 0.0
    %6179 = vmatpush1.msra.mxu0 0.0
    %6180 = vmatprep.subr.mxu0 0.0
    %6181 = vmatpush1.msra.mxu0 0.0
    %6182 = vmatprep.subr.mxu0 0.0
    %6183 = vmatpush1.msra.mxu0 0.0
    %6184 = vmatprep.subr.mxu0 0.0
    %6185 = vmatpush1.msra.mxu0 0.0
    %6186 = vmatprep.subr.mxu0 0.0
    %6187 = vmatpush1.msra.mxu0 0.0
    %6188 = vmatprep.subr.mxu0 0.0
    %6189 = vmatpush1.msra.mxu0 0.0
    %6190 = vmatprep.subr.mxu0 0.0
    %6191 = vmatpush1.msra.mxu0 0.0
    %6192 = vmatprep.subr.mxu0 0.0
    %6193 = vmatpush1.msra.mxu0 0.0
    %6194 = vmatprep.subr.mxu0 0.0
    %6195 = vmatpush1.msra.mxu0 0.0
    %6196 = vmatprep.subr.mxu0 0.0
    %6197 = vmatpush1.msra.mxu0 0.0
    %6198 = vmatprep.subr.mxu0 0.0
    %6199 = vmatpush1.msra.mxu0 0.0
    %6200 = vmatprep.subr.mxu0 0.0
    %6201 = vmatpush1.msra.mxu0 0.0
    %6202 = vmatprep.mubr.f32.mxu0 0.0
    %6203 = vmatmul.mubr.f32.gmra.mrb[0].mxu0 %v6136
    %v6204 = vpop.f32.mrb[0].mxu0
    %v6205 = vadd.f32 %v308, %v6204
    %v6206 = vpop.f32.mrb[0].mxu0
    %6207 = vdwg.mxu0
    %v6208 = vmax.f32 %v6205, 0.0
    %6210 = vset.pattern.permute.xlu0 0
    %6211 = vperm.xlu0 %6210, %v6132
    %v6212 = vpop.permute.xlu0 %6211
    %v6214 = vmul.f32 %v6208, %v6212
    %6215 = vmatprep.subr.mxu0 0.0
    %6216 = vmatpush1.msra.mxu0 %v6214
    %6217 = vmatprep.subr.mxu0 0.0
    %6218 = vmatpush1.msra.mxu0 0.0
    %6219 = vmatprep.subr.mxu0 0.0
    %6220 = vmatpush1.msra.mxu0 0.0
    %6221 = vmatprep.subr.mxu0 0.0
    %6222 = vmatpush1.msra.mxu0 0.0
    %6223 = vmatprep.subr.mxu0 0.0
    %6224 = vmatpush1.msra.mxu0 0.0
    %6225 = vmatprep.subr.mxu0 0.0
    %6226 = vmatpush1.msra.mxu0 0.0
    %6227 = vmatprep.subr.mxu0 0.0
    %6228 = vmatpush1.msra.mxu0 0.0
    %6229 = vmatprep.subr.mxu0 0.0
    %6230 = vmatpush1.msra.mxu0 0.0
    %6231 = vmatprep.subr.mxu0 0.0
    %6232 = vmatpush1.msra.mxu0 0.0
    %6233 = vmatprep.subr.mxu0 0.0
    %6234 = vmatpush1.msra.mxu0 0.0
    %6235 = vmatprep.subr.mxu0 0.0
    %6236 = vmatpush1.msra.mxu0 0.0
    %6237 = vmatprep.subr.mxu0 0.0
    %6238 = vmatpush1.msra.mxu0 0.0
    %6239 = vmatprep.subr.mxu0 0.0
    %6240 = vmatpush1.msra.mxu0 0.0
    %6241 = vmatprep.subr.mxu0 0.0
    %6242 = vmatpush1.msra.mxu0 0.0
    %6243 = vmatprep.subr.mxu0 0.0
    %6244 = vmatpush1.msra.mxu0 0.0
    %6245 = vmatprep.subr.mxu0 0.0
    %6246 = vmatpush1.msra.mxu0 0.0
    %6247 = vmatprep.subr.mxu0 0.0
    %6248 = vmatpush1.msra.mxu0 0.0
    %6249 = vmatprep.subr.mxu0 0.0
    %6250 = vmatpush1.msra.mxu0 0.0
    %6251 = vmatprep.subr.mxu0 0.0
    %6252 = vmatpush1.msra.mxu0 0.0
    %6253 = vmatprep.subr.mxu0 0.0
    %6254 = vmatpush1.msra.mxu0 0.0
    %6255 = vmatprep.subr.mxu0 0.0
    %6256 = vmatpush1.msra.mxu0 0.0
    %6257 = vmatprep.subr.mxu0 0.0
    %6258 = vmatpush1.msra.mxu0 0.0
    %6259 = vmatprep.subr.mxu0 0.0
    %6260 = vmatpush1.msra.mxu0 0.0
    %6261 = vmatprep.subr.mxu0 0.0
    %6262 = vmatpush1.msra.mxu0 0.0
    %6263 = vmatprep.subr.mxu0 0.0
    %6264 = vmatpush1.msra.mxu0 0.0
    %6265 = vmatprep.subr.mxu0 0.0
    %6266 = vmatpush1.msra.mxu0 0.0
    %6267 = vmatprep.subr.mxu0 0.0
    %6268 = vmatpush1.msra.mxu0 0.0
    %6269 = vmatprep.subr.mxu0 0.0
    %6270 = vmatpush1.msra.mxu0 0.0
    %6271 = vmatprep.subr.mxu0 0.0
    %6272 = vmatpush1.msra.mxu0 0.0
    %6273 = vmatprep.subr.mxu0 0.0
    %6274 = vmatpush1.msra.mxu0 0.0
    %6275 = vmatprep.subr.mxu0 0.0
    %6276 = vmatpush1.msra.mxu0 0.0
    %6277 = vmatprep.subr.mxu0 0.0
    %6278 = vmatpush1.msra.mxu0 0.0
    %6279 = vmatprep.mubr.f32.mxu0 0.0
    %6280 = vmatmul.mubr.f32.gmra.mrb[0].mxu0 %v394
    %v6281 = vpop.f32.mrb[0].mxu0
    %v6282 = vadd.f32 0.0, %v6281
    %v6283 = vpop.f32.mrb[0].mxu0
    %6284 = vdwg.mxu0
    %6285 = vmatprep.subr.mxu0 0.0
    %6286 = vmatpush1.msra.mxu0 %v6132
    %6287 = vmatprep.subr.mxu0 0.0
    %6288 = vmatpush1.msra.mxu0 0.0
    %6289 = vmatprep.subr.mxu0 0.0
    %6290 = vmatpush1.msra.mxu0 0.0
    %6291 = vmatprep.subr.mxu0 0.0
    %6292 = vmatpush1.msra.mxu0 0.0
    %6293 = vmatprep.subr.mxu0 0.0
    %6294 = vmatpush1.msra.mxu0 0.0
    %6295 = vmatprep.subr.mxu0 0.0
    %6296 = vmatpush1.msra.mxu0 0.0
    %6297 = vmatprep.subr.mxu0 0.0
    %6298 = vmatpush1.msra.mxu0 0.0
    %6299 = vmatprep.subr.mxu0 0.0
    %6300 = vmatpush1.msra.mxu0 0.0
    %6301 = vmatprep.subr.mxu0 0.0
    %6302 = vmatpush1.msra.mxu0 0.0
    %6303 = vmatprep.subr.mxu0 0.0
    %6304 = vmatpush1.msra.mxu0 0.0
    %6305 = vmatprep.subr.mxu0 0.0
    %6306 = vmatpush1.msra.mxu0 0.0
    %6307 = vmatprep.subr.mxu0 0.0
    %6308 = vmatpush1.msra.mxu0 0.0
    %6309 = vmatprep.subr.mxu0 0.0
    %6310 = vmatpush1.msra.mxu0 0.0
    %6311 = vmatprep.subr.mxu0 0.0
    %6312 = vmatpush1.msra.mxu0 0.0
    %6313 = vmatprep.subr.mxu0 0.0
    %6314 = vmatpush1.msra.mxu0 0.0
    %6315 = vmatprep.subr.mxu0 0.0
    %6316 = vmatpush1.msra.mxu0 0.0
    %6317 = vmatprep.subr.mxu0 0.0
    %6318 = vmatpush1.msra.mxu0 0.0
    %6319 = vmatprep.subr.mxu0 0.0
    %6320 = vmatpush1.msra.mxu0 0.0
    %6321 = vmatprep.subr.mxu0 0.0
    %6322 = vmatpush1.msra.mxu0 0.0
    %6323 = vmatprep.subr.mxu0 0.0
    %6324 = vmatpush1.msra.mxu0 0.0
    %6325 = vmatprep.subr.mxu0 0.0
    %6326 = vmatpush1.msra.mxu0 0.0
    %6327 = vmatprep.subr.mxu0 0.0
    %6328 = vmatpush1.msra.mxu0 0.0
    %6329 = vmatprep.subr.mxu0 0.0
    %6330 = vmatpush1.msra.mxu0 0.0
    %6331 = vmatprep.subr.mxu0 0.0
    %6332 = vmatpush1.msra.mxu0 0.0
    %6333 = vmatprep.subr.mxu0 0.0
    %6334 = vmatpush1.msra.mxu0 0.0
    %6335 = vmatprep.subr.mxu0 0.0
    %6336 = vmatpush1.msra.mxu0 0.0
    %6337 = vmatprep.subr.mxu0 0.0
    %6338 = vmatpush1.msra.mxu0 0.0
    %6339 = vmatprep.subr.mxu0 0.0
    %6340 = vmatpush1.msra.mxu0 0.0
    %6341 = vmatprep.subr.mxu0 0.0
    %6342 = vmatpush1.msra.mxu0 0.0
    %6343 = vmatprep.subr.mxu0 0.0
    %6344 = vmatpush1.msra.mxu0 0.0
    %6345 = vmatprep.subr.mxu0 0.0
    %6346 = vmatpush1.msra.mxu0 0.0
    %6347 = vmatprep.subr.mxu0 0.0
    %6348 = vmatpush1.msra.mxu0 0.0
    %6349 = vmatprep.mubr.f32.mxu0 0.0
    %6350 = vmatmul.mubr.f32.gmra.mrb[0].mxu0 %v394
    %v6351 = vpop.f32.mrb[0].mxu0
    %v6352 = vadd.f32 0.0, %v6351
    %v6353 = vpop.f32.mrb[0].mxu0
    %6354 = vdwg.mxu0
    %v6355 = vmax.f32 %v6352, 1.0
    %6357 = vset.pattern.permute.xlu0 0
    %6358 = vperm.xlu0 %6357, %v6355
    %v6359 = vpop.permute.xlu0 %6358
    %v6361 = vrcp.pop %v6359
    %v6362 = vmul.f32 %v6282, %v6361
    %v6364 = vsel %vm120, %v6362, 0
    %6366 = vmatprep.subr.mxu0 0.0
    %6367 = vmatpush1.msra.mxu0 %v104
    %6368 = vmatprep.subr.mxu0 0.0
    %6369 = vmatpush1.msra.mxu0 %v105
    %6370 = vmatprep.subr.mxu0 0.0
    %6371 = vmatpush1.msra.mxu0 %v106
    %6372 = vmatprep.subr.mxu0 0.0
    %6373 = vmatpush1.msra.mxu0 %v107
    %6374 = vmatprep.subr.mxu0 0.0
    %6375 = vmatpush1.msra.mxu0 0.0
    %6376 = vmatprep.subr.mxu0 0.0
    %6377 = vmatpush1.msra.mxu0 0.0
    %6378 = vmatprep.subr.mxu0 0.0
    %6379 = vmatpush1.msra.mxu0 0.0
    %6380 = vmatprep.subr.mxu0 0.0
    %6381 = vmatpush1.msra.mxu0 0.0
    %6382 = vmatprep.subr.mxu0 0.0
    %6383 = vmatpush1.msra.mxu0 0.0
    %6384 = vmatprep.subr.mxu0 0.0
    %6385 = vmatpush1.msra.mxu0 0.0
    %6386 = vmatprep.subr.mxu0 0.0
    %6387 = vmatpush1.msra.mxu0 0.0
    %6388 = vmatprep.subr.mxu0 0.0
    %6389 = vmatpush1.msra.mxu0 0.0
    %6390 = vmatprep.subr.mxu0 0.0
    %6391 = vmatpush1.msra.mxu0 0.0
    %6392 = vmatprep.subr.mxu0 0.0
    %6393 = vmatpush1.msra.mxu0 0.0
    %6394 = vmatprep.subr.mxu0 0.0
    %6395 = vmatpush1.msra.mxu0 0.0
    %6396 = vmatprep.subr.mxu0 0.0
    %6397 = vmatpush1.msra.mxu0 0.0
    %6398 = vmatprep.subr.mxu0 0.0
    %6399 = vmatpush1.msra.mxu0 0.0
    %6400 = vmatprep.subr.mxu0 0.0
    %6401 = vmatpush1.msra.mxu0 0.0
    %6402 = vmatprep.subr.mxu0 0.0
    %6403 = vmatpush1.msra.mxu0 0.0
    %6404 = vmatprep.subr.mxu0 0.0
    %6405 = vmatpush1.msra.mxu0 0.0
    %6406 = vmatprep.subr.mxu0 0.0
    %6407 = vmatpush1.msra.mxu0 0.0
    %6408 = vmatprep.subr.mxu0 0.0
    %6409 = vmatpush1.msra.mxu0 0.0
    %6410 = vmatprep.subr.mxu0 0.0
    %6411 = vmatpush1.msra.mxu0 0.0
    %6412 = vmatprep.subr.mxu0 0.0
    %6413 = vmatpush1.msra.mxu0 0.0
    %6414 = vmatprep.subr.mxu0 0.0
    %6415 = vmatpush1.msra.mxu0 0.0
    %6416 = vmatprep.subr.mxu0 0.0
    %6417 = vmatpush1.msra.mxu0 0.0
    %6418 = vmatprep.subr.mxu0 0.0
    %6419 = vmatpush1.msra.mxu0 0.0
    %6420 = vmatprep.subr.mxu0 0.0
    %6421 = vmatpush1.msra.mxu0 0.0
    %6422 = vmatprep.subr.mxu0 0.0
    %6423 = vmatpush1.msra.mxu0 0.0
    %6424 = vmatprep.subr.mxu0 0.0
    %6425 = vmatpush1.msra.mxu0 0.0
    %6426 = vmatprep.subr.mxu0 0.0
    %6427 = vmatpush1.msra.mxu0 0.0
    %6428 = vmatprep.subr.mxu0 0.0
    %6429 = vmatpush1.msra.mxu0 0.0
    %6430 = vmatprep.mubr.f32.mxu0 0.0
    %6431 = vmatmul.mubr.f32.gmra.mrb[0].mxu0 %v6364
    %v6432 = vpop.f32.mrb[0].mxu0
    %v6433 = vadd.f32 0.0, %v6432
    %v6434 = vpop.f32.mrb[0].mxu0
    %6435 = vdwg.mxu0
    %v6437 = vsel %vm621, %v6433, 0
    %6439 = vmatprep.subr.mxu0 0.0
    %6440 = vmatpush1.msra.mxu0 %v6437
    %6441 = vmatprep.subr.mxu0 0.0
    %6442 = vmatpush1.msra.mxu0 0.0
    %6443 = vmatprep.subr.mxu0 0.0
    %6444 = vmatpush1.msra.mxu0 0.0
    %6445 = vmatprep.subr.mxu0 0.0
    %6446 = vmatpush1.msra.mxu0 0.0
    %6447 = vmatprep.subr.mxu0 0.0
    %6448 = vmatpush1.msra.mxu0 0.0
    %6449 = vmatprep.subr.mxu0 0.0
    %6450 = vmatpush1.msra.mxu0 0.0
    %6451 = vmatprep.subr.mxu0 0.0
    %6452 = vmatpush1.msra.mxu0 0.0
    %6453 = vmatprep.subr.mxu0 0.0
    %6454 = vmatpush1.msra.mxu0 0.0
    %6455 = vmatprep.subr.mxu0 0.0
    %6456 = vmatpush1.msra.mxu0 0.0
    %6457 = vmatprep.subr.mxu0 0.0
    %6458 = vmatpush1.msra.mxu0 0.0
    %6459 = vmatprep.subr.mxu0 0.0
    %6460 = vmatpush1.msra.mxu0 0.0
    %6461 = vmatprep.subr.mxu0 0.0
    %6462 = vmatpush1.msra.mxu0 0.0
    %6463 = vmatprep.subr.mxu0 0.0
    %6464 = vmatpush1.msra.mxu0 0.0
    %6465 = vmatprep.subr.mxu0 0.0
    %6466 = vmatpush1.msra.mxu0 0.0
    %6467 = vmatprep.subr.mxu0 0.0
    %6468 = vmatpush1.msra.mxu0 0.0
    %6469 = vmatprep.subr.mxu0 0.0
    %6470 = vmatpush1.msra.mxu0 0.0
    %6471 = vmatprep.subr.mxu0 0.0
    %6472 = vmatpush1.msra.mxu0 0.0
    %6473 = vmatprep.subr.mxu0 0.0
    %6474 = vmatpush1.msra.mxu0 0.0
    %6475 = vmatprep.subr.mxu0 0.0
    %6476 = vmatpush1.msra.mxu0 0.0
    %6477 = vmatprep.subr.mxu0 0.0
    %6478 = vmatpush1.msra.mxu0 0.0
    %6479 = vmatprep.subr.mxu0 0.0
    %6480 = vmatpush1.msra.mxu0 0.0
    %6481 = vmatprep.subr.mxu0 0.0
    %6482 = vmatpush1.msra.mxu0 0.0
    %6483 = vmatprep.subr.mxu0 0.0
    %6484 = vmatpush1.msra.mxu0 0.0
    %6485 = vmatprep.subr.mxu0 0.0
    %6486 = vmatpush1.msra.mxu0 0.0
    %6487 = vmatprep.subr.mxu0 0.0
    %6488 = vmatpush1.msra.mxu0 0.0
    %6489 = vmatprep.subr.mxu0 0.0
    %6490 = vmatpush1.msra.mxu0 0.0
    %6491 = vmatprep.subr.mxu0 0.0
    %6492 = vmatpush1.msra.mxu0 0.0
    %6493 = vmatprep.subr.mxu0 0.0
    %6494 = vmatpush1.msra.mxu0 0.0
    %6495 = vmatprep.subr.mxu0 0.0
    %6496 = vmatpush1.msra.mxu0 0.0
    %6497 = vmatprep.subr.mxu0 0.0
    %6498 = vmatpush1.msra.mxu0 0.0
    %6499 = vmatprep.subr.mxu0 0.0
    %6500 = vmatpush1.msra.mxu0 0.0
    %6501 = vmatprep.subr.mxu0 0.0
    %6502 = vmatpush1.msra.mxu0 0.0
    %6503 = vmatprep.mubr.f32.mxu0 0.0
    %6504 = vmatmul.mubr.f32.gmra.mrb[0].mxu0 %v619
    %v6505 = vpop.f32.mrb[0].mxu0
    %v6506 = vadd.f32 0.0, %v6505
    %v6507 = vpop.f32.mrb[0].mxu0
    %6508 = vdwg.mxu0
    %v6510 = vsel %vm120, %v6208, 0
    %6512 = vmatprep.subr.mxu0 0.0
    %6513 = vmatpush1.msra.mxu0 %v100
    %6514 = vmatprep.subr.mxu0 0.0
    %6515 = vmatpush1.msra.mxu0 %v101
    %6516 = vmatprep.subr.mxu0 0.0
    %6517 = vmatpush1.msra.mxu0 %v102
    %6518 = vmatprep.subr.mxu0 0.0
    %6519 = vmatpush1.msra.mxu0 %v103
    %6520 = vmatprep.subr.mxu0 0.0
    %6521 = vmatpush1.msra.mxu0 0.0
    %6522 = vmatprep.subr.mxu0 0.0
    %6523 = vmatpush1.msra.mxu0 0.0
    %6524 = vmatprep.subr.mxu0 0.0
    %6525 = vmatpush1.msra.mxu0 0.0
    %6526 = vmatprep.subr.mxu0 0.0
    %6527 = vmatpush1.msra.mxu0 0.0
    %6528 = vmatprep.subr.mxu0 0.0
    %6529 = vmatpush1.msra.mxu0 0.0
    %6530 = vmatprep.subr.mxu0 0.0
    %6531 = vmatpush1.msra.mxu0 0.0
    %6532 = vmatprep.subr.mxu0 0.0
    %6533 = vmatpush1.msra.mxu0 0.0
    %6534 = vmatprep.subr.mxu0 0.0
    %6535 = vmatpush1.msra.mxu0 0.0
    %6536 = vmatprep.subr.mxu0 0.0
    %6537 = vmatpush1.msra.mxu0 0.0
    %6538 = vmatprep.subr.mxu0 0.0
    %6539 = vmatpush1.msra.mxu0 0.0
    %6540 = vmatprep.subr.mxu0 0.0
    %6541 = vmatpush1.msra.mxu0 0.0
    %6542 = vmatprep.subr.mxu0 0.0
    %6543 = vmatpush1.msra.mxu0 0.0
    %6544 = vmatprep.subr.mxu0 0.0
    %6545 = vmatpush1.msra.mxu0 0.0
    %6546 = vmatprep.subr.mxu0 0.0
    %6547 = vmatpush1.msra.mxu0 0.0
    %6548 = vmatprep.subr.mxu0 0.0
    %6549 = vmatpush1.msra.mxu0 0.0
    %6550 = vmatprep.subr.mxu0 0.0
    %6551 = vmatpush1.msra.mxu0 0.0
    %6552 = vmatprep.subr.mxu0 0.0
    %6553 = vmatpush1.msra.mxu0 0.0
    %6554 = vmatprep.subr.mxu0 0.0
    %6555 = vmatpush1.msra.mxu0 0.0
    %6556 = vmatprep.subr.mxu0 0.0
    %6557 = vmatpush1.msra.mxu0 0.0
    %6558 = vmatprep.subr.mxu0 0.0
    %6559 = vmatpush1.msra.mxu0 0.0
    %6560 = vmatprep.subr.mxu0 0.0
    %6561 = vmatpush1.msra.mxu0 0.0
    %6562 = vmatprep.subr.mxu0 0.0
    %6563 = vmatpush1.msra.mxu0 0.0
    %6564 = vmatprep.subr.mxu0 0.0
    %6565 = vmatpush1.msra.mxu0 0.0
    %6566 = vmatprep.subr.mxu0 0.0
    %6567 = vmatpush1.msra.mxu0 0.0
    %6568 = vmatprep.subr.mxu0 0.0
    %6569 = vmatpush1.msra.mxu0 0.0
    %6570 = vmatprep.subr.mxu0 0.0
    %6571 = vmatpush1.msra.mxu0 0.0
    %6572 = vmatprep.subr.mxu0 0.0
    %6573 = vmatpush1.msra.mxu0 0.0
    %6574 = vmatprep.subr.mxu0 0.0
    %6575 = vmatpush1.msra.mxu0 0.0
    %6576 = vmatprep.mubr.f32.mxu0 0.0
    %6577 = vmatmul.mubr.f32.gmra.mrb[0].mxu0 %v6510
    %v6578 = vpop.f32.mrb[0].mxu0
    %v6579 = vadd.f32 %v6506, %v6578
    %v6580 = vpop.f32.mrb[0].mxu0
    %6581 = vdwg.mxu0
    %v6582 = vadd.f32 %v6579, %v772
    %v6583 = vmax.f32 %v6582, 0.0
    %v6584 = vmul.f32 %v6583, %v6212
    %v6585 = vmul.f32 %v6584, %v117
    %v6586 = vmul.f32 %v6584, %v198
    %v6588 = vsel %vm779, %v6586, 0
    %6590 = vmatprep.subr.mxu0 0.0
    %6591 = vmatpush1.msra.mxu0 %v81
    %6592 = vmatprep.subr.mxu0 0.0
    %6593 = vmatpush1.msra.mxu0 %v82
    %6594 = vmatprep.subr.mxu0 0.0
    %6595 = vmatpush1.msra.mxu0 0.0
    %6596 = vmatprep.subr.mxu0 0.0
    %6597 = vmatpush1.msra.mxu0 0.0
    %6598 = vmatprep.subr.mxu0 0.0
    %6599 = vmatpush1.msra.mxu0 0.0
    %6600 = vmatprep.subr.mxu0 0.0
    %6601 = vmatpush1.msra.mxu0 0.0
    %6602 = vmatprep.subr.mxu0 0.0
    %6603 = vmatpush1.msra.mxu0 0.0
    %6604 = vmatprep.subr.mxu0 0.0
    %6605 = vmatpush1.msra.mxu0 0.0
    %6606 = vmatprep.subr.mxu0 0.0
    %6607 = vmatpush1.msra.mxu0 0.0
    %6608 = vmatprep.subr.mxu0 0.0
    %6609 = vmatpush1.msra.mxu0 0.0
    %6610 = vmatprep.subr.mxu0 0.0
    %6611 = vmatpush1.msra.mxu0 0.0
    %6612 = vmatprep.subr.mxu0 0.0
    %6613 = vmatpush1.msra.mxu0 0.0
    %6614 = vmatprep.subr.mxu0 0.0
    %6615 = vmatpush1.msra.mxu0 0.0
    %6616 = vmatprep.subr.mxu0 0.0
    %6617 = vmatpush1.msra.mxu0 0.0
    %6618 = vmatprep.subr.mxu0 0.0
    %6619 = vmatpush1.msra.mxu0 0.0
    %6620 = vmatprep.subr.mxu0 0.0
    %6621 = vmatpush1.msra.mxu0 0.0
    %6622 = vmatprep.subr.mxu0 0.0
    %6623 = vmatpush1.msra.mxu0 0.0
    %6624 = vmatprep.subr.mxu0 0.0
    %6625 = vmatpush1.msra.mxu0 0.0
    %6626 = vmatprep.subr.mxu0 0.0
    %6627 = vmatpush1.msra.mxu0 0.0
    %6628 = vmatprep.subr.mxu0 0.0
    %6629 = vmatpush1.msra.mxu0 0.0
    %6630 = vmatprep.subr.mxu0 0.0
    %6631 = vmatpush1.msra.mxu0 0.0
    %6632 = vmatprep.subr.mxu0 0.0
    %6633 = vmatpush1.msra.mxu0 0.0
    %6634 = vmatprep.subr.mxu0 0.0
    %6635 = vmatpush1.msra.mxu0 0.0
    %6636 = vmatprep.subr.mxu0 0.0
    %6637 = vmatpush1.msra.mxu0 0.0
    %6638 = vmatprep.subr.mxu0 0.0
    %6639 = vmatpush1.msra.mxu0 0.0
    %6640 = vmatprep.subr.mxu0 0.0
    %6641 = vmatpush1.msra.mxu0 0.0
    %6642 = vmatprep.subr.mxu0 0.0
    %6643 = vmatpush1.msra.mxu0 0.0
    %6644 = vmatprep.subr.mxu0 0.0
    %6645 = vmatpush1.msra.mxu0 0.0
    %6646 = vmatprep.subr.mxu0 0.0
    %6647 = vmatpush1.msra.mxu0 0.0
    %6648 = vmatprep.subr.mxu0 0.0
    %6649 = vmatpush1.msra.mxu0 0.0
    %6650 = vmatprep.subr.mxu0 0.0
    %6651 = vmatpush1.msra.mxu0 0.0
    %6652 = vmatprep.subr.mxu0 0.0
    %6653 = vmatpush1.msra.mxu0 0.0
    %6654 = vmatprep.mubr.f32.mxu0 0.0
    %6655 = vmatmul.mubr.f32.gmra.mrb[0].mxu0 %v6588
    %v6656 = vpop.f32.mrb[0].mxu0
    %v6657 = vadd.f32 0.0, %v6656
    %v6658 = vpop.f32.mrb[0].mxu0
    %6659 = vdwg.mxu0
    %v6661 = vsel %vm779, %v6585, 0
    %6663 = vmatprep.subr.mxu0 0.0
    %6664 = vmatpush1.msra.mxu0 %v78
    %6665 = vmatprep.subr.mxu0 0.0
    %6666 = vmatpush1.msra.mxu0 %v79
    %6667 = vmatprep.subr.mxu0 0.0
    %6668 = vmatpush1.msra.mxu0 0.0
    %6669 = vmatprep.subr.mxu0 0.0
    %6670 = vmatpush1.msra.mxu0 0.0
    %6671 = vmatprep.subr.mxu0 0.0
    %6672 = vmatpush1.msra.mxu0 0.0
    %6673 = vmatprep.subr.mxu0 0.0
    %6674 = vmatpush1.msra.mxu0 0.0
    %6675 = vmatprep.subr.mxu0 0.0
    %6676 = vmatpush1.msra.mxu0 0.0
    %6677 = vmatprep.subr.mxu0 0.0
    %6678 = vmatpush1.msra.mxu0 0.0
    %6679 = vmatprep.subr.mxu0 0.0
    %6680 = vmatpush1.msra.mxu0 0.0
    %6681 = vmatprep.subr.mxu0 0.0
    %6682 = vmatpush1.msra.mxu0 0.0
    %6683 = vmatprep.subr.mxu0 0.0
    %6684 = vmatpush1.msra.mxu0 0.0
    %6685 = vmatprep.subr.mxu0 0.0
    %6686 = vmatpush1.msra.mxu0 0.0
    %6687 = vmatprep.subr.mxu0 0.0
    %6688 = vmatpush1.msra.mxu0 0.0
    %6689 = vmatprep.subr.mxu0 0.0
    %6690 = vmatpush1.msra.mxu0 0.0
    %6691 = vmatprep.subr.mxu0 0.0
    %6692 = vmatpush1.msra.mxu0 0.0
    %6693 = vmatprep.subr.mxu0 0.0
    %6694 = vmatpush1.msra.mxu0 0.0
    %6695 = vmatprep.subr.mxu0 0.0
    %6696 = vmatpush1.msra.mxu0 0.0
    %6697 = vmatprep.subr.mxu0 0.0
    %6698 = vmatpush1.msra.mxu0 0.0
    %6699 = vmatprep.subr.mxu0 0.0
    %6700 = vmatpush1.msra.mxu0 0.0
    %6701 = vmatprep.subr.mxu0 0.0
    %6702 = vmatpush1.msra.mxu0 0.0
    %6703 = vmatprep.subr.mxu0 0.0
    %6704 = vmatpush1.msra.mxu0 0.0
    %6705 = vmatprep.subr.mxu0 0.0
    %6706 = vmatpush1.msra.mxu0 0.0
    %6707 = vmatprep.subr.mxu0 0.0
    %6708 = vmatpush1.msra.mxu0 0.0
    %6709 = vmatprep.subr.mxu0 0.0
    %6710 = vmatpush1.msra.mxu0 0.0
    %6711 = vmatprep.subr.mxu0 0.0
    %6712 = vmatpush1.msra.mxu0 0.0
    %6713 = vmatprep.subr.mxu0 0.0
    %6714 = vmatpush1.msra.mxu0 0.0
    %6715 = vmatprep.subr.mxu0 0.0
    %6716 = vmatpush1.msra.mxu0 0.0
    %6717 = vmatprep.subr.mxu0 0.0
    %6718 = vmatpush1.msra.mxu0 0.0
    %6719 = vmatprep.subr.mxu0 0.0
    %6720 = vmatpush1.msra.mxu0 0.0
    %6721 = vmatprep.subr.mxu0 0.0
    %6722 = vmatpush1.msra.mxu0 0.0
    %6723 = vmatprep.subr.mxu0 0.0
    %6724 = vmatpush1.msra.mxu0 0.0
    %6725 = vmatprep.subr.mxu0 0.0
    %6726 = vmatpush1.msra.mxu0 0.0
    %6727 = vmatprep.mubr.f32.mxu0 0.0
    %6728 = vmatmul.mubr.f32.gmra.mrb[0].mxu0 %v6661
    %v6729 = vpop.f32.mrb[0].mxu0
    %v6730 = vadd.f32 %v6657, %v6729
    %v6731 = vpop.f32.mrb[0].mxu0
    %6732 = vdwg.mxu0
    %v6733 = vadd.f32 %v6730, %v92
    %v6734 = vmul.f32 %v5943, %v117
    %6736 = vrot.lane.b32.xlu0 %v6734, 64
    %v6737 = vpop.permute.xlu0 %6736
    %v6738 = vsel %vm120, %v6737, 0
    %6740 = vmatprep.subr.mxu0 0.0
    %6741 = vmatpush1.msra.mxu0 %v83
    %6742 = vmatprep.subr.mxu0 0.0
    %6743 = vmatpush1.msra.mxu0 %v84
    %6744 = vmatprep.subr.mxu0 0.0
    %6745 = vmatpush1.msra.mxu0 %v85
    %6746 = vmatprep.subr.mxu0 0.0
    %6747 = vmatpush1.msra.mxu0 %v86
    %6748 = vmatprep.subr.mxu0 0.0
    %6749 = vmatpush1.msra.mxu0 0.0
    %6750 = vmatprep.subr.mxu0 0.0
    %6751 = vmatpush1.msra.mxu0 0.0
    %6752 = vmatprep.subr.mxu0 0.0
    %6753 = vmatpush1.msra.mxu0 0.0
    %6754 = vmatprep.subr.mxu0 0.0
    %6755 = vmatpush1.msra.mxu0 0.0
    %6756 = vmatprep.subr.mxu0 0.0
    %6757 = vmatpush1.msra.mxu0 0.0
    %6758 = vmatprep.subr.mxu0 0.0
    %6759 = vmatpush1.msra.mxu0 0.0
    %6760 = vmatprep.subr.mxu0 0.0
    %6761 = vmatpush1.msra.mxu0 0.0
    %6762 = vmatprep.subr.mxu0 0.0
    %6763 = vmatpush1.msra.mxu0 0.0
    %6764 = vmatprep.subr.mxu0 0.0
    %6765 = vmatpush1.msra.mxu0 0.0
    %6766 = vmatprep.subr.mxu0 0.0
    %6767 = vmatpush1.msra.mxu0 0.0
    %6768 = vmatprep.subr.mxu0 0.0
    %6769 = vmatpush1.msra.mxu0 0.0
    %6770 = vmatprep.subr.mxu0 0.0
    %6771 = vmatpush1.msra.mxu0 0.0
    %6772 = vmatprep.subr.mxu0 0.0
    %6773 = vmatpush1.msra.mxu0 0.0
    %6774 = vmatprep.subr.mxu0 0.0
    %6775 = vmatpush1.msra.mxu0 0.0
    %6776 = vmatprep.subr.mxu0 0.0
    %6777 = vmatpush1.msra.mxu0 0.0
    %6778 = vmatprep.subr.mxu0 0.0
    %6779 = vmatpush1.msra.mxu0 0.0
    %6780 = vmatprep.subr.mxu0 0.0
    %6781 = vmatpush1.msra.mxu0 0.0
    %6782 = vmatprep.subr.mxu0 0.0
    %6783 = vmatpush1.msra.mxu0 0.0
    %6784 = vmatprep.subr.mxu0 0.0
    %6785 = vmatpush1.msra.mxu0 0.0
    %6786 = vmatprep.subr.mxu0 0.0
    %6787 = vmatpush1.msra.mxu0 0.0
    %6788 = vmatprep.subr.mxu0 0.0
    %6789 = vmatpush1.msra.mxu0 0.0
    %6790 = vmatprep.subr.mxu0 0.0
    %6791 = vmatpush1.msra.mxu0 0.0
    %6792 = vmatprep.subr.mxu0 0.0
    %6793 = vmatpush1.msra.mxu0 0.0
    %6794 = vmatprep.subr.mxu0 0.0
    %6795 = vmatpush1.msra.mxu0 0.0
    %6796 = vmatprep.subr.mxu0 0.0
    %6797 = vmatpush1.msra.mxu0 0.0
    %6798 = vmatprep.subr.mxu0 0.0
    %6799 = vmatpush1.msra.mxu0 0.0
    %6800 = vmatprep.subr.mxu0 0.0
    %6801 = vmatpush1.msra.mxu0 0.0
    %6802 = vmatprep.subr.mxu0 0.0
    %6803 = vmatpush1.msra.mxu0 0.0
    %6804 = vmatprep.mubr.f32.mxu0 0.0
    %6805 = vmatmul.mubr.f32.gmra.mrb[0].mxu0 %v6738
    %v6806 = vpop.f32.mrb[0].mxu0
    %v6807 = vadd.f32 0.0, %v6806
    %v6808 = vpop.f32.mrb[0].mxu0
    %6809 = vdwg.mxu0
    %v6810 = vadd.f32 %v6733, %v6807
    %v6811 = vmul.f32 %v5943, %v198
    %6813 = vrot.lane.b32.xlu0 %v6811, 64
    %v6814 = vpop.permute.xlu0 %6813
    %v6815 = vsel %vm120, %v6814, 0
    %6817 = vmatprep.subr.mxu0 0.0
    %6818 = vmatpush1.msra.mxu0 %v88
    %6819 = vmatprep.subr.mxu0 0.0
    %6820 = vmatpush1.msra.mxu0 %v89
    %6821 = vmatprep.subr.mxu0 0.0
    %6822 = vmatpush1.msra.mxu0 %v90
    %6823 = vmatprep.subr.mxu0 0.0
    %6824 = vmatpush1.msra.mxu0 %v91
    %6825 = vmatprep.subr.mxu0 0.0
    %6826 = vmatpush1.msra.mxu0 0.0
    %6827 = vmatprep.subr.mxu0 0.0
    %6828 = vmatpush1.msra.mxu0 0.0
    %6829 = vmatprep.subr.mxu0 0.0
    %6830 = vmatpush1.msra.mxu0 0.0
    %6831 = vmatprep.subr.mxu0 0.0
    %6832 = vmatpush1.msra.mxu0 0.0
    %6833 = vmatprep.subr.mxu0 0.0
    %6834 = vmatpush1.msra.mxu0 0.0
    %6835 = vmatprep.subr.mxu0 0.0
    %6836 = vmatpush1.msra.mxu0 0.0
    %6837 = vmatprep.subr.mxu0 0.0
    %6838 = vmatpush1.msra.mxu0 0.0
    %6839 = vmatprep.subr.mxu0 0.0
    %6840 = vmatpush1.msra.mxu0 0.0
    %6841 = vmatprep.subr.mxu0 0.0
    %6842 = vmatpush1.msra.mxu0 0.0
    %6843 = vmatprep.subr.mxu0 0.0
    %6844 = vmatpush1.msra.mxu0 0.0
    %6845 = vmatprep.subr.mxu0 0.0
    %6846 = vmatpush1.msra.mxu0 0.0
    %6847 = vmatprep.subr.mxu0 0.0
    %6848 = vmatpush1.msra.mxu0 0.0
    %6849 = vmatprep.subr.mxu0 0.0
    %6850 = vmatpush1.msra.mxu0 0.0
    %6851 = vmatprep.subr.mxu0 0.0
    %6852 = vmatpush1.msra.mxu0 0.0
    %6853 = vmatprep.subr.mxu0 0.0
    %6854 = vmatpush1.msra.mxu0 0.0
    %6855 = vmatprep.subr.mxu0 0.0
    %6856 = vmatpush1.msra.mxu0 0.0
    %6857 = vmatprep.subr.mxu0 0.0
    %6858 = vmatpush1.msra.mxu0 0.0
    %6859 = vmatprep.subr.mxu0 0.0
    %6860 = vmatpush1.msra.mxu0 0.0
    %6861 = vmatprep.subr.mxu0 0.0
    %6862 = vmatpush1.msra.mxu0 0.0
    %6863 = vmatprep.subr.mxu0 0.0
    %6864 = vmatpush1.msra.mxu0 0.0
    %6865 = vmatprep.subr.mxu0 0.0
    %6866 = vmatpush1.msra.mxu0 0.0
    %6867 = vmatprep.subr.mxu0 0.0
    %6868 = vmatpush1.msra.mxu0 0.0
    %6869 = vmatprep.subr.mxu0 0.0
    %6870 = vmatpush1.msra.mxu0 0.0
    %6871 = vmatprep.subr.mxu0 0.0
    %6872 = vmatpush1.msra.mxu0 0.0
    %6873 = vmatprep.subr.mxu0 0.0
    %6874 = vmatpush1.msra.mxu0 0.0
    %6875 = vmatprep.subr.mxu0 0.0
    %6876 = vmatpush1.msra.mxu0 0.0
    %6877 = vmatprep.subr.mxu0 0.0
    %6878 = vmatpush1.msra.mxu0 0.0
    %6879 = vmatprep.subr.mxu0 0.0
    %6880 = vmatpush1.msra.mxu0 0.0
    %6881 = vmatprep.mubr.f32.mxu0 0.0
    %6882 = vmatmul.mubr.f32.gmra.mrb[0].mxu0 %v6815
    %v6883 = vpop.f32.mrb[0].mxu0
    %v6884 = vadd.f32 0.0, %v6883
    %v6885 = vpop.f32.mrb[0].mxu0
    %6886 = vdwg.mxu0
    %v6887 = vadd.f32 %v6810, %v6884
    %v6888 = vxor.u32 %v6887, 2147483648
    %v6889 = vmul.f32 %v6888, 1.442695
    %v6890 = vpow.pop %v6889
    %v6891 = vadd.f32 %v6890, 1.0
    %v6892 = vrcp.pop %v6891
    %v6893 = vmul.f32 1.0, %v6892
    %v6894 = vtanh.pop %v6887
    %v6895 = vmul.f32 %v6893, %v5937
    %6897 = vrot.lane.b32.xlu0 %v6894, 32
    %v6898 = vpop.permute.xlu0 %6897
    %v6900 = vmul.f32 %v6893, %v6898
    %6902 = vrot.lane.b32.xlu0 %v6900, 32
    %v6903 = vpop.permute.xlu0 %6902
    %v6905 = vadd.f32 %v6895, %v6903
    %v6906 = vtanh.pop %v6905
    %6908 = vrot.lane.b32.xlu0 %v6906, 32
    %v6909 = vpop.permute.xlu0 %6908
    %v6911 = vmul.f32 %v6893, %v6909
    %v6912 = vmul.f32 %v6911, %v6212
    %6914 = vrot.lane.b32.xlu0 %v6912, 64
    %v6915 = vpop.permute.xlu0 %6914
    %s6917 = scalar_lea.vmem %s18, 48
    %6918 = vst.msk [vmem:[%s6917] sm:$0xff] %vm120, %v6915
    %s6919 = scalar_lea.vmem %s0, 56
    %v6920 = vld [vmem:[%s6919] sm:$0xff]
    %v6921 = vmul.f32 %v6130, %v117
    %6923 = vrot.lane.b32.xlu0 %v6921, 64
    %v6924 = vpop.permute.xlu0 %6923
    %v6925 = vsel %vm120, %v6924, 0
    %6927 = vmatprep.subr.mxu0 0.0
    %6928 = vmatpush1.msra.mxu0 %v69
    %6929 = vmatprep.subr.mxu0 0.0
    %6930 = vmatpush1.msra.mxu0 %v70
    %6931 = vmatprep.subr.mxu0 0.0
    %6932 = vmatpush1.msra.mxu0 %v71
    %6933 = vmatprep.subr.mxu0 0.0
    %6934 = vmatpush1.msra.mxu0 %v72
    %6935 = vmatprep.subr.mxu0 0.0
    %6936 = vmatpush1.msra.mxu0 0.0
    %6937 = vmatprep.subr.mxu0 0.0
    %6938 = vmatpush1.msra.mxu0 0.0
    %6939 = vmatprep.subr.mxu0 0.0
    %6940 = vmatpush1.msra.mxu0 0.0
    %6941 = vmatprep.subr.mxu0 0.0
    %6942 = vmatpush1.msra.mxu0 0.0
    %6943 = vmatprep.subr.mxu0 0.0
    %6944 = vmatpush1.msra.mxu0 0.0
    %6945 = vmatprep.subr.mxu0 0.0
    %6946 = vmatpush1.msra.mxu0 0.0
    %6947 = vmatprep.subr.mxu0 0.0
    %6948 = vmatpush1.msra.mxu0 0.0
    %6949 = vmatprep.subr.mxu0 0.0
    %6950 = vmatpush1.msra.mxu0 0.0
    %6951 = vmatprep.subr.mxu0 0.0
    %6952 = vmatpush1.msra.mxu0 0.0
    %6953 = vmatprep.subr.mxu0 0.0
    %6954 = vmatpush1.msra.mxu0 0.0
    %6955 = vmatprep.subr.mxu0 0.0
    %6956 = vmatpush1.msra.mxu0 0.0
    %6957 = vmatprep.subr.mxu0 0.0
    %6958 = vmatpush1.msra.mxu0 0.0
    %6959 = vmatprep.subr.mxu0 0.0
    %6960 = vmatpush1.msra.mxu0 0.0
    %6961 = vmatprep.subr.mxu0 0.0
    %6962 = vmatpush1.msra.mxu0 0.0
    %6963 = vmatprep.subr.mxu0 0.0
    %6964 = vmatpush1.msra.mxu0 0.0
    %6965 = vmatprep.subr.mxu0 0.0
    %6966 = vmatpush1.msra.mxu0 0.0
    %6967 = vmatprep.subr.mxu0 0.0
    %6968 = vmatpush1.msra.mxu0 0.0
    %6969 = vmatprep.subr.mxu0 0.0
    %6970 = vmatpush1.msra.mxu0 0.0
    %6971 = vmatprep.subr.mxu0 0.0
    %6972 = vmatpush1.msra.mxu0 0.0
    %6973 = vmatprep.subr.mxu0 0.0
    %6974 = vmatpush1.msra.mxu0 0.0
    %6975 = vmatprep.subr.mxu0 0.0
    %6976 = vmatpush1.msra.mxu0 0.0
    %6977 = vmatprep.subr.mxu0 0.0
    %6978 = vmatpush1.msra.mxu0 0.0
    %6979 = vmatprep.subr.mxu0 0.0
    %6980 = vmatpush1.msra.mxu0 0.0
    %6981 = vmatprep.subr.mxu0 0.0
    %6982 = vmatpush1.msra.mxu0 0.0
    %6983 = vmatprep.subr.mxu0 0.0
    %6984 = vmatpush1.msra.mxu0 0.0
    %6985 = vmatprep.subr.mxu0 0.0
    %6986 = vmatpush1.msra.mxu0 0.0
    %6987 = vmatprep.subr.mxu0 0.0
    %6988 = vmatpush1.msra.mxu0 0.0
    %6989 = vmatprep.subr.mxu0 0.0
    %6990 = vmatpush1.msra.mxu0 0.0
    %6991 = vmatprep.mubr.f32.mxu0 0.0
    %6992 = vmatmul.mubr.f32.gmra.mrb[0].mxu0 %v6925
    %v6993 = vpop.f32.mrb[0].mxu0
    %v6994 = vadd.f32 0.0, %v6993
    %v6995 = vpop.f32.mrb[0].mxu0
    %6996 = vdwg.mxu0
    %v6997 = vadd.f32 %v6920, %v6994
    %v6998 = vmul.f32 %v6130, %v198
    %7000 = vrot.lane.b32.xlu0 %v6998, 64
    %v7001 = vpop.permute.xlu0 %7000
    %v7002 = vsel %vm120, %v7001, 0
    %7004 = vmatprep.subr.mxu0 0.0
    %7005 = vmatpush1.msra.mxu0 %v74
    %7006 = vmatprep.subr.mxu0 0.0
    %7007 = vmatpush1.msra.mxu0 %v75
    %7008 = vmatprep.subr.mxu0 0.0
    %7009 = vmatpush1.msra.mxu0 %v76
    %7010 = vmatprep.subr.mxu0 0.0
    %7011 = vmatpush1.msra.mxu0 %v77
    %7012 = vmatprep.subr.mxu0 0.0
    %7013 = vmatpush1.msra.mxu0 0.0
    %7014 = vmatprep.subr.mxu0 0.0
    %7015 = vmatpush1.msra.mxu0 0.0
    %7016 = vmatprep.subr.mxu0 0.0
    %7017 = vmatpush1.msra.mxu0 0.0
    %7018 = vmatprep.subr.mxu0 0.0
    %7019 = vmatpush1.msra.mxu0 0.0
    %7020 = vmatprep.subr.mxu0 0.0
    %7021 = vmatpush1.msra.mxu0 0.0
    %7022 = vmatprep.subr.mxu0 0.0
    %7023 = vmatpush1.msra.mxu0 0.0
    %7024 = vmatprep.subr.mxu0 0.0
    %7025 = vmatpush1.msra.mxu0 0.0
    %7026 = vmatprep.subr.mxu0 0.0
    %7027 = vmatpush1.msra.mxu0 0.0
    %7028 = vmatprep.subr.mxu0 0.0
    %7029 = vmatpush1.msra.mxu0 0.0
    %7030 = vmatprep.subr.mxu0 0.0
    %7031 = vmatpush1.msra.mxu0 0.0
    %7032 = vmatprep.subr.mxu0 0.0
    %7033 = vmatpush1.msra.mxu0 0.0
    %7034 = vmatprep.subr.mxu0 0.0
    %7035 = vmatpush1.msra.mxu0 0.0
    %7036 = vmatprep.subr.mxu0 0.0
    %7037 = vmatpush1.msra.mxu0 0.0
    %7038 = vmatprep.subr.mxu0 0.0
    %7039 = vmatpush1.msra.mxu0 0.0
    %7040 = vmatprep.subr.mxu0 0.0
    %7041 = vmatpush1.msra.mxu0 0.0
    %7042 = vmatprep.subr.mxu0 0.0
    %7043 = vmatpush1.msra.mxu0 0.0
    %7044 = vmatprep.subr.mxu0 0.0
    %7045 = vmatpush1.msra.mxu0 0.0
    %7046 = vmatprep.subr.mxu0 0.0
    %7047 = vmatpush1.msra.mxu0 0.0
    %7048 = vmatprep.subr.mxu0 0.0
    %7049 = vmatpush1.msra.mxu0 0.0
    %7050 = vmatprep.subr.mxu0 0.0
    %7051 = vmatpush1.msra.mxu0 0.0
    %7052 = vmatprep.subr.mxu0 0.0
    %7053 = vmatpush1.msra.mxu0 0.0
    %7054 = vmatprep.subr.mxu0 0.0
    %7055 = vmatpush1.msra.mxu0 0.0
    %7056 = vmatprep.subr.mxu0 0.0
    %7057 = vmatpush1.msra.mxu0 0.0
    %7058 = vmatprep.subr.mxu0 0.0
    %7059 = vmatpush1.msra.mxu0 0.0
    %7060 = vmatprep.subr.mxu0 0.0
    %7061 = vmatpush1.msra.mxu0 0.0
    %7062 = vmatprep.subr.mxu0 0.0
    %7063 = vmatpush1.msra.mxu0 0.0
    %7064 = vmatprep.subr.mxu0 0.0
    %7065 = vmatpush1.msra.mxu0 0.0
    %7066 = vmatprep.subr.mxu0 0.0
    %7067 = vmatpush1.msra.mxu0 0.0
    %7068 = vmatprep.mubr.f32.mxu0 0.0
    %7069 = vmatmul.mubr.f32.gmra.mrb[0].mxu0 %v7002
    %v7070 = vpop.f32.mrb[0].mxu0
    %v7071 = vadd.f32 0.0, %v7070
    %v7072 = vpop.f32.mrb[0].mxu0
    %7073 = vdwg.mxu0
    %v7074 = vadd.f32 %v6997, %v7071
    %v7075 = vxor.u32 %v7074, 2147483648
    %v7076 = vmul.f32 %v7075, 1.442695
    %v7077 = vpow.pop %v7076
    %v7078 = vadd.f32 %v7077, 1.0
    %v7079 = vrcp.pop %v7078
    %v7080 = vmul.f32 1.0, %v7079
    %v7081 = vtanh.pop %v7074
    %v7082 = vmul.f32 %v7080, %v6124
    %7084 = vrot.lane.b32.xlu0 %v7081, 32
    %v7085 = vpop.permute.xlu0 %7084
    %v7087 = vmul.f32 %v7080, %v7085
    %7089 = vrot.lane.b32.xlu0 %v7087, 32
    %v7090 = vpop.permute.xlu0 %7089
    %v7092 = vadd.f32 %v7082, %v7090
    %v7093 = vtanh.pop %v7092
    %7095 = vrot.lane.b32.xlu0 %v7093, 32
    %v7096 = vpop.permute.xlu0 %7095
    %v7098 = vmul.f32 %v7080, %v7096
    %s7099 = scalar_lea.vmem %s1, 56
    %v7100 = vld [vmem:[%s7099] sm:$0xff]
    %7102 = vrot.lane.b32.xlu0 %v7098, 64
    %v7103 = vpop.permute.xlu0 %7102
    %v7104 = vsel %vm120, %v7103, 0
    %7106 = vmatprep.subr.mxu0 0.0
    %7107 = vmatpush1.msra.mxu0 %v95
    %7108 = vmatprep.subr.mxu0 0.0
    %7109 = vmatpush1.msra.mxu0 %v96
    %7110 = vmatprep.subr.mxu0 0.0
    %7111 = vmatpush1.msra.mxu0 %v97
    %7112 = vmatprep.subr.mxu0 0.0
    %7113 = vmatpush1.msra.mxu0 %v98
    %7114 = vmatprep.subr.mxu0 0.0
    %7115 = vmatpush1.msra.mxu0 0.0
    %7116 = vmatprep.subr.mxu0 0.0
    %7117 = vmatpush1.msra.mxu0 0.0
    %7118 = vmatprep.subr.mxu0 0.0
    %7119 = vmatpush1.msra.mxu0 0.0
    %7120 = vmatprep.subr.mxu0 0.0
    %7121 = vmatpush1.msra.mxu0 0.0
    %7122 = vmatprep.subr.mxu0 0.0
    %7123 = vmatpush1.msra.mxu0 0.0
    %7124 = vmatprep.subr.mxu0 0.0
    %7125 = vmatpush1.msra.mxu0 0.0
    %7126 = vmatprep.subr.mxu0 0.0
    %7127 = vmatpush1.msra.mxu0 0.0
    %7128 = vmatprep.subr.mxu0 0.0
    %7129 = vmatpush1.msra.mxu0 0.0
    %7130 = vmatprep.subr.mxu0 0.0
    %7131 = vmatpush1.msra.mxu0 0.0
    %7132 = vmatprep.subr.mxu0 0.0
    %7133 = vmatpush1.msra.mxu0 0.0
    %7134 = vmatprep.subr.mxu0 0.0
    %7135 = vmatpush1.msra.mxu0 0.0
    %7136 = vmatprep.subr.mxu0 0.0
    %7137 = vmatpush1.msra.mxu0 0.0
    %7138 = vmatprep.subr.mxu0 0.0
    %7139 = vmatpush1.msra.mxu0 0.0
    %7140 = vmatprep.subr.mxu0 0.0
    %7141 = vmatpush1.msra.mxu0 0.0
    %7142 = vmatprep.subr.mxu0 0.0
    %7143 = vmatpush1.msra.mxu0 0.0
    %7144 = vmatprep.subr.mxu0 0.0
    %7145 = vmatpush1.msra.mxu0 0.0
    %7146 = vmatprep.subr.mxu0 0.0
    %7147 = vmatpush1.msra.mxu0 0.0
    %7148 = vmatprep.subr.mxu0 0.0
    %7149 = vmatpush1.msra.mxu0 0.0
    %7150 = vmatprep.subr.mxu0 0.0
    %7151 = vmatpush1.msra.mxu0 0.0
    %7152 = vmatprep.subr.mxu0 0.0
    %7153 = vmatpush1.msra.mxu0 0.0
    %7154 = vmatprep.subr.mxu0 0.0
    %7155 = vmatpush1.msra.mxu0 0.0
    %7156 = vmatprep.subr.mxu0 0.0
    %7157 = vmatpush1.msra.mxu0 0.0
    %7158 = vmatprep.subr.mxu0 0.0
    %7159 = vmatpush1.msra.mxu0 0.0
    %7160 = vmatprep.subr.mxu0 0.0
    %7161 = vmatpush1.msra.mxu0 0.0
    %7162 = vmatprep.subr.mxu0 0.0
    %7163 = vmatpush1.msra.mxu0 0.0
    %7164 = vmatprep.subr.mxu0 0.0
    %7165 = vmatpush1.msra.mxu0 0.0
    %7166 = vmatprep.subr.mxu0 0.0
    %7167 = vmatpush1.msra.mxu0 0.0
    %7168 = vmatprep.subr.mxu0 0.0
    %7169 = vmatpush1.msra.mxu0 0.0
    %7170 = vmatprep.mubr.f32.mxu0 0.0
    %7171 = vmatmul.mubr.f32.gmra.mrb[0].mxu0 %v7104
    %v7172 = vpop.f32.mrb[0].mxu0
    %v7173 = vadd.f32 %v308, %v7172
    %v7174 = vpop.f32.mrb[0].mxu0
    %7175 = vdwg.mxu0
    %v7176 = vmax.f32 %v7173, 0.0
    %7178 = vset.pattern.permute.xlu0 0
    %7179 = vperm.xlu0 %7178, %v7100
    %v7180 = vpop.permute.xlu0 %7179
    %v7182 = vmul.f32 %v7176, %v7180
    %7183 = vmatprep.subr.mxu0 0.0
    %7184 = vmatpush1.msra.mxu0 %v7182
    %7185 = vmatprep.subr.mxu0 0.0
    %7186 = vmatpush1.msra.mxu0 0.0
    %7187 = vmatprep.subr.mxu0 0.0
    %7188 = vmatpush1.msra.mxu0 0.0
    %7189 = vmatprep.subr.mxu0 0.0
    %7190 = vmatpush1.msra.mxu0 0.0
    %7191 = vmatprep.subr.mxu0 0.0
    %7192 = vmatpush1.msra.mxu0 0.0
    %7193 = vmatprep.subr.mxu0 0.0
    %7194 = vmatpush1.msra.mxu0 0.0
    %7195 = vmatprep.subr.mxu0 0.0
    %7196 = vmatpush1.msra.mxu0 0.0
    %7197 = vmatprep.subr.mxu0 0.0
    %7198 = vmatpush1.msra.mxu0 0.0
    %7199 = vmatprep.subr.mxu0 0.0
    %7200 = vmatpush1.msra.mxu0 0.0
    %7201 = vmatprep.subr.mxu0 0.0
    %7202 = vmatpush1.msra.mxu0 0.0
    %7203 = vmatprep.subr.mxu0 0.0
    %7204 = vmatpush1.msra.mxu0 0.0
    %7205 = vmatprep.subr.mxu0 0.0
    %7206 = vmatpush1.msra.mxu0 0.0
    %7207 = vmatprep.subr.mxu0 0.0
    %7208 = vmatpush1.msra.mxu0 0.0
    %7209 = vmatprep.subr.mxu0 0.0
    %7210 = vmatpush1.msra.mxu0 0.0
    %7211 = vmatprep.subr.mxu0 0.0
    %7212 = vmatpush1.msra.mxu0 0.0
    %7213 = vmatprep.subr.mxu0 0.0
    %7214 = vmatpush1.msra.mxu0 0.0
    %7215 = vmatprep.subr.mxu0 0.0
    %7216 = vmatpush1.msra.mxu0 0.0
    %7217 = vmatprep.subr.mxu0 0.0
    %7218 = vmatpush1.msra.mxu0 0.0
    %7219 = vmatprep.subr.mxu0 0.0
    %7220 = vmatpush1.msra.mxu0 0.0
    %7221 = vmatprep.subr.mxu0 0.0
    %7222 = vmatpush1.msra.mxu0 0.0
    %7223 = vmatprep.subr.mxu0 0.0
    %7224 = vmatpush1.msra.mxu0 0.0
    %7225 = vmatprep.subr.mxu0 0.0
    %7226 = vmatpush1.msra.mxu0 0.0
    %7227 = vmatprep.subr.mxu0 0.0
    %7228 = vmatpush1.msra.mxu0 0.0
    %7229 = vmatprep.subr.mxu0 0.0
    %7230 = vmatpush1.msra.mxu0 0.0
    %7231 = vmatprep.subr.mxu0 0.0
    %7232 = vmatpush1.msra.mxu0 0.0
    %7233 = vmatprep.subr.mxu0 0.0
    %7234 = vmatpush1.msra.mxu0 0.0
    %7235 = vmatprep.subr.mxu0 0.0
    %7236 = vmatpush1.msra.mxu0 0.0
    %7237 = vmatprep.subr.mxu0 0.0
    %7238 = vmatpush1.msra.mxu0 0.0
    %7239 = vmatprep.subr.mxu0 0.0
    %7240 = vmatpush1.msra.mxu0 0.0
    %7241 = vmatprep.subr.mxu0 0.0
    %7242 = vmatpush1.msra.mxu0 0.0
    %7243 = vmatprep.subr.mxu0 0.0
    %7244 = vmatpush1.msra.mxu0 0.0
    %7245 = vmatprep.subr.mxu0 0.0
    %7246 = vmatpush1.msra.mxu0 0.0
    %7247 = vmatprep.mubr.f32.mxu0 0.0
    %7248 = vmatmul.mubr.f32.gmra.mrb[0].mxu0 %v394
    %v7249 = vpop.f32.mrb[0].mxu0
    %v7250 = vadd.f32 0.0, %v7249
    %v7251 = vpop.f32.mrb[0].mxu0
    %7252 = vdwg.mxu0
    %7253 = vmatprep.subr.mxu0 0.0
    %7254 = vmatpush1.msra.mxu0 %v7100
    %7255 = vmatprep.subr.mxu0 0.0
    %7256 = vmatpush1.msra.mxu0 0.0
    %7257 = vmatprep.subr.mxu0 0.0
    %7258 = vmatpush1.msra.mxu0 0.0
    %7259 = vmatprep.subr.mxu0 0.0
    %7260 = vmatpush1.msra.mxu0 0.0
    %7261 = vmatprep.subr.mxu0 0.0
    %7262 = vmatpush1.msra.mxu0 0.0
    %7263 = vmatprep.subr.mxu0 0.0
    %7264 = vmatpush1.msra.mxu0 0.0
    %7265 = vmatprep.subr.mxu0 0.0
    %7266 = vmatpush1.msra.mxu0 0.0
    %7267 = vmatprep.subr.mxu0 0.0
    %7268 = vmatpush1.msra.mxu0 0.0
    %7269 = vmatprep.subr.mxu0 0.0
    %7270 = vmatpush1.msra.mxu0 0.0
    %7271 = vmatprep.subr.mxu0 0.0
    %7272 = vmatpush1.msra.mxu0 0.0
    %7273 = vmatprep.subr.mxu0 0.0
    %7274 = vmatpush1.msra.mxu0 0.0
    %7275 = vmatprep.subr.mxu0 0.0
    %7276 = vmatpush1.msra.mxu0 0.0
    %7277 = vmatprep.subr.mxu0 0.0
    %7278 = vmatpush1.msra.mxu0 0.0
    %7279 = vmatprep.subr.mxu0 0.0
    %7280 = vmatpush1.msra.mxu0 0.0
    %7281 = vmatprep.subr.mxu0 0.0
    %7282 = vmatpush1.msra.mxu0 0.0
    %7283 = vmatprep.subr.mxu0 0.0
    %7284 = vmatpush1.msra.mxu0 0.0
    %7285 = vmatprep.subr.mxu0 0.0
    %7286 = vmatpush1.msra.mxu0 0.0
    %7287 = vmatprep.subr.mxu0 0.0
    %7288 = vmatpush1.msra.mxu0 0.0
    %7289 = vmatprep.subr.mxu0 0.0
    %7290 = vmatpush1.msra.mxu0 0.0
    %7291 = vmatprep.subr.mxu0 0.0
    %7292 = vmatpush1.msra.mxu0 0.0
    %7293 = vmatprep.subr.mxu0 0.0
    %7294 = vmatpush1.msra.mxu0 0.0
    %7295 = vmatprep.subr.mxu0 0.0
    %7296 = vmatpush1.msra.mxu0 0.0
    %7297 = vmatprep.subr.mxu0 0.0
    %7298 = vmatpush1.msra.mxu0 0.0
    %7299 = vmatprep.subr.mxu0 0.0
    %7300 = vmatpush1.msra.mxu0 0.0
    %7301 = vmatprep.subr.mxu0 0.0
    %7302 = vmatpush1.msra.mxu0 0.0
    %7303 = vmatprep.subr.mxu0 0.0
    %7304 = vmatpush1.msra.mxu0 0.0
    %7305 = vmatprep.subr.mxu0 0.0
    %7306 = vmatpush1.msra.mxu0 0.0
    %7307 = vmatprep.subr.mxu0 0.0
    %7308 = vmatpush1.msra.mxu0 0.0
    %7309 = vmatprep.subr.mxu0 0.0
    %7310 = vmatpush1.msra.mxu0 0.0
    %7311 = vmatprep.subr.mxu0 0.0
    %7312 = vmatpush1.msra.mxu0 0.0
    %7313 = vmatprep.subr.mxu0 0.0
    %7314 = vmatpush1.msra.mxu0 0.0
    %7315 = vmatprep.subr.mxu0 0.0
    %7316 = vmatpush1.msra.mxu0 0.0
    %7317 = vmatprep.mubr.f32.mxu0 0.0
    %7318 = vmatmul.mubr.f32.gmra.mrb[0].mxu0 %v394
    %v7319 = vpop.f32.mrb[0].mxu0
    %v7320 = vadd.f32 0.0, %v7319
    %v7321 = vpop.f32.mrb[0].mxu0
    %7322 = vdwg.mxu0
    %v7323 = vmax.f32 %v7320, 1.0
    %7325 = vset.pattern.permute.xlu0 0
    %7326 = vperm.xlu0 %7325, %v7323
    %v7327 = vpop.permute.xlu0 %7326
    %v7329 = vrcp.pop %v7327
    %v7330 = vmul.f32 %v7250, %v7329
    %v7332 = vsel %vm120, %v7330, 0
    %7334 = vmatprep.subr.mxu0 0.0
    %7335 = vmatpush1.msra.mxu0 %v104
    %7336 = vmatprep.subr.mxu0 0.0
    %7337 = vmatpush1.msra.mxu0 %v105
    %7338 = vmatprep.subr.mxu0 0.0
    %7339 = vmatpush1.msra.mxu0 %v106
    %7340 = vmatprep.subr.mxu0 0.0
    %7341 = vmatpush1.msra.mxu0 %v107
    %7342 = vmatprep.subr.mxu0 0.0
    %7343 = vmatpush1.msra.mxu0 0.0
    %7344 = vmatprep.subr.mxu0 0.0
    %7345 = vmatpush1.msra.mxu0 0.0
    %7346 = vmatprep.subr.mxu0 0.0
    %7347 = vmatpush1.msra.mxu0 0.0
    %7348 = vmatprep.subr.mxu0 0.0
    %7349 = vmatpush1.msra.mxu0 0.0
    %7350 = vmatprep.subr.mxu0 0.0
    %7351 = vmatpush1.msra.mxu0 0.0
    %7352 = vmatprep.subr.mxu0 0.0
    %7353 = vmatpush1.msra.mxu0 0.0
    %7354 = vmatprep.subr.mxu0 0.0
    %7355 = vmatpush1.msra.mxu0 0.0
    %7356 = vmatprep.subr.mxu0 0.0
    %7357 = vmatpush1.msra.mxu0 0.0
    %7358 = vmatprep.subr.mxu0 0.0
    %7359 = vmatpush1.msra.mxu0 0.0
    %7360 = vmatprep.subr.mxu0 0.0
    %7361 = vmatpush1.msra.mxu0 0.0
    %7362 = vmatprep.subr.mxu0 0.0
    %7363 = vmatpush1.msra.mxu0 0.0
    %7364 = vmatprep.subr.mxu0 0.0
    %7365 = vmatpush1.msra.mxu0 0.0
    %7366 = vmatprep.subr.mxu0 0.0
    %7367 = vmatpush1.msra.mxu0 0.0
    %7368 = vmatprep.subr.mxu0 0.0
    %7369 = vmatpush1.msra.mxu0 0.0
    %7370 = vmatprep.subr.mxu0 0.0
    %7371 = vmatpush1.msra.mxu0 0.0
    %7372 = vmatprep.subr.mxu0 0.0
    %7373 = vmatpush1.msra.mxu0 0.0
    %7374 = vmatprep.subr.mxu0 0.0
    %7375 = vmatpush1.msra.mxu0 0.0
    %7376 = vmatprep.subr.mxu0 0.0
    %7377 = vmatpush1.msra.mxu0 0.0
    %7378 = vmatprep.subr.mxu0 0.0
    %7379 = vmatpush1.msra.mxu0 0.0
    %7380 = vmatprep.subr.mxu0 0.0
    %7381 = vmatpush1.msra.mxu0 0.0
    %7382 = vmatprep.subr.mxu0 0.0
    %7383 = vmatpush1.msra.mxu0 0.0
    %7384 = vmatprep.subr.mxu0 0.0
    %7385 = vmatpush1.msra.mxu0 0.0
    %7386 = vmatprep.subr.mxu0 0.0
    %7387 = vmatpush1.msra.mxu0 0.0
    %7388 = vmatprep.subr.mxu0 0.0
    %7389 = vmatpush1.msra.mxu0 0.0
    %7390 = vmatprep.subr.mxu0 0.0
    %7391 = vmatpush1.msra.mxu0 0.0
    %7392 = vmatprep.subr.mxu0 0.0
    %7393 = vmatpush1.msra.mxu0 0.0
    %7394 = vmatprep.subr.mxu0 0.0
    %7395 = vmatpush1.msra.mxu0 0.0
    %7396 = vmatprep.subr.mxu0 0.0
    %7397 = vmatpush1.msra.mxu0 0.0
    %7398 = vmatprep.mubr.f32.mxu0 0.0
    %7399 = vmatmul.mubr.f32.gmra.mrb[0].mxu0 %v7332
    %v7400 = vpop.f32.mrb[0].mxu0
    %v7401 = vadd.f32 0.0, %v7400
    %v7402 = vpop.f32.mrb[0].mxu0
    %7403 = vdwg.mxu0
    %v7405 = vsel %vm621, %v7401, 0
    %7407 = vmatprep.subr.mxu0 0.0
    %7408 = vmatpush1.msra.mxu0 %v7405
    %7409 = vmatprep.subr.mxu0 0.0
    %7410 = vmatpush1.msra.mxu0 0.0
    %7411 = vmatprep.subr.mxu0 0.0
    %7412 = vmatpush1.msra.mxu0 0.0
    %7413 = vmatprep.subr.mxu0 0.0
    %7414 = vmatpush1.msra.mxu0 0.0
    %7415 = vmatprep.subr.mxu0 0.0
    %7416 = vmatpush1.msra.mxu0 0.0
    %7417 = vmatprep.subr.mxu0 0.0
    %7418 = vmatpush1.msra.mxu0 0.0
    %7419 = vmatprep.subr.mxu0 0.0
    %7420 = vmatpush1.msra.mxu0 0.0
    %7421 = vmatprep.subr.mxu0 0.0
    %7422 = vmatpush1.msra.mxu0 0.0
    %7423 = vmatprep.subr.mxu0 0.0
    %7424 = vmatpush1.msra.mxu0 0.0
    %7425 = vmatprep.subr.mxu0 0.0
    %7426 = vmatpush1.msra.mxu0 0.0
    %7427 = vmatprep.subr.mxu0 0.0
    %7428 = vmatpush1.msra.mxu0 0.0
    %7429 = vmatprep.subr.mxu0 0.0
    %7430 = vmatpush1.msra.mxu0 0.0
    %7431 = vmatprep.subr.mxu0 0.0
    %7432 = vmatpush1.msra.mxu0 0.0
    %7433 = vmatprep.subr.mxu0 0.0
    %7434 = vmatpush1.msra.mxu0 0.0
    %7435 = vmatprep.subr.mxu0 0.0
    %7436 = vmatpush1.msra.mxu0 0.0
    %7437 = vmatprep.subr.mxu0 0.0
    %7438 = vmatpush1.msra.mxu0 0.0
    %7439 = vmatprep.subr.mxu0 0.0
    %7440 = vmatpush1.msra.mxu0 0.0
    %7441 = vmatprep.subr.mxu0 0.0
    %7442 = vmatpush1.msra.mxu0 0.0
    %7443 = vmatprep.subr.mxu0 0.0
    %7444 = vmatpush1.msra.mxu0 0.0
    %7445 = vmatprep.subr.mxu0 0.0
    %7446 = vmatpush1.msra.mxu0 0.0
    %7447 = vmatprep.subr.mxu0 0.0
    %7448 = vmatpush1.msra.mxu0 0.0
    %7449 = vmatprep.subr.mxu0 0.0
    %7450 = vmatpush1.msra.mxu0 0.0
    %7451 = vmatprep.subr.mxu0 0.0
    %7452 = vmatpush1.msra.mxu0 0.0
    %7453 = vmatprep.subr.mxu0 0.0
    %7454 = vmatpush1.msra.mxu0 0.0
    %7455 = vmatprep.subr.mxu0 0.0
    %7456 = vmatpush1.msra.mxu0 0.0
    %7457 = vmatprep.subr.mxu0 0.0
    %7458 = vmatpush1.msra.mxu0 0.0
    %7459 = vmatprep.subr.mxu0 0.0
    %7460 = vmatpush1.msra.mxu0 0.0
    %7461 = vmatprep.subr.mxu0 0.0
    %7462 = vmatpush1.msra.mxu0 0.0
    %7463 = vmatprep.subr.mxu0 0.0
    %7464 = vmatpush1.msra.mxu0 0.0
    %7465 = vmatprep.subr.mxu0 0.0
    %7466 = vmatpush1.msra.mxu0 0.0
    %7467 = vmatprep.subr.mxu0 0.0
    %7468 = vmatpush1.msra.mxu0 0.0
    %7469 = vmatprep.subr.mxu0 0.0
    %7470 = vmatpush1.msra.mxu0 0.0
    %7471 = vmatprep.mubr.f32.mxu0 0.0
    %7472 = vmatmul.mubr.f32.gmra.mrb[0].mxu0 %v619
    %v7473 = vpop.f32.mrb[0].mxu0
    %v7474 = vadd.f32 0.0, %v7473
    %v7475 = vpop.f32.mrb[0].mxu0
    %7476 = vdwg.mxu0
    %v7478 = vsel %vm120, %v7176, 0
    %7480 = vmatprep.subr.mxu0 0.0
    %7481 = vmatpush1.msra.mxu0 %v100
    %7482 = vmatprep.subr.mxu0 0.0
    %7483 = vmatpush1.msra.mxu0 %v101
    %7484 = vmatprep.subr.mxu0 0.0
    %7485 = vmatpush1.msra.mxu0 %v102
    %7486 = vmatprep.subr.mxu0 0.0
    %7487 = vmatpush1.msra.mxu0 %v103
    %7488 = vmatprep.subr.mxu0 0.0
    %7489 = vmatpush1.msra.mxu0 0.0
    %7490 = vmatprep.subr.mxu0 0.0
    %7491 = vmatpush1.msra.mxu0 0.0
    %7492 = vmatprep.subr.mxu0 0.0
    %7493 = vmatpush1.msra.mxu0 0.0
    %7494 = vmatprep.subr.mxu0 0.0
    %7495 = vmatpush1.msra.mxu0 0.0
    %7496 = vmatprep.subr.mxu0 0.0
    %7497 = vmatpush1.msra.mxu0 0.0
    %7498 = vmatprep.subr.mxu0 0.0
    %7499 = vmatpush1.msra.mxu0 0.0
    %7500 = vmatprep.subr.mxu0 0.0
    %7501 = vmatpush1.msra.mxu0 0.0
    %7502 = vmatprep.subr.mxu0 0.0
    %7503 = vmatpush1.msra.mxu0 0.0
    %7504 = vmatprep.subr.mxu0 0.0
    %7505 = vmatpush1.msra.mxu0 0.0
    %7506 = vmatprep.subr.mxu0 0.0
    %7507 = vmatpush1.msra.mxu0 0.0
    %7508 = vmatprep.subr.mxu0 0.0
    %7509 = vmatpush1.msra.mxu0 0.0
    %7510 = vmatprep.subr.mxu0 0.0
    %7511 = vmatpush1.msra.mxu0 0.0
    %7512 = vmatprep.subr.mxu0 0.0
    %7513 = vmatpush1.msra.mxu0 0.0
    %7514 = vmatprep.subr.mxu0 0.0
    %7515 = vmatpush1.msra.mxu0 0.0
    %7516 = vmatprep.subr.mxu0 0.0
    %7517 = vmatpush1.msra.mxu0 0.0
    %7518 = vmatprep.subr.mxu0 0.0
    %7519 = vmatpush1.msra.mxu0 0.0
    %7520 = vmatprep.subr.mxu0 0.0
    %7521 = vmatpush1.msra.mxu0 0.0
    %7522 = vmatprep.subr.mxu0 0.0
    %7523 = vmatpush1.msra.mxu0 0.0
    %7524 = vmatprep.subr.mxu0 0.0
    %7525 = vmatpush1.msra.mxu0 0.0
    %7526 = vmatprep.subr.mxu0 0.0
    %7527 = vmatpush1.msra.mxu0 0.0
    %7528 = vmatprep.subr.mxu0 0.0
    %7529 = vmatpush1.msra.mxu0 0.0
    %7530 = vmatprep.subr.mxu0 0.0
    %7531 = vmatpush1.msra.mxu0 0.0
    %7532 = vmatprep.subr.mxu0 0.0
    %7533 = vmatpush1.msra.mxu0 0.0
    %7534 = vmatprep.subr.mxu0 0.0
    %7535 = vmatpush1.msra.mxu0 0.0
    %7536 = vmatprep.subr.mxu0 0.0
    %7537 = vmatpush1.msra.mxu0 0.0
    %7538 = vmatprep.subr.mxu0 0.0
    %7539 = vmatpush1.msra.mxu0 0.0
    %7540 = vmatprep.subr.mxu0 0.0
    %7541 = vmatpush1.msra.mxu0 0.0
    %7542 = vmatprep.subr.mxu0 0.0
    %7543 = vmatpush1.msra.mxu0 0.0
    %7544 = vmatprep.mubr.f32.mxu0 0.0
    %7545 = vmatmul.mubr.f32.gmra.mrb[0].mxu0 %v7478
    %v7546 = vpop.f32.mrb[0].mxu0
    %v7547 = vadd.f32 %v7474, %v7546
    %v7548 = vpop.f32.mrb[0].mxu0
    %7549 = vdwg.mxu0
    %v7550 = vadd.f32 %v7547, %v772
    %v7551 = vmax.f32 %v7550, 0.0
    %v7552 = vmul.f32 %v7551, %v7180
    %v7553 = vmul.f32 %v7552, %v117
    %v7554 = vmul.f32 %v7552, %v198
    %v7556 = vsel %vm779, %v7554, 0
    %7558 = vmatprep.subr.mxu0 0.0
    %7559 = vmatpush1.msra.mxu0 %v81
    %7560 = vmatprep.subr.mxu0 0.0
    %7561 = vmatpush1.msra.mxu0 %v82
    %7562 = vmatprep.subr.mxu0 0.0
    %7563 = vmatpush1.msra.mxu0 0.0
    %7564 = vmatprep.subr.mxu0 0.0
    %7565 = vmatpush1.msra.mxu0 0.0
    %7566 = vmatprep.subr.mxu0 0.0
    %7567 = vmatpush1.msra.mxu0 0.0
    %7568 = vmatprep.subr.mxu0 0.0
    %7569 = vmatpush1.msra.mxu0 0.0
    %7570 = vmatprep.subr.mxu0 0.0
    %7571 = vmatpush1.msra.mxu0 0.0
    %7572 = vmatprep.subr.mxu0 0.0
    %7573 = vmatpush1.msra.mxu0 0.0
    %7574 = vmatprep.subr.mxu0 0.0
    %7575 = vmatpush1.msra.mxu0 0.0
    %7576 = vmatprep.subr.mxu0 0.0
    %7577 = vmatpush1.msra.mxu0 0.0
    %7578 = vmatprep.subr.mxu0 0.0
    %7579 = vmatpush1.msra.mxu0 0.0
    %7580 = vmatprep.subr.mxu0 0.0
    %7581 = vmatpush1.msra.mxu0 0.0
    %7582 = vmatprep.subr.mxu0 0.0
    %7583 = vmatpush1.msra.mxu0 0.0
    %7584 = vmatprep.subr.mxu0 0.0
    %7585 = vmatpush1.msra.mxu0 0.0
    %7586 = vmatprep.subr.mxu0 0.0
    %7587 = vmatpush1.msra.mxu0 0.0
    %7588 = vmatprep.subr.mxu0 0.0
    %7589 = vmatpush1.msra.mxu0 0.0
    %7590 = vmatprep.subr.mxu0 0.0
    %7591 = vmatpush1.msra.mxu0 0.0
    %7592 = vmatprep.subr.mxu0 0.0
    %7593 = vmatpush1.msra.mxu0 0.0
    %7594 = vmatprep.subr.mxu0 0.0
    %7595 = vmatpush1.msra.mxu0 0.0
    %7596 = vmatprep.subr.mxu0 0.0
    %7597 = vmatpush1.msra.mxu0 0.0
    %7598 = vmatprep.subr.mxu0 0.0
    %7599 = vmatpush1.msra.mxu0 0.0
    %7600 = vmatprep.subr.mxu0 0.0
    %7601 = vmatpush1.msra.mxu0 0.0
    %7602 = vmatprep.subr.mxu0 0.0
    %7603 = vmatpush1.msra.mxu0 0.0
    %7604 = vmatprep.subr.mxu0 0.0
    %7605 = vmatpush1.msra.mxu0 0.0
    %7606 = vmatprep.subr.mxu0 0.0
    %7607 = vmatpush1.msra.mxu0 0.0
    %7608 = vmatprep.subr.mxu0 0.0
    %7609 = vmatpush1.msra.mxu0 0.0
    %7610 = vmatprep.subr.mxu0 0.0
    %7611 = vmatpush1.msra.mxu0 0.0
    %7612 = vmatprep.subr.mxu0 0.0
    %7613 = vmatpush1.msra.mxu0 0.0
    %7614 = vmatprep.subr.mxu0 0.0
    %7615 = vmatpush1.msra.mxu0 0.0
    %7616 = vmatprep.subr.mxu0 0.0
    %7617 = vmatpush1.msra.mxu0 0.0
    %7618 = vmatprep.subr.mxu0 0.0
    %7619 = vmatpush1.msra.mxu0 0.0
    %7620 = vmatprep.subr.mxu0 0.0
    %7621 = vmatpush1.msra.mxu0 0.0
    %7622 = vmatprep.mubr.f32.mxu0 0.0
    %7623 = vmatmul.mubr.f32.gmra.mrb[0].mxu0 %v7556
    %v7624 = vpop.f32.mrb[0].mxu0
    %v7625 = vadd.f32 0.0, %v7624
    %v7626 = vpop.f32.mrb[0].mxu0
    %7627 = vdwg.mxu0
    %v7629 = vsel %vm779, %v7553, 0
    %7631 = vmatprep.subr.mxu0 0.0
    %7632 = vmatpush1.msra.mxu0 %v78
    %7633 = vmatprep.subr.mxu0 0.0
    %7634 = vmatpush1.msra.mxu0 %v79
    %7635 = vmatprep.subr.mxu0 0.0
    %7636 = vmatpush1.msra.mxu0 0.0
    %7637 = vmatprep.subr.mxu0 0.0
    %7638 = vmatpush1.msra.mxu0 0.0
    %7639 = vmatprep.subr.mxu0 0.0
    %7640 = vmatpush1.msra.mxu0 0.0
    %7641 = vmatprep.subr.mxu0 0.0
    %7642 = vmatpush1.msra.mxu0 0.0
    %7643 = vmatprep.subr.mxu0 0.0
    %7644 = vmatpush1.msra.mxu0 0.0
    %7645 = vmatprep.subr.mxu0 0.0
    %7646 = vmatpush1.msra.mxu0 0.0
    %7647 = vmatprep.subr.mxu0 0.0
    %7648 = vmatpush1.msra.mxu0 0.0
    %7649 = vmatprep.subr.mxu0 0.0
    %7650 = vmatpush1.msra.mxu0 0.0
    %7651 = vmatprep.subr.mxu0 0.0
    %7652 = vmatpush1.msra.mxu0 0.0
    %7653 = vmatprep.subr.mxu0 0.0
    %7654 = vmatpush1.msra.mxu0 0.0
    %7655 = vmatprep.subr.mxu0 0.0
    %7656 = vmatpush1.msra.mxu0 0.0
    %7657 = vmatprep.subr.mxu0 0.0
    %7658 = vmatpush1.msra.mxu0 0.0
    %7659 = vmatprep.subr.mxu0 0.0
    %7660 = vmatpush1.msra.mxu0 0.0
    %7661 = vmatprep.subr.mxu0 0.0
    %7662 = vmatpush1.msra.mxu0 0.0
    %7663 = vmatprep.subr.mxu0 0.0
    %7664 = vmatpush1.msra.mxu0 0.0
    %7665 = vmatprep.subr.mxu0 0.0
    %7666 = vmatpush1.msra.mxu0 0.0
    %7667 = vmatprep.subr.mxu0 0.0
    %7668 = vmatpush1.msra.mxu0 0.0
    %7669 = vmatprep.subr.mxu0 0.0
    %7670 = vmatpush1.msra.mxu0 0.0
    %7671 = vmatprep.subr.mxu0 0.0
    %7672 = vmatpush1.msra.mxu0 0.0
    %7673 = vmatprep.subr.mxu0 0.0
    %7674 = vmatpush1.msra.mxu0 0.0
    %7675 = vmatprep.subr.mxu0 0.0
    %7676 = vmatpush1.msra.mxu0 0.0
    %7677 = vmatprep.subr.mxu0 0.0
    %7678 = vmatpush1.msra.mxu0 0.0
    %7679 = vmatprep.subr.mxu0 0.0
    %7680 = vmatpush1.msra.mxu0 0.0
    %7681 = vmatprep.subr.mxu0 0.0
    %7682 = vmatpush1.msra.mxu0 0.0
    %7683 = vmatprep.subr.mxu0 0.0
    %7684 = vmatpush1.msra.mxu0 0.0
    %7685 = vmatprep.subr.mxu0 0.0
    %7686 = vmatpush1.msra.mxu0 0.0
    %7687 = vmatprep.subr.mxu0 0.0
    %7688 = vmatpush1.msra.mxu0 0.0
    %7689 = vmatprep.subr.mxu0 0.0
    %7690 = vmatpush1.msra.mxu0 0.0
    %7691 = vmatprep.subr.mxu0 0.0
    %7692 = vmatpush1.msra.mxu0 0.0
    %7693 = vmatprep.subr.mxu0 0.0
    %7694 = vmatpush1.msra.mxu0 0.0
    %7695 = vmatprep.mubr.f32.mxu0 0.0
    %7696 = vmatmul.mubr.f32.gmra.mrb[0].mxu0 %v7629
    %v7697 = vpop.f32.mrb[0].mxu0
    %v7698 = vadd.f32 %v7625, %v7697
    %v7699 = vpop.f32.mrb[0].mxu0
    %7700 = vdwg.mxu0
    %v7701 = vadd.f32 %v7698, %v92
    %v7702 = vmul.f32 %v6911, %v117
    %7704 = vrot.lane.b32.xlu0 %v7702, 64
    %v7705 = vpop.permute.xlu0 %7704
    %v7706 = vsel %vm120, %v7705, 0
    %7708 = vmatprep.subr.mxu0 0.0
    %7709 = vmatpush1.msra.mxu0 %v83
    %7710 = vmatprep.subr.mxu0 0.0
    %7711 = vmatpush1.msra.mxu0 %v84
    %7712 = vmatprep.subr.mxu0 0.0
    %7713 = vmatpush1.msra.mxu0 %v85
    %7714 = vmatprep.subr.mxu0 0.0
    %7715 = vmatpush1.msra.mxu0 %v86
    %7716 = vmatprep.subr.mxu0 0.0
    %7717 = vmatpush1.msra.mxu0 0.0
    %7718 = vmatprep.subr.mxu0 0.0
    %7719 = vmatpush1.msra.mxu0 0.0
    %7720 = vmatprep.subr.mxu0 0.0
    %7721 = vmatpush1.msra.mxu0 0.0
    %7722 = vmatprep.subr.mxu0 0.0
    %7723 = vmatpush1.msra.mxu0 0.0
    %7724 = vmatprep.subr.mxu0 0.0
    %7725 = vmatpush1.msra.mxu0 0.0
    %7726 = vmatprep.subr.mxu0 0.0
    %7727 = vmatpush1.msra.mxu0 0.0
    %7728 = vmatprep.subr.mxu0 0.0
    %7729 = vmatpush1.msra.mxu0 0.0
    %7730 = vmatprep.subr.mxu0 0.0
    %7731 = vmatpush1.msra.mxu0 0.0
    %7732 = vmatprep.subr.mxu0 0.0
    %7733 = vmatpush1.msra.mxu0 0.0
    %7734 = vmatprep.subr.mxu0 0.0
    %7735 = vmatpush1.msra.mxu0 0.0
    %7736 = vmatprep.subr.mxu0 0.0
    %7737 = vmatpush1.msra.mxu0 0.0
    %7738 = vmatprep.subr.mxu0 0.0
    %7739 = vmatpush1.msra.mxu0 0.0
    %7740 = vmatprep.subr.mxu0 0.0
    %7741 = vmatpush1.msra.mxu0 0.0
    %7742 = vmatprep.subr.mxu0 0.0
    %7743 = vmatpush1.msra.mxu0 0.0
    %7744 = vmatprep.subr.mxu0 0.0
    %7745 = vmatpush1.msra.mxu0 0.0
    %7746 = vmatprep.subr.mxu0 0.0
    %7747 = vmatpush1.msra.mxu0 0.0
    %7748 = vmatprep.subr.mxu0 0.0
    %7749 = vmatpush1.msra.mxu0 0.0
    %7750 = vmatprep.subr.mxu0 0.0
    %7751 = vmatpush1.msra.mxu0 0.0
    %7752 = vmatprep.subr.mxu0 0.0
    %7753 = vmatpush1.msra.mxu0 0.0
    %7754 = vmatprep.subr.mxu0 0.0
    %7755 = vmatpush1.msra.mxu0 0.0
    %7756 = vmatprep.subr.mxu0 0.0
    %7757 = vmatpush1.msra.mxu0 0.0
    %7758 = vmatprep.subr.mxu0 0.0
    %7759 = vmatpush1.msra.mxu0 0.0
    %7760 = vmatprep.subr.mxu0 0.0
    %7761 = vmatpush1.msra.mxu0 0.0
    %7762 = vmatprep.subr.mxu0 0.0
    %7763 = vmatpush1.msra.mxu0 0.0
    %7764 = vmatprep.subr.mxu0 0.0
    %7765 = vmatpush1.msra.mxu0 0.0
    %7766 = vmatprep.subr.mxu0 0.0
    %7767 = vmatpush1.msra.mxu0 0.0
    %7768 = vmatprep.subr.mxu0 0.0
    %7769 = vmatpush1.msra.mxu0 0.0
    %7770 = vmatprep.subr.mxu0 0.0
    %7771 = vmatpush1.msra.mxu0 0.0
    %7772 = vmatprep.mubr.f32.mxu0 0.0
    %7773 = vmatmul.mubr.f32.gmra.mrb[0].mxu0 %v7706
    %v7774 = vpop.f32.mrb[0].mxu0
    %v7775 = vadd.f32 0.0, %v7774
    %v7776 = vpop.f32.mrb[0].mxu0
    %7777 = vdwg.mxu0
    %v7778 = vadd.f32 %v7701, %v7775
    %v7779 = vmul.f32 %v6911, %v198
    %7781 = vrot.lane.b32.xlu0 %v7779, 64
    %v7782 = vpop.permute.xlu0 %7781
    %v7783 = vsel %vm120, %v7782, 0
    %7785 = vmatprep.subr.mxu0 0.0
    %7786 = vmatpush1.msra.mxu0 %v88
    %7787 = vmatprep.subr.mxu0 0.0
    %7788 = vmatpush1.msra.mxu0 %v89
    %7789 = vmatprep.subr.mxu0 0.0
    %7790 = vmatpush1.msra.mxu0 %v90
    %7791 = vmatprep.subr.mxu0 0.0
    %7792 = vmatpush1.msra.mxu0 %v91
    %7793 = vmatprep.subr.mxu0 0.0
    %7794 = vmatpush1.msra.mxu0 0.0
    %7795 = vmatprep.subr.mxu0 0.0
    %7796 = vmatpush1.msra.mxu0 0.0
    %7797 = vmatprep.subr.mxu0 0.0
    %7798 = vmatpush1.msra.mxu0 0.0
    %7799 = vmatprep.subr.mxu0 0.0
    %7800 = vmatpush1.msra.mxu0 0.0
    %7801 = vmatprep.subr.mxu0 0.0
    %7802 = vmatpush1.msra.mxu0 0.0
    %7803 = vmatprep.subr.mxu0 0.0
    %7804 = vmatpush1.msra.mxu0 0.0
    %7805 = vmatprep.subr.mxu0 0.0
    %7806 = vmatpush1.msra.mxu0 0.0
    %7807 = vmatprep.subr.mxu0 0.0
    %7808 = vmatpush1.msra.mxu0 0.0
    %7809 = vmatprep.subr.mxu0 0.0
    %7810 = vmatpush1.msra.mxu0 0.0
    %7811 = vmatprep.subr.mxu0 0.0
    %7812 = vmatpush1.msra.mxu0 0.0
    %7813 = vmatprep.subr.mxu0 0.0
    %7814 = vmatpush1.msra.mxu0 0.0
    %7815 = vmatprep.subr.mxu0 0.0
    %7816 = vmatpush1.msra.mxu0 0.0
    %7817 = vmatprep.subr.mxu0 0.0
    %7818 = vmatpush1.msra.mxu0 0.0
    %7819 = vmatprep.subr.mxu0 0.0
    %7820 = vmatpush1.msra.mxu0 0.0
    %7821 = vmatprep.subr.mxu0 0.0
    %7822 = vmatpush1.msra.mxu0 0.0
    %7823 = vmatprep.subr.mxu0 0.0
    %7824 = vmatpush1.msra.mxu0 0.0
    %7825 = vmatprep.subr.mxu0 0.0
    %7826 = vmatpush1.msra.mxu0 0.0
    %7827 = vmatprep.subr.mxu0 0.0
    %7828 = vmatpush1.msra.mxu0 0.0
    %7829 = vmatprep.subr.mxu0 0.0
    %7830 = vmatpush1.msra.mxu0 0.0
    %7831 = vmatprep.subr.mxu0 0.0
    %7832 = vmatpush1.msra.mxu0 0.0
    %7833 = vmatprep.subr.mxu0 0.0
    %7834 = vmatpush1.msra.mxu0 0.0
    %7835 = vmatprep.subr.mxu0 0.0
    %7836 = vmatpush1.msra.mxu0 0.0
    %7837 = vmatprep.subr.mxu0 0.0
    %7838 = vmatpush1.msra.mxu0 0.0
    %7839 = vmatprep.subr.mxu0 0.0
    %7840 = vmatpush1.msra.mxu0 0.0
    %7841 = vmatprep.subr.mxu0 0.0
    %7842 = vmatpush1.msra.mxu0 0.0
    %7843 = vmatprep.subr.mxu0 0.0
    %7844 = vmatpush1.msra.mxu0 0.0
    %7845 = vmatprep.subr.mxu0 0.0
    %7846 = vmatpush1.msra.mxu0 0.0
    %7847 = vmatprep.subr.mxu0 0.0
    %7848 = vmatpush1.msra.mxu0 0.0
    %7849 = vmatprep.mubr.f32.mxu0 0.0
    %7850 = vmatmul.mubr.f32.gmra.mrb[0].mxu0 %v7783
    %v7851 = vpop.f32.mrb[0].mxu0
    %v7852 = vadd.f32 0.0, %v7851
    %v7853 = vpop.f32.mrb[0].mxu0
    %7854 = vdwg.mxu0
    %v7855 = vadd.f32 %v7778, %v7852
    %v7856 = vxor.u32 %v7855, 2147483648
    %v7857 = vmul.f32 %v7856, 1.442695
    %v7858 = vpow.pop %v7857
    %v7859 = vadd.f32 %v7858, 1.0
    %v7860 = vrcp.pop %v7859
    %v7861 = vmul.f32 1.0, %v7860
    %v7862 = vtanh.pop %v7855
    %v7863 = vmul.f32 %v7861, %v6905
    %7865 = vrot.lane.b32.xlu0 %v7862, 32
    %v7866 = vpop.permute.xlu0 %7865
    %v7868 = vmul.f32 %v7861, %v7866
    %7870 = vrot.lane.b32.xlu0 %v7868, 32
    %v7871 = vpop.permute.xlu0 %7870
    %v7873 = vadd.f32 %v7863, %v7871
    %v7874 = vtanh.pop %v7873
    %7876 = vrot.lane.b32.xlu0 %v7874, 32
    %v7877 = vpop.permute.xlu0 %7876
    %v7879 = vmul.f32 %v7861, %v7877
    %v7880 = vmul.f32 %v7879, %v7180
    %7882 = vrot.lane.b32.xlu0 %v7880, 64
    %v7883 = vpop.permute.xlu0 %7882
    %s7885 = scalar_lea.vmem %s18, 56
    %7886 = vst.msk [vmem:[%s7885] sm:$0xff] %vm120, %v7883
    %7888 = vst.msk [vmem:[#allocation2] sm:$0xff] %vm120, %v7103
    %7890 = vrot.lane.b32.xlu0 %v7092, 96
    %v7891 = vpop.permute.xlu0 %7890
    %7893 = vst.msk [vmem:[#allocation4] sm:$0xff] %vm120, %v7891
    %7895 = vrot.lane.b32.xlu0 %v7879, 64
    %v7896 = vpop.permute.xlu0 %7895
    %7898 = vst.msk [vmem:[#allocation6] sm:$0xff] %vm120, %v7896
    %7900 = vrot.lane.b32.xlu0 %v7873, 96
    %v7901 = vpop.permute.xlu0 %7900
    %7903 = vst.msk [vmem:[#allocation7] sm:$0xff] %vm120, %v7901
    // Predicated region
    $region74: #{gnn_lstm2_forward.1} parent=1 // pred_check
      _
    $region75: #{gnn_lstm2_forward.1} parent=1 // pred_check_branch
      %7905 = sbr.rel (0) target = $region77
    $region76: #{gnn_lstm2_forward.1} parent=1 // pred_region
      _
    $region77: #{gnn_lstm2_forward.1} parent=1 // pred_fallthru
      _
    // Predicated region
    $region78: #{gnn_lstm2_forward.1} parent=1 // pred_check
      _
    $region79: #{gnn_lstm2_forward.1} parent=1 // pred_check_branch
      %7907 = sbr.rel (0) target = $region81
    $region80: #{gnn_lstm2_forward.1} parent=1 // pred_region
      %s7909 = ssub.s32 128, 128
      %7910 = vsyncadd [#allocation3], %s7909
      %s7912 = sshll.u32 [#allocation2], 4
      %s7913 = int_to_ptr.vmem [resolvable:$true] %s7912
      %7915 = dma.vmem_to_hbm [thread:$0]  %s7913, 128, %s19, [#allocation3]
    $region81: #{gnn_lstm2_forward.1} parent=1 // pred_fallthru
      _
    // Predicated region
    $region82: #{gnn_lstm2_forward.1} parent=1 // pred_check
      _
    $region83: #{gnn_lstm2_forward.1} parent=1 // pred_check_branch
      %7917 = sbr.rel (0) target = $region85
    $region84: #{gnn_lstm2_forward.1} parent=1 // pred_region
      %s7919 = ssub.s32 128, 128
      %7920 = vsyncadd [#allocation5], %s7919
      %s7922 = sshll.u32 [#allocation4], 4
      %s7923 = int_to_ptr.vmem [resolvable:$true] %s7922
      %7925 = dma.vmem_to_hbm [thread:$0]  %s7923, 128, %s20, [#allocation5]
    $region85: #{gnn_lstm2_forward.1} parent=1 // pred_fallthru
      _
    // Predicated region
    $region86: #{gnn_lstm2_forward.1} parent=1 // pred_check
      _
    $region87: #{gnn_lstm2_forward.1} parent=1 // pred_check_branch
      %7927 = sbr.rel (0) target = $region89
    $region88: #{gnn_lstm2_forward.1} parent=1 // pred_region
      %s7929 = ssub.s32 128, 128
      %7930 = vsyncadd [#allocation5], %s7929
      %s7932 = sshll.u32 [#allocation6], 4
      %s7933 = int_to_ptr.vmem [resolvable:$true] %s7932
      %7935 = dma.vmem_to_hbm [thread:$0]  %s7933, 128, %s21, [#allocation5]
    $region89: #{gnn_lstm2_forward.1} parent=1 // pred_fallthru
      _
    // Predicated region
    $region90: #{gnn_lstm2_forward.1} parent=1 // pred_check
      _
    $region91: #{gnn_lstm2_forward.1} parent=1 // pred_check_branch
      %7937 = sbr.rel (0) target = $region93
    $region92: #{gnn_lstm2_forward.1} parent=1 // pred_region
      %s7939 = ssub.s32 128, 128
      %7940 = vsyncadd [#allocation8], %s7939
      %s7942 = sshll.u32 [#allocation7], 4
      %s7943 = int_to_ptr.vmem [resolvable:$true] %s7942
      %7945 = dma.vmem_to_hbm [thread:$0]  %s7943, 128, %s22, [#allocation8]
    $region93: #{gnn_lstm2_forward.1} parent=1 // pred_fallthru
      _
    // Predicated region
    $region94: #{gnn_lstm2_forward.1} parent=1 // pred_check
      _
    $region95: #{gnn_lstm2_forward.1} parent=1 // pred_check_branch
      %7947 = sbr.rel (0) target = $region97
    $region96: #{gnn_lstm2_forward.1} parent=1 // pred_region
      _
    $region97: #{gnn_lstm2_forward.1} parent=1 // pred_fallthru
      _
    // Predicated region
    $region98: #{gnn_lstm2_forward.1} parent=1 // pred_check
      _
    $region99: #{gnn_lstm2_forward.1} parent=1 // pred_check_branch
      %7949 = sbr.rel (0) target = $region101
    $region100: #{gnn_lstm2_forward.1} parent=1 // pred_region
      %7950 = dma.done [#allocation3], 128
    $region101: #{gnn_lstm2_forward.1} parent=1 // pred_fallthru
      _
    // Predicated region
    $region102: #{gnn_lstm2_forward.1} parent=1 // pred_check
      _
    $region103: #{gnn_lstm2_forward.1} parent=1 // pred_check_branch
      %7952 = sbr.rel (0) target = $region105
    $region104: #{gnn_lstm2_forward.1} parent=1 // pred_region
      %7953 = dma.done [#allocation5], 128
    $region105: #{gnn_lstm2_forward.1} parent=1 // pred_fallthru
      _
    // Predicated region
    $region106: #{gnn_lstm2_forward.1} parent=1 // pred_check
      _
    $region107: #{gnn_lstm2_forward.1} parent=1 // pred_check_branch
      %7955 = sbr.rel (0) target = $region109
    $region108: #{gnn_lstm2_forward.1} parent=1 // pred_region
      %7956 = dma.done [#allocation5], 128
    $region109: #{gnn_lstm2_forward.1} parent=1 // pred_fallthru
      _
    // Predicated region
    $region110: #{gnn_lstm2_forward.1} parent=1 // pred_check
      _
    $region111: #{gnn_lstm2_forward.1} parent=1 // pred_check_branch
      %7958 = sbr.rel (0) target = $region113
    $region112: #{gnn_lstm2_forward.1} parent=1 // pred_region
      %7959 = dma.done [#allocation8], 128
    $region113: #{gnn_lstm2_forward.1} parent=1 // pred_fallthru
      _
    %7960 = vsyncpa [#allocation3], 1
    %7961 = vsyncpa [#allocation5], 1
    %7962 = vsyncpa [#allocation8], 1

</llo_original>
